<compile_context>
chip_gen: v7x
topology: tpu7x:2x2x1
jax: 0.10.0
libtpu: 0.0.40
codegen_flags: <defaults>
</compile_context>

<pallas_src>
import math
import functools

import jax
import jax.numpy as jnp
from jax.experimental import pallas as pl
from jax.experimental.pallas import tpu as pltpu


# ----------------------------------------------------------------------------
# Fused TFT-encoder kernel
# ----------------------------------------------------------------------------
def make_tft_kernel(B: int, S: int, D: int, H: int):
    dk = D // H
    scale = 1.0 / math.sqrt(dk)
    N = B * S

    def elu(x):
        # TODO(synk): jnp.expm1 would be slightly more accurate near 0, kept exp-1 for safe lowering.
        return jnp.where(x > 0, x, jnp.exp(x) - 1.0)

    def layer_norm(x, gamma, beta):
        mean = jnp.mean(x, axis=-1, keepdims=True)
        var = jnp.mean((x - mean) ** 2, axis=-1, keepdims=True)
        return (x - mean) * jax.lax.rsqrt(var + 1e-5) * gamma + beta

    def grn(x, w1, b1, w2, b2, w34, b34, gamma, beta, *, fused_skip, ctx_add=None):
        # w1  = [fc1 | skip]   (if fused_skip)   -> one matmul for fc1 and the skip path
        # w34 = [fc4 | fc3]                      -> one matmul for gate and output path
        pre = jnp.dot(x, w1, preferred_element_type=jnp.float32) + b1
        if fused_skip:
            hidden = pre[:, 0:D]
            skip = pre[:, D:2 * D]
        else:
            hidden = pre
            skip = x
        if ctx_add is not None:
            hidden = hidden + ctx_add
        hidden = elu(hidden)
        hidden = jnp.dot(hidden, w2, preferred_element_type=jnp.float32) + b2
        # dropout: identity in eval mode
        go_pre = jnp.dot(hidden, w34, preferred_element_type=jnp.float32) + b34
        gate = jax.nn.sigmoid(go_pre[:, 0:D])       # fc4
        out_lin = go_pre[:, D:2 * D]                # fc3
        return layer_norm(gate * out_lin + skip, gamma, beta)

    def kernel(static_ref, hist_ref, pe_ref, sel_ref,
               ss_w1s, ss_b1s, ss_w2, ss_b2, ss_w34, ss_b34, ss_g, ss_b,
               se_w1, se_b1, se_w2, se_b2, se_w34, se_b34, se_g, se_b,
               hs_w1s, hs_b1s, hs_wctx, hs_w2, hs_b2, hs_w34, hs_b34, hs_g, hs_b,
               w_ih, b_lstm, whh_i, whh_f, whh_g, whh_o,
               w_qkv, w_o, b_o,
               w_hor, b_hor,
               lstm_ref, aw_ref, hT_ref, preds_ref):

        # ---- 1. static variable selection GRN: (B, 10) -> (B, D)
        static_sel = grn(static_ref[...],
                         ss_w1s[...], ss_b1s[...], ss_w2[...], ss_b2[...],
                         ss_w34[...], ss_b34[...], ss_g[...], ss_b[...],
                         fused_skip=True)

        # ---- 2. static encoder GRN: (B, D) -> (B, D)   (in == out -> identity skip)
        static_ctx = grn(static_sel,
                         se_w1[...], se_b1[...], se_w2[...], se_b2[...],
                         se_w34[...], se_b34[...], se_g[...], se_b[...],
                         fused_skip=False)

        # ---- 3. historical variable selection GRN with static context
        # ctx rows reproduce the reference `static_context.repeat(seq_len,1)` pairing with the
        # batch-major flatten via a precomputed one-hot selection matrix (no HBM tile).
        ctx_h = jnp.dot(static_ctx, hs_wctx[...], preferred_element_type=jnp.float32)   # (B, D)
        ctx_rows = jnp.dot(sel_ref[...], ctx_h, preferred_element_type=jnp.float32)     # (N, D)
        hist_sel = grn(hist_ref[...],
                       hs_w1s[...], hs_b1s[...], hs_w2[...], hs_b2[...],
                       hs_w34[...], hs_b34[...], hs_g[...], hs_b[...],
                       fused_skip=True, ctx_add=ctx_rows)                               # (N, D), time-major rows

        # ---- 4. positional encoding + LSTM (in-kernel unrolled recurrence)
        x_all = hist_sel + pe_ref[...]                                                  # (N, D)
        # hoisted input projection for every timestep and every gate in one matmul
        gx = jnp.dot(x_all, w_ih[...], preferred_element_type=jnp.float32) + b_lstm[...]  # (N, 4D)
        # split gate columns ONCE (off the recurrence critical path)
        gx_i = gx[:, 0:D]
        gx_f = gx[:, D:2 * D]
        gx_g = gx[:, 2 * D:3 * D]
        gx_o = gx[:, 3 * D:4 * D]
        wi = whh_i[...]
        wf = whh_f[...]
        wg = whh_g[...]
        wo_hh = whh_o[...]

        h = jnp.zeros((B, D), jnp.float32)
        c = jnp.zeros((B, D), jnp.float32)
        for t in range(S):                               # statically unrolled; rows t*B:(t+1)*B = step t
            r0 = t * B
            gi = jax.nn.sigmoid(gx_i[r0:r0 + B, :] + jnp.dot(h, wi, preferred_element_type=jnp.float32))
            gf = jax.nn.sigmoid(gx_f[r0:r0 + B, :] + jnp.dot(h, wf, preferred_element_type=jnp.float32))
            gg = jnp.tanh(gx_g[r0:r0 + B, :] + jnp.dot(h, wg, preferred_element_type=jnp.float32))
            g_o = jax.nn.sigmoid(gx_o[r0:r0 + B, :] + jnp.dot(h, wo_hh, preferred_element_type=jnp.float32))
            c = gf * c + gi * gg
            h = g_o * jnp.tanh(c)
            # scatter this step's hidden state into the batch-major output rows
            for bb in range(B):
                row = bb * S + t
                lstm_ref[row:row + 1, :] = h[bb:bb + 1, :]
        hT_ref[...] = h

        # ---- 5. interpretable multi-head self-attention over the LSTM outputs
        x_att = lstm_ref[...]                                                    # (N, D), batch-major
        qkv = jnp.dot(x_att, w_qkv[...], preferred_element_type=jnp.float32)     # (N, 3D) fused QKV
        q3 = qkv[:, 0:D].reshape(B, S, D)
        k3 = qkv[:, D:2 * D].reshape(B, S, D)
        v3 = qkv[:, 2 * D:3 * D].reshape(B, S, D)
        # stack heads on the leading batch axis: n = head * B + batch
        qh = jnp.concatenate([q3[:, :, hh * dk:(hh + 1) * dk] for hh in range(H)], axis=0)  # (H*B, S, dk)
        kh = jnp.concatenate([k3[:, :, hh * dk:(hh + 1) * dk] for hh in range(H)], axis=0)
        vh = jnp.concatenate([v3[:, :, hh * dk:(hh + 1) * dk] for hh in range(H)], axis=0)

        s_sc = jnp.einsum('nqe,nke->nqk', qh, kh, preferred_element_type=jnp.float32) * scale
        s_sc = s_sc - jnp.max(s_sc, axis=-1, keepdims=True)
        p = jnp.exp(s_sc)
        p = p * pl.reciprocal(jnp.sum(p, axis=-1, keepdims=True), approx=True)   # one softmax, all heads

        # head-averaged attention weights
        aw = p[0:B]
        for hh in range(1, H):
            aw = aw + p[hh * B:(hh + 1) * B]
        aw_ref[...] = aw * (1.0 / H)

        # per-head context, output projection accumulated per head (no lane concat)
        ctx = jnp.einsum('nqk,nke->nqe', p, vh, preferred_element_type=jnp.float32)      # (H*B, S, dk)
        wo = w_o[...]
        att = None
        for hh in range(H):
            term = jnp.einsum('bse,ed->bsd', ctx[hh * B:(hh + 1) * B],
                              wo[hh * dk:(hh + 1) * dk, :],
                              preferred_element_type=jnp.float32)
            att = term if att is None else att + term
        att = att + b_o[...]                                                     # (B, S, D)

        # ---- 6. horizon projections for all positions (wrapper slices the last step)
        preds_ref[...] = (jnp.einsum('bsd,dn->bsn', att, w_hor[...],
                                     preferred_element_type=jnp.float32) + b_hor[...])

    return kernel


# ----------------------------------------------------------------------------
# Forward wrapper: one pallas_call for the whole encoder
# ----------------------------------------------------------------------------
def tft_encoder_forward(params, static_features, historical_features, *, config):
    B, S, F_hist = historical_features.shape
    F_static = static_features.shape[1]
    D = config["d_model"]
    H = config["n_heads"]
    horizons = config["prediction_horizons"]
    n_h = len(horizons)
    N = B * S

    # time-major flatten of the historical features: row j <-> (time j//B, batch j%B)
    hist_tm = jnp.transpose(historical_features, (1, 0, 2)).reshape(N, F_hist)
    # positional encoding replicated per batch row (row j gets pe[j // B])
    pe_rep = jnp.repeat(params["pe"][:S], B, axis=0)
    # static-context selection matrix: reference pairs flat row i (= b*S + s) with context[i % B]
    j = jnp.arange(N)
    orig_row = (j % B) * S + (j // B)
    sel = jax.nn.one_hot(orig_row % B, B, dtype=jnp.float32)                    # (N, B)

    ss = params["static_sel_grn"]
    se = params["static_enc_grn"]
    hs = params["hist_sel_grn"]
    lstm = params["lstm"]
    attn = params["attn"]

    args = [
        static_features, hist_tm, pe_rep, sel,
        ss["w1s"], ss["b1s"], ss["w2"], ss["b2"], ss["w34"], ss["b34"], ss["gamma"], ss["beta"],
        se["w1s"], se["b1s"], se["w2"], se["b2"], se["w34"], se["b34"], se["gamma"], se["beta"],
        hs["w1s"], hs["b1s"], hs["w_ctx"], hs["w2"], hs["b2"], hs["w34"], hs["b34"], hs["gamma"], hs["beta"],
        lstm["w_ih"], lstm["b"], lstm["whh_i"], lstm["whh_f"], lstm["whh_g"], lstm["whh_o"],
        attn["w_qkv"], attn["w_o"], attn["b_o"],
        params["horizon_w"], params["horizon_b"],
    ]

    vmem = lambda: pl.BlockSpec(memory_space=pltpu.MemorySpace.VMEM)
    lstm2d, attn_w, hT, preds3 = pl.pallas_call(
        make_tft_kernel(B, S, D, H),
        out_shape=[
            jax.ShapeDtypeStruct((N, D), jnp.float32),      # lstm output, batch-major rows
            jax.ShapeDtypeStruct((B, S, S), jnp.float32),   # head-mean attention weights
            jax.ShapeDtypeStruct((B, D), jnp.float32),      # final hidden state
            jax.ShapeDtypeStruct((B, S, n_h), jnp.float32), # horizon projections (all positions)
        ],
        in_specs=[vmem() for _ in args],
        out_specs=[vmem() for _ in range(4)],
    )(*args)

    lstm_output = lstm2d.reshape(B, S, D)
    preds_last = preds3[:, -1, :]
    predictions = {f"horizon_{h}": preds_last[:, i:i + 1] for i, h in enumerate(horizons)}

    return {
        "predictions": predictions,
        "attention_weights": attn_w,
        "static_weights": jnp.full((B, F_static), 1.0 / F_static, jnp.float32),
        "historical_weights": jnp.full((B, S, F_hist), 1.0 / F_hist, jnp.float32),
        "lstm_output": lstm_output,
        "final_hidden": hT.reshape(1, B, D),
    }


# ----------------------------------------------------------------------------
# Parameter initialization (deterministic, synthetic; weights stored kernel-ready)
# ----------------------------------------------------------------------------
def _init_linear(key, in_size, out_size, scale=0.1):
    kw, kb = jax.random.split(key)
    w = jax.random.normal(kw, (in_size, out_size), jnp.float32) * scale
    b = jax.random.normal(kb, (1, out_size), jnp.float32) * scale
    return w, b


def init_grn_params(key, in_size, hidden, out_size, has_context=False):
    keys = jax.random.split(key, 6)
    w1, b1 = _init_linear(keys[0], in_size, hidden)
    w2, b2 = _init_linear(keys[1], hidden, hidden)
    w3, b3 = _init_linear(keys[2], hidden, out_size)   # fc3 (output path)
    w4, b4 = _init_linear(keys[3], hidden, out_size)   # fc4 (gate path)
    p = {}
    if in_size != out_size:
        w_skip, b_skip = _init_linear(keys[4], in_size, out_size)
        p["w1s"] = jnp.concatenate([w1, w_skip], axis=1)      # x @ [fc1 | skip]
        p["b1s"] = jnp.concatenate([b1, b_skip], axis=1)
    else:
        p["w1s"] = w1
        p["b1s"] = b1
    p["w2"], p["b2"] = w2, b2
    p["w34"] = jnp.concatenate([w4, w3], axis=1)              # hidden @ [fc4 | fc3]
    p["b34"] = jnp.concatenate([b4, b3], axis=1)
    if has_context:
        p["w_ctx"] = jax.random.normal(keys[5], (out_size, hidden), jnp.float32) * 0.1
    p["gamma"] = jnp.ones((1, out_size), jnp.float32)
    p["beta"] = jnp.zeros((1, out_size), jnp.float32)
    return p


def init_lstm_params(key, D, scale=0.1):
    k1, k2, k3, k4 = jax.random.split(key, 4)
    w_ih = jax.random.normal(k1, (D, 4 * D), jnp.float32) * scale   # gate order i|f|g|o
    w_hh = jax.random.normal(k2, (D, 4 * D), jnp.float32) * scale
    b = (jax.random.normal(k3, (1, 4 * D), jnp.float32) * scale
         + jax.random.normal(k4, (1, 4 * D), jnp.float32) * scale)  # b_ih + b_hh
    return {
        "w_ih": w_ih, "b": b,
        "whh_i": w_hh[:, 0:D], "whh_f": w_hh[:, D:2 * D],
        "whh_g": w_hh[:, 2 * D:3 * D], "whh_o": w_hh[:, 3 * D:4 * D],
    }


def init_attention_params(key, D, scale=0.1):
    k1, k2, k3, k4, k5 = jax.random.split(key, 5)
    w_q = jax.random.normal(k1, (D, D), jnp.float32) * scale
    w_k = jax.random.normal(k2, (D, D), jnp.float32) * scale
    w_v = jax.random.normal(k3, (D, D), jnp.float32) * scale
    w_o = jax.random.normal(k4, (D, D), jnp.float32) * scale
    b_o = jax.random.normal(k5, (1, D), jnp.float32) * scale
    return {"w_qkv": jnp.concatenate([w_q, w_k, w_v], axis=1), "w_o": w_o, "b_o": b_o}


def make_positional_encoding(max_len, d_model):
    position = jnp.arange(max_len, dtype=jnp.float32)[:, None]
    div_term = jnp.exp(jnp.arange(0, d_model, 2, dtype=jnp.float32)
                       * (-math.log(10000.0) / d_model))
    pe = jnp.zeros((max_len, d_model), jnp.float32)
    pe = pe.at[:, 0::2].set(jnp.sin(position * div_term))
    pe = pe.at[:, 1::2].set(jnp.cos(position * div_term))
    return pe


# ----------------------------------------------------------------------------
# Main
# ----------------------------------------------------------------------------
if __name__ == "__main__":
    config = {
        "d_model": 32,
        "n_heads": 4,
        "dropout": 0.1,               # identity in eval-mode forward
        "sequence_length": 8,
        "prediction_horizons": [1, 5],
    }
    B = 2
    S = config["sequence_length"]
    D = config["d_model"]

    key = jax.random.PRNGKey(0)
    (k_ss, k_hs, k_se, k_lstm, k_attn, k_hor, k_in1, k_in2) = jax.random.split(key, 8)

    params = {
        # VariableSelection.flattened_grn for static features (context layer unused in forward)
        "static_sel_grn": init_grn_params(k_ss, 10, D, D),
        # VariableSelection.flattened_grn for historical features (uses static context)
        "hist_sel_grn": init_grn_params(k_hs, 20, D, D, has_context=True),
        # static encoder GRN (input == output -> identity skip)
        "static_enc_grn": init_grn_params(k_se, D, D, D),
        "lstm": init_lstm_params(k_lstm, D),
        "attn": init_attention_params(k_attn, D),
        "pe": make_positional_encoding(config["sequence_length"], D),
    }
    n_h = len(config["prediction_horizons"])
    kw, kb = jax.random.split(k_hor)
    params["horizon_w"] = jax.random.normal(kw, (D, n_h), jnp.float32) * 0.1   # fused per-horizon Linear(D,1)
    params["horizon_b"] = jax.random.normal(kb, (1, n_h), jnp.float32) * 0.1

    static_features = jax.random.normal(k_in1, (B, 10), jnp.float32)
    historical_features = jax.random.normal(k_in2, (B, S, 20), jnp.float32)

    fwd = jax.jit(functools.partial(tft_encoder_forward, config=config))
    out = fwd(params, static_features, historical_features)
    out = jax.block_until_ready(out)

    # basic sanity on shapes / values
    assert out["lstm_output"].shape == (B, S, D)
    assert out["attention_weights"].shape == (B, S, S)
    assert out["predictions"]["horizon_1"].shape == (B, 1)
    assert out["predictions"]["horizon_5"].shape == (B, 1)
    assert out["final_hidden"].shape == (1, B, D)
    assert out["static_weights"].shape == (B, 10)
    assert out["historical_weights"].shape == (B, S, 20)
    for leaf in jax.tree_util.tree_leaves(out):
        assert bool(jnp.all(jnp.isfinite(leaf)))

    print("KERNEL_OK")
</pallas_src>

<mosaic_0001>
module attributes {stable_mosaic.version = 11 : i64} {
  func.func @kernel(%arg0: memref<2x10xf32, #tpu.memory_space<vmem>>, %arg1: memref<16x20xf32, #tpu.memory_space<vmem>>, %arg2: memref<16x32xf32, #tpu.memory_space<vmem>>, %arg3: memref<16x2xf32, #tpu.memory_space<vmem>>, %arg4: memref<10x64xf32, #tpu.memory_space<vmem>>, %arg5: memref<1x64xf32, #tpu.memory_space<vmem>>, %arg6: memref<32x32xf32, #tpu.memory_space<vmem>>, %arg7: memref<1x32xf32, #tpu.memory_space<vmem>>, %arg8: memref<32x64xf32, #tpu.memory_space<vmem>>, %arg9: memref<1x64xf32, #tpu.memory_space<vmem>>, %arg10: memref<1x32xf32, #tpu.memory_space<vmem>>, %arg11: memref<1x32xf32, #tpu.memory_space<vmem>>, %arg12: memref<32x32xf32, #tpu.memory_space<vmem>>, %arg13: memref<1x32xf32, #tpu.memory_space<vmem>>, %arg14: memref<32x32xf32, #tpu.memory_space<vmem>>, %arg15: memref<1x32xf32, #tpu.memory_space<vmem>>, %arg16: memref<32x64xf32, #tpu.memory_space<vmem>>, %arg17: memref<1x64xf32, #tpu.memory_space<vmem>>, %arg18: memref<1x32xf32, #tpu.memory_space<vmem>>, %arg19: memref<1x32xf32, #tpu.memory_space<vmem>>, %arg20: memref<20x64xf32, #tpu.memory_space<vmem>>, %arg21: memref<1x64xf32, #tpu.memory_space<vmem>>, %arg22: memref<32x32xf32, #tpu.memory_space<vmem>>, %arg23: memref<32x32xf32, #tpu.memory_space<vmem>>, %arg24: memref<1x32xf32, #tpu.memory_space<vmem>>, %arg25: memref<32x64xf32, #tpu.memory_space<vmem>>, %arg26: memref<1x64xf32, #tpu.memory_space<vmem>>, %arg27: memref<1x32xf32, #tpu.memory_space<vmem>>, %arg28: memref<1x32xf32, #tpu.memory_space<vmem>>, %arg29: memref<32x128xf32, #tpu.memory_space<vmem>>, %arg30: memref<1x128xf32, #tpu.memory_space<vmem>>, %arg31: memref<32x32xf32, #tpu.memory_space<vmem>>, %arg32: memref<32x32xf32, #tpu.memory_space<vmem>>, %arg33: memref<32x32xf32, #tpu.memory_space<vmem>>, %arg34: memref<32x32xf32, #tpu.memory_space<vmem>>, %arg35: memref<32x96xf32, #tpu.memory_space<vmem>>, %arg36: memref<32x32xf32, #tpu.memory_space<vmem>>, %arg37: memref<1x32xf32, #tpu.memory_space<vmem>>, %arg38: memref<32x2xf32, #tpu.memory_space<vmem>>, %arg39: memref<1x2xf32, #tpu.memory_space<vmem>>, %arg40: memref<16x32xf32, #tpu.memory_space<vmem>>, %arg41: memref<2x8x8xf32, #tpu.memory_space<vmem>>, %arg42: memref<2x32xf32, #tpu.memory_space<vmem>>, %arg43: memref<2x8x2xf32, #tpu.memory_space<vmem>>) attributes {dimension_semantics = [], scalar_prefetch = 0 : i64, scratch_operands = 0 : i64, tpu.core_type = #tpu.core_type<tc>} {
    %c0 = arith.constant 0 : index
    %c0_0 = arith.constant 0 : index
    %0 = vector.load %arg0[%c0, %c0_0] : memref<2x10xf32, #tpu.memory_space<vmem>>, vector<2x10xf32>
    %c0_1 = arith.constant 0 : index
    %c0_2 = arith.constant 0 : index
    %1 = vector.load %arg4[%c0_1, %c0_2] : memref<10x64xf32, #tpu.memory_space<vmem>>, vector<10x64xf32>
    %c0_3 = arith.constant 0 : index
    %c0_4 = arith.constant 0 : index
    %2 = vector.load %arg5[%c0_3, %c0_4] : memref<1x64xf32, #tpu.memory_space<vmem>>, vector<1x64xf32>
    %c0_5 = arith.constant 0 : index
    %c0_6 = arith.constant 0 : index
    %3 = vector.load %arg6[%c0_5, %c0_6] : memref<32x32xf32, #tpu.memory_space<vmem>>, vector<32x32xf32>
    %c0_7 = arith.constant 0 : index
    %c0_8 = arith.constant 0 : index
    %4 = vector.load %arg7[%c0_7, %c0_8] : memref<1x32xf32, #tpu.memory_space<vmem>>, vector<1x32xf32>
    %c0_9 = arith.constant 0 : index
    %c0_10 = arith.constant 0 : index
    %5 = vector.load %arg8[%c0_9, %c0_10] : memref<32x64xf32, #tpu.memory_space<vmem>>, vector<32x64xf32>
    %c0_11 = arith.constant 0 : index
    %c0_12 = arith.constant 0 : index
    %6 = vector.load %arg9[%c0_11, %c0_12] : memref<1x64xf32, #tpu.memory_space<vmem>>, vector<1x64xf32>
    %c0_13 = arith.constant 0 : index
    %c0_14 = arith.constant 0 : index
    %7 = vector.load %arg10[%c0_13, %c0_14] : memref<1x32xf32, #tpu.memory_space<vmem>>, vector<1x32xf32>
    %c0_15 = arith.constant 0 : index
    %c0_16 = arith.constant 0 : index
    %8 = vector.load %arg11[%c0_15, %c0_16] : memref<1x32xf32, #tpu.memory_space<vmem>>, vector<1x32xf32>
    %cst = arith.constant dense<0.000000e+00> : vector<2x64xf32>
    %9 = tpu.matmul %0, %1, %cst {dimension_numbers = #tpu.dot_dimension_numbers<[1], [0], [0], [1], [0, 0, 1, 1], [], []>} : vector<2x10xf32>, vector<10x64xf32>, vector<2x64xf32> -> vector<2x64xf32>
    %10 = vector.broadcast %2 : vector<1x64xf32> to vector<2x64xf32>
    %11 = arith.addf %9, %10 : vector<2x64xf32>
    %12 = vector.extract_strided_slice %11 {offsets = [0, 0], sizes = [2, 32], strides = [1, 1]} : vector<2x64xf32> to vector<2x32xf32>
    %13 = vector.extract_strided_slice %11 {offsets = [0, 32], sizes = [2, 32], strides = [1, 1]} : vector<2x64xf32> to vector<2x32xf32>
    %cst_17 = arith.constant 0.000000e+00 : f32
    %14 = vector.broadcast %cst_17 : f32 to vector<2x32xf32>
    %15 = arith.cmpf ogt, %12, %14 : vector<2x32xf32>
    %16 = math.exp %12 : vector<2x32xf32>
    %cst_18 = arith.constant 1.000000e+00 : f32
    %17 = vector.broadcast %cst_18 : f32 to vector<2x32xf32>
    %18 = arith.subf %16, %17 : vector<2x32xf32>
    %19 = arith.select %15, %12, %18 : vector<2x32xi1>, vector<2x32xf32>
    %cst_19 = arith.constant dense<0.000000e+00> : vector<2x32xf32>
    %20 = tpu.matmul %19, %3, %cst_19 {dimension_numbers = #tpu.dot_dimension_numbers<[1], [0], [0], [1], [0, 0, 1, 1], [], []>} : vector<2x32xf32>, vector<32x32xf32>, vector<2x32xf32> -> vector<2x32xf32>
    %21 = vector.broadcast %4 : vector<1x32xf32> to vector<2x32xf32>
    %22 = arith.addf %20, %21 : vector<2x32xf32>
    %cst_20 = arith.constant dense<0.000000e+00> : vector<2x64xf32>
    %23 = tpu.matmul %22, %5, %cst_20 {dimension_numbers = #tpu.dot_dimension_numbers<[1], [0], [0], [1], [0, 0, 1, 1], [], []>} : vector<2x32xf32>, vector<32x64xf32>, vector<2x64xf32> -> vector<2x64xf32>
    %24 = vector.broadcast %6 : vector<1x64xf32> to vector<2x64xf32>
    %25 = arith.addf %23, %24 : vector<2x64xf32>
    %26 = vector.extract_strided_slice %25 {offsets = [0, 0], sizes = [2, 32], strides = [1, 1]} : vector<2x64xf32> to vector<2x32xf32>
    %27 = arith.negf %26 : vector<2x32xf32>
    %28 = math.exp %27 : vector<2x32xf32>
    %cst_21 = arith.constant 1.000000e+00 : f32
    %29 = vector.broadcast %cst_21 : f32 to vector<2x32xf32>
    %30 = arith.addf %29, %28 : vector<2x32xf32>
    %31 = arith.divf %29, %30 : vector<2x32xf32>
    %32 = vector.extract_strided_slice %25 {offsets = [0, 32], sizes = [2, 32], strides = [1, 1]} : vector<2x64xf32> to vector<2x32xf32>
    %33 = arith.mulf %31, %32 : vector<2x32xf32>
    %34 = arith.addf %33, %13 : vector<2x32xf32>
    %cst_22 = arith.constant dense<0.000000e+00> : vector<2xf32>
    %35 = vector.multi_reduction <add>, %34, %cst_22 [1] : vector<2x32xf32> to vector<2xf32>
    %36 = vector.shape_cast %35 : vector<2xf32> to vector<2x1xf32>
    %cst_23 = arith.constant 3.200000e+01 : f32
    %37 = vector.broadcast %cst_23 : f32 to vector<2x1xf32>
    %38 = arith.divf %36, %37 : vector<2x1xf32>
    %39 = vector.broadcast %38 : vector<2x1xf32> to vector<2x32xf32>
    %40 = arith.subf %34, %39 : vector<2x32xf32>
    %41 = arith.mulf %40, %40 : vector<2x32xf32>
    %cst_24 = arith.constant dense<0.000000e+00> : vector<2xf32>
    %42 = vector.multi_reduction <add>, %41, %cst_24 [1] : vector<2x32xf32> to vector<2xf32>
    %43 = vector.shape_cast %42 : vector<2xf32> to vector<2x1xf32>
    %cst_25 = arith.constant 3.200000e+01 : f32
    %44 = vector.broadcast %cst_25 : f32 to vector<2x1xf32>
    %45 = arith.divf %43, %44 : vector<2x1xf32>
    %46 = vector.broadcast %38 : vector<2x1xf32> to vector<2x32xf32>
    %47 = arith.subf %34, %46 : vector<2x32xf32>
    %cst_26 = arith.constant 9.99999974E-6 : f32
    %48 = vector.broadcast %cst_26 : f32 to vector<2x1xf32>
    %49 = arith.addf %45, %48 : vector<2x1xf32>
    %50 = math.rsqrt %49 : vector<2x1xf32>
    %51 = vector.broadcast %50 : vector<2x1xf32> to vector<2x32xf32>
    %52 = arith.mulf %47, %51 : vector<2x32xf32>
    %53 = vector.broadcast %7 : vector<1x32xf32> to vector<2x32xf32>
    %54 = arith.mulf %52, %53 : vector<2x32xf32>
    %55 = vector.broadcast %8 : vector<1x32xf32> to vector<2x32xf32>
    %56 = arith.addf %54, %55 : vector<2x32xf32>
    %c0_27 = arith.constant 0 : index
    %c0_28 = arith.constant 0 : index
    %57 = vector.load %arg12[%c0_27, %c0_28] : memref<32x32xf32, #tpu.memory_space<vmem>>, vector<32x32xf32>
    %c0_29 = arith.constant 0 : index
    %c0_30 = arith.constant 0 : index
    %58 = vector.load %arg13[%c0_29, %c0_30] : memref<1x32xf32, #tpu.memory_space<vmem>>, vector<1x32xf32>
    %c0_31 = arith.constant 0 : index
    %c0_32 = arith.constant 0 : index
    %59 = vector.load %arg14[%c0_31, %c0_32] : memref<32x32xf32, #tpu.memory_space<vmem>>, vector<32x32xf32>
    %c0_33 = arith.constant 0 : index
    %c0_34 = arith.constant 0 : index
    %60 = vector.load %arg15[%c0_33, %c0_34] : memref<1x32xf32, #tpu.memory_space<vmem>>, vector<1x32xf32>
    %c0_35 = arith.constant 0 : index
    %c0_36 = arith.constant 0 : index
    %61 = vector.load %arg16[%c0_35, %c0_36] : memref<32x64xf32, #tpu.memory_space<vmem>>, vector<32x64xf32>
    %c0_37 = arith.constant 0 : index
    %c0_38 = arith.constant 0 : index
    %62 = vector.load %arg17[%c0_37, %c0_38] : memref<1x64xf32, #tpu.memory_space<vmem>>, vector<1x64xf32>
    %c0_39 = arith.constant 0 : index
    %c0_40 = arith.constant 0 : index
    %63 = vector.load %arg18[%c0_39, %c0_40] : memref<1x32xf32, #tpu.memory_space<vmem>>, vector<1x32xf32>
    %c0_41 = arith.constant 0 : index
    %c0_42 = arith.constant 0 : index
    %64 = vector.load %arg19[%c0_41, %c0_42] : memref<1x32xf32, #tpu.memory_space<vmem>>, vector<1x32xf32>
    %cst_43 = arith.constant dense<0.000000e+00> : vector<2x32xf32>
    %65 = tpu.matmul %56, %57, %cst_43 {dimension_numbers = #tpu.dot_dimension_numbers<[1], [0], [0], [1], [0, 0, 1, 1], [], []>} : vector<2x32xf32>, vector<32x32xf32>, vector<2x32xf32> -> vector<2x32xf32>
    %66 = vector.broadcast %58 : vector<1x32xf32> to vector<2x32xf32>
    %67 = arith.addf %65, %66 : vector<2x32xf32>
    %cst_44 = arith.constant 0.000000e+00 : f32
    %68 = vector.broadcast %cst_44 : f32 to vector<2x32xf32>
    %69 = arith.cmpf ogt, %67, %68 : vector<2x32xf32>
    %70 = math.exp %67 : vector<2x32xf32>
    %cst_45 = arith.constant 1.000000e+00 : f32
    %71 = vector.broadcast %cst_45 : f32 to vector<2x32xf32>
    %72 = arith.subf %70, %71 : vector<2x32xf32>
    %73 = arith.select %69, %67, %72 : vector<2x32xi1>, vector<2x32xf32>
    %cst_46 = arith.constant dense<0.000000e+00> : vector<2x32xf32>
    %74 = tpu.matmul %73, %59, %cst_46 {dimension_numbers = #tpu.dot_dimension_numbers<[1], [0], [0], [1], [0, 0, 1, 1], [], []>} : vector<2x32xf32>, vector<32x32xf32>, vector<2x32xf32> -> vector<2x32xf32>
    %75 = vector.broadcast %60 : vector<1x32xf32> to vector<2x32xf32>
    %76 = arith.addf %74, %75 : vector<2x32xf32>
    %cst_47 = arith.constant dense<0.000000e+00> : vector<2x64xf32>
    %77 = tpu.matmul %76, %61, %cst_47 {dimension_numbers = #tpu.dot_dimension_numbers<[1], [0], [0], [1], [0, 0, 1, 1], [], []>} : vector<2x32xf32>, vector<32x64xf32>, vector<2x64xf32> -> vector<2x64xf32>
    %78 = vector.broadcast %62 : vector<1x64xf32> to vector<2x64xf32>
    %79 = arith.addf %77, %78 : vector<2x64xf32>
    %80 = vector.extract_strided_slice %79 {offsets = [0, 0], sizes = [2, 32], strides = [1, 1]} : vector<2x64xf32> to vector<2x32xf32>
    %81 = arith.negf %80 : vector<2x32xf32>
    %82 = math.exp %81 : vector<2x32xf32>
    %cst_48 = arith.constant 1.000000e+00 : f32
    %83 = vector.broadcast %cst_48 : f32 to vector<2x32xf32>
    %84 = arith.addf %83, %82 : vector<2x32xf32>
    %85 = arith.divf %83, %84 : vector<2x32xf32>
    %86 = vector.extract_strided_slice %79 {offsets = [0, 32], sizes = [2, 32], strides = [1, 1]} : vector<2x64xf32> to vector<2x32xf32>
    %87 = arith.mulf %85, %86 : vector<2x32xf32>
    %88 = arith.addf %87, %56 : vector<2x32xf32>
    %cst_49 = arith.constant dense<0.000000e+00> : vector<2xf32>
    %89 = vector.multi_reduction <add>, %88, %cst_49 [1] : vector<2x32xf32> to vector<2xf32>
    %90 = vector.shape_cast %89 : vector<2xf32> to vector<2x1xf32>
    %cst_50 = arith.constant 3.200000e+01 : f32
    %91 = vector.broadcast %cst_50 : f32 to vector<2x1xf32>
    %92 = arith.divf %90, %91 : vector<2x1xf32>
    %93 = vector.broadcast %92 : vector<2x1xf32> to vector<2x32xf32>
    %94 = arith.subf %88, %93 : vector<2x32xf32>
    %95 = arith.mulf %94, %94 : vector<2x32xf32>
    %cst_51 = arith.constant dense<0.000000e+00> : vector<2xf32>
    %96 = vector.multi_reduction <add>, %95, %cst_51 [1] : vector<2x32xf32> to vector<2xf32>
    %97 = vector.shape_cast %96 : vector<2xf32> to vector<2x1xf32>
    %cst_52 = arith.constant 3.200000e+01 : f32
    %98 = vector.broadcast %cst_52 : f32 to vector<2x1xf32>
    %99 = arith.divf %97, %98 : vector<2x1xf32>
    %100 = vector.broadcast %92 : vector<2x1xf32> to vector<2x32xf32>
    %101 = arith.subf %88, %100 : vector<2x32xf32>
    %cst_53 = arith.constant 9.99999974E-6 : f32
    %102 = vector.broadcast %cst_53 : f32 to vector<2x1xf32>
    %103 = arith.addf %99, %102 : vector<2x1xf32>
    %104 = math.rsqrt %103 : vector<2x1xf32>
    %105 = vector.broadcast %104 : vector<2x1xf32> to vector<2x32xf32>
    %106 = arith.mulf %101, %105 : vector<2x32xf32>
    %107 = vector.broadcast %63 : vector<1x32xf32> to vector<2x32xf32>
    %108 = arith.mulf %106, %107 : vector<2x32xf32>
    %109 = vector.broadcast %64 : vector<1x32xf32> to vector<2x32xf32>
    %110 = arith.addf %108, %109 : vector<2x32xf32>
    %c0_54 = arith.constant 0 : index
    %c0_55 = arith.constant 0 : index
    %111 = vector.load %arg22[%c0_54, %c0_55] : memref<32x32xf32, #tpu.memory_space<vmem>>, vector<32x32xf32>
    %cst_56 = arith.constant dense<0.000000e+00> : vector<2x32xf32>
    %112 = tpu.matmul %110, %111, %cst_56 {dimension_numbers = #tpu.dot_dimension_numbers<[1], [0], [0], [1], [0, 0, 1, 1], [], []>} : vector<2x32xf32>, vector<32x32xf32>, vector<2x32xf32> -> vector<2x32xf32>
    %c0_57 = arith.constant 0 : index
    %c0_58 = arith.constant 0 : index
    %113 = vector.load %arg3[%c0_57, %c0_58] : memref<16x2xf32, #tpu.memory_space<vmem>>, vector<16x2xf32>
    %cst_59 = arith.constant dense<0.000000e+00> : vector<16x32xf32>
    %114 = tpu.matmul %113, %112, %cst_59 {dimension_numbers = #tpu.dot_dimension_numbers<[1], [0], [0], [1], [0, 0, 1, 1], [], []>} : vector<16x2xf32>, vector<2x32xf32>, vector<16x32xf32> -> vector<16x32xf32>
    %c0_60 = arith.constant 0 : index
    %c0_61 = arith.constant 0 : index
    %115 = vector.load %arg1[%c0_60, %c0_61] : memref<16x20xf32, #tpu.memory_space<vmem>>, vector<16x20xf32>
    %c0_62 = arith.constant 0 : index
    %c0_63 = arith.constant 0 : index
    %116 = vector.load %arg20[%c0_62, %c0_63] : memref<20x64xf32, #tpu.memory_space<vmem>>, vector<20x64xf32>
    %c0_64 = arith.constant 0 : index
    %c0_65 = arith.constant 0 : index
    %117 = vector.load %arg21[%c0_64, %c0_65] : memref<1x64xf32, #tpu.memory_space<vmem>>, vector<1x64xf32>
    %c0_66 = arith.constant 0 : index
    %c0_67 = arith.constant 0 : index
    %118 = vector.load %arg23[%c0_66, %c0_67] : memref<32x32xf32, #tpu.memory_space<vmem>>, vector<32x32xf32>
    %c0_68 = arith.constant 0 : index
    %c0_69 = arith.constant 0 : index
    %119 = vector.load %arg24[%c0_68, %c0_69] : memref<1x32xf32, #tpu.memory_space<vmem>>, vector<1x32xf32>
    %c0_70 = arith.constant 0 : index
    %c0_71 = arith.constant 0 : index
    %120 = vector.load %arg25[%c0_70, %c0_71] : memref<32x64xf32, #tpu.memory_space<vmem>>, vector<32x64xf32>
    %c0_72 = arith.constant 0 : index
    %c0_73 = arith.constant 0 : index
    %121 = vector.load %arg26[%c0_72, %c0_73] : memref<1x64xf32, #tpu.memory_space<vmem>>, vector<1x64xf32>
    %c0_74 = arith.constant 0 : index
    %c0_75 = arith.constant 0 : index
    %122 = vector.load %arg27[%c0_74, %c0_75] : memref<1x32xf32, #tpu.memory_space<vmem>>, vector<1x32xf32>
    %c0_76 = arith.constant 0 : index
    %c0_77 = arith.constant 0 : index
    %123 = vector.load %arg28[%c0_76, %c0_77] : memref<1x32xf32, #tpu.memory_space<vmem>>, vector<1x32xf32>
    %cst_78 = arith.constant dense<0.000000e+00> : vector<16x64xf32>
    %124 = tpu.matmul %115, %116, %cst_78 {dimension_numbers = #tpu.dot_dimension_numbers<[1], [0], [0], [1], [0, 0, 1, 1], [], []>} : vector<16x20xf32>, vector<20x64xf32>, vector<16x64xf32> -> vector<16x64xf32>
    %125 = vector.broadcast %117 : vector<1x64xf32> to vector<16x64xf32>
    %126 = arith.addf %124, %125 : vector<16x64xf32>
    %127 = vector.extract_strided_slice %126 {offsets = [0, 0], sizes = [16, 32], strides = [1, 1]} : vector<16x64xf32> to vector<16x32xf32>
    %128 = vector.extract_strided_slice %126 {offsets = [0, 32], sizes = [16, 32], strides = [1, 1]} : vector<16x64xf32> to vector<16x32xf32>
    %129 = arith.addf %127, %114 : vector<16x32xf32>
    %cst_79 = arith.constant 0.000000e+00 : f32
    %130 = vector.broadcast %cst_79 : f32 to vector<16x32xf32>
    %131 = arith.cmpf ogt, %129, %130 : vector<16x32xf32>
    %132 = math.exp %129 : vector<16x32xf32>
    %cst_80 = arith.constant 1.000000e+00 : f32
    %133 = vector.broadcast %cst_80 : f32 to vector<16x32xf32>
    %134 = arith.subf %132, %133 : vector<16x32xf32>
    %135 = arith.select %131, %129, %134 : vector<16x32xi1>, vector<16x32xf32>
    %cst_81 = arith.constant dense<0.000000e+00> : vector<16x32xf32>
    %136 = tpu.matmul %135, %118, %cst_81 {dimension_numbers = #tpu.dot_dimension_numbers<[1], [0], [0], [1], [0, 0, 1, 1], [], []>} : vector<16x32xf32>, vector<32x32xf32>, vector<16x32xf32> -> vector<16x32xf32>
    %137 = vector.broadcast %119 : vector<1x32xf32> to vector<16x32xf32>
    %138 = arith.addf %136, %137 : vector<16x32xf32>
    %cst_82 = arith.constant dense<0.000000e+00> : vector<16x64xf32>
    %139 = tpu.matmul %138, %120, %cst_82 {dimension_numbers = #tpu.dot_dimension_numbers<[1], [0], [0], [1], [0, 0, 1, 1], [], []>} : vector<16x32xf32>, vector<32x64xf32>, vector<16x64xf32> -> vector<16x64xf32>
    %140 = vector.broadcast %121 : vector<1x64xf32> to vector<16x64xf32>
    %141 = arith.addf %139, %140 : vector<16x64xf32>
    %142 = vector.extract_strided_slice %141 {offsets = [0, 0], sizes = [16, 32], strides = [1, 1]} : vector<16x64xf32> to vector<16x32xf32>
    %143 = arith.negf %142 : vector<16x32xf32>
    %144 = math.exp %143 : vector<16x32xf32>
    %cst_83 = arith.constant 1.000000e+00 : f32
    %145 = vector.broadcast %cst_83 : f32 to vector<16x32xf32>
    %146 = arith.addf %145, %144 : vector<16x32xf32>
    %147 = arith.divf %145, %146 : vector<16x32xf32>
    %148 = vector.extract_strided_slice %141 {offsets = [0, 32], sizes = [16, 32], strides = [1, 1]} : vector<16x64xf32> to vector<16x32xf32>
    %149 = arith.mulf %147, %148 : vector<16x32xf32>
    %150 = arith.addf %149, %128 : vector<16x32xf32>
    %cst_84 = arith.constant dense<0.000000e+00> : vector<16xf32>
    %151 = vector.multi_reduction <add>, %150, %cst_84 [1] : vector<16x32xf32> to vector<16xf32>
    %152 = vector.shape_cast %151 : vector<16xf32> to vector<16x1xf32>
    %cst_85 = arith.constant 3.200000e+01 : f32
    %153 = vector.broadcast %cst_85 : f32 to vector<16x1xf32>
    %154 = arith.divf %152, %153 : vector<16x1xf32>
    %155 = vector.broadcast %154 : vector<16x1xf32> to vector<16x32xf32>
    %156 = arith.subf %150, %155 : vector<16x32xf32>
    %157 = arith.mulf %156, %156 : vector<16x32xf32>
    %cst_86 = arith.constant dense<0.000000e+00> : vector<16xf32>
    %158 = vector.multi_reduction <add>, %157, %cst_86 [1] : vector<16x32xf32> to vector<16xf32>
    %159 = vector.shape_cast %158 : vector<16xf32> to vector<16x1xf32>
    %cst_87 = arith.constant 3.200000e+01 : f32
    %160 = vector.broadcast %cst_87 : f32 to vector<16x1xf32>
    %161 = arith.divf %159, %160 : vector<16x1xf32>
    %162 = vector.broadcast %154 : vector<16x1xf32> to vector<16x32xf32>
    %163 = arith.subf %150, %162 : vector<16x32xf32>
    %cst_88 = arith.constant 9.99999974E-6 : f32
    %164 = vector.broadcast %cst_88 : f32 to vector<16x1xf32>
    %165 = arith.addf %161, %164 : vector<16x1xf32>
    %166 = math.rsqrt %165 : vector<16x1xf32>
    %167 = vector.broadcast %166 : vector<16x1xf32> to vector<16x32xf32>
    %168 = arith.mulf %163, %167 : vector<16x32xf32>
    %169 = vector.broadcast %122 : vector<1x32xf32> to vector<16x32xf32>
    %170 = arith.mulf %168, %169 : vector<16x32xf32>
    %171 = vector.broadcast %123 : vector<1x32xf32> to vector<16x32xf32>
    %172 = arith.addf %170, %171 : vector<16x32xf32>
    %c0_89 = arith.constant 0 : index
    %c0_90 = arith.constant 0 : index
    %173 = vector.load %arg2[%c0_89, %c0_90] : memref<16x32xf32, #tpu.memory_space<vmem>>, vector<16x32xf32>
    %174 = arith.addf %172, %173 : vector<16x32xf32>
    %c0_91 = arith.constant 0 : index
    %c0_92 = arith.constant 0 : index
    %175 = vector.load %arg29[%c0_91, %c0_92] : memref<32x128xf32, #tpu.memory_space<vmem>>, vector<32x128xf32>
    %cst_93 = arith.constant dense<0.000000e+00> : vector<16x128xf32>
    %176 = tpu.matmul %174, %175, %cst_93 {dimension_numbers = #tpu.dot_dimension_numbers<[1], [0], [0], [1], [0, 0, 1, 1], [], []>} : vector<16x32xf32>, vector<32x128xf32>, vector<16x128xf32> -> vector<16x128xf32>
    %c0_94 = arith.constant 0 : index
    %c0_95 = arith.constant 0 : index
    %177 = vector.load %arg30[%c0_94, %c0_95] : memref<1x128xf32, #tpu.memory_space<vmem>>, vector<1x128xf32>
    %178 = vector.broadcast %177 : vector<1x128xf32> to vector<16x128xf32>
    %179 = arith.addf %176, %178 : vector<16x128xf32>
    %180 = vector.extract_strided_slice %179 {offsets = [0, 0], sizes = [16, 32], strides = [1, 1]} : vector<16x128xf32> to vector<16x32xf32>
    %181 = vector.extract_strided_slice %179 {offsets = [0, 32], sizes = [16, 32], strides = [1, 1]} : vector<16x128xf32> to vector<16x32xf32>
    %182 = vector.extract_strided_slice %179 {offsets = [0, 64], sizes = [16, 32], strides = [1, 1]} : vector<16x128xf32> to vector<16x32xf32>
    %183 = vector.extract_strided_slice %179 {offsets = [0, 96], sizes = [16, 32], strides = [1, 1]} : vector<16x128xf32> to vector<16x32xf32>
    %c0_96 = arith.constant 0 : index
    %c0_97 = arith.constant 0 : index
    %184 = vector.load %arg31[%c0_96, %c0_97] : memref<32x32xf32, #tpu.memory_space<vmem>>, vector<32x32xf32>
    %c0_98 = arith.constant 0 : index
    %c0_99 = arith.constant 0 : index
    %185 = vector.load %arg32[%c0_98, %c0_99] : memref<32x32xf32, #tpu.memory_space<vmem>>, vector<32x32xf32>
    %c0_100 = arith.constant 0 : index
    %c0_101 = arith.constant 0 : index
    %186 = vector.load %arg33[%c0_100, %c0_101] : memref<32x32xf32, #tpu.memory_space<vmem>>, vector<32x32xf32>
    %c0_102 = arith.constant 0 : index
    %c0_103 = arith.constant 0 : index
    %187 = vector.load %arg34[%c0_102, %c0_103] : memref<32x32xf32, #tpu.memory_space<vmem>>, vector<32x32xf32>
    %cst_104 = arith.constant 0.000000e+00 : f32
    %188 = vector.broadcast %cst_104 : f32 to vector<2x32xf32>
    %cst_105 = arith.constant 0.000000e+00 : f32
    %189 = vector.broadcast %cst_105 : f32 to vector<2x32xf32>
    %190 = vector.extract_strided_slice %180 {offsets = [0, 0], sizes = [2, 32], strides = [1, 1]} : vector<16x32xf32> to vector<2x32xf32>
    %cst_106 = arith.constant dense<0.000000e+00> : vector<2x32xf32>
    %191 = tpu.matmul %188, %184, %cst_106 {dimension_numbers = #tpu.dot_dimension_numbers<[1], [0], [0], [1], [0, 0, 1, 1], [], []>} : vector<2x32xf32>, vector<32x32xf32>, vector<2x32xf32> -> vector<2x32xf32>
    %192 = arith.addf %190, %191 : vector<2x32xf32>
    %193 = arith.negf %192 : vector<2x32xf32>
    %194 = math.exp %193 : vector<2x32xf32>
    %cst_107 = arith.constant 1.000000e+00 : f32
    %195 = vector.broadcast %cst_107 : f32 to vector<2x32xf32>
    %196 = arith.addf %195, %194 : vector<2x32xf32>
    %197 = arith.divf %195, %196 : vector<2x32xf32>
    %198 = vector.extract_strided_slice %181 {offsets = [0, 0], sizes = [2, 32], strides = [1, 1]} : vector<16x32xf32> to vector<2x32xf32>
    %cst_108 = arith.constant dense<0.000000e+00> : vector<2x32xf32>
    %199 = tpu.matmul %188, %185, %cst_108 {dimension_numbers = #tpu.dot_dimension_numbers<[1], [0], [0], [1], [0, 0, 1, 1], [], []>} : vector<2x32xf32>, vector<32x32xf32>, vector<2x32xf32> -> vector<2x32xf32>
    %200 = arith.addf %198, %199 : vector<2x32xf32>
    %201 = arith.negf %200 : vector<2x32xf32>
    %202 = math.exp %201 : vector<2x32xf32>
    %cst_109 = arith.constant 1.000000e+00 : f32
    %203 = vector.broadcast %cst_109 : f32 to vector<2x32xf32>
    %204 = arith.addf %203, %202 : vector<2x32xf32>
    %205 = arith.divf %203, %204 : vector<2x32xf32>
    %206 = vector.extract_strided_slice %182 {offsets = [0, 0], sizes = [2, 32], strides = [1, 1]} : vector<16x32xf32> to vector<2x32xf32>
    %cst_110 = arith.constant dense<0.000000e+00> : vector<2x32xf32>
    %207 = tpu.matmul %188, %186, %cst_110 {dimension_numbers = #tpu.dot_dimension_numbers<[1], [0], [0], [1], [0, 0, 1, 1], [], []>} : vector<2x32xf32>, vector<32x32xf32>, vector<2x32xf32> -> vector<2x32xf32>
    %208 = arith.addf %206, %207 : vector<2x32xf32>
    %209 = math.tanh %208 : vector<2x32xf32>
    %210 = vector.extract_strided_slice %183 {offsets = [0, 0], sizes = [2, 32], strides = [1, 1]} : vector<16x32xf32> to vector<2x32xf32>
    %cst_111 = arith.constant dense<0.000000e+00> : vector<2x32xf32>
    %211 = tpu.matmul %188, %187, %cst_111 {dimension_numbers = #tpu.dot_dimension_numbers<[1], [0], [0], [1], [0, 0, 1, 1], [], []>} : vector<2x32xf32>, vector<32x32xf32>, vector<2x32xf32> -> vector<2x32xf32>
    %212 = arith.addf %210, %211 : vector<2x32xf32>
    %213 = arith.negf %212 : vector<2x32xf32>
    %214 = math.exp %213 : vector<2x32xf32>
    %cst_112 = arith.constant 1.000000e+00 : f32
    %215 = vector.broadcast %cst_112 : f32 to vector<2x32xf32>
    %216 = arith.addf %215, %214 : vector<2x32xf32>
    %217 = arith.divf %215, %216 : vector<2x32xf32>
    %218 = arith.mulf %205, %189 : vector<2x32xf32>
    %219 = arith.mulf %197, %209 : vector<2x32xf32>
    %220 = arith.addf %218, %219 : vector<2x32xf32>
    %221 = math.tanh %220 : vector<2x32xf32>
    %222 = arith.mulf %217, %221 : vector<2x32xf32>
    %223 = vector.extract_strided_slice %222 {offsets = [0, 0], sizes = [1, 32], strides = [1, 1]} : vector<2x32xf32> to vector<1x32xf32>
    %c0_113 = arith.constant 0 : index
    %c0_114 = arith.constant 0 : index
    %224 = vector.load %arg40[%c0_113, %c0_114] : memref<16x32xf32, #tpu.memory_space<vmem>>, vector<1x32xf32>
    tpu.vector_store %arg40[%c0_113, %c0_114], %223 {strides = array<i32>} : memref<16x32xf32, #tpu.memory_space<vmem>>, vector<1x32xf32>,
    %225 = vector.extract_strided_slice %222 {offsets = [1, 0], sizes = [1, 32], strides = [1, 1]} : vector<2x32xf32> to vector<1x32xf32>
    %c8 = arith.constant 8 : index
    %c0_115 = arith.constant 0 : index
    %226 = vector.load %arg40[%c8, %c0_115] : memref<16x32xf32, #tpu.memory_space<vmem>>, vector<1x32xf32>
    tpu.vector_store %arg40[%c8, %c0_115], %225 {strides = array<i32>} : memref<16x32xf32, #tpu.memory_space<vmem>>, vector<1x32xf32>,
    %227 = vector.extract_strided_slice %180 {offsets = [2, 0], sizes = [2, 32], strides = [1, 1]} : vector<16x32xf32> to vector<2x32xf32>
    %cst_116 = arith.constant dense<0.000000e+00> : vector<2x32xf32>
    %228 = tpu.matmul %222, %184, %cst_116 {dimension_numbers = #tpu.dot_dimension_numbers<[1], [0], [0], [1], [0, 0, 1, 1], [], []>} : vector<2x32xf32>, vector<32x32xf32>, vector<2x32xf32> -> vector<2x32xf32>
    %229 = arith.addf %227, %228 : vector<2x32xf32>
    %230 = arith.negf %229 : vector<2x32xf32>
    %231 = math.exp %230 : vector<2x32xf32>
    %cst_117 = arith.constant 1.000000e+00 : f32
    %232 = vector.broadcast %cst_117 : f32 to vector<2x32xf32>
    %233 = arith.addf %232, %231 : vector<2x32xf32>
    %234 = arith.divf %232, %233 : vector<2x32xf32>
    %235 = vector.extract_strided_slice %181 {offsets = [2, 0], sizes = [2, 32], strides = [1, 1]} : vector<16x32xf32> to vector<2x32xf32>
    %cst_118 = arith.constant dense<0.000000e+00> : vector<2x32xf32>
    %236 = tpu.matmul %222, %185, %cst_118 {dimension_numbers = #tpu.dot_dimension_numbers<[1], [0], [0], [1], [0, 0, 1, 1], [], []>} : vector<2x32xf32>, vector<32x32xf32>, vector<2x32xf32> -> vector<2x32xf32>
    %237 = arith.addf %235, %236 : vector<2x32xf32>
    %238 = arith.negf %237 : vector<2x32xf32>
    %239 = math.exp %238 : vector<2x32xf32>
    %cst_119 = arith.constant 1.000000e+00 : f32
    %240 = vector.broadcast %cst_119 : f32 to vector<2x32xf32>
    %241 = arith.addf %240, %239 : vector<2x32xf32>
    %242 = arith.divf %240, %241 : vector<2x32xf32>
    %243 = vector.extract_strided_slice %182 {offsets = [2, 0], sizes = [2, 32], strides = [1, 1]} : vector<16x32xf32> to vector<2x32xf32>
    %cst_120 = arith.constant dense<0.000000e+00> : vector<2x32xf32>
    %244 = tpu.matmul %222, %186, %cst_120 {dimension_numbers = #tpu.dot_dimension_numbers<[1], [0], [0], [1], [0, 0, 1, 1], [], []>} : vector<2x32xf32>, vector<32x32xf32>, vector<2x32xf32> -> vector<2x32xf32>
    %245 = arith.addf %243, %244 : vector<2x32xf32>
    %246 = math.tanh %245 : vector<2x32xf32>
    %247 = vector.extract_strided_slice %183 {offsets = [2, 0], sizes = [2, 32], strides = [1, 1]} : vector<16x32xf32> to vector<2x32xf32>
    %cst_121 = arith.constant dense<0.000000e+00> : vector<2x32xf32>
    %248 = tpu.matmul %222, %187, %cst_121 {dimension_numbers = #tpu.dot_dimension_numbers<[1], [0], [0], [1], [0, 0, 1, 1], [], []>} : vector<2x32xf32>, vector<32x32xf32>, vector<2x32xf32> -> vector<2x32xf32>
    %249 = arith.addf %247, %248 : vector<2x32xf32>
    %250 = arith.negf %249 : vector<2x32xf32>
    %251 = math.exp %250 : vector<2x32xf32>
    %cst_122 = arith.constant 1.000000e+00 : f32
    %252 = vector.broadcast %cst_122 : f32 to vector<2x32xf32>
    %253 = arith.addf %252, %251 : vector<2x32xf32>
    %254 = arith.divf %252, %253 : vector<2x32xf32>
    %255 = arith.mulf %242, %220 : vector<2x32xf32>
    %256 = arith.mulf %234, %246 : vector<2x32xf32>
    %257 = arith.addf %255, %256 : vector<2x32xf32>
    %258 = math.tanh %257 : vector<2x32xf32>
    %259 = arith.mulf %254, %258 : vector<2x32xf32>
    %260 = vector.extract_strided_slice %259 {offsets = [0, 0], sizes = [1, 32], strides = [1, 1]} : vector<2x32xf32> to vector<1x32xf32>
    %c1 = arith.constant 1 : index
    %c0_123 = arith.constant 0 : index
    %261 = vector.load %arg40[%c1, %c0_123] : memref<16x32xf32, #tpu.memory_space<vmem>>, vector<1x32xf32>
    tpu.vector_store %arg40[%c1, %c0_123], %260 {strides = array<i32>} : memref<16x32xf32, #tpu.memory_space<vmem>>, vector<1x32xf32>,
    %262 = vector.extract_strided_slice %259 {offsets = [1, 0], sizes = [1, 32], strides = [1, 1]} : vector<2x32xf32> to vector<1x32xf32>
    %c9 = arith.constant 9 : index
    %c0_124 = arith.constant 0 : index
    %263 = vector.load %arg40[%c9, %c0_124] : memref<16x32xf32, #tpu.memory_space<vmem>>, vector<1x32xf32>
    tpu.vector_store %arg40[%c9, %c0_124], %262 {strides = array<i32>} : memref<16x32xf32, #tpu.memory_space<vmem>>, vector<1x32xf32>,
    %264 = vector.extract_strided_slice %180 {offsets = [4, 0], sizes = [2, 32], strides = [1, 1]} : vector<16x32xf32> to vector<2x32xf32>
    %cst_125 = arith.constant dense<0.000000e+00> : vector<2x32xf32>
    %265 = tpu.matmul %259, %184, %cst_125 {dimension_numbers = #tpu.dot_dimension_numbers<[1], [0], [0], [1], [0, 0, 1, 1], [], []>} : vector<2x32xf32>, vector<32x32xf32>, vector<2x32xf32> -> vector<2x32xf32>
    %266 = arith.addf %264, %265 : vector<2x32xf32>
    %267 = arith.negf %266 : vector<2x32xf32>
    %268 = math.exp %267 : vector<2x32xf32>
    %cst_126 = arith.constant 1.000000e+00 : f32
    %269 = vector.broadcast %cst_126 : f32 to vector<2x32xf32>
    %270 = arith.addf %269, %268 : vector<2x32xf32>
    %271 = arith.divf %269, %270 : vector<2x32xf32>
    %272 = vector.extract_strided_slice %181 {offsets = [4, 0], sizes = [2, 32], strides = [1, 1]} : vector<16x32xf32> to vector<2x32xf32>
    %cst_127 = arith.constant dense<0.000000e+00> : vector<2x32xf32>
    %273 = tpu.matmul %259, %185, %cst_127 {dimension_numbers = #tpu.dot_dimension_numbers<[1], [0], [0], [1], [0, 0, 1, 1], [], []>} : vector<2x32xf32>, vector<32x32xf32>, vector<2x32xf32> -> vector<2x32xf32>
    %274 = arith.addf %272, %273 : vector<2x32xf32>
    %275 = arith.negf %274 : vector<2x32xf32>
    %276 = math.exp %275 : vector<2x32xf32>
    %cst_128 = arith.constant 1.000000e+00 : f32
    %277 = vector.broadcast %cst_128 : f32 to vector<2x32xf32>
    %278 = arith.addf %277, %276 : vector<2x32xf32>
    %279 = arith.divf %277, %278 : vector<2x32xf32>
    %280 = vector.extract_strided_slice %182 {offsets = [4, 0], sizes = [2, 32], strides = [1, 1]} : vector<16x32xf32> to vector<2x32xf32>
    %cst_129 = arith.constant dense<0.000000e+00> : vector<2x32xf32>
    %281 = tpu.matmul %259, %186, %cst_129 {dimension_numbers = #tpu.dot_dimension_numbers<[1], [0], [0], [1], [0, 0, 1, 1], [], []>} : vector<2x32xf32>, vector<32x32xf32>, vector<2x32xf32> -> vector<2x32xf32>
    %282 = arith.addf %280, %281 : vector<2x32xf32>
    %283 = math.tanh %282 : vector<2x32xf32>
    %284 = vector.extract_strided_slice %183 {offsets = [4, 0], sizes = [2, 32], strides = [1, 1]} : vector<16x32xf32> to vector<2x32xf32>
    %cst_130 = arith.constant dense<0.000000e+00> : vector<2x32xf32>
    %285 = tpu.matmul %259, %187, %cst_130 {dimension_numbers = #tpu.dot_dimension_numbers<[1], [0], [0], [1], [0, 0, 1, 1], [], []>} : vector<2x32xf32>, vector<32x32xf32>, vector<2x32xf32> -> vector<2x32xf32>
    %286 = arith.addf %284, %285 : vector<2x32xf32>
    %287 = arith.negf %286 : vector<2x32xf32>
    %288 = math.exp %287 : vector<2x32xf32>
    %cst_131 = arith.constant 1.000000e+00 : f32
    %289 = vector.broadcast %cst_131 : f32 to vector<2x32xf32>
    %290 = arith.addf %289, %288 : vector<2x32xf32>
    %291 = arith.divf %289, %290 : vector<2x32xf32>
    %292 = arith.mulf %279, %257 : vector<2x32xf32>
    %293 = arith.mulf %271, %283 : vector<2x32xf32>
    %294 = arith.addf %292, %293 : vector<2x32xf32>
    %295 = math.tanh %294 : vector<2x32xf32>
    %296 = arith.mulf %291, %295 : vector<2x32xf32>
    %297 = vector.extract_strided_slice %296 {offsets = [0, 0], sizes = [1, 32], strides = [1, 1]} : vector<2x32xf32> to vector<1x32xf32>
    %c2 = arith.constant 2 : index
    %c0_132 = arith.constant 0 : index
    %298 = vector.load %arg40[%c2, %c0_132] : memref<16x32xf32, #tpu.memory_space<vmem>>, vector<1x32xf32>
    tpu.vector_store %arg40[%c2, %c0_132], %297 {strides = array<i32>} : memref<16x32xf32, #tpu.memory_space<vmem>>, vector<1x32xf32>,
    %299 = vector.extract_strided_slice %296 {offsets = [1, 0], sizes = [1, 32], strides = [1, 1]} : vector<2x32xf32> to vector<1x32xf32>
    %c10 = arith.constant 10 : index
    %c0_133 = arith.constant 0 : index
    %300 = vector.load %arg40[%c10, %c0_133] : memref<16x32xf32, #tpu.memory_space<vmem>>, vector<1x32xf32>
    tpu.vector_store %arg40[%c10, %c0_133], %299 {strides = array<i32>} : memref<16x32xf32, #tpu.memory_space<vmem>>, vector<1x32xf32>,
    %301 = vector.extract_strided_slice %180 {offsets = [6, 0], sizes = [2, 32], strides = [1, 1]} : vector<16x32xf32> to vector<2x32xf32>
    %cst_134 = arith.constant dense<0.000000e+00> : vector<2x32xf32>
    %302 = tpu.matmul %296, %184, %cst_134 {dimension_numbers = #tpu.dot_dimension_numbers<[1], [0], [0], [1], [0, 0, 1, 1], [], []>} : vector<2x32xf32>, vector<32x32xf32>, vector<2x32xf32> -> vector<2x32xf32>
    %303 = arith.addf %301, %302 : vector<2x32xf32>
    %304 = arith.negf %303 : vector<2x32xf32>
    %305 = math.exp %304 : vector<2x32xf32>
    %cst_135 = arith.constant 1.000000e+00 : f32
    %306 = vector.broadcast %cst_135 : f32 to vector<2x32xf32>
    %307 = arith.addf %306, %305 : vector<2x32xf32>
    %308 = arith.divf %306, %307 : vector<2x32xf32>
    %309 = vector.extract_strided_slice %181 {offsets = [6, 0], sizes = [2, 32], strides = [1, 1]} : vector<16x32xf32> to vector<2x32xf32>
    %cst_136 = arith.constant dense<0.000000e+00> : vector<2x32xf32>
    %310 = tpu.matmul %296, %185, %cst_136 {dimension_numbers = #tpu.dot_dimension_numbers<[1], [0], [0], [1], [0, 0, 1, 1], [], []>} : vector<2x32xf32>, vector<32x32xf32>, vector<2x32xf32> -> vector<2x32xf32>
    %311 = arith.addf %309, %310 : vector<2x32xf32>
    %312 = arith.negf %311 : vector<2x32xf32>
    %313 = math.exp %312 : vector<2x32xf32>
    %cst_137 = arith.constant 1.000000e+00 : f32
    %314 = vector.broadcast %cst_137 : f32 to vector<2x32xf32>
    %315 = arith.addf %314, %313 : vector<2x32xf32>
    %316 = arith.divf %314, %315 : vector<2x32xf32>
    %317 = vector.extract_strided_slice %182 {offsets = [6, 0], sizes = [2, 32], strides = [1, 1]} : vector<16x32xf32> to vector<2x32xf32>
    %cst_138 = arith.constant dense<0.000000e+00> : vector<2x32xf32>
    %318 = tpu.matmul %296, %186, %cst_138 {dimension_numbers = #tpu.dot_dimension_numbers<[1], [0], [0], [1], [0, 0, 1, 1], [], []>} : vector<2x32xf32>, vector<32x32xf32>, vector<2x32xf32> -> vector<2x32xf32>
    %319 = arith.addf %317, %318 : vector<2x32xf32>
    %320 = math.tanh %319 : vector<2x32xf32>
    %321 = vector.extract_strided_slice %183 {offsets = [6, 0], sizes = [2, 32], strides = [1, 1]} : vector<16x32xf32> to vector<2x32xf32>
    %cst_139 = arith.constant dense<0.000000e+00> : vector<2x32xf32>
    %322 = tpu.matmul %296, %187, %cst_139 {dimension_numbers = #tpu.dot_dimension_numbers<[1], [0], [0], [1], [0, 0, 1, 1], [], []>} : vector<2x32xf32>, vector<32x32xf32>, vector<2x32xf32> -> vector<2x32xf32>
    %323 = arith.addf %321, %322 : vector<2x32xf32>
    %324 = arith.negf %323 : vector<2x32xf32>
    %325 = math.exp %324 : vector<2x32xf32>
    %cst_140 = arith.constant 1.000000e+00 : f32
    %326 = vector.broadcast %cst_140 : f32 to vector<2x32xf32>
    %327 = arith.addf %326, %325 : vector<2x32xf32>
    %328 = arith.divf %326, %327 : vector<2x32xf32>
    %329 = arith.mulf %316, %294 : vector<2x32xf32>
    %330 = arith.mulf %308, %320 : vector<2x32xf32>
    %331 = arith.addf %329, %330 : vector<2x32xf32>
    %332 = math.tanh %331 : vector<2x32xf32>
    %333 = arith.mulf %328, %332 : vector<2x32xf32>
    %334 = vector.extract_strided_slice %333 {offsets = [0, 0], sizes = [1, 32], strides = [1, 1]} : vector<2x32xf32> to vector<1x32xf32>
    %c3 = arith.constant 3 : index
    %c0_141 = arith.constant 0 : index
    %335 = vector.load %arg40[%c3, %c0_141] : memref<16x32xf32, #tpu.memory_space<vmem>>, vector<1x32xf32>
    tpu.vector_store %arg40[%c3, %c0_141], %334 {strides = array<i32>} : memref<16x32xf32, #tpu.memory_space<vmem>>, vector<1x32xf32>,
    %336 = vector.extract_strided_slice %333 {offsets = [1, 0], sizes = [1, 32], strides = [1, 1]} : vector<2x32xf32> to vector<1x32xf32>
    %c11 = arith.constant 11 : index
    %c0_142 = arith.constant 0 : index
    %337 = vector.load %arg40[%c11, %c0_142] : memref<16x32xf32, #tpu.memory_space<vmem>>, vector<1x32xf32>
    tpu.vector_store %arg40[%c11, %c0_142], %336 {strides = array<i32>} : memref<16x32xf32, #tpu.memory_space<vmem>>, vector<1x32xf32>,
    %338 = vector.extract_strided_slice %180 {offsets = [8, 0], sizes = [2, 32], strides = [1, 1]} : vector<16x32xf32> to vector<2x32xf32>
    %cst_143 = arith.constant dense<0.000000e+00> : vector<2x32xf32>
    %339 = tpu.matmul %333, %184, %cst_143 {dimension_numbers = #tpu.dot_dimension_numbers<[1], [0], [0], [1], [0, 0, 1, 1], [], []>} : vector<2x32xf32>, vector<32x32xf32>, vector<2x32xf32> -> vector<2x32xf32>
    %340 = arith.addf %338, %339 : vector<2x32xf32>
    %341 = arith.negf %340 : vector<2x32xf32>
    %342 = math.exp %341 : vector<2x32xf32>
    %cst_144 = arith.constant 1.000000e+00 : f32
    %343 = vector.broadcast %cst_144 : f32 to vector<2x32xf32>
    %344 = arith.addf %343, %342 : vector<2x32xf32>
    %345 = arith.divf %343, %344 : vector<2x32xf32>
    %346 = vector.extract_strided_slice %181 {offsets = [8, 0], sizes = [2, 32], strides = [1, 1]} : vector<16x32xf32> to vector<2x32xf32>
    %cst_145 = arith.constant dense<0.000000e+00> : vector<2x32xf32>
    %347 = tpu.matmul %333, %185, %cst_145 {dimension_numbers = #tpu.dot_dimension_numbers<[1], [0], [0], [1], [0, 0, 1, 1], [], []>} : vector<2x32xf32>, vector<32x32xf32>, vector<2x32xf32> -> vector<2x32xf32>
    %348 = arith.addf %346, %347 : vector<2x32xf32>
    %349 = arith.negf %348 : vector<2x32xf32>
    %350 = math.exp %349 : vector<2x32xf32>
    %cst_146 = arith.constant 1.000000e+00 : f32
    %351 = vector.broadcast %cst_146 : f32 to vector<2x32xf32>
    %352 = arith.addf %351, %350 : vector<2x32xf32>
    %353 = arith.divf %351, %352 : vector<2x32xf32>
    %354 = vector.extract_strided_slice %182 {offsets = [8, 0], sizes = [2, 32], strides = [1, 1]} : vector<16x32xf32> to vector<2x32xf32>
    %cst_147 = arith.constant dense<0.000000e+00> : vector<2x32xf32>
    %355 = tpu.matmul %333, %186, %cst_147 {dimension_numbers = #tpu.dot_dimension_numbers<[1], [0], [0], [1], [0, 0, 1, 1], [], []>} : vector<2x32xf32>, vector<32x32xf32>, vector<2x32xf32> -> vector<2x32xf32>
    %356 = arith.addf %354, %355 : vector<2x32xf32>
    %357 = math.tanh %356 : vector<2x32xf32>
    %358 = vector.extract_strided_slice %183 {offsets = [8, 0], sizes = [2, 32], strides = [1, 1]} : vector<16x32xf32> to vector<2x32xf32>
    %cst_148 = arith.constant dense<0.000000e+00> : vector<2x32xf32>
    %359 = tpu.matmul %333, %187, %cst_148 {dimension_numbers = #tpu.dot_dimension_numbers<[1], [0], [0], [1], [0, 0, 1, 1], [], []>} : vector<2x32xf32>, vector<32x32xf32>, vector<2x32xf32> -> vector<2x32xf32>
    %360 = arith.addf %358, %359 : vector<2x32xf32>
    %361 = arith.negf %360 : vector<2x32xf32>
    %362 = math.exp %361 : vector<2x32xf32>
    %cst_149 = arith.constant 1.000000e+00 : f32
    %363 = vector.broadcast %cst_149 : f32 to vector<2x32xf32>
    %364 = arith.addf %363, %362 : vector<2x32xf32>
    %365 = arith.divf %363, %364 : vector<2x32xf32>
    %366 = arith.mulf %353, %331 : vector<2x32xf32>
    %367 = arith.mulf %345, %357 : vector<2x32xf32>
    %368 = arith.addf %366, %367 : vector<2x32xf32>
    %369 = math.tanh %368 : vector<2x32xf32>
    %370 = arith.mulf %365, %369 : vector<2x32xf32>
    %371 = vector.extract_strided_slice %370 {offsets = [0, 0], sizes = [1, 32], strides = [1, 1]} : vector<2x32xf32> to vector<1x32xf32>
    %c4 = arith.constant 4 : index
    %c0_150 = arith.constant 0 : index
    %372 = vector.load %arg40[%c4, %c0_150] : memref<16x32xf32, #tpu.memory_space<vmem>>, vector<1x32xf32>
    tpu.vector_store %arg40[%c4, %c0_150], %371 {strides = array<i32>} : memref<16x32xf32, #tpu.memory_space<vmem>>, vector<1x32xf32>,
    %373 = vector.extract_strided_slice %370 {offsets = [1, 0], sizes = [1, 32], strides = [1, 1]} : vector<2x32xf32> to vector<1x32xf32>
    %c12 = arith.constant 12 : index
    %c0_151 = arith.constant 0 : index
    %374 = vector.load %arg40[%c12, %c0_151] : memref<16x32xf32, #tpu.memory_space<vmem>>, vector<1x32xf32>
    tpu.vector_store %arg40[%c12, %c0_151], %373 {strides = array<i32>} : memref<16x32xf32, #tpu.memory_space<vmem>>, vector<1x32xf32>,
    %375 = vector.extract_strided_slice %180 {offsets = [10, 0], sizes = [2, 32], strides = [1, 1]} : vector<16x32xf32> to vector<2x32xf32>
    %cst_152 = arith.constant dense<0.000000e+00> : vector<2x32xf32>
    %376 = tpu.matmul %370, %184, %cst_152 {dimension_numbers = #tpu.dot_dimension_numbers<[1], [0], [0], [1], [0, 0, 1, 1], [], []>} : vector<2x32xf32>, vector<32x32xf32>, vector<2x32xf32> -> vector<2x32xf32>
    %377 = arith.addf %375, %376 : vector<2x32xf32>
    %378 = arith.negf %377 : vector<2x32xf32>
    %379 = math.exp %378 : vector<2x32xf32>
    %cst_153 = arith.constant 1.000000e+00 : f32
    %380 = vector.broadcast %cst_153 : f32 to vector<2x32xf32>
    %381 = arith.addf %380, %379 : vector<2x32xf32>
    %382 = arith.divf %380, %381 : vector<2x32xf32>
    %383 = vector.extract_strided_slice %181 {offsets = [10, 0], sizes = [2, 32], strides = [1, 1]} : vector<16x32xf32> to vector<2x32xf32>
    %cst_154 = arith.constant dense<0.000000e+00> : vector<2x32xf32>
    %384 = tpu.matmul %370, %185, %cst_154 {dimension_numbers = #tpu.dot_dimension_numbers<[1], [0], [0], [1], [0, 0, 1, 1], [], []>} : vector<2x32xf32>, vector<32x32xf32>, vector<2x32xf32> -> vector<2x32xf32>
    %385 = arith.addf %383, %384 : vector<2x32xf32>
    %386 = arith.negf %385 : vector<2x32xf32>
    %387 = math.exp %386 : vector<2x32xf32>
    %cst_155 = arith.constant 1.000000e+00 : f32
    %388 = vector.broadcast %cst_155 : f32 to vector<2x32xf32>
    %389 = arith.addf %388, %387 : vector<2x32xf32>
    %390 = arith.divf %388, %389 : vector<2x32xf32>
    %391 = vector.extract_strided_slice %182 {offsets = [10, 0], sizes = [2, 32], strides = [1, 1]} : vector<16x32xf32> to vector<2x32xf32>
    %cst_156 = arith.constant dense<0.000000e+00> : vector<2x32xf32>
    %392 = tpu.matmul %370, %186, %cst_156 {dimension_numbers = #tpu.dot_dimension_numbers<[1], [0], [0], [1], [0, 0, 1, 1], [], []>} : vector<2x32xf32>, vector<32x32xf32>, vector<2x32xf32> -> vector<2x32xf32>
    %393 = arith.addf %391, %392 : vector<2x32xf32>
    %394 = math.tanh %393 : vector<2x32xf32>
    %395 = vector.extract_strided_slice %183 {offsets = [10, 0], sizes = [2, 32], strides = [1, 1]} : vector<16x32xf32> to vector<2x32xf32>
    %cst_157 = arith.constant dense<0.000000e+00> : vector<2x32xf32>
    %396 = tpu.matmul %370, %187, %cst_157 {dimension_numbers = #tpu.dot_dimension_numbers<[1], [0], [0], [1], [0, 0, 1, 1], [], []>} : vector<2x32xf32>, vector<32x32xf32>, vector<2x32xf32> -> vector<2x32xf32>
    %397 = arith.addf %395, %396 : vector<2x32xf32>
    %398 = arith.negf %397 : vector<2x32xf32>
    %399 = math.exp %398 : vector<2x32xf32>
    %cst_158 = arith.constant 1.000000e+00 : f32
    %400 = vector.broadcast %cst_158 : f32 to vector<2x32xf32>
    %401 = arith.addf %400, %399 : vector<2x32xf32>
    %402 = arith.divf %400, %401 : vector<2x32xf32>
    %403 = arith.mulf %390, %368 : vector<2x32xf32>
    %404 = arith.mulf %382, %394 : vector<2x32xf32>
    %405 = arith.addf %403, %404 : vector<2x32xf32>
    %406 = math.tanh %405 : vector<2x32xf32>
    %407 = arith.mulf %402, %406 : vector<2x32xf32>
    %408 = vector.extract_strided_slice %407 {offsets = [0, 0], sizes = [1, 32], strides = [1, 1]} : vector<2x32xf32> to vector<1x32xf32>
    %c5 = arith.constant 5 : index
    %c0_159 = arith.constant 0 : index
    %409 = vector.load %arg40[%c5, %c0_159] : memref<16x32xf32, #tpu.memory_space<vmem>>, vector<1x32xf32>
    tpu.vector_store %arg40[%c5, %c0_159], %408 {strides = array<i32>} : memref<16x32xf32, #tpu.memory_space<vmem>>, vector<1x32xf32>,
    %410 = vector.extract_strided_slice %407 {offsets = [1, 0], sizes = [1, 32], strides = [1, 1]} : vector<2x32xf32> to vector<1x32xf32>
    %c13 = arith.constant 13 : index
    %c0_160 = arith.constant 0 : index
    %411 = vector.load %arg40[%c13, %c0_160] : memref<16x32xf32, #tpu.memory_space<vmem>>, vector<1x32xf32>
    tpu.vector_store %arg40[%c13, %c0_160], %410 {strides = array<i32>} : memref<16x32xf32, #tpu.memory_space<vmem>>, vector<1x32xf32>,
    %412 = vector.extract_strided_slice %180 {offsets = [12, 0], sizes = [2, 32], strides = [1, 1]} : vector<16x32xf32> to vector<2x32xf32>
    %cst_161 = arith.constant dense<0.000000e+00> : vector<2x32xf32>
    %413 = tpu.matmul %407, %184, %cst_161 {dimension_numbers = #tpu.dot_dimension_numbers<[1], [0], [0], [1], [0, 0, 1, 1], [], []>} : vector<2x32xf32>, vector<32x32xf32>, vector<2x32xf32> -> vector<2x32xf32>
    %414 = arith.addf %412, %413 : vector<2x32xf32>
    %415 = arith.negf %414 : vector<2x32xf32>
    %416 = math.exp %415 : vector<2x32xf32>
    %cst_162 = arith.constant 1.000000e+00 : f32
    %417 = vector.broadcast %cst_162 : f32 to vector<2x32xf32>
    %418 = arith.addf %417, %416 : vector<2x32xf32>
    %419 = arith.divf %417, %418 : vector<2x32xf32>
    %420 = vector.extract_strided_slice %181 {offsets = [12, 0], sizes = [2, 32], strides = [1, 1]} : vector<16x32xf32> to vector<2x32xf32>
    %cst_163 = arith.constant dense<0.000000e+00> : vector<2x32xf32>
    %421 = tpu.matmul %407, %185, %cst_163 {dimension_numbers = #tpu.dot_dimension_numbers<[1], [0], [0], [1], [0, 0, 1, 1], [], []>} : vector<2x32xf32>, vector<32x32xf32>, vector<2x32xf32> -> vector<2x32xf32>
    %422 = arith.addf %420, %421 : vector<2x32xf32>
    %423 = arith.negf %422 : vector<2x32xf32>
    %424 = math.exp %423 : vector<2x32xf32>
    %cst_164 = arith.constant 1.000000e+00 : f32
    %425 = vector.broadcast %cst_164 : f32 to vector<2x32xf32>
    %426 = arith.addf %425, %424 : vector<2x32xf32>
    %427 = arith.divf %425, %426 : vector<2x32xf32>
    %428 = vector.extract_strided_slice %182 {offsets = [12, 0], sizes = [2, 32], strides = [1, 1]} : vector<16x32xf32> to vector<2x32xf32>
    %cst_165 = arith.constant dense<0.000000e+00> : vector<2x32xf32>
    %429 = tpu.matmul %407, %186, %cst_165 {dimension_numbers = #tpu.dot_dimension_numbers<[1], [0], [0], [1], [0, 0, 1, 1], [], []>} : vector<2x32xf32>, vector<32x32xf32>, vector<2x32xf32> -> vector<2x32xf32>
    %430 = arith.addf %428, %429 : vector<2x32xf32>
    %431 = math.tanh %430 : vector<2x32xf32>
    %432 = vector.extract_strided_slice %183 {offsets = [12, 0], sizes = [2, 32], strides = [1, 1]} : vector<16x32xf32> to vector<2x32xf32>
    %cst_166 = arith.constant dense<0.000000e+00> : vector<2x32xf32>
    %433 = tpu.matmul %407, %187, %cst_166 {dimension_numbers = #tpu.dot_dimension_numbers<[1], [0], [0], [1], [0, 0, 1, 1], [], []>} : vector<2x32xf32>, vector<32x32xf32>, vector<2x32xf32> -> vector<2x32xf32>
    %434 = arith.addf %432, %433 : vector<2x32xf32>
    %435 = arith.negf %434 : vector<2x32xf32>
    %436 = math.exp %435 : vector<2x32xf32>
    %cst_167 = arith.constant 1.000000e+00 : f32
    %437 = vector.broadcast %cst_167 : f32 to vector<2x32xf32>
    %438 = arith.addf %437, %436 : vector<2x32xf32>
    %439 = arith.divf %437, %438 : vector<2x32xf32>
    %440 = arith.mulf %427, %405 : vector<2x32xf32>
    %441 = arith.mulf %419, %431 : vector<2x32xf32>
    %442 = arith.addf %440, %441 : vector<2x32xf32>
    %443 = math.tanh %442 : vector<2x32xf32>
    %444 = arith.mulf %439, %443 : vector<2x32xf32>
    %445 = vector.extract_strided_slice %444 {offsets = [0, 0], sizes = [1, 32], strides = [1, 1]} : vector<2x32xf32> to vector<1x32xf32>
    %c6 = arith.constant 6 : index
    %c0_168 = arith.constant 0 : index
    %446 = vector.load %arg40[%c6, %c0_168] : memref<16x32xf32, #tpu.memory_space<vmem>>, vector<1x32xf32>
    tpu.vector_store %arg40[%c6, %c0_168], %445 {strides = array<i32>} : memref<16x32xf32, #tpu.memory_space<vmem>>, vector<1x32xf32>,
    %447 = vector.extract_strided_slice %444 {offsets = [1, 0], sizes = [1, 32], strides = [1, 1]} : vector<2x32xf32> to vector<1x32xf32>
    %c14 = arith.constant 14 : index
    %c0_169 = arith.constant 0 : index
    %448 = vector.load %arg40[%c14, %c0_169] : memref<16x32xf32, #tpu.memory_space<vmem>>, vector<1x32xf32>
    tpu.vector_store %arg40[%c14, %c0_169], %447 {strides = array<i32>} : memref<16x32xf32, #tpu.memory_space<vmem>>, vector<1x32xf32>,
    %449 = vector.extract_strided_slice %180 {offsets = [14, 0], sizes = [2, 32], strides = [1, 1]} : vector<16x32xf32> to vector<2x32xf32>
    %cst_170 = arith.constant dense<0.000000e+00> : vector<2x32xf32>
    %450 = tpu.matmul %444, %184, %cst_170 {dimension_numbers = #tpu.dot_dimension_numbers<[1], [0], [0], [1], [0, 0, 1, 1], [], []>} : vector<2x32xf32>, vector<32x32xf32>, vector<2x32xf32> -> vector<2x32xf32>
    %451 = arith.addf %449, %450 : vector<2x32xf32>
    %452 = arith.negf %451 : vector<2x32xf32>
    %453 = math.exp %452 : vector<2x32xf32>
    %cst_171 = arith.constant 1.000000e+00 : f32
    %454 = vector.broadcast %cst_171 : f32 to vector<2x32xf32>
    %455 = arith.addf %454, %453 : vector<2x32xf32>
    %456 = arith.divf %454, %455 : vector<2x32xf32>
    %457 = vector.extract_strided_slice %181 {offsets = [14, 0], sizes = [2, 32], strides = [1, 1]} : vector<16x32xf32> to vector<2x32xf32>
    %cst_172 = arith.constant dense<0.000000e+00> : vector<2x32xf32>
    %458 = tpu.matmul %444, %185, %cst_172 {dimension_numbers = #tpu.dot_dimension_numbers<[1], [0], [0], [1], [0, 0, 1, 1], [], []>} : vector<2x32xf32>, vector<32x32xf32>, vector<2x32xf32> -> vector<2x32xf32>
    %459 = arith.addf %457, %458 : vector<2x32xf32>
    %460 = arith.negf %459 : vector<2x32xf32>
    %461 = math.exp %460 : vector<2x32xf32>
    %cst_173 = arith.constant 1.000000e+00 : f32
    %462 = vector.broadcast %cst_173 : f32 to vector<2x32xf32>
    %463 = arith.addf %462, %461 : vector<2x32xf32>
    %464 = arith.divf %462, %463 : vector<2x32xf32>
    %465 = vector.extract_strided_slice %182 {offsets = [14, 0], sizes = [2, 32], strides = [1, 1]} : vector<16x32xf32> to vector<2x32xf32>
    %cst_174 = arith.constant dense<0.000000e+00> : vector<2x32xf32>
    %466 = tpu.matmul %444, %186, %cst_174 {dimension_numbers = #tpu.dot_dimension_numbers<[1], [0], [0], [1], [0, 0, 1, 1], [], []>} : vector<2x32xf32>, vector<32x32xf32>, vector<2x32xf32> -> vector<2x32xf32>
    %467 = arith.addf %465, %466 : vector<2x32xf32>
    %468 = math.tanh %467 : vector<2x32xf32>
    %469 = vector.extract_strided_slice %183 {offsets = [14, 0], sizes = [2, 32], strides = [1, 1]} : vector<16x32xf32> to vector<2x32xf32>
    %cst_175 = arith.constant dense<0.000000e+00> : vector<2x32xf32>
    %470 = tpu.matmul %444, %187, %cst_175 {dimension_numbers = #tpu.dot_dimension_numbers<[1], [0], [0], [1], [0, 0, 1, 1], [], []>} : vector<2x32xf32>, vector<32x32xf32>, vector<2x32xf32> -> vector<2x32xf32>
    %471 = arith.addf %469, %470 : vector<2x32xf32>
    %472 = arith.negf %471 : vector<2x32xf32>
    %473 = math.exp %472 : vector<2x32xf32>
    %cst_176 = arith.constant 1.000000e+00 : f32
    %474 = vector.broadcast %cst_176 : f32 to vector<2x32xf32>
    %475 = arith.addf %474, %473 : vector<2x32xf32>
    %476 = arith.divf %474, %475 : vector<2x32xf32>
    %477 = arith.mulf %464, %442 : vector<2x32xf32>
    %478 = arith.mulf %456, %468 : vector<2x32xf32>
    %479 = arith.addf %477, %478 : vector<2x32xf32>
    %480 = math.tanh %479 : vector<2x32xf32>
    %481 = arith.mulf %476, %480 : vector<2x32xf32>
    %482 = vector.extract_strided_slice %481 {offsets = [0, 0], sizes = [1, 32], strides = [1, 1]} : vector<2x32xf32> to vector<1x32xf32>
    %c7 = arith.constant 7 : index
    %c0_177 = arith.constant 0 : index
    %483 = vector.load %arg40[%c7, %c0_177] : memref<16x32xf32, #tpu.memory_space<vmem>>, vector<1x32xf32>
    tpu.vector_store %arg40[%c7, %c0_177], %482 {strides = array<i32>} : memref<16x32xf32, #tpu.memory_space<vmem>>, vector<1x32xf32>,
    %484 = vector.extract_strided_slice %481 {offsets = [1, 0], sizes = [1, 32], strides = [1, 1]} : vector<2x32xf32> to vector<1x32xf32>
    %c15 = arith.constant 15 : index
    %c0_178 = arith.constant 0 : index
    %485 = vector.load %arg40[%c15, %c0_178] : memref<16x32xf32, #tpu.memory_space<vmem>>, vector<1x32xf32>
    tpu.vector_store %arg40[%c15, %c0_178], %484 {strides = array<i32>} : memref<16x32xf32, #tpu.memory_space<vmem>>, vector<1x32xf32>,
    %c0_179 = arith.constant 0 : index
    %c0_180 = arith.constant 0 : index
    %486 = vector.load %arg42[%c0_179, %c0_180] : memref<2x32xf32, #tpu.memory_space<vmem>>, vector<2x32xf32>
    tpu.vector_store %arg42[%c0_179, %c0_180], %481 {strides = array<i32>} : memref<2x32xf32, #tpu.memory_space<vmem>>, vector<2x32xf32>,
    %c0_181 = arith.constant 0 : index
    %c0_182 = arith.constant 0 : index
    %487 = vector.load %arg40[%c0_181, %c0_182] : memref<16x32xf32, #tpu.memory_space<vmem>>, vector<16x32xf32>
    %c0_183 = arith.constant 0 : index
    %c0_184 = arith.constant 0 : index
    %488 = vector.load %arg35[%c0_183, %c0_184] : memref<32x96xf32, #tpu.memory_space<vmem>>, vector<32x96xf32>
    %cst_185 = arith.constant dense<0.000000e+00> : vector<16x96xf32>
    %489 = tpu.matmul %487, %488, %cst_185 {dimension_numbers = #tpu.dot_dimension_numbers<[1], [0], [0], [1], [0, 0, 1, 1], [], []>} : vector<16x32xf32>, vector<32x96xf32>, vector<16x96xf32> -> vector<16x96xf32>
    %490 = vector.extract_strided_slice %489 {offsets = [0, 0], sizes = [16, 32], strides = [1, 1]} : vector<16x96xf32> to vector<16x32xf32>
    %491 = vector.shape_cast %490 : vector<16x32xf32> to vector<2x8x32xf32>
    %492 = vector.extract_strided_slice %489 {offsets = [0, 32], sizes = [16, 32], strides = [1, 1]} : vector<16x96xf32> to vector<16x32xf32>
    %493 = vector.shape_cast %492 : vector<16x32xf32> to vector<2x8x32xf32>
    %494 = vector.extract_strided_slice %489 {offsets = [0, 64], sizes = [16, 32], strides = [1, 1]} : vector<16x96xf32> to vector<16x32xf32>
    %495 = vector.shape_cast %494 : vector<16x32xf32> to vector<2x8x32xf32>
    %496 = vector.extract_strided_slice %491 {offsets = [0, 0, 0], sizes = [2, 8, 8], strides = [1, 1, 1]} : vector<2x8x32xf32> to vector<2x8x8xf32>
    %497 = vector.extract_strided_slice %491 {offsets = [0, 0, 8], sizes = [2, 8, 8], strides = [1, 1, 1]} : vector<2x8x32xf32> to vector<2x8x8xf32>
    %498 = vector.extract_strided_slice %491 {offsets = [0, 0, 16], sizes = [2, 8, 8], strides = [1, 1, 1]} : vector<2x8x32xf32> to vector<2x8x8xf32>
    %499 = vector.extract_strided_slice %491 {offsets = [0, 0, 24], sizes = [2, 8, 8], strides = [1, 1, 1]} : vector<2x8x32xf32> to vector<2x8x8xf32>
    %500 = tpu.concatenate %496, %497, %498, %499 in 0 : vector<2x8x8xf32>, vector<2x8x8xf32>, vector<2x8x8xf32>, vector<2x8x8xf32> -> vector<8x8x8xf32>
    %501 = vector.extract_strided_slice %493 {offsets = [0, 0, 0], sizes = [2, 8, 8], strides = [1, 1, 1]} : vector<2x8x32xf32> to vector<2x8x8xf32>
    %502 = vector.extract_strided_slice %493 {offsets = [0, 0, 8], sizes = [2, 8, 8], strides = [1, 1, 1]} : vector<2x8x32xf32> to vector<2x8x8xf32>
    %503 = vector.extract_strided_slice %493 {offsets = [0, 0, 16], sizes = [2, 8, 8], strides = [1, 1, 1]} : vector<2x8x32xf32> to vector<2x8x8xf32>
    %504 = vector.extract_strided_slice %493 {offsets = [0, 0, 24], sizes = [2, 8, 8], strides = [1, 1, 1]} : vector<2x8x32xf32> to vector<2x8x8xf32>
    %505 = tpu.concatenate %501, %502, %503, %504 in 0 : vector<2x8x8xf32>, vector<2x8x8xf32>, vector<2x8x8xf32>, vector<2x8x8xf32> -> vector<8x8x8xf32>
    %506 = vector.extract_strided_slice %495 {offsets = [0, 0, 0], sizes = [2, 8, 8], strides = [1, 1, 1]} : vector<2x8x32xf32> to vector<2x8x8xf32>
    %507 = vector.extract_strided_slice %495 {offsets = [0, 0, 8], sizes = [2, 8, 8], strides = [1, 1, 1]} : vector<2x8x32xf32> to vector<2x8x8xf32>
    %508 = vector.extract_strided_slice %495 {offsets = [0, 0, 16], sizes = [2, 8, 8], strides = [1, 1, 1]} : vector<2x8x32xf32> to vector<2x8x8xf32>
    %509 = vector.extract_strided_slice %495 {offsets = [0, 0, 24], sizes = [2, 8, 8], strides = [1, 1, 1]} : vector<2x8x32xf32> to vector<2x8x8xf32>
    %510 = tpu.concatenate %506, %507, %508, %509 in 0 : vector<2x8x8xf32>, vector<2x8x8xf32>, vector<2x8x8xf32>, vector<2x8x8xf32> -> vector<8x8x8xf32>
    "tpu.trace_start"() <{level = 10 : i32, message = "nqe,nke->nqk"}> : () -> ()
    %cst_186 = arith.constant dense<0.000000e+00> : vector<8x8x8xf32>
    %511 = tpu.matmul %500, %505, %cst_186 {dimension_numbers = #tpu.dot_dimension_numbers<[2], [2], [1], [1], [0, 0, 0, 1, 1, 1], [0], [0]>} : vector<8x8x8xf32>, vector<8x8x8xf32>, vector<8x8x8xf32> -> vector<8x8x8xf32>
    "tpu.trace_stop"() : () -> ()
    %cst_187 = arith.constant 0.353553385 : f32
    %512 = vector.broadcast %cst_187 : f32 to vector<8x8x8xf32>
    %513 = arith.mulf %511, %512 : vector<8x8x8xf32>
    %cst_188 = arith.constant dense<0xFF800000> : vector<8x8xf32>
    %514 = vector.multi_reduction <maximumf>, %513, %cst_188 [2] : vector<8x8x8xf32> to vector<8x8xf32>
    %515 = vector.shape_cast %514 : vector<8x8xf32> to vector<8x8x1xf32>
    %516 = vector.broadcast %515 : vector<8x8x1xf32> to vector<8x8x8xf32>
    %517 = arith.subf %513, %516 : vector<8x8x8xf32>
    %518 = math.exp %517 : vector<8x8x8xf32>
    %cst_189 = arith.constant dense<0.000000e+00> : vector<8x8xf32>
    %519 = vector.multi_reduction <add>, %518, %cst_189 [2] : vector<8x8x8xf32> to vector<8x8xf32>
    %520 = vector.shape_cast %519 : vector<8x8xf32> to vector<8x8x1xf32>
    %521 = tpu.reciprocal %520 {approx = true} : vector<8x8x1xf32> -> vector<8x8x1xf32>
    %522 = vector.broadcast %521 : vector<8x8x1xf32> to vector<8x8x8xf32>
    %523 = arith.mulf %518, %522 : vector<8x8x8xf32>
    %524 = vector.extract_strided_slice %523 {offsets = [0, 0, 0], sizes = [2, 8, 8], strides = [1, 1, 1]} : vector<8x8x8xf32> to vector<2x8x8xf32>
    %525 = vector.extract_strided_slice %523 {offsets = [2, 0, 0], sizes = [2, 8, 8], strides = [1, 1, 1]} : vector<8x8x8xf32> to vector<2x8x8xf32>
    %526 = arith.addf %524, %525 : vector<2x8x8xf32>
    %527 = vector.extract_strided_slice %523 {offsets = [4, 0, 0], sizes = [2, 8, 8], strides = [1, 1, 1]} : vector<8x8x8xf32> to vector<2x8x8xf32>
    %528 = arith.addf %526, %527 : vector<2x8x8xf32>
    %529 = vector.extract_strided_slice %523 {offsets = [6, 0, 0], sizes = [2, 8, 8], strides = [1, 1, 1]} : vector<8x8x8xf32> to vector<2x8x8xf32>
    %530 = arith.addf %528, %529 : vector<2x8x8xf32>
    %cst_190 = arith.constant 2.500000e-01 : f32
    %531 = vector.broadcast %cst_190 : f32 to vector<2x8x8xf32>
    %532 = arith.mulf %530, %531 : vector<2x8x8xf32>
    %c0_191 = arith.constant 0 : index
    %c0_192 = arith.constant 0 : index
    %c0_193 = arith.constant 0 : index
    %533 = vector.load %arg41[%c0_191, %c0_192, %c0_193] : memref<2x8x8xf32, #tpu.memory_space<vmem>>, vector<2x8x8xf32>
    tpu.vector_store %arg41[%c0_191, %c0_192, %c0_193], %532 {strides = array<i32>} : memref<2x8x8xf32, #tpu.memory_space<vmem>>, vector<2x8x8xf32>,
    "tpu.trace_start"() <{level = 10 : i32, message = "nqk,nke->nqe"}> : () -> ()
    %cst_194 = arith.constant dense<0.000000e+00> : vector<8x8x8xf32>
    %534 = tpu.matmul %523, %510, %cst_194 {dimension_numbers = #tpu.dot_dimension_numbers<[2], [1], [1], [2], [0, 0, 0, 1, 1, 2], [0], [0]>} : vector<8x8x8xf32>, vector<8x8x8xf32>, vector<8x8x8xf32> -> vector<8x8x8xf32>
    "tpu.trace_stop"() : () -> ()
    %c0_195 = arith.constant 0 : index
    %c0_196 = arith.constant 0 : index
    %535 = vector.load %arg36[%c0_195, %c0_196] : memref<32x32xf32, #tpu.memory_space<vmem>>, vector<32x32xf32>
    %536 = vector.extract_strided_slice %534 {offsets = [0, 0, 0], sizes = [2, 8, 8], strides = [1, 1, 1]} : vector<8x8x8xf32> to vector<2x8x8xf32>
    %537 = vector.extract_strided_slice %535 {offsets = [0, 0], sizes = [8, 32], strides = [1, 1]} : vector<32x32xf32> to vector<8x32xf32>
    "tpu.trace_start"() <{level = 10 : i32, message = "bse,ed->bsd"}> : () -> ()
    %cst_197 = arith.constant dense<0.000000e+00> : vector<2x8x32xf32>
    %538 = tpu.matmul %536, %537, %cst_197 {dimension_numbers = #tpu.dot_dimension_numbers<[2], [0], [0, 1], [1], [0, 0, 0, 1, 1, 1], [], []>} : vector<2x8x8xf32>, vector<8x32xf32>, vector<2x8x32xf32> -> vector<2x8x32xf32>
    "tpu.trace_stop"() : () -> ()
    %539 = vector.extract_strided_slice %534 {offsets = [2, 0, 0], sizes = [2, 8, 8], strides = [1, 1, 1]} : vector<8x8x8xf32> to vector<2x8x8xf32>
    %540 = vector.extract_strided_slice %535 {offsets = [8, 0], sizes = [8, 32], strides = [1, 1]} : vector<32x32xf32> to vector<8x32xf32>
    "tpu.trace_start"() <{level = 10 : i32, message = "bse,ed->bsd"}> : () -> ()
    %cst_198 = arith.constant dense<0.000000e+00> : vector<2x8x32xf32>
    %541 = tpu.matmul %539, %540, %cst_198 {dimension_numbers = #tpu.dot_dimension_numbers<[2], [0], [0, 1], [1], [0, 0, 0, 1, 1, 1], [], []>} : vector<2x8x8xf32>, vector<8x32xf32>, vector<2x8x32xf32> -> vector<2x8x32xf32>
    "tpu.trace_stop"() : () -> ()
    %542 = arith.addf %538, %541 : vector<2x8x32xf32>
    %543 = vector.extract_strided_slice %534 {offsets = [4, 0, 0], sizes = [2, 8, 8], strides = [1, 1, 1]} : vector<8x8x8xf32> to vector<2x8x8xf32>
    %544 = vector.extract_strided_slice %535 {offsets = [16, 0], sizes = [8, 32], strides = [1, 1]} : vector<32x32xf32> to vector<8x32xf32>
    "tpu.trace_start"() <{level = 10 : i32, message = "bse,ed->bsd"}> : () -> ()
    %cst_199 = arith.constant dense<0.000000e+00> : vector<2x8x32xf32>
    %545 = tpu.matmul %543, %544, %cst_199 {dimension_numbers = #tpu.dot_dimension_numbers<[2], [0], [0, 1], [1], [0, 0, 0, 1, 1, 1], [], []>} : vector<2x8x8xf32>, vector<8x32xf32>, vector<2x8x32xf32> -> vector<2x8x32xf32>
    "tpu.trace_stop"() : () -> ()
    %546 = arith.addf %542, %545 : vector<2x8x32xf32>
    %547 = vector.extract_strided_slice %534 {offsets = [6, 0, 0], sizes = [2, 8, 8], strides = [1, 1, 1]} : vector<8x8x8xf32> to vector<2x8x8xf32>
    %548 = vector.extract_strided_slice %535 {offsets = [24, 0], sizes = [8, 32], strides = [1, 1]} : vector<32x32xf32> to vector<8x32xf32>
    "tpu.trace_start"() <{level = 10 : i32, message = "bse,ed->bsd"}> : () -> ()
    %cst_200 = arith.constant dense<0.000000e+00> : vector<2x8x32xf32>
    %549 = tpu.matmul %547, %548, %cst_200 {dimension_numbers = #tpu.dot_dimension_numbers<[2], [0], [0, 1], [1], [0, 0, 0, 1, 1, 1], [], []>} : vector<2x8x8xf32>, vector<8x32xf32>, vector<2x8x32xf32> -> vector<2x8x32xf32>
    "tpu.trace_stop"() : () -> ()
    %550 = arith.addf %546, %549 : vector<2x8x32xf32>
    %c0_201 = arith.constant 0 : index
    %c0_202 = arith.constant 0 : index
    %551 = vector.load %arg37[%c0_201, %c0_202] : memref<1x32xf32, #tpu.memory_space<vmem>>, vector<1x32xf32>
    %552 = vector.shape_cast %551 : vector<1x32xf32> to vector<1x1x32xf32>
    %553 = vector.broadcast %552 : vector<1x1x32xf32> to vector<2x8x32xf32>
    %554 = arith.addf %550, %553 : vector<2x8x32xf32>
    %c0_203 = arith.constant 0 : index
    %c0_204 = arith.constant 0 : index
    %555 = vector.load %arg38[%c0_203, %c0_204] : memref<32x2xf32, #tpu.memory_space<vmem>>, vector<32x2xf32>
    "tpu.trace_start"() <{level = 10 : i32, message = "bsd,dn->bsn"}> : () -> ()
    %cst_205 = arith.constant dense<0.000000e+00> : vector<2x8x2xf32>
    %556 = tpu.matmul %554, %555, %cst_205 {dimension_numbers = #tpu.dot_dimension_numbers<[2], [0], [0, 1], [1], [0, 0, 0, 1, 1, 1], [], []>} : vector<2x8x32xf32>, vector<32x2xf32>, vector<2x8x2xf32> -> vector<2x8x2xf32>
    "tpu.trace_stop"() : () -> ()
    %c0_206 = arith.constant 0 : index
    %c0_207 = arith.constant 0 : index
    %557 = vector.load %arg39[%c0_206, %c0_207] : memref<1x2xf32, #tpu.memory_space<vmem>>, vector<1x2xf32>
    %558 = vector.shape_cast %557 : vector<1x2xf32> to vector<1x1x2xf32>
    %559 = vector.broadcast %558 : vector<1x1x2xf32> to vector<2x8x2xf32>
    %560 = arith.addf %556, %559 : vector<2x8x2xf32>
    %c0_208 = arith.constant 0 : index
    %c0_209 = arith.constant 0 : index
    %c0_210 = arith.constant 0 : index
    %561 = vector.load %arg43[%c0_208, %c0_209, %c0_210] : memref<2x8x2xf32, #tpu.memory_space<vmem>>, vector<2x8x2xf32>
    tpu.vector_store %arg43[%c0_208, %c0_209, %c0_210], %560 {strides = array<i32>} : memref<2x8x2xf32, #tpu.memory_space<vmem>>, vector<2x8x2xf32>,
    return
  }
}

</mosaic_0001>

<llo_original>
// kernel: tft_encoder_forward.1
$region0: #{tft_encoder_forward.1}
  #allocation0 [shape = 'u32[]', space=smem, size = 0x4, offset = 0x4, fixed_abs, tag = 'smem constant byte address 0x4 - core index']
  #allocation1 [shape = 'u32[144,128]{1,0:T(1,128)}', space=vmem, size = 0x12000, scoped, tag = 'internal scratch']
  %s0 = inlined_call_operand.smem [shape: u32[44], index: -1, kind: input, shape index: {}]
  %s1 = sld [smem:[%s0]]
  %s2 = scalar_lea.smem %s0, 1
  %s3 = sld [smem:[%s2]]
  %s4 = scalar_lea.smem %s0, 2
  %s5 = sld [smem:[%s4]]
  %s6 = scalar_lea.smem %s0, 3
  %s7 = sld [smem:[%s6]]
  %s8 = scalar_lea.smem %s0, 4
  %s9 = sld [smem:[%s8]]
  %s10 = scalar_lea.smem %s0, 5
  %s11 = sld [smem:[%s10]]
  %s12 = scalar_lea.smem %s0, 6
  %s13 = sld [smem:[%s12]]
  %s14 = scalar_lea.smem %s0, 7
  %s15 = sld [smem:[%s14]]
  %s16 = scalar_lea.smem %s0, 8
  %s17 = sld [smem:[%s16]]
  %s18 = scalar_lea.smem %s0, 9
  %s19 = sld [smem:[%s18]]
  %s20 = scalar_lea.smem %s0, 10
  %s21 = sld [smem:[%s20]]
  %s22 = scalar_lea.smem %s0, 11
  %s23 = sld [smem:[%s22]]
  %s24 = scalar_lea.smem %s0, 12
  %s25 = sld [smem:[%s24]]
  %s26 = scalar_lea.smem %s0, 13
  %s27 = sld [smem:[%s26]]
  %s28 = scalar_lea.smem %s0, 14
  %s29 = sld [smem:[%s28]]
  %s30 = scalar_lea.smem %s0, 15
  %s31 = sld [smem:[%s30]]
  %s32 = scalar_lea.smem %s0, 16
  %s33 = sld [smem:[%s32]]
  %s34 = scalar_lea.smem %s0, 17
  %s35 = sld [smem:[%s34]]
  %s36 = scalar_lea.smem %s0, 18
  %s37 = sld [smem:[%s36]]
  %s38 = scalar_lea.smem %s0, 19
  %s39 = sld [smem:[%s38]]
  %s40 = scalar_lea.smem %s0, 20
  %s41 = sld [smem:[%s40]]
  %s42 = scalar_lea.smem %s0, 21
  %s43 = sld [smem:[%s42]]
  %s44 = scalar_lea.smem %s0, 22
  %s45 = sld [smem:[%s44]]
  %s46 = scalar_lea.smem %s0, 23
  %s47 = sld [smem:[%s46]]
  %s48 = scalar_lea.smem %s0, 24
  %s49 = sld [smem:[%s48]]
  %s50 = scalar_lea.smem %s0, 25
  %s51 = sld [smem:[%s50]]
  %s52 = scalar_lea.smem %s0, 26
  %s53 = sld [smem:[%s52]]
  %s54 = scalar_lea.smem %s0, 27
  %s55 = sld [smem:[%s54]]
  %s56 = scalar_lea.smem %s0, 28
  %s57 = sld [smem:[%s56]]
  %s58 = scalar_lea.smem %s0, 29
  %s59 = sld [smem:[%s58]]
  %s60 = scalar_lea.smem %s0, 30
  %s61 = sld [smem:[%s60]]
  %s62 = scalar_lea.smem %s0, 31
  %s63 = sld [smem:[%s62]]
  %s64 = scalar_lea.smem %s0, 32
  %s65 = sld [smem:[%s64]]
  %s66 = scalar_lea.smem %s0, 33
  %s67 = sld [smem:[%s66]]
  %s68 = scalar_lea.smem %s0, 34
  %s69 = sld [smem:[%s68]]
  %s70 = scalar_lea.smem %s0, 35
  %s71 = sld [smem:[%s70]]
  %s72 = scalar_lea.smem %s0, 36
  %s73 = sld [smem:[%s72]]
  %s74 = scalar_lea.smem %s0, 37
  %s75 = sld [smem:[%s74]]
  %s76 = scalar_lea.smem %s0, 38
  %s77 = sld [smem:[%s76]]
  %s78 = scalar_lea.smem %s0, 39
  %s79 = sld [smem:[%s78]]
  %s80 = scalar_lea.smem %s0, 40
  %s81 = sld [smem:[%s80]]
  %s82 = scalar_lea.smem %s0, 41
  %s83 = sld [smem:[%s82]]
  %s84 = scalar_lea.smem %s0, 42
  %s85 = sld [smem:[%s84]]
  %s86 = scalar_lea.smem %s0, 43
  %s87 = sld [smem:[%s86]]
  %88 = xla_tuple %s81, %s83, %s85, %s87
  %s89 = sld [smem:[#allocation0]]
  $region306: #{tft_encoder_forward.1} parent=0
    _
  %s91 = ssub.s32 1, %s89
  %s92 = scalar_select 0, %s91, %s89
  $region1: #{tft_encoder_forward.1} parent=0
    #allocation2 [shape = 'u8[1024]{0}', space=vmem, size = 0x400, scoped, tag = 'input window, operand 0, single buffered']
    #allocation3 [shape = 's32[1]{0}', space=sflag, size = 0x4, scoped, tag = 'scoped memory for tft_encoder_forward.1']
    #allocation4 [shape = 's32[1]{0}', space=sflag, size = 0x4, scoped, tag = 'scoped memory for tft_encoder_forward.1']
    #allocation5 [shape = 'u8[8192]{0}', space=vmem, size = 0x2000, scoped, tag = 'input window, operand 4, single buffered']
    #allocation6 [shape = 's32[1]{0}', space=sflag, size = 0x4, scoped, tag = 'scoped memory for tft_encoder_forward.1']
    #allocation7 [shape = 'u8[512]{0}', space=vmem, size = 0x400, scoped, tag = 'input window, operand 5, single buffered']
    #allocation8 [shape = 'u8[512]{0}', space=vmem, size = 0x400, scoped, tag = 'input window, operand 7, single buffered']
    #allocation9 [shape = 's32[1]{0}', space=sflag, size = 0x4, scoped, tag = 'scoped memory for tft_encoder_forward.1']
    #allocation10 [shape = 'u8[512]{0}', space=vmem, size = 0x400, scoped, tag = 'input window, operand 9, single buffered']
    #allocation11 [shape = 'u8[512]{0}', space=vmem, size = 0x400, scoped, tag = 'input window, operand 10, single buffered']
    #allocation12 [shape = 's32[1]{0}', space=sflag, size = 0x4, scoped, tag = 'scoped memory for tft_encoder_forward.1']
    #allocation13 [shape = 'u8[512]{0}', space=vmem, size = 0x400, scoped, tag = 'input window, operand 11, single buffered']
    #allocation14 [shape = 'u8[512]{0}', space=vmem, size = 0x400, scoped, tag = 'input window, operand 13, single buffered']
    #allocation15 [shape = 's32[1]{0}', space=sflag, size = 0x4, scoped, tag = 'scoped memory for tft_encoder_forward.1']
    #allocation16 [shape = 'u8[512]{0}', space=vmem, size = 0x400, scoped, tag = 'input window, operand 15, single buffered']
    #allocation17 [shape = 'u8[16384]{0}', space=vmem, size = 0x4000, scoped, tag = 'input window, operand 16, single buffered']
    #allocation18 [shape = 's32[1]{0}', space=sflag, size = 0x4, scoped, tag = 'scoped memory for tft_encoder_forward.1']
    #allocation19 [shape = 'u8[512]{0}', space=vmem, size = 0x400, scoped, tag = 'input window, operand 17, single buffered']
    #allocation20 [shape = 'u8[512]{0}', space=vmem, size = 0x400, scoped, tag = 'input window, operand 18, single buffered']
    #allocation21 [shape = 's32[1]{0}', space=sflag, size = 0x4, scoped, tag = 'scoped memory for tft_encoder_forward.1']
    #allocation22 [shape = 'u8[512]{0}', space=vmem, size = 0x400, scoped, tag = 'input window, operand 19, single buffered']
    #allocation23 [shape = 'u8[12288]{0}', space=vmem, size = 0x3000, scoped, tag = 'input window, operand 20, single buffered']
    #allocation24 [shape = 's32[1]{0}', space=sflag, size = 0x4, scoped, tag = 'scoped memory for tft_encoder_forward.1']
    #allocation25 [shape = 'u8[512]{0}', space=vmem, size = 0x400, scoped, tag = 'input window, operand 21, single buffered']
    #allocation26 [shape = 'u8[512]{0}', space=vmem, size = 0x400, scoped, tag = 'input window, operand 24, single buffered']
    #allocation27 [shape = 's32[1]{0}', space=sflag, size = 0x4, scoped, tag = 'scoped memory for tft_encoder_forward.1']
    #allocation28 [shape = 'u8[16384]{0}', space=vmem, size = 0x4000, scoped, tag = 'input window, operand 25, single buffered']
    #allocation29 [shape = 'u8[512]{0}', space=vmem, size = 0x400, scoped, tag = 'input window, operand 26, single buffered']
    #allocation30 [shape = 's32[1]{0}', space=sflag, size = 0x4, scoped, tag = 'scoped memory for tft_encoder_forward.1']
    #allocation31 [shape = 'u8[512]{0}', space=vmem, size = 0x400, scoped, tag = 'input window, operand 27, single buffered']
    #allocation32 [shape = 'u8[512]{0}', space=vmem, size = 0x400, scoped, tag = 'input window, operand 28, single buffered']
    #allocation33 [shape = 's32[1]{0}', space=sflag, size = 0x4, scoped, tag = 'scoped memory for tft_encoder_forward.1']
    #allocation34 [shape = 'u8[16384]{0}', space=vmem, size = 0x4000, scoped, tag = 'input window, operand 29, single buffered']
    #allocation35 [shape = 'u8[512]{0}', space=vmem, size = 0x400, scoped, tag = 'input window, operand 30, single buffered']
    #allocation36 [shape = 's32[1]{0}', space=sflag, size = 0x4, scoped, tag = 'scoped memory for tft_encoder_forward.1']
    #allocation37 [shape = 'u8[16384]{0}', space=vmem, size = 0x4000, scoped, tag = 'input window, operand 31, single buffered']
    #allocation38 [shape = 'u8[16384]{0}', space=vmem, size = 0x4000, scoped, tag = 'input window, operand 32, single buffered']
    #allocation39 [shape = 's32[1]{0}', space=sflag, size = 0x4, scoped, tag = 'scoped memory for tft_encoder_forward.1']
    #allocation40 [shape = 'u8[16384]{0}', space=vmem, size = 0x4000, scoped, tag = 'input window, operand 33, single buffered']
    #allocation41 [shape = 'u8[16384]{0}', space=vmem, size = 0x4000, scoped, tag = 'input window, operand 34, single buffered']
    #allocation42 [shape = 's32[1]{0}', space=sflag, size = 0x4, scoped, tag = 'scoped memory for tft_encoder_forward.1']
    #allocation43 [shape = 'u8[16384]{0}', space=vmem, size = 0x4000, scoped, tag = 'input window, operand 36, single buffered']
    #allocation44 [shape = 'u8[512]{0}', space=vmem, size = 0x400, scoped, tag = 'input window, operand 39, single buffered']
    #allocation45 [shape = 's32[1]{0}', space=sflag, size = 0x4, scoped, tag = 'scoped memory for tft_encoder_forward.1']
    #allocation46 [shape = 'u8[8192]{0}', space=vmem, size = 0x2000, scoped, tag = 'output window, operand 0, single buffered']
    #allocation47 [shape = 'u8[8192]{0}', space=vmem, size = 0x2000, scoped, tag = 'output window, operand 1, single buffered']
    #allocation48 [shape = 's32[1]{0}', space=sflag, size = 0x4, scoped, tag = 'scoped memory for tft_encoder_forward.1']
    #allocation49 [shape = 'u8[1024]{0}', space=vmem, size = 0x400, scoped, tag = 'output window, operand 2, single buffered']
    %93 = vsyncpa [#allocation3], 0
    %94 = vsyncpa [#allocation6], 0
    %95 = vsyncpa [#allocation9], 0
    %96 = vsyncpa [#allocation12], 0
    %97 = vsyncpa [#allocation15], 0
    %98 = vsyncpa [#allocation18], 0
    %99 = vsyncpa [#allocation21], 0
    %100 = vsyncpa [#allocation24], 0
    %101 = vsyncpa [#allocation27], 0
    %102 = vsyncpa [#allocation30], 0
    %103 = vsyncpa [#allocation33], 0
    %104 = vsyncpa [#allocation36], 0
    %105 = vsyncpa [#allocation39], 0
    %106 = vsyncpa [#allocation42], 0
    %107 = vsyncpa [#allocation45], 0
    %108 = vsyncpa [#allocation4], 0
    %109 = vsyncpa [#allocation48], 0
    // Predicated region
    $region2: #{tft_encoder_forward.1} parent=1 // pred_check
      _
    $region3: #{tft_encoder_forward.1} parent=1 // pred_check_branch
      %111 = sbr.rel (0) target = $region5
    $region4: #{tft_encoder_forward.1} parent=1 // pred_region
      %s113 = ssub.s32 32, 32
      %114 = vsyncadd [#allocation3], %s113
      %s116 = sshll.u32 [#allocation2], 4
      %s117 = int_to_ptr.vmem [resolvable:$true] %s116
      %119 = dma.hbm_to_vmem [thread:$0]  %s1, 32, %s117, [#allocation3]
    $region5: #{tft_encoder_forward.1} parent=1 // pred_fallthru
      _
    // Predicated region
    $region6: #{tft_encoder_forward.1} parent=1 // pred_check
      _
    $region7: #{tft_encoder_forward.1} parent=1 // pred_check_branch
      %121 = sbr.rel (0) target = $region9
    $region8: #{tft_encoder_forward.1} parent=1 // pred_region
      _
    $region9: #{tft_encoder_forward.1} parent=1 // pred_fallthru
      _
    // Predicated region
    $region10: #{tft_encoder_forward.1} parent=1 // pred_check
      _
    $region11: #{tft_encoder_forward.1} parent=1 // pred_check_branch
      %123 = sbr.rel (0) target = $region13
    $region12: #{tft_encoder_forward.1} parent=1 // pred_region
      _
    $region13: #{tft_encoder_forward.1} parent=1 // pred_fallthru
      _
    // Predicated region
    $region14: #{tft_encoder_forward.1} parent=1 // pred_check
      _
    $region15: #{tft_encoder_forward.1} parent=1 // pred_check_branch
      %125 = sbr.rel (0) target = $region17
    $region16: #{tft_encoder_forward.1} parent=1 // pred_region
      _
    $region17: #{tft_encoder_forward.1} parent=1 // pred_fallthru
      _
    // Predicated region
    $region18: #{tft_encoder_forward.1} parent=1 // pred_check
      _
    $region19: #{tft_encoder_forward.1} parent=1 // pred_check_branch
      %127 = sbr.rel (0) target = $region21
    $region20: #{tft_encoder_forward.1} parent=1 // pred_region
      %s129 = ssub.s32 256, 256
      %130 = vsyncadd [#allocation6], %s129
      %s131 = sshll.u32 [#allocation5], 4
      %s132 = int_to_ptr.vmem [resolvable:$true] %s131
      %137 = dma.hbm_to_vmem [thread:$0]  %s9, 256, %s132, [#allocation6], 128, 128, 8
    $region21: #{tft_encoder_forward.1} parent=1 // pred_fallthru
      _
    // Predicated region
    $region22: #{tft_encoder_forward.1} parent=1 // pred_check
      _
    $region23: #{tft_encoder_forward.1} parent=1 // pred_check_branch
      %139 = sbr.rel (0) target = $region25
    $region24: #{tft_encoder_forward.1} parent=1 // pred_region
      %s141 = ssub.s32 16, 16
      %142 = vsyncadd [#allocation6], %s141
      %s144 = sshll.u32 [#allocation7], 4
      %s145 = int_to_ptr.vmem [resolvable:$true] %s144
      %147 = dma.hbm_to_vmem [thread:$0]  %s11, 16, %s145, [#allocation6]
    $region25: #{tft_encoder_forward.1} parent=1 // pred_fallthru
      _
    // Predicated region
    $region26: #{tft_encoder_forward.1} parent=1 // pred_check
      _
    $region27: #{tft_encoder_forward.1} parent=1 // pred_check_branch
      %149 = sbr.rel (0) target = $region29
    $region28: #{tft_encoder_forward.1} parent=1 // pred_region
      _
    $region29: #{tft_encoder_forward.1} parent=1 // pred_fallthru
      _
    // Predicated region
    $region30: #{tft_encoder_forward.1} parent=1 // pred_check
      _
    $region31: #{tft_encoder_forward.1} parent=1 // pred_check_branch
      %151 = sbr.rel (0) target = $region33
    $region32: #{tft_encoder_forward.1} parent=1 // pred_region
      %s153 = ssub.s32 16, 16
      %154 = vsyncadd [#allocation9], %s153
      %s156 = sshll.u32 [#allocation8], 4
      %s157 = int_to_ptr.vmem [resolvable:$true] %s156
      %159 = dma.hbm_to_vmem [thread:$0]  %s15, 16, %s157, [#allocation9]
    $region33: #{tft_encoder_forward.1} parent=1 // pred_fallthru
      _
    // Predicated region
    $region34: #{tft_encoder_forward.1} parent=1 // pred_check
      _
    $region35: #{tft_encoder_forward.1} parent=1 // pred_check_branch
      %161 = sbr.rel (0) target = $region37
    $region36: #{tft_encoder_forward.1} parent=1 // pred_region
      _
    $region37: #{tft_encoder_forward.1} parent=1 // pred_fallthru
      _
    // Predicated region
    $region38: #{tft_encoder_forward.1} parent=1 // pred_check
      _
    $region39: #{tft_encoder_forward.1} parent=1 // pred_check_branch
      %163 = sbr.rel (0) target = $region41
    $region40: #{tft_encoder_forward.1} parent=1 // pred_region
      %s165 = ssub.s32 16, 16
      %166 = vsyncadd [#allocation9], %s165
      %s168 = sshll.u32 [#allocation10], 4
      %s169 = int_to_ptr.vmem [resolvable:$true] %s168
      %171 = dma.hbm_to_vmem [thread:$0]  %s19, 16, %s169, [#allocation9]
    $region41: #{tft_encoder_forward.1} parent=1 // pred_fallthru
      _
    // Predicated region
    $region42: #{tft_encoder_forward.1} parent=1 // pred_check
      _
    $region43: #{tft_encoder_forward.1} parent=1 // pred_check_branch
      %173 = sbr.rel (0) target = $region45
    $region44: #{tft_encoder_forward.1} parent=1 // pred_region
      %s175 = ssub.s32 16, 16
      %176 = vsyncadd [#allocation12], %s175
      %s178 = sshll.u32 [#allocation11], 4
      %s179 = int_to_ptr.vmem [resolvable:$true] %s178
      %181 = dma.hbm_to_vmem [thread:$0]  %s21, 16, %s179, [#allocation12]
    $region45: #{tft_encoder_forward.1} parent=1 // pred_fallthru
      _
    // Predicated region
    $region46: #{tft_encoder_forward.1} parent=1 // pred_check
      _
    $region47: #{tft_encoder_forward.1} parent=1 // pred_check_branch
      %183 = sbr.rel (0) target = $region49
    $region48: #{tft_encoder_forward.1} parent=1 // pred_region
      %s185 = ssub.s32 16, 16
      %186 = vsyncadd [#allocation12], %s185
      %s188 = sshll.u32 [#allocation13], 4
      %s189 = int_to_ptr.vmem [resolvable:$true] %s188
      %191 = dma.hbm_to_vmem [thread:$0]  %s23, 16, %s189, [#allocation12]
    $region49: #{tft_encoder_forward.1} parent=1 // pred_fallthru
      _
    // Predicated region
    $region50: #{tft_encoder_forward.1} parent=1 // pred_check
      _
    $region51: #{tft_encoder_forward.1} parent=1 // pred_check_branch
      %193 = sbr.rel (0) target = $region53
    $region52: #{tft_encoder_forward.1} parent=1 // pred_region
      _
    $region53: #{tft_encoder_forward.1} parent=1 // pred_fallthru
      _
    // Predicated region
    $region54: #{tft_encoder_forward.1} parent=1 // pred_check
      _
    $region55: #{tft_encoder_forward.1} parent=1 // pred_check_branch
      %195 = sbr.rel (0) target = $region57
    $region56: #{tft_encoder_forward.1} parent=1 // pred_region
      %s197 = ssub.s32 16, 16
      %198 = vsyncadd [#allocation15], %s197
      %s200 = sshll.u32 [#allocation14], 4
      %s201 = int_to_ptr.vmem [resolvable:$true] %s200
      %203 = dma.hbm_to_vmem [thread:$0]  %s27, 16, %s201, [#allocation15]
    $region57: #{tft_encoder_forward.1} parent=1 // pred_fallthru
      _
    // Predicated region
    $region58: #{tft_encoder_forward.1} parent=1 // pred_check
      _
    $region59: #{tft_encoder_forward.1} parent=1 // pred_check_branch
      %205 = sbr.rel (0) target = $region61
    $region60: #{tft_encoder_forward.1} parent=1 // pred_region
      _
    $region61: #{tft_encoder_forward.1} parent=1 // pred_fallthru
      _
    // Predicated region
    $region62: #{tft_encoder_forward.1} parent=1 // pred_check
      _
    $region63: #{tft_encoder_forward.1} parent=1 // pred_check_branch
      %207 = sbr.rel (0) target = $region65
    $region64: #{tft_encoder_forward.1} parent=1 // pred_region
      %s209 = ssub.s32 16, 16
      %210 = vsyncadd [#allocation15], %s209
      %s212 = sshll.u32 [#allocation16], 4
      %s213 = int_to_ptr.vmem [resolvable:$true] %s212
      %215 = dma.hbm_to_vmem [thread:$0]  %s31, 16, %s213, [#allocation15]
    $region65: #{tft_encoder_forward.1} parent=1 // pred_fallthru
      _
    // Predicated region
    $region66: #{tft_encoder_forward.1} parent=1 // pred_check
      _
    $region67: #{tft_encoder_forward.1} parent=1 // pred_check_branch
      %217 = sbr.rel (0) target = $region69
    $region68: #{tft_encoder_forward.1} parent=1 // pred_region
      %s219 = ssub.s32 512, 512
      %220 = vsyncadd [#allocation18], %s219
      %s221 = sshll.u32 [#allocation17], 4
      %s222 = int_to_ptr.vmem [resolvable:$true] %s221
      %227 = dma.hbm_to_vmem [thread:$0]  %s33, 512, %s222, [#allocation18], 128, 128, 8
    $region69: #{tft_encoder_forward.1} parent=1 // pred_fallthru
      _
    // Predicated region
    $region70: #{tft_encoder_forward.1} parent=1 // pred_check
      _
    $region71: #{tft_encoder_forward.1} parent=1 // pred_check_branch
      %229 = sbr.rel (0) target = $region73
    $region72: #{tft_encoder_forward.1} parent=1 // pred_region
      %s231 = ssub.s32 16, 16
      %232 = vsyncadd [#allocation18], %s231
      %s234 = sshll.u32 [#allocation19], 4
      %s235 = int_to_ptr.vmem [resolvable:$true] %s234
      %237 = dma.hbm_to_vmem [thread:$0]  %s35, 16, %s235, [#allocation18]
    $region73: #{tft_encoder_forward.1} parent=1 // pred_fallthru
      _
    // Predicated region
    $region74: #{tft_encoder_forward.1} parent=1 // pred_check
      _
    $region75: #{tft_encoder_forward.1} parent=1 // pred_check_branch
      %239 = sbr.rel (0) target = $region77
    $region76: #{tft_encoder_forward.1} parent=1 // pred_region
      %s241 = ssub.s32 16, 16
      %242 = vsyncadd [#allocation21], %s241
      %s244 = sshll.u32 [#allocation20], 4
      %s245 = int_to_ptr.vmem [resolvable:$true] %s244
      %247 = dma.hbm_to_vmem [thread:$0]  %s37, 16, %s245, [#allocation21]
    $region77: #{tft_encoder_forward.1} parent=1 // pred_fallthru
      _
    // Predicated region
    $region78: #{tft_encoder_forward.1} parent=1 // pred_check
      _
    $region79: #{tft_encoder_forward.1} parent=1 // pred_check_branch
      %249 = sbr.rel (0) target = $region81
    $region80: #{tft_encoder_forward.1} parent=1 // pred_region
      %s251 = ssub.s32 16, 16
      %252 = vsyncadd [#allocation21], %s251
      %s254 = sshll.u32 [#allocation22], 4
      %s255 = int_to_ptr.vmem [resolvable:$true] %s254
      %257 = dma.hbm_to_vmem [thread:$0]  %s39, 16, %s255, [#allocation21]
    $region81: #{tft_encoder_forward.1} parent=1 // pred_fallthru
      _
    // Predicated region
    $region82: #{tft_encoder_forward.1} parent=1 // pred_check
      _
    $region83: #{tft_encoder_forward.1} parent=1 // pred_check_branch
      %259 = sbr.rel (0) target = $region85
    $region84: #{tft_encoder_forward.1} parent=1 // pred_region
      %s261 = ssub.s32 384, 384
      %262 = vsyncadd [#allocation24], %s261
      %s263 = sshll.u32 [#allocation23], 4
      %s264 = int_to_ptr.vmem [resolvable:$true] %s263
      %269 = dma.hbm_to_vmem [thread:$0]  %s41, 384, %s264, [#allocation24], 128, 128, 8
    $region85: #{tft_encoder_forward.1} parent=1 // pred_fallthru
      _
    // Predicated region
    $region86: #{tft_encoder_forward.1} parent=1 // pred_check
      _
    $region87: #{tft_encoder_forward.1} parent=1 // pred_check_branch
      %271 = sbr.rel (0) target = $region89
    $region88: #{tft_encoder_forward.1} parent=1 // pred_region
      %s273 = ssub.s32 16, 16
      %274 = vsyncadd [#allocation24], %s273
      %s276 = sshll.u32 [#allocation25], 4
      %s277 = int_to_ptr.vmem [resolvable:$true] %s276
      %279 = dma.hbm_to_vmem [thread:$0]  %s43, 16, %s277, [#allocation24]
    $region89: #{tft_encoder_forward.1} parent=1 // pred_fallthru
      _
    // Predicated region
    $region90: #{tft_encoder_forward.1} parent=1 // pred_check
      _
    $region91: #{tft_encoder_forward.1} parent=1 // pred_check_branch
      %281 = sbr.rel (0) target = $region93
    $region92: #{tft_encoder_forward.1} parent=1 // pred_region
      _
    $region93: #{tft_encoder_forward.1} parent=1 // pred_fallthru
      _
    // Predicated region
    $region94: #{tft_encoder_forward.1} parent=1 // pred_check
      _
    $region95: #{tft_encoder_forward.1} parent=1 // pred_check_branch
      %283 = sbr.rel (0) target = $region97
    $region96: #{tft_encoder_forward.1} parent=1 // pred_region
      _
    $region97: #{tft_encoder_forward.1} parent=1 // pred_fallthru
      _
    // Predicated region
    $region98: #{tft_encoder_forward.1} parent=1 // pred_check
      _
    $region99: #{tft_encoder_forward.1} parent=1 // pred_check_branch
      %285 = sbr.rel (0) target = $region101
    $region100: #{tft_encoder_forward.1} parent=1 // pred_region
      %s287 = ssub.s32 16, 16
      %288 = vsyncadd [#allocation27], %s287
      %s290 = sshll.u32 [#allocation26], 4
      %s291 = int_to_ptr.vmem [resolvable:$true] %s290
      %293 = dma.hbm_to_vmem [thread:$0]  %s49, 16, %s291, [#allocation27]
    $region101: #{tft_encoder_forward.1} parent=1 // pred_fallthru
      _
    // Predicated region
    $region102: #{tft_encoder_forward.1} parent=1 // pred_check
      _
    $region103: #{tft_encoder_forward.1} parent=1 // pred_check_branch
      %295 = sbr.rel (0) target = $region105
    $region104: #{tft_encoder_forward.1} parent=1 // pred_region
      %s297 = ssub.s32 512, 512
      %298 = vsyncadd [#allocation27], %s297
      %s299 = sshll.u32 [#allocation28], 4
      %s300 = int_to_ptr.vmem [resolvable:$true] %s299
      %305 = dma.hbm_to_vmem [thread:$0]  %s51, 512, %s300, [#allocation27], 128, 128, 8
    $region105: #{tft_encoder_forward.1} parent=1 // pred_fallthru
      _
    // Predicated region
    $region106: #{tft_encoder_forward.1} parent=1 // pred_check
      _
    $region107: #{tft_encoder_forward.1} parent=1 // pred_check_branch
      %307 = sbr.rel (0) target = $region109
    $region108: #{tft_encoder_forward.1} parent=1 // pred_region
      %s309 = ssub.s32 16, 16
      %310 = vsyncadd [#allocation30], %s309
      %s312 = sshll.u32 [#allocation29], 4
      %s313 = int_to_ptr.vmem [resolvable:$true] %s312
      %315 = dma.hbm_to_vmem [thread:$0]  %s53, 16, %s313, [#allocation30]
    $region109: #{tft_encoder_forward.1} parent=1 // pred_fallthru
      _
    // Predicated region
    $region110: #{tft_encoder_forward.1} parent=1 // pred_check
      _
    $region111: #{tft_encoder_forward.1} parent=1 // pred_check_branch
      %317 = sbr.rel (0) target = $region113
    $region112: #{tft_encoder_forward.1} parent=1 // pred_region
      %s319 = ssub.s32 16, 16
      %320 = vsyncadd [#allocation30], %s319
      %s322 = sshll.u32 [#allocation31], 4
      %s323 = int_to_ptr.vmem [resolvable:$true] %s322
      %325 = dma.hbm_to_vmem [thread:$0]  %s55, 16, %s323, [#allocation30]
    $region113: #{tft_encoder_forward.1} parent=1 // pred_fallthru
      _
    // Predicated region
    $region114: #{tft_encoder_forward.1} parent=1 // pred_check
      _
    $region115: #{tft_encoder_forward.1} parent=1 // pred_check_branch
      %327 = sbr.rel (0) target = $region117
    $region116: #{tft_encoder_forward.1} parent=1 // pred_region
      %s329 = ssub.s32 16, 16
      %330 = vsyncadd [#allocation33], %s329
      %s332 = sshll.u32 [#allocation32], 4
      %s333 = int_to_ptr.vmem [resolvable:$true] %s332
      %335 = dma.hbm_to_vmem [thread:$0]  %s57, 16, %s333, [#allocation33]
    $region117: #{tft_encoder_forward.1} parent=1 // pred_fallthru
      _
    // Predicated region
    $region118: #{tft_encoder_forward.1} parent=1 // pred_check
      _
    $region119: #{tft_encoder_forward.1} parent=1 // pred_check_branch
      %337 = sbr.rel (0) target = $region121
    $region120: #{tft_encoder_forward.1} parent=1 // pred_region
      %s339 = ssub.s32 512, 512
      %340 = vsyncadd [#allocation33], %s339
      %s341 = sshll.u32 [#allocation34], 4
      %s342 = int_to_ptr.vmem [resolvable:$true] %s341
      %347 = dma.hbm_to_vmem [thread:$0]  %s59, 512, %s342, [#allocation33], 128, 128, 8
    $region121: #{tft_encoder_forward.1} parent=1 // pred_fallthru
      _
    // Predicated region
    $region122: #{tft_encoder_forward.1} parent=1 // pred_check
      _
    $region123: #{tft_encoder_forward.1} parent=1 // pred_check_branch
      %349 = sbr.rel (0) target = $region125
    $region124: #{tft_encoder_forward.1} parent=1 // pred_region
      %s351 = ssub.s32 16, 16
      %352 = vsyncadd [#allocation36], %s351
      %s354 = sshll.u32 [#allocation35], 4
      %s355 = int_to_ptr.vmem [resolvable:$true] %s354
      %357 = dma.hbm_to_vmem [thread:$0]  %s61, 16, %s355, [#allocation36]
    $region125: #{tft_encoder_forward.1} parent=1 // pred_fallthru
      _
    // Predicated region
    $region126: #{tft_encoder_forward.1} parent=1 // pred_check
      _
    $region127: #{tft_encoder_forward.1} parent=1 // pred_check_branch
      %359 = sbr.rel (0) target = $region129
    $region128: #{tft_encoder_forward.1} parent=1 // pred_region
      %s361 = ssub.s32 512, 512
      %362 = vsyncadd [#allocation36], %s361
      %s363 = sshll.u32 [#allocation37], 4
      %s364 = int_to_ptr.vmem [resolvable:$true] %s363
      %369 = dma.hbm_to_vmem [thread:$0]  %s63, 512, %s364, [#allocation36], 128, 128, 8
    $region129: #{tft_encoder_forward.1} parent=1 // pred_fallthru
      _
    // Predicated region
    $region130: #{tft_encoder_forward.1} parent=1 // pred_check
      _
    $region131: #{tft_encoder_forward.1} parent=1 // pred_check_branch
      %371 = sbr.rel (0) target = $region133
    $region132: #{tft_encoder_forward.1} parent=1 // pred_region
      %s373 = ssub.s32 512, 512
      %374 = vsyncadd [#allocation39], %s373
      %s375 = sshll.u32 [#allocation38], 4
      %s376 = int_to_ptr.vmem [resolvable:$true] %s375
      %381 = dma.hbm_to_vmem [thread:$0]  %s65, 512, %s376, [#allocation39], 128, 128, 8
    $region133: #{tft_encoder_forward.1} parent=1 // pred_fallthru
      _
    // Predicated region
    $region134: #{tft_encoder_forward.1} parent=1 // pred_check
      _
    $region135: #{tft_encoder_forward.1} parent=1 // pred_check_branch
      %383 = sbr.rel (0) target = $region137
    $region136: #{tft_encoder_forward.1} parent=1 // pred_region
      %s385 = ssub.s32 512, 512
      %386 = vsyncadd [#allocation39], %s385
      %s387 = sshll.u32 [#allocation40], 4
      %s388 = int_to_ptr.vmem [resolvable:$true] %s387
      %393 = dma.hbm_to_vmem [thread:$0]  %s67, 512, %s388, [#allocation39], 128, 128, 8
    $region137: #{tft_encoder_forward.1} parent=1 // pred_fallthru
      _
    // Predicated region
    $region138: #{tft_encoder_forward.1} parent=1 // pred_check
      _
    $region139: #{tft_encoder_forward.1} parent=1 // pred_check_branch
      %395 = sbr.rel (0) target = $region141
    $region140: #{tft_encoder_forward.1} parent=1 // pred_region
      %s397 = ssub.s32 512, 512
      %398 = vsyncadd [#allocation42], %s397
      %s399 = sshll.u32 [#allocation41], 4
      %s400 = int_to_ptr.vmem [resolvable:$true] %s399
      %405 = dma.hbm_to_vmem [thread:$0]  %s69, 512, %s400, [#allocation42], 128, 128, 8
    $region141: #{tft_encoder_forward.1} parent=1 // pred_fallthru
      _
    // Predicated region
    $region142: #{tft_encoder_forward.1} parent=1 // pred_check
      _
    $region143: #{tft_encoder_forward.1} parent=1 // pred_check_branch
      %407 = sbr.rel (0) target = $region145
    $region144: #{tft_encoder_forward.1} parent=1 // pred_region
      _
    $region145: #{tft_encoder_forward.1} parent=1 // pred_fallthru
      _
    // Predicated region
    $region146: #{tft_encoder_forward.1} parent=1 // pred_check
      _
    $region147: #{tft_encoder_forward.1} parent=1 // pred_check_branch
      %409 = sbr.rel (0) target = $region149
    $region148: #{tft_encoder_forward.1} parent=1 // pred_region
      %s411 = ssub.s32 512, 512
      %412 = vsyncadd [#allocation42], %s411
      %s413 = sshll.u32 [#allocation43], 4
      %s414 = int_to_ptr.vmem [resolvable:$true] %s413
      %419 = dma.hbm_to_vmem [thread:$0]  %s73, 512, %s414, [#allocation42], 128, 128, 8
    $region149: #{tft_encoder_forward.1} parent=1 // pred_fallthru
      _
    // Predicated region
    $region150: #{tft_encoder_forward.1} parent=1 // pred_check
      _
    $region151: #{tft_encoder_forward.1} parent=1 // pred_check_branch
      %421 = sbr.rel (0) target = $region153
    $region152: #{tft_encoder_forward.1} parent=1 // pred_region
      _
    $region153: #{tft_encoder_forward.1} parent=1 // pred_fallthru
      _
    // Predicated region
    $region154: #{tft_encoder_forward.1} parent=1 // pred_check
      _
    $region155: #{tft_encoder_forward.1} parent=1 // pred_check_branch
      %423 = sbr.rel (0) target = $region157
    $region156: #{tft_encoder_forward.1} parent=1 // pred_region
      _
    $region157: #{tft_encoder_forward.1} parent=1 // pred_fallthru
      _
    // Predicated region
    $region158: #{tft_encoder_forward.1} parent=1 // pred_check
      _
    $region159: #{tft_encoder_forward.1} parent=1 // pred_check_branch
      %425 = sbr.rel (0) target = $region161
    $region160: #{tft_encoder_forward.1} parent=1 // pred_region
      %s427 = ssub.s32 16, 16
      %428 = vsyncadd [#allocation45], %s427
      %s430 = sshll.u32 [#allocation44], 4
      %s431 = int_to_ptr.vmem [resolvable:$true] %s430
      %433 = dma.hbm_to_vmem [thread:$0]  %s79, 16, %s431, [#allocation45]
    $region161: #{tft_encoder_forward.1} parent=1 // pred_fallthru
      _
    // Predicated region
    $region162: #{tft_encoder_forward.1} parent=1 // pred_check
      _
    $region163: #{tft_encoder_forward.1} parent=1 // pred_check_branch
      %435 = sbr.rel (0) target = $region165
    $region164: #{tft_encoder_forward.1} parent=1 // pred_region
      %436 = dma.done [#allocation3], 32
    $region165: #{tft_encoder_forward.1} parent=1 // pred_fallthru
      _
    // Predicated region
    $region166: #{tft_encoder_forward.1} parent=1 // pred_check
      _
    $region167: #{tft_encoder_forward.1} parent=1 // pred_check_branch
      %438 = sbr.rel (0) target = $region169
    $region168: #{tft_encoder_forward.1} parent=1 // pred_region
      %439 = dma.done [#allocation6], 256
    $region169: #{tft_encoder_forward.1} parent=1 // pred_fallthru
      _
    // Predicated region
    $region170: #{tft_encoder_forward.1} parent=1 // pred_check
      _
    $region171: #{tft_encoder_forward.1} parent=1 // pred_check_branch
      %441 = sbr.rel (0) target = $region173
    $region172: #{tft_encoder_forward.1} parent=1 // pred_region
      %442 = dma.done [#allocation6], 16
    $region173: #{tft_encoder_forward.1} parent=1 // pred_fallthru
      _
    // Predicated region
    $region174: #{tft_encoder_forward.1} parent=1 // pred_check
      _
    $region175: #{tft_encoder_forward.1} parent=1 // pred_check_branch
      %444 = sbr.rel (0) target = $region177
    $region176: #{tft_encoder_forward.1} parent=1 // pred_region
      %445 = dma.done [#allocation9], 16
    $region177: #{tft_encoder_forward.1} parent=1 // pred_fallthru
      _
    // Predicated region
    $region178: #{tft_encoder_forward.1} parent=1 // pred_check
      _
    $region179: #{tft_encoder_forward.1} parent=1 // pred_check_branch
      %447 = sbr.rel (0) target = $region181
    $region180: #{tft_encoder_forward.1} parent=1 // pred_region
      %448 = dma.done [#allocation9], 16
    $region181: #{tft_encoder_forward.1} parent=1 // pred_fallthru
      _
    // Predicated region
    $region182: #{tft_encoder_forward.1} parent=1 // pred_check
      _
    $region183: #{tft_encoder_forward.1} parent=1 // pred_check_branch
      %450 = sbr.rel (0) target = $region185
    $region184: #{tft_encoder_forward.1} parent=1 // pred_region
      %451 = dma.done [#allocation12], 16
    $region185: #{tft_encoder_forward.1} parent=1 // pred_fallthru
      _
    // Predicated region
    $region186: #{tft_encoder_forward.1} parent=1 // pred_check
      _
    $region187: #{tft_encoder_forward.1} parent=1 // pred_check_branch
      %453 = sbr.rel (0) target = $region189
    $region188: #{tft_encoder_forward.1} parent=1 // pred_region
      %454 = dma.done [#allocation12], 16
    $region189: #{tft_encoder_forward.1} parent=1 // pred_fallthru
      _
    // Predicated region
    $region190: #{tft_encoder_forward.1} parent=1 // pred_check
      _
    $region191: #{tft_encoder_forward.1} parent=1 // pred_check_branch
      %456 = sbr.rel (0) target = $region193
    $region192: #{tft_encoder_forward.1} parent=1 // pred_region
      %457 = dma.done [#allocation15], 16
    $region193: #{tft_encoder_forward.1} parent=1 // pred_fallthru
      _
    // Predicated region
    $region194: #{tft_encoder_forward.1} parent=1 // pred_check
      _
    $region195: #{tft_encoder_forward.1} parent=1 // pred_check_branch
      %459 = sbr.rel (0) target = $region197
    $region196: #{tft_encoder_forward.1} parent=1 // pred_region
      %460 = dma.done [#allocation15], 16
    $region197: #{tft_encoder_forward.1} parent=1 // pred_fallthru
      _
    // Predicated region
    $region198: #{tft_encoder_forward.1} parent=1 // pred_check
      _
    $region199: #{tft_encoder_forward.1} parent=1 // pred_check_branch
      %462 = sbr.rel (0) target = $region201
    $region200: #{tft_encoder_forward.1} parent=1 // pred_region
      %463 = dma.done [#allocation18], 512
    $region201: #{tft_encoder_forward.1} parent=1 // pred_fallthru
      _
    // Predicated region
    $region202: #{tft_encoder_forward.1} parent=1 // pred_check
      _
    $region203: #{tft_encoder_forward.1} parent=1 // pred_check_branch
      %465 = sbr.rel (0) target = $region205
    $region204: #{tft_encoder_forward.1} parent=1 // pred_region
      %466 = dma.done [#allocation18], 16
    $region205: #{tft_encoder_forward.1} parent=1 // pred_fallthru
      _
    // Predicated region
    $region206: #{tft_encoder_forward.1} parent=1 // pred_check
      _
    $region207: #{tft_encoder_forward.1} parent=1 // pred_check_branch
      %468 = sbr.rel (0) target = $region209
    $region208: #{tft_encoder_forward.1} parent=1 // pred_region
      %469 = dma.done [#allocation21], 16
    $region209: #{tft_encoder_forward.1} parent=1 // pred_fallthru
      _
    // Predicated region
    $region210: #{tft_encoder_forward.1} parent=1 // pred_check
      _
    $region211: #{tft_encoder_forward.1} parent=1 // pred_check_branch
      %471 = sbr.rel (0) target = $region213
    $region212: #{tft_encoder_forward.1} parent=1 // pred_region
      %472 = dma.done [#allocation21], 16
    $region213: #{tft_encoder_forward.1} parent=1 // pred_fallthru
      _
    // Predicated region
    $region214: #{tft_encoder_forward.1} parent=1 // pred_check
      _
    $region215: #{tft_encoder_forward.1} parent=1 // pred_check_branch
      %474 = sbr.rel (0) target = $region217
    $region216: #{tft_encoder_forward.1} parent=1 // pred_region
      %475 = dma.done [#allocation24], 384
    $region217: #{tft_encoder_forward.1} parent=1 // pred_fallthru
      _
    // Predicated region
    $region218: #{tft_encoder_forward.1} parent=1 // pred_check
      _
    $region219: #{tft_encoder_forward.1} parent=1 // pred_check_branch
      %477 = sbr.rel (0) target = $region221
    $region220: #{tft_encoder_forward.1} parent=1 // pred_region
      %478 = dma.done [#allocation24], 16
    $region221: #{tft_encoder_forward.1} parent=1 // pred_fallthru
      _
    // Predicated region
    $region222: #{tft_encoder_forward.1} parent=1 // pred_check
      _
    $region223: #{tft_encoder_forward.1} parent=1 // pred_check_branch
      %480 = sbr.rel (0) target = $region225
    $region224: #{tft_encoder_forward.1} parent=1 // pred_region
      %481 = dma.done [#allocation27], 16
    $region225: #{tft_encoder_forward.1} parent=1 // pred_fallthru
      _
    // Predicated region
    $region226: #{tft_encoder_forward.1} parent=1 // pred_check
      _
    $region227: #{tft_encoder_forward.1} parent=1 // pred_check_branch
      %483 = sbr.rel (0) target = $region229
    $region228: #{tft_encoder_forward.1} parent=1 // pred_region
      %484 = dma.done [#allocation27], 512
    $region229: #{tft_encoder_forward.1} parent=1 // pred_fallthru
      _
    // Predicated region
    $region230: #{tft_encoder_forward.1} parent=1 // pred_check
      _
    $region231: #{tft_encoder_forward.1} parent=1 // pred_check_branch
      %486 = sbr.rel (0) target = $region233
    $region232: #{tft_encoder_forward.1} parent=1 // pred_region
      %487 = dma.done [#allocation30], 16
    $region233: #{tft_encoder_forward.1} parent=1 // pred_fallthru
      _
    // Predicated region
    $region234: #{tft_encoder_forward.1} parent=1 // pred_check
      _
    $region235: #{tft_encoder_forward.1} parent=1 // pred_check_branch
      %489 = sbr.rel (0) target = $region237
    $region236: #{tft_encoder_forward.1} parent=1 // pred_region
      %490 = dma.done [#allocation30], 16
    $region237: #{tft_encoder_forward.1} parent=1 // pred_fallthru
      _
    // Predicated region
    $region238: #{tft_encoder_forward.1} parent=1 // pred_check
      _
    $region239: #{tft_encoder_forward.1} parent=1 // pred_check_branch
      %492 = sbr.rel (0) target = $region241
    $region240: #{tft_encoder_forward.1} parent=1 // pred_region
      %493 = dma.done [#allocation33], 16
    $region241: #{tft_encoder_forward.1} parent=1 // pred_fallthru
      _
    // Predicated region
    $region242: #{tft_encoder_forward.1} parent=1 // pred_check
      _
    $region243: #{tft_encoder_forward.1} parent=1 // pred_check_branch
      %495 = sbr.rel (0) target = $region245
    $region244: #{tft_encoder_forward.1} parent=1 // pred_region
      %496 = dma.done [#allocation33], 512
    $region245: #{tft_encoder_forward.1} parent=1 // pred_fallthru
      _
    // Predicated region
    $region246: #{tft_encoder_forward.1} parent=1 // pred_check
      _
    $region247: #{tft_encoder_forward.1} parent=1 // pred_check_branch
      %498 = sbr.rel (0) target = $region249
    $region248: #{tft_encoder_forward.1} parent=1 // pred_region
      %499 = dma.done [#allocation36], 16
    $region249: #{tft_encoder_forward.1} parent=1 // pred_fallthru
      _
    // Predicated region
    $region250: #{tft_encoder_forward.1} parent=1 // pred_check
      _
    $region251: #{tft_encoder_forward.1} parent=1 // pred_check_branch
      %501 = sbr.rel (0) target = $region253
    $region252: #{tft_encoder_forward.1} parent=1 // pred_region
      %502 = dma.done [#allocation36], 512
    $region253: #{tft_encoder_forward.1} parent=1 // pred_fallthru
      _
    // Predicated region
    $region254: #{tft_encoder_forward.1} parent=1 // pred_check
      _
    $region255: #{tft_encoder_forward.1} parent=1 // pred_check_branch
      %504 = sbr.rel (0) target = $region257
    $region256: #{tft_encoder_forward.1} parent=1 // pred_region
      %505 = dma.done [#allocation39], 512
    $region257: #{tft_encoder_forward.1} parent=1 // pred_fallthru
      _
    // Predicated region
    $region258: #{tft_encoder_forward.1} parent=1 // pred_check
      _
    $region259: #{tft_encoder_forward.1} parent=1 // pred_check_branch
      %507 = sbr.rel (0) target = $region261
    $region260: #{tft_encoder_forward.1} parent=1 // pred_region
      %508 = dma.done [#allocation39], 512
    $region261: #{tft_encoder_forward.1} parent=1 // pred_fallthru
      _
    // Predicated region
    $region262: #{tft_encoder_forward.1} parent=1 // pred_check
      _
    $region263: #{tft_encoder_forward.1} parent=1 // pred_check_branch
      %510 = sbr.rel (0) target = $region265
    $region264: #{tft_encoder_forward.1} parent=1 // pred_region
      %511 = dma.done [#allocation42], 512
    $region265: #{tft_encoder_forward.1} parent=1 // pred_fallthru
      _
    // Predicated region
    $region266: #{tft_encoder_forward.1} parent=1 // pred_check
      _
    $region267: #{tft_encoder_forward.1} parent=1 // pred_check_branch
      %513 = sbr.rel (0) target = $region269
    $region268: #{tft_encoder_forward.1} parent=1 // pred_region
      %514 = dma.done [#allocation42], 512
    $region269: #{tft_encoder_forward.1} parent=1 // pred_fallthru
      _
    // Predicated region
    $region270: #{tft_encoder_forward.1} parent=1 // pred_check
      _
    $region271: #{tft_encoder_forward.1} parent=1 // pred_check_branch
      %516 = sbr.rel (0) target = $region273
    $region272: #{tft_encoder_forward.1} parent=1 // pred_region
      %517 = dma.done [#allocation45], 16
    $region273: #{tft_encoder_forward.1} parent=1 // pred_fallthru
      _
    %v518 = vld [vmem:[#allocation2] sm:$0x3]
    %v519 = vld [vmem:[#allocation5] sm:$0xff]
    %v520 = vld [vmem:[#allocation5 + $0x8] sm:$0x3]
    %v521 = vld [vmem:[#allocation7] sm:$0x1]
    %v522 = vld [vmem:[%s13] sm:$0xff]
    %v523 = vld [vmem:[%s13 + $0x8] sm:$0xff]
    %v524 = vld [vmem:[%s13 + $0x10] sm:$0xff]
    %v525 = vld [vmem:[%s13 + $0x18] sm:$0xff]
    %v526 = vld [vmem:[#allocation8] sm:$0x1]
    %v527 = vld [vmem:[%s17] sm:$0xff]
    %v528 = vld [vmem:[%s17 + $0x8] sm:$0xff]
    %v529 = vld [vmem:[%s17 + $0x10] sm:$0xff]
    %v530 = vld [vmem:[%s17 + $0x18] sm:$0xff]
    %v531 = vld [vmem:[#allocation10] sm:$0x1]
    %v532 = vld [vmem:[#allocation11] sm:$0x1]
    %v533 = vld [vmem:[#allocation13] sm:$0x1]
    %v535 = vlaneseq
    %v536 = vshrl.u32 %v535, 7
    %v537 = vsub.s32 0, %v536
    %v538 = vrot.slane %v521, %v537
    %vm540 = vcmask 80896
    %v542 = vsel %vm540, %v518, 0
    %vm544 = vcmask 1041408
    %v546 = vsel %vm544, %v520, 0
    %548 = vmatprep.subr.mxu0 0.0
    %549 = vmatpush1.msra.mxu0 %v519
    %550 = vmatprep.subr.mxu0 0.0
    %551 = vmatpush1.msra.mxu0 %v546
    %552 = vmatprep.subr.mxu0 0.0
    %553 = vmatpush1.msra.mxu0 0.0
    %554 = vmatprep.subr.mxu0 0.0
    %555 = vmatpush1.msra.mxu0 0.0
    %556 = vmatprep.subr.mxu0 0.0
    %557 = vmatpush1.msra.mxu0 0.0
    %558 = vmatprep.subr.mxu0 0.0
    %559 = vmatpush1.msra.mxu0 0.0
    %560 = vmatprep.subr.mxu0 0.0
    %561 = vmatpush1.msra.mxu0 0.0
    %562 = vmatprep.subr.mxu0 0.0
    %563 = vmatpush1.msra.mxu0 0.0
    %564 = vmatprep.subr.mxu0 0.0
    %565 = vmatpush1.msra.mxu0 0.0
    %566 = vmatprep.subr.mxu0 0.0
    %567 = vmatpush1.msra.mxu0 0.0
    %568 = vmatprep.subr.mxu0 0.0
    %569 = vmatpush1.msra.mxu0 0.0
    %570 = vmatprep.subr.mxu0 0.0
    %571 = vmatpush1.msra.mxu0 0.0
    %572 = vmatprep.subr.mxu0 0.0
    %573 = vmatpush1.msra.mxu0 0.0
    %574 = vmatprep.subr.mxu0 0.0
    %575 = vmatpush1.msra.mxu0 0.0
    %576 = vmatprep.subr.mxu0 0.0
    %577 = vmatpush1.msra.mxu0 0.0
    %578 = vmatprep.subr.mxu0 0.0
    %579 = vmatpush1.msra.mxu0 0.0
    %580 = vmatprep.subr.mxu0 0.0
    %581 = vmatpush1.msra.mxu0 0.0
    %582 = vmatprep.subr.mxu0 0.0
    %583 = vmatpush1.msra.mxu0 0.0
    %584 = vmatprep.subr.mxu0 0.0
    %585 = vmatpush1.msra.mxu0 0.0
    %586 = vmatprep.subr.mxu0 0.0
    %587 = vmatpush1.msra.mxu0 0.0
    %588 = vmatprep.subr.mxu0 0.0
    %589 = vmatpush1.msra.mxu0 0.0
    %590 = vmatprep.subr.mxu0 0.0
    %591 = vmatpush1.msra.mxu0 0.0
    %592 = vmatprep.subr.mxu0 0.0
    %593 = vmatpush1.msra.mxu0 0.0
    %594 = vmatprep.subr.mxu0 0.0
    %595 = vmatpush1.msra.mxu0 0.0
    %596 = vmatprep.subr.mxu0 0.0
    %597 = vmatpush1.msra.mxu0 0.0
    %598 = vmatprep.subr.mxu0 0.0
    %599 = vmatpush1.msra.mxu0 0.0
    %600 = vmatprep.subr.mxu0 0.0
    %601 = vmatpush1.msra.mxu0 0.0
    %602 = vmatprep.subr.mxu0 0.0
    %603 = vmatpush1.msra.mxu0 0.0
    %604 = vmatprep.subr.mxu0 0.0
    %605 = vmatpush1.msra.mxu0 0.0
    %606 = vmatprep.subr.mxu0 0.0
    %607 = vmatpush1.msra.mxu0 0.0
    %608 = vmatprep.subr.mxu0 0.0
    %609 = vmatpush1.msra.mxu0 0.0
    %610 = vmatprep.subr.mxu0 0.0
    %611 = vmatpush1.msra.mxu0 0.0
    %612 = vmatprep.mubr.f32.mxu0 0.0
    %613 = vmatmul.mubr.f32.gmra.mrb[0].mxu0 %v542
    %v614 = vpop.f32.mrb[0].mxu0
    %v615 = vadd.f32 %v538, %v614
    %v616 = vpop.f32.mrb[0].mxu0
    %617 = vdwg.mxu0
    %vm618 = vcmp.gt.f32.partialorder %v615, 0.0
    %v619 = vmul.f32 %v615, 1.442695
    %v620 = vpow.pop %v619
    %v621 = vsub.f32 %v620, 1.0
    %v622 = vsel %vm618, %v615, %v621
    %v624 = vlaneseq
    %v625 = vshrl.u32 %v624, 7
    %v626 = vsub.s32 0, %v625
    %v627 = vrot.slane %v526, %v626
    %vm629 = vcmask 261120
    %v631 = vsel %vm629, %v622, 0
    %633 = vmatprep.subr.mxu0 0.0
    %634 = vmatpush1.msra.mxu0 %v522
    %635 = vmatprep.subr.mxu0 0.0
    %636 = vmatpush1.msra.mxu0 %v523
    %637 = vmatprep.subr.mxu0 0.0
    %638 = vmatpush1.msra.mxu0 %v524
    %639 = vmatprep.subr.mxu0 0.0
    %640 = vmatpush1.msra.mxu0 %v525
    %641 = vmatprep.subr.mxu0 0.0
    %642 = vmatpush1.msra.mxu0 0.0
    %643 = vmatprep.subr.mxu0 0.0
    %644 = vmatpush1.msra.mxu0 0.0
    %645 = vmatprep.subr.mxu0 0.0
    %646 = vmatpush1.msra.mxu0 0.0
    %647 = vmatprep.subr.mxu0 0.0
    %648 = vmatpush1.msra.mxu0 0.0
    %649 = vmatprep.subr.mxu0 0.0
    %650 = vmatpush1.msra.mxu0 0.0
    %651 = vmatprep.subr.mxu0 0.0
    %652 = vmatpush1.msra.mxu0 0.0
    %653 = vmatprep.subr.mxu0 0.0
    %654 = vmatpush1.msra.mxu0 0.0
    %655 = vmatprep.subr.mxu0 0.0
    %656 = vmatpush1.msra.mxu0 0.0
    %657 = vmatprep.subr.mxu0 0.0
    %658 = vmatpush1.msra.mxu0 0.0
    %659 = vmatprep.subr.mxu0 0.0
    %660 = vmatpush1.msra.mxu0 0.0
    %661 = vmatprep.subr.mxu0 0.0
    %662 = vmatpush1.msra.mxu0 0.0
    %663 = vmatprep.subr.mxu0 0.0
    %664 = vmatpush1.msra.mxu0 0.0
    %665 = vmatprep.subr.mxu0 0.0
    %666 = vmatpush1.msra.mxu0 0.0
    %667 = vmatprep.subr.mxu0 0.0
    %668 = vmatpush1.msra.mxu0 0.0
    %669 = vmatprep.subr.mxu0 0.0
    %670 = vmatpush1.msra.mxu0 0.0
    %671 = vmatprep.subr.mxu0 0.0
    %672 = vmatpush1.msra.mxu0 0.0
    %673 = vmatprep.subr.mxu0 0.0
    %674 = vmatpush1.msra.mxu0 0.0
    %675 = vmatprep.subr.mxu0 0.0
    %676 = vmatpush1.msra.mxu0 0.0
    %677 = vmatprep.subr.mxu0 0.0
    %678 = vmatpush1.msra.mxu0 0.0
    %679 = vmatprep.subr.mxu0 0.0
    %680 = vmatpush1.msra.mxu0 0.0
    %681 = vmatprep.subr.mxu0 0.0
    %682 = vmatpush1.msra.mxu0 0.0
    %683 = vmatprep.subr.mxu0 0.0
    %684 = vmatpush1.msra.mxu0 0.0
    %685 = vmatprep.subr.mxu0 0.0
    %686 = vmatpush1.msra.mxu0 0.0
    %687 = vmatprep.subr.mxu0 0.0
    %688 = vmatpush1.msra.mxu0 0.0
    %689 = vmatprep.subr.mxu0 0.0
    %690 = vmatpush1.msra.mxu0 0.0
    %691 = vmatprep.subr.mxu0 0.0
    %692 = vmatpush1.msra.mxu0 0.0
    %693 = vmatprep.subr.mxu0 0.0
    %694 = vmatpush1.msra.mxu0 0.0
    %695 = vmatprep.subr.mxu0 0.0
    %696 = vmatpush1.msra.mxu0 0.0
    %697 = vmatprep.mubr.f32.mxu0 0.0
    %698 = vmatmul.mubr.f32.gmra.mrb[0].mxu0 %v631
    %v699 = vpop.f32.mrb[0].mxu0
    %v700 = vadd.f32 %v627, %v699
    %v701 = vpop.f32.mrb[0].mxu0
    %702 = vdwg.mxu0
    %v704 = vlaneseq
    %v705 = vshrl.u32 %v704, 7
    %v706 = vsub.s32 0, %v705
    %v707 = vrot.slane %v531, %v706
    %v710 = vsel %vm629, %v700, 0
    %712 = vmatprep.subr.mxu0 0.0
    %713 = vmatpush1.msra.mxu0 %v527
    %714 = vmatprep.subr.mxu0 0.0
    %715 = vmatpush1.msra.mxu0 %v528
    %716 = vmatprep.subr.mxu0 0.0
    %717 = vmatpush1.msra.mxu0 %v529
    %718 = vmatprep.subr.mxu0 0.0
    %719 = vmatpush1.msra.mxu0 %v530
    %720 = vmatprep.subr.mxu0 0.0
    %721 = vmatpush1.msra.mxu0 0.0
    %722 = vmatprep.subr.mxu0 0.0
    %723 = vmatpush1.msra.mxu0 0.0
    %724 = vmatprep.subr.mxu0 0.0
    %725 = vmatpush1.msra.mxu0 0.0
    %726 = vmatprep.subr.mxu0 0.0
    %727 = vmatpush1.msra.mxu0 0.0
    %728 = vmatprep.subr.mxu0 0.0
    %729 = vmatpush1.msra.mxu0 0.0
    %730 = vmatprep.subr.mxu0 0.0
    %731 = vmatpush1.msra.mxu0 0.0
    %732 = vmatprep.subr.mxu0 0.0
    %733 = vmatpush1.msra.mxu0 0.0
    %734 = vmatprep.subr.mxu0 0.0
    %735 = vmatpush1.msra.mxu0 0.0
    %736 = vmatprep.subr.mxu0 0.0
    %737 = vmatpush1.msra.mxu0 0.0
    %738 = vmatprep.subr.mxu0 0.0
    %739 = vmatpush1.msra.mxu0 0.0
    %740 = vmatprep.subr.mxu0 0.0
    %741 = vmatpush1.msra.mxu0 0.0
    %742 = vmatprep.subr.mxu0 0.0
    %743 = vmatpush1.msra.mxu0 0.0
    %744 = vmatprep.subr.mxu0 0.0
    %745 = vmatpush1.msra.mxu0 0.0
    %746 = vmatprep.subr.mxu0 0.0
    %747 = vmatpush1.msra.mxu0 0.0
    %748 = vmatprep.subr.mxu0 0.0
    %749 = vmatpush1.msra.mxu0 0.0
    %750 = vmatprep.subr.mxu0 0.0
    %751 = vmatpush1.msra.mxu0 0.0
    %752 = vmatprep.subr.mxu0 0.0
    %753 = vmatpush1.msra.mxu0 0.0
    %754 = vmatprep.subr.mxu0 0.0
    %755 = vmatpush1.msra.mxu0 0.0
    %756 = vmatprep.subr.mxu0 0.0
    %757 = vmatpush1.msra.mxu0 0.0
    %758 = vmatprep.subr.mxu0 0.0
    %759 = vmatpush1.msra.mxu0 0.0
    %760 = vmatprep.subr.mxu0 0.0
    %761 = vmatpush1.msra.mxu0 0.0
    %762 = vmatprep.subr.mxu0 0.0
    %763 = vmatpush1.msra.mxu0 0.0
    %764 = vmatprep.subr.mxu0 0.0
    %765 = vmatpush1.msra.mxu0 0.0
    %766 = vmatprep.subr.mxu0 0.0
    %767 = vmatpush1.msra.mxu0 0.0
    %768 = vmatprep.subr.mxu0 0.0
    %769 = vmatpush1.msra.mxu0 0.0
    %770 = vmatprep.subr.mxu0 0.0
    %771 = vmatpush1.msra.mxu0 0.0
    %772 = vmatprep.subr.mxu0 0.0
    %773 = vmatpush1.msra.mxu0 0.0
    %774 = vmatprep.subr.mxu0 0.0
    %775 = vmatpush1.msra.mxu0 0.0
    %776 = vmatprep.mubr.f32.mxu0 0.0
    %777 = vmatmul.mubr.f32.gmra.mrb[0].mxu0 %v710
    %v778 = vpop.f32.mrb[0].mxu0
    %v779 = vadd.f32 %v707, %v778
    %v780 = vpop.f32.mrb[0].mxu0
    %781 = vdwg.mxu0
    %v782 = vxor.u32 %v779, 2147483648
    %v783 = vmul.f32 %v782, 1.442695
    %v784 = vpow.pop %v783
    %v785 = vadd.f32 %v784, 1.0
    %v786 = vrcp.pop %v785
    %v787 = vmul.f32 1.0, %v786
    %789 = vrot.lane.b32.xlu0 %v779, 96
    %v790 = vpop.permute.xlu0 %789
    %v792 = vmul.f32 %v787, %v790
    %794 = vrot.lane.b32.xlu0 %v615, 96
    %v795 = vpop.permute.xlu0 %794
    %v797 = vadd.f32 %v792, %v795
    %vm798 = vcmask 254976
    %v799 = vsel %vm798, %v797, 0.0
    %800 = vadd.xlane.f32.xlu0 %v799
    %v801 = vpop.xlane.xlu0 %800
    %v802 = vrcp.pop 32.0
    %v803 = vmul.f32 %v801, %v802
    %v804 = vsub.f32 %v797, %v803
    %v805 = vmul.f32 %v804, %v804
    %v806 = vsel %vm798, %v805, 0.0
    %807 = vadd.xlane.f32.xlu0 %v806
    %v808 = vpop.xlane.xlu0 %807
    %v809 = vmul.f32 %v808, %v802
    %v810 = vadd.f32 %v809, 1e-05
    %v811 = vrsqrt.pop %v810
    %v812 = vmul.f32 %v804, %v811
    %v814 = vlaneseq
    %v815 = vshrl.u32 %v814, 7
    %v816 = vsub.s32 0, %v815
    %v817 = vrot.slane %v532, %v816
    %v819 = vmul.f32 %v812, %v817
    %v821 = vlaneseq
    %v822 = vshrl.u32 %v821, 7
    %v823 = vsub.s32 0, %v822
    %v824 = vrot.slane %v533, %v823
    %v826 = vadd.f32 %v819, %v824
    %v827 = vld [vmem:[%s25] sm:$0xff]
    %v828 = vld [vmem:[%s25 + $0x8] sm:$0xff]
    %v829 = vld [vmem:[%s25 + $0x10] sm:$0xff]
    %v830 = vld [vmem:[%s25 + $0x18] sm:$0xff]
    %v831 = vld [vmem:[#allocation14] sm:$0x1]
    %v832 = vld [vmem:[%s29] sm:$0xff]
    %v833 = vld [vmem:[%s29 + $0x8] sm:$0xff]
    %v834 = vld [vmem:[%s29 + $0x10] sm:$0xff]
    %v835 = vld [vmem:[%s29 + $0x18] sm:$0xff]
    %v836 = vld [vmem:[#allocation16] sm:$0x1]
    %v837 = vld [vmem:[#allocation17] sm:$0xff]
    %v838 = vld [vmem:[#allocation17 + $0x8] sm:$0xff]
    %v839 = vld [vmem:[#allocation17 + $0x10] sm:$0xff]
    %v840 = vld [vmem:[#allocation17 + $0x18] sm:$0xff]
    %v841 = vld [vmem:[#allocation19] sm:$0x1]
    %v842 = vld [vmem:[#allocation20] sm:$0x1]
    %v843 = vld [vmem:[#allocation22] sm:$0x1]
    %v845 = vlaneseq
    %v846 = vshrl.u32 %v845, 7
    %v847 = vsub.s32 0, %v846
    %v848 = vrot.slane %v831, %v847
    %v851 = vsel %vm629, %v826, 0
    %853 = vmatprep.subr.mxu0 0.0
    %854 = vmatpush1.msra.mxu0 %v827
    %855 = vmatprep.subr.mxu0 0.0
    %856 = vmatpush1.msra.mxu0 %v828
    %857 = vmatprep.subr.mxu0 0.0
    %858 = vmatpush1.msra.mxu0 %v829
    %859 = vmatprep.subr.mxu0 0.0
    %860 = vmatpush1.msra.mxu0 %v830
    %861 = vmatprep.subr.mxu0 0.0
    %862 = vmatpush1.msra.mxu0 0.0
    %863 = vmatprep.subr.mxu0 0.0
    %864 = vmatpush1.msra.mxu0 0.0
    %865 = vmatprep.subr.mxu0 0.0
    %866 = vmatpush1.msra.mxu0 0.0
    %867 = vmatprep.subr.mxu0 0.0
    %868 = vmatpush1.msra.mxu0 0.0
    %869 = vmatprep.subr.mxu0 0.0
    %870 = vmatpush1.msra.mxu0 0.0
    %871 = vmatprep.subr.mxu0 0.0
    %872 = vmatpush1.msra.mxu0 0.0
    %873 = vmatprep.subr.mxu0 0.0
    %874 = vmatpush1.msra.mxu0 0.0
    %875 = vmatprep.subr.mxu0 0.0
    %876 = vmatpush1.msra.mxu0 0.0
    %877 = vmatprep.subr.mxu0 0.0
    %878 = vmatpush1.msra.mxu0 0.0
    %879 = vmatprep.subr.mxu0 0.0
    %880 = vmatpush1.msra.mxu0 0.0
    %881 = vmatprep.subr.mxu0 0.0
    %882 = vmatpush1.msra.mxu0 0.0
    %883 = vmatprep.subr.mxu0 0.0
    %884 = vmatpush1.msra.mxu0 0.0
    %885 = vmatprep.subr.mxu0 0.0
    %886 = vmatpush1.msra.mxu0 0.0
    %887 = vmatprep.subr.mxu0 0.0
    %888 = vmatpush1.msra.mxu0 0.0
    %889 = vmatprep.subr.mxu0 0.0
    %890 = vmatpush1.msra.mxu0 0.0
    %891 = vmatprep.subr.mxu0 0.0
    %892 = vmatpush1.msra.mxu0 0.0
    %893 = vmatprep.subr.mxu0 0.0
    %894 = vmatpush1.msra.mxu0 0.0
    %895 = vmatprep.subr.mxu0 0.0
    %896 = vmatpush1.msra.mxu0 0.0
    %897 = vmatprep.subr.mxu0 0.0
    %898 = vmatpush1.msra.mxu0 0.0
    %899 = vmatprep.subr.mxu0 0.0
    %900 = vmatpush1.msra.mxu0 0.0
    %901 = vmatprep.subr.mxu0 0.0
    %902 = vmatpush1.msra.mxu0 0.0
    %903 = vmatprep.subr.mxu0 0.0
    %904 = vmatpush1.msra.mxu0 0.0
    %905 = vmatprep.subr.mxu0 0.0
    %906 = vmatpush1.msra.mxu0 0.0
    %907 = vmatprep.subr.mxu0 0.0
    %908 = vmatpush1.msra.mxu0 0.0
    %909 = vmatprep.subr.mxu0 0.0
    %910 = vmatpush1.msra.mxu0 0.0
    %911 = vmatprep.subr.mxu0 0.0
    %912 = vmatpush1.msra.mxu0 0.0
    %913 = vmatprep.subr.mxu0 0.0
    %914 = vmatpush1.msra.mxu0 0.0
    %915 = vmatprep.subr.mxu0 0.0
    %916 = vmatpush1.msra.mxu0 0.0
    %917 = vmatprep.mubr.f32.mxu0 0.0
    %918 = vmatmul.mubr.f32.gmra.mrb[0].mxu0 %v851
    %v919 = vpop.f32.mrb[0].mxu0
    %v920 = vadd.f32 %v848, %v919
    %v921 = vpop.f32.mrb[0].mxu0
    %922 = vdwg.mxu0
    %vm923 = vcmp.gt.f32.partialorder %v920, 0.0
    %v924 = vmul.f32 %v920, 1.442695
    %v925 = vpow.pop %v924
    %v926 = vsub.f32 %v925, 1.0
    %v927 = vsel %vm923, %v920, %v926
    %v929 = vlaneseq
    %v930 = vshrl.u32 %v929, 7
    %v931 = vsub.s32 0, %v930
    %v932 = vrot.slane %v836, %v931
    %v935 = vsel %vm629, %v927, 0
    %937 = vmatprep.subr.mxu0 0.0
    %938 = vmatpush1.msra.mxu0 %v832
    %939 = vmatprep.subr.mxu0 0.0
    %940 = vmatpush1.msra.mxu0 %v833
    %941 = vmatprep.subr.mxu0 0.0
    %942 = vmatpush1.msra.mxu0 %v834
    %943 = vmatprep.subr.mxu0 0.0
    %944 = vmatpush1.msra.mxu0 %v835
    %945 = vmatprep.subr.mxu0 0.0
    %946 = vmatpush1.msra.mxu0 0.0
    %947 = vmatprep.subr.mxu0 0.0
    %948 = vmatpush1.msra.mxu0 0.0
    %949 = vmatprep.subr.mxu0 0.0
    %950 = vmatpush1.msra.mxu0 0.0
    %951 = vmatprep.subr.mxu0 0.0
    %952 = vmatpush1.msra.mxu0 0.0
    %953 = vmatprep.subr.mxu0 0.0
    %954 = vmatpush1.msra.mxu0 0.0
    %955 = vmatprep.subr.mxu0 0.0
    %956 = vmatpush1.msra.mxu0 0.0
    %957 = vmatprep.subr.mxu0 0.0
    %958 = vmatpush1.msra.mxu0 0.0
    %959 = vmatprep.subr.mxu0 0.0
    %960 = vmatpush1.msra.mxu0 0.0
    %961 = vmatprep.subr.mxu0 0.0
    %962 = vmatpush1.msra.mxu0 0.0
    %963 = vmatprep.subr.mxu0 0.0
    %964 = vmatpush1.msra.mxu0 0.0
    %965 = vmatprep.subr.mxu0 0.0
    %966 = vmatpush1.msra.mxu0 0.0
    %967 = vmatprep.subr.mxu0 0.0
    %968 = vmatpush1.msra.mxu0 0.0
    %969 = vmatprep.subr.mxu0 0.0
    %970 = vmatpush1.msra.mxu0 0.0
    %971 = vmatprep.subr.mxu0 0.0
    %972 = vmatpush1.msra.mxu0 0.0
    %973 = vmatprep.subr.mxu0 0.0
    %974 = vmatpush1.msra.mxu0 0.0
    %975 = vmatprep.subr.mxu0 0.0
    %976 = vmatpush1.msra.mxu0 0.0
    %977 = vmatprep.subr.mxu0 0.0
    %978 = vmatpush1.msra.mxu0 0.0
    %979 = vmatprep.subr.mxu0 0.0
    %980 = vmatpush1.msra.mxu0 0.0
    %981 = vmatprep.subr.mxu0 0.0
    %982 = vmatpush1.msra.mxu0 0.0
    %983 = vmatprep.subr.mxu0 0.0
    %984 = vmatpush1.msra.mxu0 0.0
    %985 = vmatprep.subr.mxu0 0.0
    %986 = vmatpush1.msra.mxu0 0.0
    %987 = vmatprep.subr.mxu0 0.0
    %988 = vmatpush1.msra.mxu0 0.0
    %989 = vmatprep.subr.mxu0 0.0
    %990 = vmatpush1.msra.mxu0 0.0
    %991 = vmatprep.subr.mxu0 0.0
    %992 = vmatpush1.msra.mxu0 0.0
    %993 = vmatprep.subr.mxu0 0.0
    %994 = vmatpush1.msra.mxu0 0.0
    %995 = vmatprep.subr.mxu0 0.0
    %996 = vmatpush1.msra.mxu0 0.0
    %997 = vmatprep.subr.mxu0 0.0
    %998 = vmatpush1.msra.mxu0 0.0
    %999 = vmatprep.subr.mxu0 0.0
    %1000 = vmatpush1.msra.mxu0 0.0
    %1001 = vmatprep.mubr.f32.mxu0 0.0
    %1002 = vmatmul.mubr.f32.gmra.mrb[0].mxu0 %v935
    %v1003 = vpop.f32.mrb[0].mxu0
    %v1004 = vadd.f32 %v932, %v1003
    %v1005 = vpop.f32.mrb[0].mxu0
    %1006 = vdwg.mxu0
    %v1008 = vlaneseq
    %v1009 = vshrl.u32 %v1008, 7
    %v1010 = vsub.s32 0, %v1009
    %v1011 = vrot.slane %v841, %v1010
    %v1014 = vsel %vm629, %v1004, 0
    %1016 = vmatprep.subr.mxu0 0.0
    %1017 = vmatpush1.msra.mxu0 %v837
    %1018 = vmatprep.subr.mxu0 0.0
    %1019 = vmatpush1.msra.mxu0 %v838
    %1020 = vmatprep.subr.mxu0 0.0
    %1021 = vmatpush1.msra.mxu0 %v839
    %1022 = vmatprep.subr.mxu0 0.0
    %1023 = vmatpush1.msra.mxu0 %v840
    %1024 = vmatprep.subr.mxu0 0.0
    %1025 = vmatpush1.msra.mxu0 0.0
    %1026 = vmatprep.subr.mxu0 0.0
    %1027 = vmatpush1.msra.mxu0 0.0
    %1028 = vmatprep.subr.mxu0 0.0
    %1029 = vmatpush1.msra.mxu0 0.0
    %1030 = vmatprep.subr.mxu0 0.0
    %1031 = vmatpush1.msra.mxu0 0.0
    %1032 = vmatprep.subr.mxu0 0.0
    %1033 = vmatpush1.msra.mxu0 0.0
    %1034 = vmatprep.subr.mxu0 0.0
    %1035 = vmatpush1.msra.mxu0 0.0
    %1036 = vmatprep.subr.mxu0 0.0
    %1037 = vmatpush1.msra.mxu0 0.0
    %1038 = vmatprep.subr.mxu0 0.0
    %1039 = vmatpush1.msra.mxu0 0.0
    %1040 = vmatprep.subr.mxu0 0.0
    %1041 = vmatpush1.msra.mxu0 0.0
    %1042 = vmatprep.subr.mxu0 0.0
    %1043 = vmatpush1.msra.mxu0 0.0
    %1044 = vmatprep.subr.mxu0 0.0
    %1045 = vmatpush1.msra.mxu0 0.0
    %1046 = vmatprep.subr.mxu0 0.0
    %1047 = vmatpush1.msra.mxu0 0.0
    %1048 = vmatprep.subr.mxu0 0.0
    %1049 = vmatpush1.msra.mxu0 0.0
    %1050 = vmatprep.subr.mxu0 0.0
    %1051 = vmatpush1.msra.mxu0 0.0
    %1052 = vmatprep.subr.mxu0 0.0
    %1053 = vmatpush1.msra.mxu0 0.0
    %1054 = vmatprep.subr.mxu0 0.0
    %1055 = vmatpush1.msra.mxu0 0.0
    %1056 = vmatprep.subr.mxu0 0.0
    %1057 = vmatpush1.msra.mxu0 0.0
    %1058 = vmatprep.subr.mxu0 0.0
    %1059 = vmatpush1.msra.mxu0 0.0
    %1060 = vmatprep.subr.mxu0 0.0
    %1061 = vmatpush1.msra.mxu0 0.0
    %1062 = vmatprep.subr.mxu0 0.0
    %1063 = vmatpush1.msra.mxu0 0.0
    %1064 = vmatprep.subr.mxu0 0.0
    %1065 = vmatpush1.msra.mxu0 0.0
    %1066 = vmatprep.subr.mxu0 0.0
    %1067 = vmatpush1.msra.mxu0 0.0
    %1068 = vmatprep.subr.mxu0 0.0
    %1069 = vmatpush1.msra.mxu0 0.0
    %1070 = vmatprep.subr.mxu0 0.0
    %1071 = vmatpush1.msra.mxu0 0.0
    %1072 = vmatprep.subr.mxu0 0.0
    %1073 = vmatpush1.msra.mxu0 0.0
    %1074 = vmatprep.subr.mxu0 0.0
    %1075 = vmatpush1.msra.mxu0 0.0
    %1076 = vmatprep.subr.mxu0 0.0
    %1077 = vmatpush1.msra.mxu0 0.0
    %1078 = vmatprep.subr.mxu0 0.0
    %1079 = vmatpush1.msra.mxu0 0.0
    %1080 = vmatprep.mubr.f32.mxu0 0.0
    %1081 = vmatmul.mubr.f32.gmra.mrb[0].mxu0 %v1014
    %v1082 = vpop.f32.mrb[0].mxu0
    %v1083 = vadd.f32 %v1011, %v1082
    %v1084 = vpop.f32.mrb[0].mxu0
    %1085 = vdwg.mxu0
    %v1086 = vxor.u32 %v1083, 2147483648
    %v1087 = vmul.f32 %v1086, 1.442695
    %v1088 = vpow.pop %v1087
    %v1089 = vadd.f32 %v1088, 1.0
    %v1090 = vrcp.pop %v1089
    %v1091 = vmul.f32 1.0, %v1090
    %1093 = vrot.lane.b32.xlu0 %v1083, 96
    %v1094 = vpop.permute.xlu0 %1093
    %v1096 = vmul.f32 %v1091, %v1094
    %v1097 = vadd.f32 %v1096, %v826
    %v1098 = vsel %vm798, %v1097, 0.0
    %1099 = vadd.xlane.f32.xlu0 %v1098
    %v1100 = vpop.xlane.xlu0 %1099
    %v1101 = vmul.f32 %v1100, %v802
    %v1102 = vsub.f32 %v1097, %v1101
    %v1103 = vmul.f32 %v1102, %v1102
    %v1104 = vsel %vm798, %v1103, 0.0
    %1105 = vadd.xlane.f32.xlu0 %v1104
    %v1106 = vpop.xlane.xlu0 %1105
    %v1107 = vmul.f32 %v1106, %v802
    %v1108 = vadd.f32 %v1107, 1e-05
    %v1109 = vrsqrt.pop %v1108
    %v1110 = vmul.f32 %v1102, %v1109
    %v1112 = vlaneseq
    %v1113 = vshrl.u32 %v1112, 7
    %v1114 = vsub.s32 0, %v1113
    %v1115 = vrot.slane %v842, %v1114
    %v1117 = vmul.f32 %v1110, %v1115
    %v1119 = vlaneseq
    %v1120 = vshrl.u32 %v1119, 7
    %v1121 = vsub.s32 0, %v1120
    %v1122 = vrot.slane %v843, %v1121
    %v1124 = vadd.f32 %v1117, %v1122
    %v1125 = vld [vmem:[%s45] sm:$0xff]
    %v1126 = vld [vmem:[%s45 + $0x8] sm:$0xff]
    %v1127 = vld [vmem:[%s45 + $0x10] sm:$0xff]
    %v1128 = vld [vmem:[%s45 + $0x18] sm:$0xff]
    %v1130 = vsel %vm629, %v1124, 0
    %1132 = vmatprep.subr.mxu0 0.0
    %1133 = vmatpush1.msra.mxu0 %v1125
    %1134 = vmatprep.subr.mxu0 0.0
    %1135 = vmatpush1.msra.mxu0 %v1126
    %1136 = vmatprep.subr.mxu0 0.0
    %1137 = vmatpush1.msra.mxu0 %v1127
    %1138 = vmatprep.subr.mxu0 0.0
    %1139 = vmatpush1.msra.mxu0 %v1128
    %1140 = vmatprep.subr.mxu0 0.0
    %1141 = vmatpush1.msra.mxu0 0.0
    %1142 = vmatprep.subr.mxu0 0.0
    %1143 = vmatpush1.msra.mxu0 0.0
    %1144 = vmatprep.subr.mxu0 0.0
    %1145 = vmatpush1.msra.mxu0 0.0
    %1146 = vmatprep.subr.mxu0 0.0
    %1147 = vmatpush1.msra.mxu0 0.0
    %1148 = vmatprep.subr.mxu0 0.0
    %1149 = vmatpush1.msra.mxu0 0.0
    %1150 = vmatprep.subr.mxu0 0.0
    %1151 = vmatpush1.msra.mxu0 0.0
    %1152 = vmatprep.subr.mxu0 0.0
    %1153 = vmatpush1.msra.mxu0 0.0
    %1154 = vmatprep.subr.mxu0 0.0
    %1155 = vmatpush1.msra.mxu0 0.0
    %1156 = vmatprep.subr.mxu0 0.0
    %1157 = vmatpush1.msra.mxu0 0.0
    %1158 = vmatprep.subr.mxu0 0.0
    %1159 = vmatpush1.msra.mxu0 0.0
    %1160 = vmatprep.subr.mxu0 0.0
    %1161 = vmatpush1.msra.mxu0 0.0
    %1162 = vmatprep.subr.mxu0 0.0
    %1163 = vmatpush1.msra.mxu0 0.0
    %1164 = vmatprep.subr.mxu0 0.0
    %1165 = vmatpush1.msra.mxu0 0.0
    %1166 = vmatprep.subr.mxu0 0.0
    %1167 = vmatpush1.msra.mxu0 0.0
    %1168 = vmatprep.subr.mxu0 0.0
    %1169 = vmatpush1.msra.mxu0 0.0
    %1170 = vmatprep.subr.mxu0 0.0
    %1171 = vmatpush1.msra.mxu0 0.0
    %1172 = vmatprep.subr.mxu0 0.0
    %1173 = vmatpush1.msra.mxu0 0.0
    %1174 = vmatprep.subr.mxu0 0.0
    %1175 = vmatpush1.msra.mxu0 0.0
    %1176 = vmatprep.subr.mxu0 0.0
    %1177 = vmatpush1.msra.mxu0 0.0
    %1178 = vmatprep.subr.mxu0 0.0
    %1179 = vmatpush1.msra.mxu0 0.0
    %1180 = vmatprep.subr.mxu0 0.0
    %1181 = vmatpush1.msra.mxu0 0.0
    %1182 = vmatprep.subr.mxu0 0.0
    %1183 = vmatpush1.msra.mxu0 0.0
    %1184 = vmatprep.subr.mxu0 0.0
    %1185 = vmatpush1.msra.mxu0 0.0
    %1186 = vmatprep.subr.mxu0 0.0
    %1187 = vmatpush1.msra.mxu0 0.0
    %1188 = vmatprep.subr.mxu0 0.0
    %1189 = vmatpush1.msra.mxu0 0.0
    %1190 = vmatprep.subr.mxu0 0.0
    %1191 = vmatpush1.msra.mxu0 0.0
    %1192 = vmatprep.subr.mxu0 0.0
    %1193 = vmatpush1.msra.mxu0 0.0
    %1194 = vmatprep.subr.mxu0 0.0
    %1195 = vmatpush1.msra.mxu0 0.0
    %1196 = vmatprep.mubr.f32.mxu0 0.0
    %1197 = vmatmul.mubr.f32.gmra.mrb[0].mxu0 %v1130
    %v1198 = vpop.f32.mrb[0].mxu0
    %v1199 = vadd.f32 0.0, %v1198
    %v1200 = vpop.f32.mrb[0].mxu0
    %1201 = vdwg.mxu0
    %v1202 = vld [vmem:[%s7] sm:$0xff]
    %v1203 = vld [vmem:[%s7 + $0x8] sm:$0xff]
    %vm1204 = vcmask 15360
    %v1206 = vsel %vm1204, %v1202, 0
    %v1209 = vsel %vm1204, %v1203, 0
    %v1212 = vsel %vm544, %v1199, 0
    %1214 = vmatprep.subr.mxu0 0.0
    %1215 = vmatpush1.msra.mxu0 %v1212
    %1216 = vmatprep.subr.mxu0 0.0
    %1217 = vmatpush1.msra.mxu0 0.0
    %1218 = vmatprep.subr.mxu0 0.0
    %1219 = vmatpush1.msra.mxu0 0.0
    %1220 = vmatprep.subr.mxu0 0.0
    %1221 = vmatpush1.msra.mxu0 0.0
    %1222 = vmatprep.subr.mxu0 0.0
    %1223 = vmatpush1.msra.mxu0 0.0
    %1224 = vmatprep.subr.mxu0 0.0
    %1225 = vmatpush1.msra.mxu0 0.0
    %1226 = vmatprep.subr.mxu0 0.0
    %1227 = vmatpush1.msra.mxu0 0.0
    %1228 = vmatprep.subr.mxu0 0.0
    %1229 = vmatpush1.msra.mxu0 0.0
    %1230 = vmatprep.subr.mxu0 0.0
    %1231 = vmatpush1.msra.mxu0 0.0
    %1232 = vmatprep.subr.mxu0 0.0
    %1233 = vmatpush1.msra.mxu0 0.0
    %1234 = vmatprep.subr.mxu0 0.0
    %1235 = vmatpush1.msra.mxu0 0.0
    %1236 = vmatprep.subr.mxu0 0.0
    %1237 = vmatpush1.msra.mxu0 0.0
    %1238 = vmatprep.subr.mxu0 0.0
    %1239 = vmatpush1.msra.mxu0 0.0
    %1240 = vmatprep.subr.mxu0 0.0
    %1241 = vmatpush1.msra.mxu0 0.0
    %1242 = vmatprep.subr.mxu0 0.0
    %1243 = vmatpush1.msra.mxu0 0.0
    %1244 = vmatprep.subr.mxu0 0.0
    %1245 = vmatpush1.msra.mxu0 0.0
    %1246 = vmatprep.subr.mxu0 0.0
    %1247 = vmatpush1.msra.mxu0 0.0
    %1248 = vmatprep.subr.mxu0 0.0
    %1249 = vmatpush1.msra.mxu0 0.0
    %1250 = vmatprep.subr.mxu0 0.0
    %1251 = vmatpush1.msra.mxu0 0.0
    %1252 = vmatprep.subr.mxu0 0.0
    %1253 = vmatpush1.msra.mxu0 0.0
    %1254 = vmatprep.subr.mxu0 0.0
    %1255 = vmatpush1.msra.mxu0 0.0
    %1256 = vmatprep.subr.mxu0 0.0
    %1257 = vmatpush1.msra.mxu0 0.0
    %1258 = vmatprep.subr.mxu0 0.0
    %1259 = vmatpush1.msra.mxu0 0.0
    %1260 = vmatprep.subr.mxu0 0.0
    %1261 = vmatpush1.msra.mxu0 0.0
    %1262 = vmatprep.subr.mxu0 0.0
    %1263 = vmatpush1.msra.mxu0 0.0
    %1264 = vmatprep.subr.mxu0 0.0
    %1265 = vmatpush1.msra.mxu0 0.0
    %1266 = vmatprep.subr.mxu0 0.0
    %1267 = vmatpush1.msra.mxu0 0.0
    %1268 = vmatprep.subr.mxu0 0.0
    %1269 = vmatpush1.msra.mxu0 0.0
    %1270 = vmatprep.subr.mxu0 0.0
    %1271 = vmatpush1.msra.mxu0 0.0
    %1272 = vmatprep.subr.mxu0 0.0
    %1273 = vmatpush1.msra.mxu0 0.0
    %1274 = vmatprep.subr.mxu0 0.0
    %1275 = vmatpush1.msra.mxu0 0.0
    %1276 = vmatprep.subr.mxu0 0.0
    %1277 = vmatpush1.msra.mxu0 0.0
    %1278 = vmatprep.mubr.f32.mxu0 0.0
    %1279 = vmatmul.mubr.f32.gmra.mrb[0].mxu0 %v1206
    %v1280 = vpop.f32.mrb[0].mxu0
    %v1281 = vadd.f32 0.0, %v1280
    %v1282 = vpop.f32.mrb[0].mxu0
    %1283 = vmatprep.mubr.f32.mxu0 0.0
    %1284 = vmatmul.mubr.f32.gmra.mrb[0].mxu0 %v1209
    %v1285 = vpop.f32.mrb[0].mxu0
    %v1286 = vadd.f32 0.0, %v1285
    %v1287 = vpop.f32.mrb[0].mxu0
    %1288 = vdwg.mxu0
    %v1289 = vld [vmem:[%s3] sm:$0xff]
    %v1290 = vld [vmem:[%s3 + $0x8] sm:$0xff]
    %v1291 = vld [vmem:[#allocation23] sm:$0xff]
    %v1292 = vld [vmem:[#allocation23 + $0x8] sm:$0xff]
    %v1293 = vld [vmem:[#allocation23 + $0x10] sm:$0xf]
    %v1294 = vld [vmem:[#allocation25] sm:$0x1]
    %v1295 = vld [vmem:[%s47] sm:$0xff]
    %v1296 = vld [vmem:[%s47 + $0x8] sm:$0xff]
    %v1297 = vld [vmem:[%s47 + $0x10] sm:$0xff]
    %v1298 = vld [vmem:[%s47 + $0x18] sm:$0xff]
    %v1299 = vld [vmem:[#allocation26] sm:$0x1]
    %v1300 = vld [vmem:[#allocation28] sm:$0xff]
    %v1301 = vld [vmem:[#allocation28 + $0x8] sm:$0xff]
    %v1302 = vld [vmem:[#allocation28 + $0x10] sm:$0xff]
    %v1303 = vld [vmem:[#allocation28 + $0x18] sm:$0xff]
    %v1304 = vld [vmem:[#allocation29] sm:$0x1]
    %v1305 = vld [vmem:[#allocation31] sm:$0x1]
    %v1306 = vld [vmem:[#allocation32] sm:$0x1]
    %v1308 = vlaneseq
    %v1309 = vshrl.u32 %v1308, 7
    %v1310 = vsub.s32 0, %v1309
    %v1311 = vrot.slane %v1294, %v1310
    %vm1313 = vcmask 162816
    %v1315 = vsel %vm1313, %v1289, 0
    %v1318 = vsel %vm1313, %v1290, 0
    %vm1320 = vcmask 1043456
    %v1322 = vsel %vm1320, %v1293, 0
    %1324 = vmatprep.subr.mxu0 0.0
    %1325 = vmatpush1.msra.mxu0 %v1291
    %1326 = vmatprep.subr.mxu0 0.0
    %1327 = vmatpush1.msra.mxu0 %v1292
    %1328 = vmatprep.subr.mxu0 0.0
    %1329 = vmatpush1.msra.mxu0 %v1322
    %1330 = vmatprep.subr.mxu0 0.0
    %1331 = vmatpush1.msra.mxu0 0.0
    %1332 = vmatprep.subr.mxu0 0.0
    %1333 = vmatpush1.msra.mxu0 0.0
    %1334 = vmatprep.subr.mxu0 0.0
    %1335 = vmatpush1.msra.mxu0 0.0
    %1336 = vmatprep.subr.mxu0 0.0
    %1337 = vmatpush1.msra.mxu0 0.0
    %1338 = vmatprep.subr.mxu0 0.0
    %1339 = vmatpush1.msra.mxu0 0.0
    %1340 = vmatprep.subr.mxu0 0.0
    %1341 = vmatpush1.msra.mxu0 0.0
    %1342 = vmatprep.subr.mxu0 0.0
    %1343 = vmatpush1.msra.mxu0 0.0
    %1344 = vmatprep.subr.mxu0 0.0
    %1345 = vmatpush1.msra.mxu0 0.0
    %1346 = vmatprep.subr.mxu0 0.0
    %1347 = vmatpush1.msra.mxu0 0.0
    %1348 = vmatprep.subr.mxu0 0.0
    %1349 = vmatpush1.msra.mxu0 0.0
    %1350 = vmatprep.subr.mxu0 0.0
    %1351 = vmatpush1.msra.mxu0 0.0
    %1352 = vmatprep.subr.mxu0 0.0
    %1353 = vmatpush1.msra.mxu0 0.0
    %1354 = vmatprep.subr.mxu0 0.0
    %1355 = vmatpush1.msra.mxu0 0.0
    %1356 = vmatprep.subr.mxu0 0.0
    %1357 = vmatpush1.msra.mxu0 0.0
    %1358 = vmatprep.subr.mxu0 0.0
    %1359 = vmatpush1.msra.mxu0 0.0
    %1360 = vmatprep.subr.mxu0 0.0
    %1361 = vmatpush1.msra.mxu0 0.0
    %1362 = vmatprep.subr.mxu0 0.0
    %1363 = vmatpush1.msra.mxu0 0.0
    %1364 = vmatprep.subr.mxu0 0.0
    %1365 = vmatpush1.msra.mxu0 0.0
    %1366 = vmatprep.subr.mxu0 0.0
    %1367 = vmatpush1.msra.mxu0 0.0
    %1368 = vmatprep.subr.mxu0 0.0
    %1369 = vmatpush1.msra.mxu0 0.0
    %1370 = vmatprep.subr.mxu0 0.0
    %1371 = vmatpush1.msra.mxu0 0.0
    %1372 = vmatprep.subr.mxu0 0.0
    %1373 = vmatpush1.msra.mxu0 0.0
    %1374 = vmatprep.subr.mxu0 0.0
    %1375 = vmatpush1.msra.mxu0 0.0
    %1376 = vmatprep.subr.mxu0 0.0
    %1377 = vmatpush1.msra.mxu0 0.0
    %1378 = vmatprep.subr.mxu0 0.0
    %1379 = vmatpush1.msra.mxu0 0.0
    %1380 = vmatprep.subr.mxu0 0.0
    %1381 = vmatpush1.msra.mxu0 0.0
    %1382 = vmatprep.subr.mxu0 0.0
    %1383 = vmatpush1.msra.mxu0 0.0
    %1384 = vmatprep.subr.mxu0 0.0
    %1385 = vmatpush1.msra.mxu0 0.0
    %1386 = vmatprep.subr.mxu0 0.0
    %1387 = vmatpush1.msra.mxu0 0.0
    %1388 = vmatprep.mubr.f32.mxu0 0.0
    %1389 = vmatmul.mubr.f32.gmra.mrb[0].mxu0 %v1315
    %v1390 = vpop.f32.mrb[0].mxu0
    %v1391 = vadd.f32 %v1311, %v1390
    %v1392 = vpop.f32.mrb[0].mxu0
    %1393 = vmatprep.mubr.f32.mxu0 0.0
    %1394 = vmatmul.mubr.f32.gmra.mrb[0].mxu0 %v1318
    %v1395 = vpop.f32.mrb[0].mxu0
    %v1396 = vadd.f32 %v1311, %v1395
    %v1397 = vpop.f32.mrb[0].mxu0
    %1398 = vdwg.mxu0
    %v1399 = vadd.f32 %v1391, %v1281
    %v1400 = vadd.f32 %v1396, %v1286
    %vm1401 = vcmp.gt.f32.partialorder %v1399, 0.0
    %vm1402 = vcmp.gt.f32.partialorder %v1400, 0.0
    %v1403 = vmul.f32 %v1399, 1.442695
    %v1404 = vpow.pop %v1403
    %v1405 = vmul.f32 %v1400, 1.442695
    %v1406 = vpow.pop %v1405
    %v1407 = vsub.f32 %v1404, 1.0
    %v1408 = vsub.f32 %v1406, 1.0
    %v1409 = vsel %vm1401, %v1399, %v1407
    %v1410 = vsel %vm1402, %v1400, %v1408
    %v1412 = vlaneseq
    %v1413 = vshrl.u32 %v1412, 7
    %v1414 = vsub.s32 0, %v1413
    %v1415 = vrot.slane %v1299, %v1414
    %v1418 = vsel %vm629, %v1409, 0
    %v1421 = vsel %vm629, %v1410, 0
    %1423 = vmatprep.subr.mxu0 0.0
    %1424 = vmatpush1.msra.mxu0 %v1295
    %1425 = vmatprep.subr.mxu0 0.0
    %1426 = vmatpush1.msra.mxu0 %v1296
    %1427 = vmatprep.subr.mxu0 0.0
    %1428 = vmatpush1.msra.mxu0 %v1297
    %1429 = vmatprep.subr.mxu0 0.0
    %1430 = vmatpush1.msra.mxu0 %v1298
    %1431 = vmatprep.subr.mxu0 0.0
    %1432 = vmatpush1.msra.mxu0 0.0
    %1433 = vmatprep.subr.mxu0 0.0
    %1434 = vmatpush1.msra.mxu0 0.0
    %1435 = vmatprep.subr.mxu0 0.0
    %1436 = vmatpush1.msra.mxu0 0.0
    %1437 = vmatprep.subr.mxu0 0.0
    %1438 = vmatpush1.msra.mxu0 0.0
    %1439 = vmatprep.subr.mxu0 0.0
    %1440 = vmatpush1.msra.mxu0 0.0
    %1441 = vmatprep.subr.mxu0 0.0
    %1442 = vmatpush1.msra.mxu0 0.0
    %1443 = vmatprep.subr.mxu0 0.0
    %1444 = vmatpush1.msra.mxu0 0.0
    %1445 = vmatprep.subr.mxu0 0.0
    %1446 = vmatpush1.msra.mxu0 0.0
    %1447 = vmatprep.subr.mxu0 0.0
    %1448 = vmatpush1.msra.mxu0 0.0
    %1449 = vmatprep.subr.mxu0 0.0
    %1450 = vmatpush1.msra.mxu0 0.0
    %1451 = vmatprep.subr.mxu0 0.0
    %1452 = vmatpush1.msra.mxu0 0.0
    %1453 = vmatprep.subr.mxu0 0.0
    %1454 = vmatpush1.msra.mxu0 0.0
    %1455 = vmatprep.subr.mxu0 0.0
    %1456 = vmatpush1.msra.mxu0 0.0
    %1457 = vmatprep.subr.mxu0 0.0
    %1458 = vmatpush1.msra.mxu0 0.0
    %1459 = vmatprep.subr.mxu0 0.0
    %1460 = vmatpush1.msra.mxu0 0.0
    %1461 = vmatprep.subr.mxu0 0.0
    %1462 = vmatpush1.msra.mxu0 0.0
    %1463 = vmatprep.subr.mxu0 0.0
    %1464 = vmatpush1.msra.mxu0 0.0
    %1465 = vmatprep.subr.mxu0 0.0
    %1466 = vmatpush1.msra.mxu0 0.0
    %1467 = vmatprep.subr.mxu0 0.0
    %1468 = vmatpush1.msra.mxu0 0.0
    %1469 = vmatprep.subr.mxu0 0.0
    %1470 = vmatpush1.msra.mxu0 0.0
    %1471 = vmatprep.subr.mxu0 0.0
    %1472 = vmatpush1.msra.mxu0 0.0
    %1473 = vmatprep.subr.mxu0 0.0
    %1474 = vmatpush1.msra.mxu0 0.0
    %1475 = vmatprep.subr.mxu0 0.0
    %1476 = vmatpush1.msra.mxu0 0.0
    %1477 = vmatprep.subr.mxu0 0.0
    %1478 = vmatpush1.msra.mxu0 0.0
    %1479 = vmatprep.subr.mxu0 0.0
    %1480 = vmatpush1.msra.mxu0 0.0
    %1481 = vmatprep.subr.mxu0 0.0
    %1482 = vmatpush1.msra.mxu0 0.0
    %1483 = vmatprep.subr.mxu0 0.0
    %1484 = vmatpush1.msra.mxu0 0.0
    %1485 = vmatprep.subr.mxu0 0.0
    %1486 = vmatpush1.msra.mxu0 0.0
    %1487 = vmatprep.mubr.f32.mxu0 0.0
    %1488 = vmatmul.mubr.f32.gmra.mrb[0].mxu0 %v1418
    %v1489 = vpop.f32.mrb[0].mxu0
    %v1490 = vadd.f32 %v1415, %v1489
    %v1491 = vpop.f32.mrb[0].mxu0
    %1492 = vmatprep.mubr.f32.mxu0 0.0
    %1493 = vmatmul.mubr.f32.gmra.mrb[0].mxu0 %v1421
    %v1494 = vpop.f32.mrb[0].mxu0
    %v1495 = vadd.f32 %v1415, %v1494
    %v1496 = vpop.f32.mrb[0].mxu0
    %1497 = vdwg.mxu0
    %v1499 = vlaneseq
    %v1500 = vshrl.u32 %v1499, 7
    %v1501 = vsub.s32 0, %v1500
    %v1502 = vrot.slane %v1304, %v1501
    %v1505 = vsel %vm629, %v1490, 0
    %v1508 = vsel %vm629, %v1495, 0
    %1510 = vmatprep.subr.mxu0 0.0
    %1511 = vmatpush1.msra.mxu0 %v1300
    %1512 = vmatprep.subr.mxu0 0.0
    %1513 = vmatpush1.msra.mxu0 %v1301
    %1514 = vmatprep.subr.mxu0 0.0
    %1515 = vmatpush1.msra.mxu0 %v1302
    %1516 = vmatprep.subr.mxu0 0.0
    %1517 = vmatpush1.msra.mxu0 %v1303
    %1518 = vmatprep.subr.mxu0 0.0
    %1519 = vmatpush1.msra.mxu0 0.0
    %1520 = vmatprep.subr.mxu0 0.0
    %1521 = vmatpush1.msra.mxu0 0.0
    %1522 = vmatprep.subr.mxu0 0.0
    %1523 = vmatpush1.msra.mxu0 0.0
    %1524 = vmatprep.subr.mxu0 0.0
    %1525 = vmatpush1.msra.mxu0 0.0
    %1526 = vmatprep.subr.mxu0 0.0
    %1527 = vmatpush1.msra.mxu0 0.0
    %1528 = vmatprep.subr.mxu0 0.0
    %1529 = vmatpush1.msra.mxu0 0.0
    %1530 = vmatprep.subr.mxu0 0.0
    %1531 = vmatpush1.msra.mxu0 0.0
    %1532 = vmatprep.subr.mxu0 0.0
    %1533 = vmatpush1.msra.mxu0 0.0
    %1534 = vmatprep.subr.mxu0 0.0
    %1535 = vmatpush1.msra.mxu0 0.0
    %1536 = vmatprep.subr.mxu0 0.0
    %1537 = vmatpush1.msra.mxu0 0.0
    %1538 = vmatprep.subr.mxu0 0.0
    %1539 = vmatpush1.msra.mxu0 0.0
    %1540 = vmatprep.subr.mxu0 0.0
    %1541 = vmatpush1.msra.mxu0 0.0
    %1542 = vmatprep.subr.mxu0 0.0
    %1543 = vmatpush1.msra.mxu0 0.0
    %1544 = vmatprep.subr.mxu0 0.0
    %1545 = vmatpush1.msra.mxu0 0.0
    %1546 = vmatprep.subr.mxu0 0.0
    %1547 = vmatpush1.msra.mxu0 0.0
    %1548 = vmatprep.subr.mxu0 0.0
    %1549 = vmatpush1.msra.mxu0 0.0
    %1550 = vmatprep.subr.mxu0 0.0
    %1551 = vmatpush1.msra.mxu0 0.0
    %1552 = vmatprep.subr.mxu0 0.0
    %1553 = vmatpush1.msra.mxu0 0.0
    %1554 = vmatprep.subr.mxu0 0.0
    %1555 = vmatpush1.msra.mxu0 0.0
    %1556 = vmatprep.subr.mxu0 0.0
    %1557 = vmatpush1.msra.mxu0 0.0
    %1558 = vmatprep.subr.mxu0 0.0
    %1559 = vmatpush1.msra.mxu0 0.0
    %1560 = vmatprep.subr.mxu0 0.0
    %1561 = vmatpush1.msra.mxu0 0.0
    %1562 = vmatprep.subr.mxu0 0.0
    %1563 = vmatpush1.msra.mxu0 0.0
    %1564 = vmatprep.subr.mxu0 0.0
    %1565 = vmatpush1.msra.mxu0 0.0
    %1566 = vmatprep.subr.mxu0 0.0
    %1567 = vmatpush1.msra.mxu0 0.0
    %1568 = vmatprep.subr.mxu0 0.0
    %1569 = vmatpush1.msra.mxu0 0.0
    %1570 = vmatprep.subr.mxu0 0.0
    %1571 = vmatpush1.msra.mxu0 0.0
    %1572 = vmatprep.subr.mxu0 0.0
    %1573 = vmatpush1.msra.mxu0 0.0
    %1574 = vmatprep.mubr.f32.mxu0 0.0
    %1575 = vmatmul.mubr.f32.gmra.mrb[0].mxu0 %v1505
    %v1576 = vpop.f32.mrb[0].mxu0
    %v1577 = vadd.f32 %v1502, %v1576
    %v1578 = vpop.f32.mrb[0].mxu0
    %1579 = vmatprep.mubr.f32.mxu0 0.0
    %1580 = vmatmul.mubr.f32.gmra.mrb[0].mxu0 %v1508
    %v1581 = vpop.f32.mrb[0].mxu0
    %v1582 = vadd.f32 %v1502, %v1581
    %v1583 = vpop.f32.mrb[0].mxu0
    %1584 = vdwg.mxu0
    %v1585 = vxor.u32 %v1577, 2147483648
    %v1586 = vxor.u32 %v1582, 2147483648
    %v1587 = vmul.f32 %v1585, 1.442695
    %v1588 = vpow.pop %v1587
    %v1589 = vmul.f32 %v1586, 1.442695
    %v1590 = vpow.pop %v1589
    %v1591 = vadd.f32 %v1588, 1.0
    %v1592 = vadd.f32 %v1590, 1.0
    %v1593 = vrcp.pop %v1591
    %v1594 = vmul.f32 1.0, %v1593
    %v1595 = vrcp.pop %v1592
    %v1596 = vmul.f32 1.0, %v1595
    %1599 = vrot.lane.b32.xlu0 %v1577, 96
    %v1600 = vpop.permute.xlu0 %1599
    %1601 = vrot.lane.b32.xlu0 %v1582, 96
    %v1602 = vpop.permute.xlu0 %1601
    %v1605 = vmul.f32 %v1594, %v1600
    %v1606 = vmul.f32 %v1596, %v1602
    %1609 = vrot.lane.b32.xlu0 %v1391, 96
    %v1610 = vpop.permute.xlu0 %1609
    %1611 = vrot.lane.b32.xlu0 %v1396, 96
    %v1612 = vpop.permute.xlu0 %1611
    %v1615 = vadd.f32 %v1605, %v1610
    %v1616 = vadd.f32 %v1606, %v1612
    %v1617 = vsel %vm629, %v1615, 0.0
    %1618 = vadd.xlane.f32.xlu0 %v1617
    %v1619 = vpop.xlane.xlu0 %1618
    %v1620 = vsel %vm629, %v1616, 0.0
    %1621 = vadd.xlane.f32.xlu0 %v1620
    %v1622 = vpop.xlane.xlu0 %1621
    %v1623 = vmul.f32 %v1619, %v802
    %v1624 = vmul.f32 %v1622, %v802
    %v1625 = vsub.f32 %v1615, %v1623
    %v1626 = vsub.f32 %v1616, %v1624
    %v1627 = vmul.f32 %v1625, %v1625
    %v1628 = vmul.f32 %v1626, %v1626
    %v1629 = vsel %vm629, %v1627, 0.0
    %1630 = vadd.xlane.f32.xlu0 %v1629
    %v1631 = vpop.xlane.xlu0 %1630
    %v1632 = vsel %vm629, %v1628, 0.0
    %1633 = vadd.xlane.f32.xlu0 %v1632
    %v1634 = vpop.xlane.xlu0 %1633
    %v1635 = vmul.f32 %v1631, %v802
    %v1636 = vmul.f32 %v1634, %v802
    %v1637 = vadd.f32 %v1635, 1e-05
    %v1638 = vadd.f32 %v1636, 1e-05
    %v1639 = vrsqrt.pop %v1637
    %v1640 = vrsqrt.pop %v1638
    %v1641 = vmul.f32 %v1625, %v1639
    %v1642 = vmul.f32 %v1626, %v1640
    %v1644 = vlaneseq
    %v1645 = vshrl.u32 %v1644, 7
    %v1646 = vsub.s32 0, %v1645
    %v1647 = vrot.slane %v1305, %v1646
    %v1649 = vmul.f32 %v1641, %v1647
    %v1650 = vmul.f32 %v1642, %v1647
    %v1652 = vlaneseq
    %v1653 = vshrl.u32 %v1652, 7
    %v1654 = vsub.s32 0, %v1653
    %v1655 = vrot.slane %v1306, %v1654
    %v1657 = vadd.f32 %v1649, %v1655
    %v1658 = vadd.f32 %v1650, %v1655
    %v1659 = vld [vmem:[%s5] sm:$0xff]
    %v1660 = vld [vmem:[%s5 + $0x8] sm:$0xff]
    %v1661 = vadd.f32 %v1657, %v1659
    %v1662 = vadd.f32 %v1658, %v1660
    %v1663 = vld [vmem:[#allocation34] sm:$0xff]
    %v1664 = vld [vmem:[#allocation34 + $0x8] sm:$0xff]
    %v1665 = vld [vmem:[#allocation34 + $0x10] sm:$0xff]
    %v1666 = vld [vmem:[#allocation34 + $0x18] sm:$0xff]
    %v1667 = vld [vmem:[#allocation35] sm:$0x1]
    %v1669 = vlaneseq
    %v1670 = vshrl.u32 %v1669, 7
    %v1671 = vsub.s32 0, %v1670
    %v1672 = vrot.slane %v1667, %v1671
    %v1675 = vsel %vm629, %v1661, 0
    %v1678 = vsel %vm629, %v1662, 0
    %1680 = vmatprep.subr.mxu0 0.0
    %1681 = vmatpush1.msra.mxu0 %v1663
    %1682 = vmatprep.subr.mxu0 0.0
    %1683 = vmatpush1.msra.mxu0 %v1664
    %1684 = vmatprep.subr.mxu0 0.0
    %1685 = vmatpush1.msra.mxu0 %v1665
    %1686 = vmatprep.subr.mxu0 0.0
    %1687 = vmatpush1.msra.mxu0 %v1666
    %1688 = vmatprep.subr.mxu0 0.0
    %1689 = vmatpush1.msra.mxu0 0.0
    %1690 = vmatprep.subr.mxu0 0.0
    %1691 = vmatpush1.msra.mxu0 0.0
    %1692 = vmatprep.subr.mxu0 0.0
    %1693 = vmatpush1.msra.mxu0 0.0
    %1694 = vmatprep.subr.mxu0 0.0
    %1695 = vmatpush1.msra.mxu0 0.0
    %1696 = vmatprep.subr.mxu0 0.0
    %1697 = vmatpush1.msra.mxu0 0.0
    %1698 = vmatprep.subr.mxu0 0.0
    %1699 = vmatpush1.msra.mxu0 0.0
    %1700 = vmatprep.subr.mxu0 0.0
    %1701 = vmatpush1.msra.mxu0 0.0
    %1702 = vmatprep.subr.mxu0 0.0
    %1703 = vmatpush1.msra.mxu0 0.0
    %1704 = vmatprep.subr.mxu0 0.0
    %1705 = vmatpush1.msra.mxu0 0.0
    %1706 = vmatprep.subr.mxu0 0.0
    %1707 = vmatpush1.msra.mxu0 0.0
    %1708 = vmatprep.subr.mxu0 0.0
    %1709 = vmatpush1.msra.mxu0 0.0
    %1710 = vmatprep.subr.mxu0 0.0
    %1711 = vmatpush1.msra.mxu0 0.0
    %1712 = vmatprep.subr.mxu0 0.0
    %1713 = vmatpush1.msra.mxu0 0.0
    %1714 = vmatprep.subr.mxu0 0.0
    %1715 = vmatpush1.msra.mxu0 0.0
    %1716 = vmatprep.subr.mxu0 0.0
    %1717 = vmatpush1.msra.mxu0 0.0
    %1718 = vmatprep.subr.mxu0 0.0
    %1719 = vmatpush1.msra.mxu0 0.0
    %1720 = vmatprep.subr.mxu0 0.0
    %1721 = vmatpush1.msra.mxu0 0.0
    %1722 = vmatprep.subr.mxu0 0.0
    %1723 = vmatpush1.msra.mxu0 0.0
    %1724 = vmatprep.subr.mxu0 0.0
    %1725 = vmatpush1.msra.mxu0 0.0
    %1726 = vmatprep.subr.mxu0 0.0
    %1727 = vmatpush1.msra.mxu0 0.0
    %1728 = vmatprep.subr.mxu0 0.0
    %1729 = vmatpush1.msra.mxu0 0.0
    %1730 = vmatprep.subr.mxu0 0.0
    %1731 = vmatpush1.msra.mxu0 0.0
    %1732 = vmatprep.subr.mxu0 0.0
    %1733 = vmatpush1.msra.mxu0 0.0
    %1734 = vmatprep.subr.mxu0 0.0
    %1735 = vmatpush1.msra.mxu0 0.0
    %1736 = vmatprep.subr.mxu0 0.0
    %1737 = vmatpush1.msra.mxu0 0.0
    %1738 = vmatprep.subr.mxu0 0.0
    %1739 = vmatpush1.msra.mxu0 0.0
    %1740 = vmatprep.subr.mxu0 0.0
    %1741 = vmatpush1.msra.mxu0 0.0
    %1742 = vmatprep.subr.mxu0 0.0
    %1743 = vmatpush1.msra.mxu0 0.0
    %1744 = vmatprep.mubr.f32.mxu0 0.0
    %1745 = vmatmul.mubr.f32.gmra.mrb[0].mxu0 %v1675
    %v1746 = vpop.f32.mrb[0].mxu0
    %v1747 = vadd.f32 %v1672, %v1746
    %v1748 = vpop.f32.mrb[0].mxu0
    %1749 = vmatprep.mubr.f32.mxu0 0.0
    %1750 = vmatmul.mubr.f32.gmra.mrb[0].mxu0 %v1678
    %v1751 = vpop.f32.mrb[0].mxu0
    %v1752 = vadd.f32 %v1672, %v1751
    %v1753 = vpop.f32.mrb[0].mxu0
    %1754 = vdwg.mxu0
    %v1755 = vld [vmem:[#allocation37] sm:$0xff]
    %v1756 = vld [vmem:[#allocation37 + $0x8] sm:$0xff]
    %v1757 = vld [vmem:[#allocation37 + $0x10] sm:$0xff]
    %v1758 = vld [vmem:[#allocation37 + $0x18] sm:$0xff]
    %v1759 = vld [vmem:[#allocation38] sm:$0xff]
    %v1760 = vld [vmem:[#allocation38 + $0x8] sm:$0xff]
    %v1761 = vld [vmem:[#allocation38 + $0x10] sm:$0xff]
    %v1762 = vld [vmem:[#allocation38 + $0x18] sm:$0xff]
    %v1763 = vld [vmem:[#allocation40] sm:$0xff]
    %v1764 = vld [vmem:[#allocation40 + $0x8] sm:$0xff]
    %v1765 = vld [vmem:[#allocation40 + $0x10] sm:$0xff]
    %v1766 = vld [vmem:[#allocation40 + $0x18] sm:$0xff]
    %v1767 = vld [vmem:[#allocation41] sm:$0xff]
    %v1768 = vld [vmem:[#allocation41 + $0x8] sm:$0xff]
    %v1769 = vld [vmem:[#allocation41 + $0x10] sm:$0xff]
    %v1770 = vld [vmem:[#allocation41 + $0x18] sm:$0xff]
    %v1772 = vsel %vm629, 0.0, 0
    %1774 = vmatprep.subr.mxu0 0.0
    %1775 = vmatpush1.msra.mxu0 %v1755
    %1776 = vmatprep.subr.mxu0 0.0
    %1777 = vmatpush1.msra.mxu0 %v1756
    %1778 = vmatprep.subr.mxu0 0.0
    %1779 = vmatpush1.msra.mxu0 %v1757
    %1780 = vmatprep.subr.mxu0 0.0
    %1781 = vmatpush1.msra.mxu0 %v1758
    %1782 = vmatprep.subr.mxu0 0.0
    %1783 = vmatpush1.msra.mxu0 0.0
    %1784 = vmatprep.subr.mxu0 0.0
    %1785 = vmatpush1.msra.mxu0 0.0
    %1786 = vmatprep.subr.mxu0 0.0
    %1787 = vmatpush1.msra.mxu0 0.0
    %1788 = vmatprep.subr.mxu0 0.0
    %1789 = vmatpush1.msra.mxu0 0.0
    %1790 = vmatprep.subr.mxu0 0.0
    %1791 = vmatpush1.msra.mxu0 0.0
    %1792 = vmatprep.subr.mxu0 0.0
    %1793 = vmatpush1.msra.mxu0 0.0
    %1794 = vmatprep.subr.mxu0 0.0
    %1795 = vmatpush1.msra.mxu0 0.0
    %1796 = vmatprep.subr.mxu0 0.0
    %1797 = vmatpush1.msra.mxu0 0.0
    %1798 = vmatprep.subr.mxu0 0.0
    %1799 = vmatpush1.msra.mxu0 0.0
    %1800 = vmatprep.subr.mxu0 0.0
    %1801 = vmatpush1.msra.mxu0 0.0
    %1802 = vmatprep.subr.mxu0 0.0
    %1803 = vmatpush1.msra.mxu0 0.0
    %1804 = vmatprep.subr.mxu0 0.0
    %1805 = vmatpush1.msra.mxu0 0.0
    %1806 = vmatprep.subr.mxu0 0.0
    %1807 = vmatpush1.msra.mxu0 0.0
    %1808 = vmatprep.subr.mxu0 0.0
    %1809 = vmatpush1.msra.mxu0 0.0
    %1810 = vmatprep.subr.mxu0 0.0
    %1811 = vmatpush1.msra.mxu0 0.0
    %1812 = vmatprep.subr.mxu0 0.0
    %1813 = vmatpush1.msra.mxu0 0.0
    %1814 = vmatprep.subr.mxu0 0.0
    %1815 = vmatpush1.msra.mxu0 0.0
    %1816 = vmatprep.subr.mxu0 0.0
    %1817 = vmatpush1.msra.mxu0 0.0
    %1818 = vmatprep.subr.mxu0 0.0
    %1819 = vmatpush1.msra.mxu0 0.0
    %1820 = vmatprep.subr.mxu0 0.0
    %1821 = vmatpush1.msra.mxu0 0.0
    %1822 = vmatprep.subr.mxu0 0.0
    %1823 = vmatpush1.msra.mxu0 0.0
    %1824 = vmatprep.subr.mxu0 0.0
    %1825 = vmatpush1.msra.mxu0 0.0
    %1826 = vmatprep.subr.mxu0 0.0
    %1827 = vmatpush1.msra.mxu0 0.0
    %1828 = vmatprep.subr.mxu0 0.0
    %1829 = vmatpush1.msra.mxu0 0.0
    %1830 = vmatprep.subr.mxu0 0.0
    %1831 = vmatpush1.msra.mxu0 0.0
    %1832 = vmatprep.subr.mxu0 0.0
    %1833 = vmatpush1.msra.mxu0 0.0
    %1834 = vmatprep.subr.mxu0 0.0
    %1835 = vmatpush1.msra.mxu0 0.0
    %1836 = vmatprep.subr.mxu0 0.0
    %1837 = vmatpush1.msra.mxu0 0.0
    %1838 = vmatprep.mubr.f32.mxu0 0.0
    %1839 = vmatmul.mubr.f32.gmra.mrb[0].mxu0 %v1772
    %v1840 = vpop.f32.mrb[0].mxu0
    %v1841 = vadd.f32 0.0, %v1840
    %v1842 = vpop.f32.mrb[0].mxu0
    %1843 = vdwg.mxu0
    %v1844 = vadd.f32 %v1747, %v1841
    %v1845 = vxor.u32 %v1844, 2147483648
    %v1846 = vmul.f32 %v1845, 1.442695
    %v1847 = vpow.pop %v1846
    %v1848 = vadd.f32 %v1847, 1.0
    %v1849 = vrcp.pop %v1848
    %v1850 = vmul.f32 1.0, %v1849
    %1851 = vmatprep.subr.mxu0 0.0
    %1852 = vmatpush1.msra.mxu0 %v1759
    %1853 = vmatprep.subr.mxu0 0.0
    %1854 = vmatpush1.msra.mxu0 %v1760
    %1855 = vmatprep.subr.mxu0 0.0
    %1856 = vmatpush1.msra.mxu0 %v1761
    %1857 = vmatprep.subr.mxu0 0.0
    %1858 = vmatpush1.msra.mxu0 %v1762
    %1859 = vmatprep.subr.mxu0 0.0
    %1860 = vmatpush1.msra.mxu0 0.0
    %1861 = vmatprep.subr.mxu0 0.0
    %1862 = vmatpush1.msra.mxu0 0.0
    %1863 = vmatprep.subr.mxu0 0.0
    %1864 = vmatpush1.msra.mxu0 0.0
    %1865 = vmatprep.subr.mxu0 0.0
    %1866 = vmatpush1.msra.mxu0 0.0
    %1867 = vmatprep.subr.mxu0 0.0
    %1868 = vmatpush1.msra.mxu0 0.0
    %1869 = vmatprep.subr.mxu0 0.0
    %1870 = vmatpush1.msra.mxu0 0.0
    %1871 = vmatprep.subr.mxu0 0.0
    %1872 = vmatpush1.msra.mxu0 0.0
    %1873 = vmatprep.subr.mxu0 0.0
    %1874 = vmatpush1.msra.mxu0 0.0
    %1875 = vmatprep.subr.mxu0 0.0
    %1876 = vmatpush1.msra.mxu0 0.0
    %1877 = vmatprep.subr.mxu0 0.0
    %1878 = vmatpush1.msra.mxu0 0.0
    %1879 = vmatprep.subr.mxu0 0.0
    %1880 = vmatpush1.msra.mxu0 0.0
    %1881 = vmatprep.subr.mxu0 0.0
    %1882 = vmatpush1.msra.mxu0 0.0
    %1883 = vmatprep.subr.mxu0 0.0
    %1884 = vmatpush1.msra.mxu0 0.0
    %1885 = vmatprep.subr.mxu0 0.0
    %1886 = vmatpush1.msra.mxu0 0.0
    %1887 = vmatprep.subr.mxu0 0.0
    %1888 = vmatpush1.msra.mxu0 0.0
    %1889 = vmatprep.subr.mxu0 0.0
    %1890 = vmatpush1.msra.mxu0 0.0
    %1891 = vmatprep.subr.mxu0 0.0
    %1892 = vmatpush1.msra.mxu0 0.0
    %1893 = vmatprep.subr.mxu0 0.0
    %1894 = vmatpush1.msra.mxu0 0.0
    %1895 = vmatprep.subr.mxu0 0.0
    %1896 = vmatpush1.msra.mxu0 0.0
    %1897 = vmatprep.subr.mxu0 0.0
    %1898 = vmatpush1.msra.mxu0 0.0
    %1899 = vmatprep.subr.mxu0 0.0
    %1900 = vmatpush1.msra.mxu0 0.0
    %1901 = vmatprep.subr.mxu0 0.0
    %1902 = vmatpush1.msra.mxu0 0.0
    %1903 = vmatprep.subr.mxu0 0.0
    %1904 = vmatpush1.msra.mxu0 0.0
    %1905 = vmatprep.subr.mxu0 0.0
    %1906 = vmatpush1.msra.mxu0 0.0
    %1907 = vmatprep.subr.mxu0 0.0
    %1908 = vmatpush1.msra.mxu0 0.0
    %1909 = vmatprep.subr.mxu0 0.0
    %1910 = vmatpush1.msra.mxu0 0.0
    %1911 = vmatprep.subr.mxu0 0.0
    %1912 = vmatpush1.msra.mxu0 0.0
    %1913 = vmatprep.subr.mxu0 0.0
    %1914 = vmatpush1.msra.mxu0 0.0
    %1915 = vmatprep.mubr.f32.mxu0 0.0
    %1916 = vmatmul.mubr.f32.gmra.mrb[0].mxu0 %v1772
    %v1917 = vpop.f32.mrb[0].mxu0
    %v1918 = vadd.f32 0.0, %v1917
    %v1919 = vpop.f32.mrb[0].mxu0
    %1920 = vdwg.mxu0
    %1922 = vrot.lane.b32.xlu0 %v1918, 32
    %v1923 = vpop.permute.xlu0 %1922
    %v1925 = vadd.f32 %v1747, %v1923
    %v1926 = vxor.u32 %v1925, 2147483648
    %v1927 = vmul.f32 %v1926, 1.442695
    %v1928 = vpow.pop %v1927
    %v1929 = vadd.f32 %v1928, 1.0
    %v1930 = vrcp.pop %v1929
    %v1931 = vmul.f32 1.0, %v1930
    %1932 = vmatprep.subr.mxu0 0.0
    %1933 = vmatpush1.msra.mxu0 %v1763
    %1934 = vmatprep.subr.mxu0 0.0
    %1935 = vmatpush1.msra.mxu0 %v1764
    %1936 = vmatprep.subr.mxu0 0.0
    %1937 = vmatpush1.msra.mxu0 %v1765
    %1938 = vmatprep.subr.mxu0 0.0
    %1939 = vmatpush1.msra.mxu0 %v1766
    %1940 = vmatprep.subr.mxu0 0.0
    %1941 = vmatpush1.msra.mxu0 0.0
    %1942 = vmatprep.subr.mxu0 0.0
    %1943 = vmatpush1.msra.mxu0 0.0
    %1944 = vmatprep.subr.mxu0 0.0
    %1945 = vmatpush1.msra.mxu0 0.0
    %1946 = vmatprep.subr.mxu0 0.0
    %1947 = vmatpush1.msra.mxu0 0.0
    %1948 = vmatprep.subr.mxu0 0.0
    %1949 = vmatpush1.msra.mxu0 0.0
    %1950 = vmatprep.subr.mxu0 0.0
    %1951 = vmatpush1.msra.mxu0 0.0
    %1952 = vmatprep.subr.mxu0 0.0
    %1953 = vmatpush1.msra.mxu0 0.0
    %1954 = vmatprep.subr.mxu0 0.0
    %1955 = vmatpush1.msra.mxu0 0.0
    %1956 = vmatprep.subr.mxu0 0.0
    %1957 = vmatpush1.msra.mxu0 0.0
    %1958 = vmatprep.subr.mxu0 0.0
    %1959 = vmatpush1.msra.mxu0 0.0
    %1960 = vmatprep.subr.mxu0 0.0
    %1961 = vmatpush1.msra.mxu0 0.0
    %1962 = vmatprep.subr.mxu0 0.0
    %1963 = vmatpush1.msra.mxu0 0.0
    %1964 = vmatprep.subr.mxu0 0.0
    %1965 = vmatpush1.msra.mxu0 0.0
    %1966 = vmatprep.subr.mxu0 0.0
    %1967 = vmatpush1.msra.mxu0 0.0
    %1968 = vmatprep.subr.mxu0 0.0
    %1969 = vmatpush1.msra.mxu0 0.0
    %1970 = vmatprep.subr.mxu0 0.0
    %1971 = vmatpush1.msra.mxu0 0.0
    %1972 = vmatprep.subr.mxu0 0.0
    %1973 = vmatpush1.msra.mxu0 0.0
    %1974 = vmatprep.subr.mxu0 0.0
    %1975 = vmatpush1.msra.mxu0 0.0
    %1976 = vmatprep.subr.mxu0 0.0
    %1977 = vmatpush1.msra.mxu0 0.0
    %1978 = vmatprep.subr.mxu0 0.0
    %1979 = vmatpush1.msra.mxu0 0.0
    %1980 = vmatprep.subr.mxu0 0.0
    %1981 = vmatpush1.msra.mxu0 0.0
    %1982 = vmatprep.subr.mxu0 0.0
    %1983 = vmatpush1.msra.mxu0 0.0
    %1984 = vmatprep.subr.mxu0 0.0
    %1985 = vmatpush1.msra.mxu0 0.0
    %1986 = vmatprep.subr.mxu0 0.0
    %1987 = vmatpush1.msra.mxu0 0.0
    %1988 = vmatprep.subr.mxu0 0.0
    %1989 = vmatpush1.msra.mxu0 0.0
    %1990 = vmatprep.subr.mxu0 0.0
    %1991 = vmatpush1.msra.mxu0 0.0
    %1992 = vmatprep.subr.mxu0 0.0
    %1993 = vmatpush1.msra.mxu0 0.0
    %1994 = vmatprep.subr.mxu0 0.0
    %1995 = vmatpush1.msra.mxu0 0.0
    %1996 = vmatprep.mubr.f32.mxu0 0.0
    %1997 = vmatmul.mubr.f32.gmra.mrb[0].mxu0 %v1772
    %v1998 = vpop.f32.mrb[0].mxu0
    %v1999 = vadd.f32 0.0, %v1998
    %v2000 = vpop.f32.mrb[0].mxu0
    %2001 = vdwg.mxu0
    %2003 = vrot.lane.b32.xlu0 %v1999, 64
    %v2004 = vpop.permute.xlu0 %2003
    %v2006 = vadd.f32 %v1747, %v2004
    %v2007 = vtanh.pop %v2006
    %2008 = vmatprep.subr.mxu0 0.0
    %2009 = vmatpush1.msra.mxu0 %v1767
    %2010 = vmatprep.subr.mxu0 0.0
    %2011 = vmatpush1.msra.mxu0 %v1768
    %2012 = vmatprep.subr.mxu0 0.0
    %2013 = vmatpush1.msra.mxu0 %v1769
    %2014 = vmatprep.subr.mxu0 0.0
    %2015 = vmatpush1.msra.mxu0 %v1770
    %2016 = vmatprep.subr.mxu0 0.0
    %2017 = vmatpush1.msra.mxu0 0.0
    %2018 = vmatprep.subr.mxu0 0.0
    %2019 = vmatpush1.msra.mxu0 0.0
    %2020 = vmatprep.subr.mxu0 0.0
    %2021 = vmatpush1.msra.mxu0 0.0
    %2022 = vmatprep.subr.mxu0 0.0
    %2023 = vmatpush1.msra.mxu0 0.0
    %2024 = vmatprep.subr.mxu0 0.0
    %2025 = vmatpush1.msra.mxu0 0.0
    %2026 = vmatprep.subr.mxu0 0.0
    %2027 = vmatpush1.msra.mxu0 0.0
    %2028 = vmatprep.subr.mxu0 0.0
    %2029 = vmatpush1.msra.mxu0 0.0
    %2030 = vmatprep.subr.mxu0 0.0
    %2031 = vmatpush1.msra.mxu0 0.0
    %2032 = vmatprep.subr.mxu0 0.0
    %2033 = vmatpush1.msra.mxu0 0.0
    %2034 = vmatprep.subr.mxu0 0.0
    %2035 = vmatpush1.msra.mxu0 0.0
    %2036 = vmatprep.subr.mxu0 0.0
    %2037 = vmatpush1.msra.mxu0 0.0
    %2038 = vmatprep.subr.mxu0 0.0
    %2039 = vmatpush1.msra.mxu0 0.0
    %2040 = vmatprep.subr.mxu0 0.0
    %2041 = vmatpush1.msra.mxu0 0.0
    %2042 = vmatprep.subr.mxu0 0.0
    %2043 = vmatpush1.msra.mxu0 0.0
    %2044 = vmatprep.subr.mxu0 0.0
    %2045 = vmatpush1.msra.mxu0 0.0
    %2046 = vmatprep.subr.mxu0 0.0
    %2047 = vmatpush1.msra.mxu0 0.0
    %2048 = vmatprep.subr.mxu0 0.0
    %2049 = vmatpush1.msra.mxu0 0.0
    %2050 = vmatprep.subr.mxu0 0.0
    %2051 = vmatpush1.msra.mxu0 0.0
    %2052 = vmatprep.subr.mxu0 0.0
    %2053 = vmatpush1.msra.mxu0 0.0
    %2054 = vmatprep.subr.mxu0 0.0
    %2055 = vmatpush1.msra.mxu0 0.0
    %2056 = vmatprep.subr.mxu0 0.0
    %2057 = vmatpush1.msra.mxu0 0.0
    %2058 = vmatprep.subr.mxu0 0.0
    %2059 = vmatpush1.msra.mxu0 0.0
    %2060 = vmatprep.subr.mxu0 0.0
    %2061 = vmatpush1.msra.mxu0 0.0
    %2062 = vmatprep.subr.mxu0 0.0
    %2063 = vmatpush1.msra.mxu0 0.0
    %2064 = vmatprep.subr.mxu0 0.0
    %2065 = vmatpush1.msra.mxu0 0.0
    %2066 = vmatprep.subr.mxu0 0.0
    %2067 = vmatpush1.msra.mxu0 0.0
    %2068 = vmatprep.subr.mxu0 0.0
    %2069 = vmatpush1.msra.mxu0 0.0
    %2070 = vmatprep.subr.mxu0 0.0
    %2071 = vmatpush1.msra.mxu0 0.0
    %2072 = vmatprep.mubr.f32.mxu0 0.0
    %2073 = vmatmul.mubr.f32.gmra.mrb[0].mxu0 %v1772
    %v2074 = vpop.f32.mrb[0].mxu0
    %v2075 = vadd.f32 0.0, %v2074
    %v2076 = vpop.f32.mrb[0].mxu0
    %2077 = vdwg.mxu0
    %2079 = vrot.lane.b32.xlu0 %v2075, 96
    %v2080 = vpop.permute.xlu0 %2079
    %v2082 = vadd.f32 %v1747, %v2080
    %v2083 = vxor.u32 %v2082, 2147483648
    %v2084 = vmul.f32 %v2083, 1.442695
    %v2085 = vpow.pop %v2084
    %v2086 = vadd.f32 %v2085, 1.0
    %v2087 = vrcp.pop %v2086
    %v2088 = vmul.f32 1.0, %v2087
    %v2089 = vmul.f32 %v1931, 0.0
    %2091 = vrot.lane.b32.xlu0 %v2007, 64
    %v2092 = vpop.permute.xlu0 %2091
    %v2094 = vmul.f32 %v1850, %v2092
    %2096 = vrot.lane.b32.xlu0 %v2094, 32
    %v2097 = vpop.permute.xlu0 %2096
    %v2099 = vadd.f32 %v2089, %v2097
    %v2100 = vtanh.pop %v2099
    %2102 = vrot.lane.b32.xlu0 %v2100, 64
    %v2103 = vpop.permute.xlu0 %2102
    %v2105 = vmul.f32 %v2088, %v2103
    %2107 = vrot.lane.b32.xlu0 %v2105, 32
    %v2108 = vpop.permute.xlu0 %2107
    %vm2110 = vcmask 253952
    %2111 = vst.msk [vmem:[#allocation46] sm:$0x1] %vm2110, %v2108
    %vm2112 = vcmask 254977
    %2113 = vst.msk [vmem:[#allocation46 + $0x7] sm:$0x2] %vm2112, %v2108
    %v2114 = vsel %vm629, %v2108, 0
    %2116 = vmatprep.subr.mxu0 0.0
    %2117 = vmatpush1.msra.mxu0 %v1755
    %2118 = vmatprep.subr.mxu0 0.0
    %2119 = vmatpush1.msra.mxu0 %v1756
    %2120 = vmatprep.subr.mxu0 0.0
    %2121 = vmatpush1.msra.mxu0 %v1757
    %2122 = vmatprep.subr.mxu0 0.0
    %2123 = vmatpush1.msra.mxu0 %v1758
    %2124 = vmatprep.subr.mxu0 0.0
    %2125 = vmatpush1.msra.mxu0 0.0
    %2126 = vmatprep.subr.mxu0 0.0
    %2127 = vmatpush1.msra.mxu0 0.0
    %2128 = vmatprep.subr.mxu0 0.0
    %2129 = vmatpush1.msra.mxu0 0.0
    %2130 = vmatprep.subr.mxu0 0.0
    %2131 = vmatpush1.msra.mxu0 0.0
    %2132 = vmatprep.subr.mxu0 0.0
    %2133 = vmatpush1.msra.mxu0 0.0
    %2134 = vmatprep.subr.mxu0 0.0
    %2135 = vmatpush1.msra.mxu0 0.0
    %2136 = vmatprep.subr.mxu0 0.0
    %2137 = vmatpush1.msra.mxu0 0.0
    %2138 = vmatprep.subr.mxu0 0.0
    %2139 = vmatpush1.msra.mxu0 0.0
    %2140 = vmatprep.subr.mxu0 0.0
    %2141 = vmatpush1.msra.mxu0 0.0
    %2142 = vmatprep.subr.mxu0 0.0
    %2143 = vmatpush1.msra.mxu0 0.0
    %2144 = vmatprep.subr.mxu0 0.0
    %2145 = vmatpush1.msra.mxu0 0.0
    %2146 = vmatprep.subr.mxu0 0.0
    %2147 = vmatpush1.msra.mxu0 0.0
    %2148 = vmatprep.subr.mxu0 0.0
    %2149 = vmatpush1.msra.mxu0 0.0
    %2150 = vmatprep.subr.mxu0 0.0
    %2151 = vmatpush1.msra.mxu0 0.0
    %2152 = vmatprep.subr.mxu0 0.0
    %2153 = vmatpush1.msra.mxu0 0.0
    %2154 = vmatprep.subr.mxu0 0.0
    %2155 = vmatpush1.msra.mxu0 0.0
    %2156 = vmatprep.subr.mxu0 0.0
    %2157 = vmatpush1.msra.mxu0 0.0
    %2158 = vmatprep.subr.mxu0 0.0
    %2159 = vmatpush1.msra.mxu0 0.0
    %2160 = vmatprep.subr.mxu0 0.0
    %2161 = vmatpush1.msra.mxu0 0.0
    %2162 = vmatprep.subr.mxu0 0.0
    %2163 = vmatpush1.msra.mxu0 0.0
    %2164 = vmatprep.subr.mxu0 0.0
    %2165 = vmatpush1.msra.mxu0 0.0
    %2166 = vmatprep.subr.mxu0 0.0
    %2167 = vmatpush1.msra.mxu0 0.0
    %2168 = vmatprep.subr.mxu0 0.0
    %2169 = vmatpush1.msra.mxu0 0.0
    %2170 = vmatprep.subr.mxu0 0.0
    %2171 = vmatpush1.msra.mxu0 0.0
    %2172 = vmatprep.subr.mxu0 0.0
    %2173 = vmatpush1.msra.mxu0 0.0
    %2174 = vmatprep.subr.mxu0 0.0
    %2175 = vmatpush1.msra.mxu0 0.0
    %2176 = vmatprep.subr.mxu0 0.0
    %2177 = vmatpush1.msra.mxu0 0.0
    %2178 = vmatprep.subr.mxu0 0.0
    %2179 = vmatpush1.msra.mxu0 0.0
    %2180 = vmatprep.mubr.f32.mxu0 0.0
    %2181 = vmatmul.mubr.f32.gmra.mrb[0].mxu0 %v2114
    %v2182 = vpop.f32.mrb[0].mxu0
    %v2183 = vadd.f32 0.0, %v2182
    %v2184 = vpop.f32.mrb[0].mxu0
    %2185 = vdwg.mxu0
    %v2187 = vrot.slane %v2183, 6
    %v2189 = vadd.f32 %v1747, %v2187
    %v2190 = vxor.u32 %v2189, 2147483648
    %v2191 = vmul.f32 %v2190, 1.442695
    %v2192 = vpow.pop %v2191
    %v2193 = vadd.f32 %v2192, 1.0
    %v2194 = vrcp.pop %v2193
    %v2195 = vmul.f32 1.0, %v2194
    %2196 = vmatprep.subr.mxu0 0.0
    %2197 = vmatpush1.msra.mxu0 %v1759
    %2198 = vmatprep.subr.mxu0 0.0
    %2199 = vmatpush1.msra.mxu0 %v1760
    %2200 = vmatprep.subr.mxu0 0.0
    %2201 = vmatpush1.msra.mxu0 %v1761
    %2202 = vmatprep.subr.mxu0 0.0
    %2203 = vmatpush1.msra.mxu0 %v1762
    %2204 = vmatprep.subr.mxu0 0.0
    %2205 = vmatpush1.msra.mxu0 0.0
    %2206 = vmatprep.subr.mxu0 0.0
    %2207 = vmatpush1.msra.mxu0 0.0
    %2208 = vmatprep.subr.mxu0 0.0
    %2209 = vmatpush1.msra.mxu0 0.0
    %2210 = vmatprep.subr.mxu0 0.0
    %2211 = vmatpush1.msra.mxu0 0.0
    %2212 = vmatprep.subr.mxu0 0.0
    %2213 = vmatpush1.msra.mxu0 0.0
    %2214 = vmatprep.subr.mxu0 0.0
    %2215 = vmatpush1.msra.mxu0 0.0
    %2216 = vmatprep.subr.mxu0 0.0
    %2217 = vmatpush1.msra.mxu0 0.0
    %2218 = vmatprep.subr.mxu0 0.0
    %2219 = vmatpush1.msra.mxu0 0.0
    %2220 = vmatprep.subr.mxu0 0.0
    %2221 = vmatpush1.msra.mxu0 0.0
    %2222 = vmatprep.subr.mxu0 0.0
    %2223 = vmatpush1.msra.mxu0 0.0
    %2224 = vmatprep.subr.mxu0 0.0
    %2225 = vmatpush1.msra.mxu0 0.0
    %2226 = vmatprep.subr.mxu0 0.0
    %2227 = vmatpush1.msra.mxu0 0.0
    %2228 = vmatprep.subr.mxu0 0.0
    %2229 = vmatpush1.msra.mxu0 0.0
    %2230 = vmatprep.subr.mxu0 0.0
    %2231 = vmatpush1.msra.mxu0 0.0
    %2232 = vmatprep.subr.mxu0 0.0
    %2233 = vmatpush1.msra.mxu0 0.0
    %2234 = vmatprep.subr.mxu0 0.0
    %2235 = vmatpush1.msra.mxu0 0.0
    %2236 = vmatprep.subr.mxu0 0.0
    %2237 = vmatpush1.msra.mxu0 0.0
    %2238 = vmatprep.subr.mxu0 0.0
    %2239 = vmatpush1.msra.mxu0 0.0
    %2240 = vmatprep.subr.mxu0 0.0
    %2241 = vmatpush1.msra.mxu0 0.0
    %2242 = vmatprep.subr.mxu0 0.0
    %2243 = vmatpush1.msra.mxu0 0.0
    %2244 = vmatprep.subr.mxu0 0.0
    %2245 = vmatpush1.msra.mxu0 0.0
    %2246 = vmatprep.subr.mxu0 0.0
    %2247 = vmatpush1.msra.mxu0 0.0
    %2248 = vmatprep.subr.mxu0 0.0
    %2249 = vmatpush1.msra.mxu0 0.0
    %2250 = vmatprep.subr.mxu0 0.0
    %2251 = vmatpush1.msra.mxu0 0.0
    %2252 = vmatprep.subr.mxu0 0.0
    %2253 = vmatpush1.msra.mxu0 0.0
    %2254 = vmatprep.subr.mxu0 0.0
    %2255 = vmatpush1.msra.mxu0 0.0
    %2256 = vmatprep.subr.mxu0 0.0
    %2257 = vmatpush1.msra.mxu0 0.0
    %2258 = vmatprep.subr.mxu0 0.0
    %2259 = vmatpush1.msra.mxu0 0.0
    %2260 = vmatprep.mubr.f32.mxu0 0.0
    %2261 = vmatmul.mubr.f32.gmra.mrb[0].mxu0 %v2114
    %v2262 = vpop.f32.mrb[0].mxu0
    %v2263 = vadd.f32 0.0, %v2262
    %v2264 = vpop.f32.mrb[0].mxu0
    %2265 = vdwg.mxu0
    %v2267 = vrot.slane %v2263, 6
    %2268 = vrot.lane.b32.xlu0 %v2267, 32
    %v2269 = vpop.permute.xlu0 %2268
    %v2271 = vadd.f32 %v1747, %v2269
    %v2272 = vxor.u32 %v2271, 2147483648
    %v2273 = vmul.f32 %v2272, 1.442695
    %v2274 = vpow.pop %v2273
    %v2275 = vadd.f32 %v2274, 1.0
    %v2276 = vrcp.pop %v2275
    %v2277 = vmul.f32 1.0, %v2276
    %2278 = vmatprep.subr.mxu0 0.0
    %2279 = vmatpush1.msra.mxu0 %v1763
    %2280 = vmatprep.subr.mxu0 0.0
    %2281 = vmatpush1.msra.mxu0 %v1764
    %2282 = vmatprep.subr.mxu0 0.0
    %2283 = vmatpush1.msra.mxu0 %v1765
    %2284 = vmatprep.subr.mxu0 0.0
    %2285 = vmatpush1.msra.mxu0 %v1766
    %2286 = vmatprep.subr.mxu0 0.0
    %2287 = vmatpush1.msra.mxu0 0.0
    %2288 = vmatprep.subr.mxu0 0.0
    %2289 = vmatpush1.msra.mxu0 0.0
    %2290 = vmatprep.subr.mxu0 0.0
    %2291 = vmatpush1.msra.mxu0 0.0
    %2292 = vmatprep.subr.mxu0 0.0
    %2293 = vmatpush1.msra.mxu0 0.0
    %2294 = vmatprep.subr.mxu0 0.0
    %2295 = vmatpush1.msra.mxu0 0.0
    %2296 = vmatprep.subr.mxu0 0.0
    %2297 = vmatpush1.msra.mxu0 0.0
    %2298 = vmatprep.subr.mxu0 0.0
    %2299 = vmatpush1.msra.mxu0 0.0
    %2300 = vmatprep.subr.mxu0 0.0
    %2301 = vmatpush1.msra.mxu0 0.0
    %2302 = vmatprep.subr.mxu0 0.0
    %2303 = vmatpush1.msra.mxu0 0.0
    %2304 = vmatprep.subr.mxu0 0.0
    %2305 = vmatpush1.msra.mxu0 0.0
    %2306 = vmatprep.subr.mxu0 0.0
    %2307 = vmatpush1.msra.mxu0 0.0
    %2308 = vmatprep.subr.mxu0 0.0
    %2309 = vmatpush1.msra.mxu0 0.0
    %2310 = vmatprep.subr.mxu0 0.0
    %2311 = vmatpush1.msra.mxu0 0.0
    %2312 = vmatprep.subr.mxu0 0.0
    %2313 = vmatpush1.msra.mxu0 0.0
    %2314 = vmatprep.subr.mxu0 0.0
    %2315 = vmatpush1.msra.mxu0 0.0
    %2316 = vmatprep.subr.mxu0 0.0
    %2317 = vmatpush1.msra.mxu0 0.0
    %2318 = vmatprep.subr.mxu0 0.0
    %2319 = vmatpush1.msra.mxu0 0.0
    %2320 = vmatprep.subr.mxu0 0.0
    %2321 = vmatpush1.msra.mxu0 0.0
    %2322 = vmatprep.subr.mxu0 0.0
    %2323 = vmatpush1.msra.mxu0 0.0
    %2324 = vmatprep.subr.mxu0 0.0
    %2325 = vmatpush1.msra.mxu0 0.0
    %2326 = vmatprep.subr.mxu0 0.0
    %2327 = vmatpush1.msra.mxu0 0.0
    %2328 = vmatprep.subr.mxu0 0.0
    %2329 = vmatpush1.msra.mxu0 0.0
    %2330 = vmatprep.subr.mxu0 0.0
    %2331 = vmatpush1.msra.mxu0 0.0
    %2332 = vmatprep.subr.mxu0 0.0
    %2333 = vmatpush1.msra.mxu0 0.0
    %2334 = vmatprep.subr.mxu0 0.0
    %2335 = vmatpush1.msra.mxu0 0.0
    %2336 = vmatprep.subr.mxu0 0.0
    %2337 = vmatpush1.msra.mxu0 0.0
    %2338 = vmatprep.subr.mxu0 0.0
    %2339 = vmatpush1.msra.mxu0 0.0
    %2340 = vmatprep.subr.mxu0 0.0
    %2341 = vmatpush1.msra.mxu0 0.0
    %2342 = vmatprep.mubr.f32.mxu0 0.0
    %2343 = vmatmul.mubr.f32.gmra.mrb[0].mxu0 %v2114
    %v2344 = vpop.f32.mrb[0].mxu0
    %v2345 = vadd.f32 0.0, %v2344
    %v2346 = vpop.f32.mrb[0].mxu0
    %2347 = vdwg.mxu0
    %v2349 = vrot.slane %v2345, 6
    %2350 = vrot.lane.b32.xlu0 %v2349, 64
    %v2351 = vpop.permute.xlu0 %2350
    %v2353 = vadd.f32 %v1747, %v2351
    %v2354 = vtanh.pop %v2353
    %2355 = vmatprep.subr.mxu0 0.0
    %2356 = vmatpush1.msra.mxu0 %v1767
    %2357 = vmatprep.subr.mxu0 0.0
    %2358 = vmatpush1.msra.mxu0 %v1768
    %2359 = vmatprep.subr.mxu0 0.0
    %2360 = vmatpush1.msra.mxu0 %v1769
    %2361 = vmatprep.subr.mxu0 0.0
    %2362 = vmatpush1.msra.mxu0 %v1770
    %2363 = vmatprep.subr.mxu0 0.0
    %2364 = vmatpush1.msra.mxu0 0.0
    %2365 = vmatprep.subr.mxu0 0.0
    %2366 = vmatpush1.msra.mxu0 0.0
    %2367 = vmatprep.subr.mxu0 0.0
    %2368 = vmatpush1.msra.mxu0 0.0
    %2369 = vmatprep.subr.mxu0 0.0
    %2370 = vmatpush1.msra.mxu0 0.0
    %2371 = vmatprep.subr.mxu0 0.0
    %2372 = vmatpush1.msra.mxu0 0.0
    %2373 = vmatprep.subr.mxu0 0.0
    %2374 = vmatpush1.msra.mxu0 0.0
    %2375 = vmatprep.subr.mxu0 0.0
    %2376 = vmatpush1.msra.mxu0 0.0
    %2377 = vmatprep.subr.mxu0 0.0
    %2378 = vmatpush1.msra.mxu0 0.0
    %2379 = vmatprep.subr.mxu0 0.0
    %2380 = vmatpush1.msra.mxu0 0.0
    %2381 = vmatprep.subr.mxu0 0.0
    %2382 = vmatpush1.msra.mxu0 0.0
    %2383 = vmatprep.subr.mxu0 0.0
    %2384 = vmatpush1.msra.mxu0 0.0
    %2385 = vmatprep.subr.mxu0 0.0
    %2386 = vmatpush1.msra.mxu0 0.0
    %2387 = vmatprep.subr.mxu0 0.0
    %2388 = vmatpush1.msra.mxu0 0.0
    %2389 = vmatprep.subr.mxu0 0.0
    %2390 = vmatpush1.msra.mxu0 0.0
    %2391 = vmatprep.subr.mxu0 0.0
    %2392 = vmatpush1.msra.mxu0 0.0
    %2393 = vmatprep.subr.mxu0 0.0
    %2394 = vmatpush1.msra.mxu0 0.0
    %2395 = vmatprep.subr.mxu0 0.0
    %2396 = vmatpush1.msra.mxu0 0.0
    %2397 = vmatprep.subr.mxu0 0.0
    %2398 = vmatpush1.msra.mxu0 0.0
    %2399 = vmatprep.subr.mxu0 0.0
    %2400 = vmatpush1.msra.mxu0 0.0
    %2401 = vmatprep.subr.mxu0 0.0
    %2402 = vmatpush1.msra.mxu0 0.0
    %2403 = vmatprep.subr.mxu0 0.0
    %2404 = vmatpush1.msra.mxu0 0.0
    %2405 = vmatprep.subr.mxu0 0.0
    %2406 = vmatpush1.msra.mxu0 0.0
    %2407 = vmatprep.subr.mxu0 0.0
    %2408 = vmatpush1.msra.mxu0 0.0
    %2409 = vmatprep.subr.mxu0 0.0
    %2410 = vmatpush1.msra.mxu0 0.0
    %2411 = vmatprep.subr.mxu0 0.0
    %2412 = vmatpush1.msra.mxu0 0.0
    %2413 = vmatprep.subr.mxu0 0.0
    %2414 = vmatpush1.msra.mxu0 0.0
    %2415 = vmatprep.subr.mxu0 0.0
    %2416 = vmatpush1.msra.mxu0 0.0
    %2417 = vmatprep.subr.mxu0 0.0
    %2418 = vmatpush1.msra.mxu0 0.0
    %2419 = vmatprep.mubr.f32.mxu0 0.0
    %2420 = vmatmul.mubr.f32.gmra.mrb[0].mxu0 %v2114
    %v2421 = vpop.f32.mrb[0].mxu0
    %v2422 = vadd.f32 0.0, %v2421
    %v2423 = vpop.f32.mrb[0].mxu0
    %2424 = vdwg.mxu0
    %v2426 = vrot.slane %v2422, 6
    %2427 = vrot.lane.b32.xlu0 %v2426, 96
    %v2428 = vpop.permute.xlu0 %2427
    %v2430 = vadd.f32 %v1747, %v2428
    %v2431 = vxor.u32 %v2430, 2147483648
    %v2432 = vmul.f32 %v2431, 1.442695
    %v2433 = vpow.pop %v2432
    %v2434 = vadd.f32 %v2433, 1.0
    %v2435 = vrcp.pop %v2434
    %v2436 = vmul.f32 1.0, %v2435
    %v2438 = vrot.slane %v2099, 6
    %v2440 = vmul.f32 %v2277, %v2438
    %2442 = vrot.lane.b32.xlu0 %v2354, 64
    %v2443 = vpop.permute.xlu0 %2442
    %v2445 = vmul.f32 %v2195, %v2443
    %2447 = vrot.lane.b32.xlu0 %v2445, 32
    %v2448 = vpop.permute.xlu0 %2447
    %v2450 = vadd.f32 %v2440, %v2448
    %v2451 = vtanh.pop %v2450
    %2453 = vrot.lane.b32.xlu0 %v2451, 64
    %v2454 = vpop.permute.xlu0 %2453
    %v2456 = vmul.f32 %v2436, %v2454
    %2458 = vrot.lane.b32.xlu0 %v2456, 32
    %v2459 = vpop.permute.xlu0 %2458
    %vm2461 = vcmask 256002
    %2462 = vst.msk [vmem:[#allocation46 - $0x1] sm:$0x4] %vm2461, %v2459
    %vm2463 = vcmask 257027
    %2464 = vst.msk [vmem:[#allocation46 + $0x6] sm:$0x8] %vm2463, %v2459
    %v2465 = vrot.slane %v2456, 2
    %2466 = vrot.lane.b32.xlu0 %v2465, 32
    %v2467 = vpop.permute.xlu0 %2466
    %v2468 = vsel %vm629, %v2467, 0
    %2470 = vmatprep.subr.mxu0 0.0
    %2471 = vmatpush1.msra.mxu0 %v1755
    %2472 = vmatprep.subr.mxu0 0.0
    %2473 = vmatpush1.msra.mxu0 %v1756
    %2474 = vmatprep.subr.mxu0 0.0
    %2475 = vmatpush1.msra.mxu0 %v1757
    %2476 = vmatprep.subr.mxu0 0.0
    %2477 = vmatpush1.msra.mxu0 %v1758
    %2478 = vmatprep.subr.mxu0 0.0
    %2479 = vmatpush1.msra.mxu0 0.0
    %2480 = vmatprep.subr.mxu0 0.0
    %2481 = vmatpush1.msra.mxu0 0.0
    %2482 = vmatprep.subr.mxu0 0.0
    %2483 = vmatpush1.msra.mxu0 0.0
    %2484 = vmatprep.subr.mxu0 0.0
    %2485 = vmatpush1.msra.mxu0 0.0
    %2486 = vmatprep.subr.mxu0 0.0
    %2487 = vmatpush1.msra.mxu0 0.0
    %2488 = vmatprep.subr.mxu0 0.0
    %2489 = vmatpush1.msra.mxu0 0.0
    %2490 = vmatprep.subr.mxu0 0.0
    %2491 = vmatpush1.msra.mxu0 0.0
    %2492 = vmatprep.subr.mxu0 0.0
    %2493 = vmatpush1.msra.mxu0 0.0
    %2494 = vmatprep.subr.mxu0 0.0
    %2495 = vmatpush1.msra.mxu0 0.0
    %2496 = vmatprep.subr.mxu0 0.0
    %2497 = vmatpush1.msra.mxu0 0.0
    %2498 = vmatprep.subr.mxu0 0.0
    %2499 = vmatpush1.msra.mxu0 0.0
    %2500 = vmatprep.subr.mxu0 0.0
    %2501 = vmatpush1.msra.mxu0 0.0
    %2502 = vmatprep.subr.mxu0 0.0
    %2503 = vmatpush1.msra.mxu0 0.0
    %2504 = vmatprep.subr.mxu0 0.0
    %2505 = vmatpush1.msra.mxu0 0.0
    %2506 = vmatprep.subr.mxu0 0.0
    %2507 = vmatpush1.msra.mxu0 0.0
    %2508 = vmatprep.subr.mxu0 0.0
    %2509 = vmatpush1.msra.mxu0 0.0
    %2510 = vmatprep.subr.mxu0 0.0
    %2511 = vmatpush1.msra.mxu0 0.0
    %2512 = vmatprep.subr.mxu0 0.0
    %2513 = vmatpush1.msra.mxu0 0.0
    %2514 = vmatprep.subr.mxu0 0.0
    %2515 = vmatpush1.msra.mxu0 0.0
    %2516 = vmatprep.subr.mxu0 0.0
    %2517 = vmatpush1.msra.mxu0 0.0
    %2518 = vmatprep.subr.mxu0 0.0
    %2519 = vmatpush1.msra.mxu0 0.0
    %2520 = vmatprep.subr.mxu0 0.0
    %2521 = vmatpush1.msra.mxu0 0.0
    %2522 = vmatprep.subr.mxu0 0.0
    %2523 = vmatpush1.msra.mxu0 0.0
    %2524 = vmatprep.subr.mxu0 0.0
    %2525 = vmatpush1.msra.mxu0 0.0
    %2526 = vmatprep.subr.mxu0 0.0
    %2527 = vmatpush1.msra.mxu0 0.0
    %2528 = vmatprep.subr.mxu0 0.0
    %2529 = vmatpush1.msra.mxu0 0.0
    %2530 = vmatprep.subr.mxu0 0.0
    %2531 = vmatpush1.msra.mxu0 0.0
    %2532 = vmatprep.subr.mxu0 0.0
    %2533 = vmatpush1.msra.mxu0 0.0
    %2534 = vmatprep.mubr.f32.mxu0 0.0
    %2535 = vmatmul.mubr.f32.gmra.mrb[0].mxu0 %v2468
    %v2536 = vpop.f32.mrb[0].mxu0
    %v2537 = vadd.f32 0.0, %v2536
    %v2538 = vpop.f32.mrb[0].mxu0
    %2539 = vdwg.mxu0
    %v2541 = vrot.slane %v2537, 4
    %v2543 = vadd.f32 %v1747, %v2541
    %v2544 = vxor.u32 %v2543, 2147483648
    %v2545 = vmul.f32 %v2544, 1.442695
    %v2546 = vpow.pop %v2545
    %v2547 = vadd.f32 %v2546, 1.0
    %v2548 = vrcp.pop %v2547
    %v2549 = vmul.f32 1.0, %v2548
    %2550 = vmatprep.subr.mxu0 0.0
    %2551 = vmatpush1.msra.mxu0 %v1759
    %2552 = vmatprep.subr.mxu0 0.0
    %2553 = vmatpush1.msra.mxu0 %v1760
    %2554 = vmatprep.subr.mxu0 0.0
    %2555 = vmatpush1.msra.mxu0 %v1761
    %2556 = vmatprep.subr.mxu0 0.0
    %2557 = vmatpush1.msra.mxu0 %v1762
    %2558 = vmatprep.subr.mxu0 0.0
    %2559 = vmatpush1.msra.mxu0 0.0
    %2560 = vmatprep.subr.mxu0 0.0
    %2561 = vmatpush1.msra.mxu0 0.0
    %2562 = vmatprep.subr.mxu0 0.0
    %2563 = vmatpush1.msra.mxu0 0.0
    %2564 = vmatprep.subr.mxu0 0.0
    %2565 = vmatpush1.msra.mxu0 0.0
    %2566 = vmatprep.subr.mxu0 0.0
    %2567 = vmatpush1.msra.mxu0 0.0
    %2568 = vmatprep.subr.mxu0 0.0
    %2569 = vmatpush1.msra.mxu0 0.0
    %2570 = vmatprep.subr.mxu0 0.0
    %2571 = vmatpush1.msra.mxu0 0.0
    %2572 = vmatprep.subr.mxu0 0.0
    %2573 = vmatpush1.msra.mxu0 0.0
    %2574 = vmatprep.subr.mxu0 0.0
    %2575 = vmatpush1.msra.mxu0 0.0
    %2576 = vmatprep.subr.mxu0 0.0
    %2577 = vmatpush1.msra.mxu0 0.0
    %2578 = vmatprep.subr.mxu0 0.0
    %2579 = vmatpush1.msra.mxu0 0.0
    %2580 = vmatprep.subr.mxu0 0.0
    %2581 = vmatpush1.msra.mxu0 0.0
    %2582 = vmatprep.subr.mxu0 0.0
    %2583 = vmatpush1.msra.mxu0 0.0
    %2584 = vmatprep.subr.mxu0 0.0
    %2585 = vmatpush1.msra.mxu0 0.0
    %2586 = vmatprep.subr.mxu0 0.0
    %2587 = vmatpush1.msra.mxu0 0.0
    %2588 = vmatprep.subr.mxu0 0.0
    %2589 = vmatpush1.msra.mxu0 0.0
    %2590 = vmatprep.subr.mxu0 0.0
    %2591 = vmatpush1.msra.mxu0 0.0
    %2592 = vmatprep.subr.mxu0 0.0
    %2593 = vmatpush1.msra.mxu0 0.0
    %2594 = vmatprep.subr.mxu0 0.0
    %2595 = vmatpush1.msra.mxu0 0.0
    %2596 = vmatprep.subr.mxu0 0.0
    %2597 = vmatpush1.msra.mxu0 0.0
    %2598 = vmatprep.subr.mxu0 0.0
    %2599 = vmatpush1.msra.mxu0 0.0
    %2600 = vmatprep.subr.mxu0 0.0
    %2601 = vmatpush1.msra.mxu0 0.0
    %2602 = vmatprep.subr.mxu0 0.0
    %2603 = vmatpush1.msra.mxu0 0.0
    %2604 = vmatprep.subr.mxu0 0.0
    %2605 = vmatpush1.msra.mxu0 0.0
    %2606 = vmatprep.subr.mxu0 0.0
    %2607 = vmatpush1.msra.mxu0 0.0
    %2608 = vmatprep.subr.mxu0 0.0
    %2609 = vmatpush1.msra.mxu0 0.0
    %2610 = vmatprep.subr.mxu0 0.0
    %2611 = vmatpush1.msra.mxu0 0.0
    %2612 = vmatprep.subr.mxu0 0.0
    %2613 = vmatpush1.msra.mxu0 0.0
    %2614 = vmatprep.mubr.f32.mxu0 0.0
    %2615 = vmatmul.mubr.f32.gmra.mrb[0].mxu0 %v2468
    %v2616 = vpop.f32.mrb[0].mxu0
    %v2617 = vadd.f32 0.0, %v2616
    %v2618 = vpop.f32.mrb[0].mxu0
    %2619 = vdwg.mxu0
    %v2621 = vrot.slane %v2617, 4
    %2622 = vrot.lane.b32.xlu0 %v2621, 32
    %v2623 = vpop.permute.xlu0 %2622
    %v2625 = vadd.f32 %v1747, %v2623
    %v2626 = vxor.u32 %v2625, 2147483648
    %v2627 = vmul.f32 %v2626, 1.442695
    %v2628 = vpow.pop %v2627
    %v2629 = vadd.f32 %v2628, 1.0
    %v2630 = vrcp.pop %v2629
    %v2631 = vmul.f32 1.0, %v2630
    %2632 = vmatprep.subr.mxu0 0.0
    %2633 = vmatpush1.msra.mxu0 %v1763
    %2634 = vmatprep.subr.mxu0 0.0
    %2635 = vmatpush1.msra.mxu0 %v1764
    %2636 = vmatprep.subr.mxu0 0.0
    %2637 = vmatpush1.msra.mxu0 %v1765
    %2638 = vmatprep.subr.mxu0 0.0
    %2639 = vmatpush1.msra.mxu0 %v1766
    %2640 = vmatprep.subr.mxu0 0.0
    %2641 = vmatpush1.msra.mxu0 0.0
    %2642 = vmatprep.subr.mxu0 0.0
    %2643 = vmatpush1.msra.mxu0 0.0
    %2644 = vmatprep.subr.mxu0 0.0
    %2645 = vmatpush1.msra.mxu0 0.0
    %2646 = vmatprep.subr.mxu0 0.0
    %2647 = vmatpush1.msra.mxu0 0.0
    %2648 = vmatprep.subr.mxu0 0.0
    %2649 = vmatpush1.msra.mxu0 0.0
    %2650 = vmatprep.subr.mxu0 0.0
    %2651 = vmatpush1.msra.mxu0 0.0
    %2652 = vmatprep.subr.mxu0 0.0
    %2653 = vmatpush1.msra.mxu0 0.0
    %2654 = vmatprep.subr.mxu0 0.0
    %2655 = vmatpush1.msra.mxu0 0.0
    %2656 = vmatprep.subr.mxu0 0.0
    %2657 = vmatpush1.msra.mxu0 0.0
    %2658 = vmatprep.subr.mxu0 0.0
    %2659 = vmatpush1.msra.mxu0 0.0
    %2660 = vmatprep.subr.mxu0 0.0
    %2661 = vmatpush1.msra.mxu0 0.0
    %2662 = vmatprep.subr.mxu0 0.0
    %2663 = vmatpush1.msra.mxu0 0.0
    %2664 = vmatprep.subr.mxu0 0.0
    %2665 = vmatpush1.msra.mxu0 0.0
    %2666 = vmatprep.subr.mxu0 0.0
    %2667 = vmatpush1.msra.mxu0 0.0
    %2668 = vmatprep.subr.mxu0 0.0
    %2669 = vmatpush1.msra.mxu0 0.0
    %2670 = vmatprep.subr.mxu0 0.0
    %2671 = vmatpush1.msra.mxu0 0.0
    %2672 = vmatprep.subr.mxu0 0.0
    %2673 = vmatpush1.msra.mxu0 0.0
    %2674 = vmatprep.subr.mxu0 0.0
    %2675 = vmatpush1.msra.mxu0 0.0
    %2676 = vmatprep.subr.mxu0 0.0
    %2677 = vmatpush1.msra.mxu0 0.0
    %2678 = vmatprep.subr.mxu0 0.0
    %2679 = vmatpush1.msra.mxu0 0.0
    %2680 = vmatprep.subr.mxu0 0.0
    %2681 = vmatpush1.msra.mxu0 0.0
    %2682 = vmatprep.subr.mxu0 0.0
    %2683 = vmatpush1.msra.mxu0 0.0
    %2684 = vmatprep.subr.mxu0 0.0
    %2685 = vmatpush1.msra.mxu0 0.0
    %2686 = vmatprep.subr.mxu0 0.0
    %2687 = vmatpush1.msra.mxu0 0.0
    %2688 = vmatprep.subr.mxu0 0.0
    %2689 = vmatpush1.msra.mxu0 0.0
    %2690 = vmatprep.subr.mxu0 0.0
    %2691 = vmatpush1.msra.mxu0 0.0
    %2692 = vmatprep.subr.mxu0 0.0
    %2693 = vmatpush1.msra.mxu0 0.0
    %2694 = vmatprep.subr.mxu0 0.0
    %2695 = vmatpush1.msra.mxu0 0.0
    %2696 = vmatprep.mubr.f32.mxu0 0.0
    %2697 = vmatmul.mubr.f32.gmra.mrb[0].mxu0 %v2468
    %v2698 = vpop.f32.mrb[0].mxu0
    %v2699 = vadd.f32 0.0, %v2698
    %v2700 = vpop.f32.mrb[0].mxu0
    %2701 = vdwg.mxu0
    %v2703 = vrot.slane %v2699, 4
    %2704 = vrot.lane.b32.xlu0 %v2703, 64
    %v2705 = vpop.permute.xlu0 %2704
    %v2707 = vadd.f32 %v1747, %v2705
    %v2708 = vtanh.pop %v2707
    %2709 = vmatprep.subr.mxu0 0.0
    %2710 = vmatpush1.msra.mxu0 %v1767
    %2711 = vmatprep.subr.mxu0 0.0
    %2712 = vmatpush1.msra.mxu0 %v1768
    %2713 = vmatprep.subr.mxu0 0.0
    %2714 = vmatpush1.msra.mxu0 %v1769
    %2715 = vmatprep.subr.mxu0 0.0
    %2716 = vmatpush1.msra.mxu0 %v1770
    %2717 = vmatprep.subr.mxu0 0.0
    %2718 = vmatpush1.msra.mxu0 0.0
    %2719 = vmatprep.subr.mxu0 0.0
    %2720 = vmatpush1.msra.mxu0 0.0
    %2721 = vmatprep.subr.mxu0 0.0
    %2722 = vmatpush1.msra.mxu0 0.0
    %2723 = vmatprep.subr.mxu0 0.0
    %2724 = vmatpush1.msra.mxu0 0.0
    %2725 = vmatprep.subr.mxu0 0.0
    %2726 = vmatpush1.msra.mxu0 0.0
    %2727 = vmatprep.subr.mxu0 0.0
    %2728 = vmatpush1.msra.mxu0 0.0
    %2729 = vmatprep.subr.mxu0 0.0
    %2730 = vmatpush1.msra.mxu0 0.0
    %2731 = vmatprep.subr.mxu0 0.0
    %2732 = vmatpush1.msra.mxu0 0.0
    %2733 = vmatprep.subr.mxu0 0.0
    %2734 = vmatpush1.msra.mxu0 0.0
    %2735 = vmatprep.subr.mxu0 0.0
    %2736 = vmatpush1.msra.mxu0 0.0
    %2737 = vmatprep.subr.mxu0 0.0
    %2738 = vmatpush1.msra.mxu0 0.0
    %2739 = vmatprep.subr.mxu0 0.0
    %2740 = vmatpush1.msra.mxu0 0.0
    %2741 = vmatprep.subr.mxu0 0.0
    %2742 = vmatpush1.msra.mxu0 0.0
    %2743 = vmatprep.subr.mxu0 0.0
    %2744 = vmatpush1.msra.mxu0 0.0
    %2745 = vmatprep.subr.mxu0 0.0
    %2746 = vmatpush1.msra.mxu0 0.0
    %2747 = vmatprep.subr.mxu0 0.0
    %2748 = vmatpush1.msra.mxu0 0.0
    %2749 = vmatprep.subr.mxu0 0.0
    %2750 = vmatpush1.msra.mxu0 0.0
    %2751 = vmatprep.subr.mxu0 0.0
    %2752 = vmatpush1.msra.mxu0 0.0
    %2753 = vmatprep.subr.mxu0 0.0
    %2754 = vmatpush1.msra.mxu0 0.0
    %2755 = vmatprep.subr.mxu0 0.0
    %2756 = vmatpush1.msra.mxu0 0.0
    %2757 = vmatprep.subr.mxu0 0.0
    %2758 = vmatpush1.msra.mxu0 0.0
    %2759 = vmatprep.subr.mxu0 0.0
    %2760 = vmatpush1.msra.mxu0 0.0
    %2761 = vmatprep.subr.mxu0 0.0
    %2762 = vmatpush1.msra.mxu0 0.0
    %2763 = vmatprep.subr.mxu0 0.0
    %2764 = vmatpush1.msra.mxu0 0.0
    %2765 = vmatprep.subr.mxu0 0.0
    %2766 = vmatpush1.msra.mxu0 0.0
    %2767 = vmatprep.subr.mxu0 0.0
    %2768 = vmatpush1.msra.mxu0 0.0
    %2769 = vmatprep.subr.mxu0 0.0
    %2770 = vmatpush1.msra.mxu0 0.0
    %2771 = vmatprep.subr.mxu0 0.0
    %2772 = vmatpush1.msra.mxu0 0.0
    %2773 = vmatprep.mubr.f32.mxu0 0.0
    %2774 = vmatmul.mubr.f32.gmra.mrb[0].mxu0 %v2468
    %v2775 = vpop.f32.mrb[0].mxu0
    %v2776 = vadd.f32 0.0, %v2775
    %v2777 = vpop.f32.mrb[0].mxu0
    %2778 = vdwg.mxu0
    %v2780 = vrot.slane %v2776, 4
    %2781 = vrot.lane.b32.xlu0 %v2780, 96
    %v2782 = vpop.permute.xlu0 %2781
    %v2784 = vadd.f32 %v1747, %v2782
    %v2785 = vxor.u32 %v2784, 2147483648
    %v2786 = vmul.f32 %v2785, 1.442695
    %v2787 = vpow.pop %v2786
    %v2788 = vadd.f32 %v2787, 1.0
    %v2789 = vrcp.pop %v2788
    %v2790 = vmul.f32 1.0, %v2789
    %v2792 = vrot.slane %v2450, 6
    %v2794 = vmul.f32 %v2631, %v2792
    %2796 = vrot.lane.b32.xlu0 %v2708, 64
    %v2797 = vpop.permute.xlu0 %2796
    %v2799 = vmul.f32 %v2549, %v2797
    %2801 = vrot.lane.b32.xlu0 %v2799, 32
    %v2802 = vpop.permute.xlu0 %2801
    %v2804 = vadd.f32 %v2794, %v2802
    %v2805 = vtanh.pop %v2804
    %2807 = vrot.lane.b32.xlu0 %v2805, 64
    %v2808 = vpop.permute.xlu0 %2807
    %v2810 = vmul.f32 %v2790, %v2808
    %2812 = vrot.lane.b32.xlu0 %v2810, 32
    %v2813 = vpop.permute.xlu0 %2812
    %vm2815 = vcmask 258052
    %2816 = vst.msk [vmem:[#allocation46 - $0x2] sm:$0x10] %vm2815, %v2813
    %vm2817 = vcmask 259077
    %2818 = vst.msk [vmem:[#allocation46 + $0x5] sm:$0x20] %vm2817, %v2813
    %v2819 = vrot.slane %v2810, 4
    %2820 = vrot.lane.b32.xlu0 %v2819, 32
    %v2821 = vpop.permute.xlu0 %2820
    %v2822 = vsel %vm629, %v2821, 0
    %2824 = vmatprep.subr.mxu0 0.0
    %2825 = vmatpush1.msra.mxu0 %v1755
    %2826 = vmatprep.subr.mxu0 0.0
    %2827 = vmatpush1.msra.mxu0 %v1756
    %2828 = vmatprep.subr.mxu0 0.0
    %2829 = vmatpush1.msra.mxu0 %v1757
    %2830 = vmatprep.subr.mxu0 0.0
    %2831 = vmatpush1.msra.mxu0 %v1758
    %2832 = vmatprep.subr.mxu0 0.0
    %2833 = vmatpush1.msra.mxu0 0.0
    %2834 = vmatprep.subr.mxu0 0.0
    %2835 = vmatpush1.msra.mxu0 0.0
    %2836 = vmatprep.subr.mxu0 0.0
    %2837 = vmatpush1.msra.mxu0 0.0
    %2838 = vmatprep.subr.mxu0 0.0
    %2839 = vmatpush1.msra.mxu0 0.0
    %2840 = vmatprep.subr.mxu0 0.0
    %2841 = vmatpush1.msra.mxu0 0.0
    %2842 = vmatprep.subr.mxu0 0.0
    %2843 = vmatpush1.msra.mxu0 0.0
    %2844 = vmatprep.subr.mxu0 0.0
    %2845 = vmatpush1.msra.mxu0 0.0
    %2846 = vmatprep.subr.mxu0 0.0
    %2847 = vmatpush1.msra.mxu0 0.0
    %2848 = vmatprep.subr.mxu0 0.0
    %2849 = vmatpush1.msra.mxu0 0.0
    %2850 = vmatprep.subr.mxu0 0.0
    %2851 = vmatpush1.msra.mxu0 0.0
    %2852 = vmatprep.subr.mxu0 0.0
    %2853 = vmatpush1.msra.mxu0 0.0
    %2854 = vmatprep.subr.mxu0 0.0
    %2855 = vmatpush1.msra.mxu0 0.0
    %2856 = vmatprep.subr.mxu0 0.0
    %2857 = vmatpush1.msra.mxu0 0.0
    %2858 = vmatprep.subr.mxu0 0.0
    %2859 = vmatpush1.msra.mxu0 0.0
    %2860 = vmatprep.subr.mxu0 0.0
    %2861 = vmatpush1.msra.mxu0 0.0
    %2862 = vmatprep.subr.mxu0 0.0
    %2863 = vmatpush1.msra.mxu0 0.0
    %2864 = vmatprep.subr.mxu0 0.0
    %2865 = vmatpush1.msra.mxu0 0.0
    %2866 = vmatprep.subr.mxu0 0.0
    %2867 = vmatpush1.msra.mxu0 0.0
    %2868 = vmatprep.subr.mxu0 0.0
    %2869 = vmatpush1.msra.mxu0 0.0
    %2870 = vmatprep.subr.mxu0 0.0
    %2871 = vmatpush1.msra.mxu0 0.0
    %2872 = vmatprep.subr.mxu0 0.0
    %2873 = vmatpush1.msra.mxu0 0.0
    %2874 = vmatprep.subr.mxu0 0.0
    %2875 = vmatpush1.msra.mxu0 0.0
    %2876 = vmatprep.subr.mxu0 0.0
    %2877 = vmatpush1.msra.mxu0 0.0
    %2878 = vmatprep.subr.mxu0 0.0
    %2879 = vmatpush1.msra.mxu0 0.0
    %2880 = vmatprep.subr.mxu0 0.0
    %2881 = vmatpush1.msra.mxu0 0.0
    %2882 = vmatprep.subr.mxu0 0.0
    %2883 = vmatpush1.msra.mxu0 0.0
    %2884 = vmatprep.subr.mxu0 0.0
    %2885 = vmatpush1.msra.mxu0 0.0
    %2886 = vmatprep.subr.mxu0 0.0
    %2887 = vmatpush1.msra.mxu0 0.0
    %2888 = vmatprep.mubr.f32.mxu0 0.0
    %2889 = vmatmul.mubr.f32.gmra.mrb[0].mxu0 %v2822
    %v2890 = vpop.f32.mrb[0].mxu0
    %v2891 = vadd.f32 0.0, %v2890
    %v2892 = vpop.f32.mrb[0].mxu0
    %2893 = vdwg.mxu0
    %v2895 = vrot.slane %v2891, 2
    %v2897 = vadd.f32 %v1747, %v2895
    %v2898 = vxor.u32 %v2897, 2147483648
    %v2899 = vmul.f32 %v2898, 1.442695
    %v2900 = vpow.pop %v2899
    %v2901 = vadd.f32 %v2900, 1.0
    %v2902 = vrcp.pop %v2901
    %v2903 = vmul.f32 1.0, %v2902
    %2904 = vmatprep.subr.mxu0 0.0
    %2905 = vmatpush1.msra.mxu0 %v1759
    %2906 = vmatprep.subr.mxu0 0.0
    %2907 = vmatpush1.msra.mxu0 %v1760
    %2908 = vmatprep.subr.mxu0 0.0
    %2909 = vmatpush1.msra.mxu0 %v1761
    %2910 = vmatprep.subr.mxu0 0.0
    %2911 = vmatpush1.msra.mxu0 %v1762
    %2912 = vmatprep.subr.mxu0 0.0
    %2913 = vmatpush1.msra.mxu0 0.0
    %2914 = vmatprep.subr.mxu0 0.0
    %2915 = vmatpush1.msra.mxu0 0.0
    %2916 = vmatprep.subr.mxu0 0.0
    %2917 = vmatpush1.msra.mxu0 0.0
    %2918 = vmatprep.subr.mxu0 0.0
    %2919 = vmatpush1.msra.mxu0 0.0
    %2920 = vmatprep.subr.mxu0 0.0
    %2921 = vmatpush1.msra.mxu0 0.0
    %2922 = vmatprep.subr.mxu0 0.0
    %2923 = vmatpush1.msra.mxu0 0.0
    %2924 = vmatprep.subr.mxu0 0.0
    %2925 = vmatpush1.msra.mxu0 0.0
    %2926 = vmatprep.subr.mxu0 0.0
    %2927 = vmatpush1.msra.mxu0 0.0
    %2928 = vmatprep.subr.mxu0 0.0
    %2929 = vmatpush1.msra.mxu0 0.0
    %2930 = vmatprep.subr.mxu0 0.0
    %2931 = vmatpush1.msra.mxu0 0.0
    %2932 = vmatprep.subr.mxu0 0.0
    %2933 = vmatpush1.msra.mxu0 0.0
    %2934 = vmatprep.subr.mxu0 0.0
    %2935 = vmatpush1.msra.mxu0 0.0
    %2936 = vmatprep.subr.mxu0 0.0
    %2937 = vmatpush1.msra.mxu0 0.0
    %2938 = vmatprep.subr.mxu0 0.0
    %2939 = vmatpush1.msra.mxu0 0.0
    %2940 = vmatprep.subr.mxu0 0.0
    %2941 = vmatpush1.msra.mxu0 0.0
    %2942 = vmatprep.subr.mxu0 0.0
    %2943 = vmatpush1.msra.mxu0 0.0
    %2944 = vmatprep.subr.mxu0 0.0
    %2945 = vmatpush1.msra.mxu0 0.0
    %2946 = vmatprep.subr.mxu0 0.0
    %2947 = vmatpush1.msra.mxu0 0.0
    %2948 = vmatprep.subr.mxu0 0.0
    %2949 = vmatpush1.msra.mxu0 0.0
    %2950 = vmatprep.subr.mxu0 0.0
    %2951 = vmatpush1.msra.mxu0 0.0
    %2952 = vmatprep.subr.mxu0 0.0
    %2953 = vmatpush1.msra.mxu0 0.0
    %2954 = vmatprep.subr.mxu0 0.0
    %2955 = vmatpush1.msra.mxu0 0.0
    %2956 = vmatprep.subr.mxu0 0.0
    %2957 = vmatpush1.msra.mxu0 0.0
    %2958 = vmatprep.subr.mxu0 0.0
    %2959 = vmatpush1.msra.mxu0 0.0
    %2960 = vmatprep.subr.mxu0 0.0
    %2961 = vmatpush1.msra.mxu0 0.0
    %2962 = vmatprep.subr.mxu0 0.0
    %2963 = vmatpush1.msra.mxu0 0.0
    %2964 = vmatprep.subr.mxu0 0.0
    %2965 = vmatpush1.msra.mxu0 0.0
    %2966 = vmatprep.subr.mxu0 0.0
    %2967 = vmatpush1.msra.mxu0 0.0
    %2968 = vmatprep.mubr.f32.mxu0 0.0
    %2969 = vmatmul.mubr.f32.gmra.mrb[0].mxu0 %v2822
    %v2970 = vpop.f32.mrb[0].mxu0
    %v2971 = vadd.f32 0.0, %v2970
    %v2972 = vpop.f32.mrb[0].mxu0
    %2973 = vdwg.mxu0
    %v2975 = vrot.slane %v2971, 2
    %2976 = vrot.lane.b32.xlu0 %v2975, 32
    %v2977 = vpop.permute.xlu0 %2976
    %v2979 = vadd.f32 %v1747, %v2977
    %v2980 = vxor.u32 %v2979, 2147483648
    %v2981 = vmul.f32 %v2980, 1.442695
    %v2982 = vpow.pop %v2981
    %v2983 = vadd.f32 %v2982, 1.0
    %v2984 = vrcp.pop %v2983
    %v2985 = vmul.f32 1.0, %v2984
    %2986 = vmatprep.subr.mxu0 0.0
    %2987 = vmatpush1.msra.mxu0 %v1763
    %2988 = vmatprep.subr.mxu0 0.0
    %2989 = vmatpush1.msra.mxu0 %v1764
    %2990 = vmatprep.subr.mxu0 0.0
    %2991 = vmatpush1.msra.mxu0 %v1765
    %2992 = vmatprep.subr.mxu0 0.0
    %2993 = vmatpush1.msra.mxu0 %v1766
    %2994 = vmatprep.subr.mxu0 0.0
    %2995 = vmatpush1.msra.mxu0 0.0
    %2996 = vmatprep.subr.mxu0 0.0
    %2997 = vmatpush1.msra.mxu0 0.0
    %2998 = vmatprep.subr.mxu0 0.0
    %2999 = vmatpush1.msra.mxu0 0.0
    %3000 = vmatprep.subr.mxu0 0.0
    %3001 = vmatpush1.msra.mxu0 0.0
    %3002 = vmatprep.subr.mxu0 0.0
    %3003 = vmatpush1.msra.mxu0 0.0
    %3004 = vmatprep.subr.mxu0 0.0
    %3005 = vmatpush1.msra.mxu0 0.0
    %3006 = vmatprep.subr.mxu0 0.0
    %3007 = vmatpush1.msra.mxu0 0.0
    %3008 = vmatprep.subr.mxu0 0.0
    %3009 = vmatpush1.msra.mxu0 0.0
    %3010 = vmatprep.subr.mxu0 0.0
    %3011 = vmatpush1.msra.mxu0 0.0
    %3012 = vmatprep.subr.mxu0 0.0
    %3013 = vmatpush1.msra.mxu0 0.0
    %3014 = vmatprep.subr.mxu0 0.0
    %3015 = vmatpush1.msra.mxu0 0.0
    %3016 = vmatprep.subr.mxu0 0.0
    %3017 = vmatpush1.msra.mxu0 0.0
    %3018 = vmatprep.subr.mxu0 0.0
    %3019 = vmatpush1.msra.mxu0 0.0
    %3020 = vmatprep.subr.mxu0 0.0
    %3021 = vmatpush1.msra.mxu0 0.0
    %3022 = vmatprep.subr.mxu0 0.0
    %3023 = vmatpush1.msra.mxu0 0.0
    %3024 = vmatprep.subr.mxu0 0.0
    %3025 = vmatpush1.msra.mxu0 0.0
    %3026 = vmatprep.subr.mxu0 0.0
    %3027 = vmatpush1.msra.mxu0 0.0
    %3028 = vmatprep.subr.mxu0 0.0
    %3029 = vmatpush1.msra.mxu0 0.0
    %3030 = vmatprep.subr.mxu0 0.0
    %3031 = vmatpush1.msra.mxu0 0.0
    %3032 = vmatprep.subr.mxu0 0.0
    %3033 = vmatpush1.msra.mxu0 0.0
    %3034 = vmatprep.subr.mxu0 0.0
    %3035 = vmatpush1.msra.mxu0 0.0
    %3036 = vmatprep.subr.mxu0 0.0
    %3037 = vmatpush1.msra.mxu0 0.0
    %3038 = vmatprep.subr.mxu0 0.0
    %3039 = vmatpush1.msra.mxu0 0.0
    %3040 = vmatprep.subr.mxu0 0.0
    %3041 = vmatpush1.msra.mxu0 0.0
    %3042 = vmatprep.subr.mxu0 0.0
    %3043 = vmatpush1.msra.mxu0 0.0
    %3044 = vmatprep.subr.mxu0 0.0
    %3045 = vmatpush1.msra.mxu0 0.0
    %3046 = vmatprep.subr.mxu0 0.0
    %3047 = vmatpush1.msra.mxu0 0.0
    %3048 = vmatprep.subr.mxu0 0.0
    %3049 = vmatpush1.msra.mxu0 0.0
    %3050 = vmatprep.mubr.f32.mxu0 0.0
    %3051 = vmatmul.mubr.f32.gmra.mrb[0].mxu0 %v2822
    %v3052 = vpop.f32.mrb[0].mxu0
    %v3053 = vadd.f32 0.0, %v3052
    %v3054 = vpop.f32.mrb[0].mxu0
    %3055 = vdwg.mxu0
    %v3057 = vrot.slane %v3053, 2
    %3058 = vrot.lane.b32.xlu0 %v3057, 64
    %v3059 = vpop.permute.xlu0 %3058
    %v3061 = vadd.f32 %v1747, %v3059
    %v3062 = vtanh.pop %v3061
    %3063 = vmatprep.subr.mxu0 0.0
    %3064 = vmatpush1.msra.mxu0 %v1767
    %3065 = vmatprep.subr.mxu0 0.0
    %3066 = vmatpush1.msra.mxu0 %v1768
    %3067 = vmatprep.subr.mxu0 0.0
    %3068 = vmatpush1.msra.mxu0 %v1769
    %3069 = vmatprep.subr.mxu0 0.0
    %3070 = vmatpush1.msra.mxu0 %v1770
    %3071 = vmatprep.subr.mxu0 0.0
    %3072 = vmatpush1.msra.mxu0 0.0
    %3073 = vmatprep.subr.mxu0 0.0
    %3074 = vmatpush1.msra.mxu0 0.0
    %3075 = vmatprep.subr.mxu0 0.0
    %3076 = vmatpush1.msra.mxu0 0.0
    %3077 = vmatprep.subr.mxu0 0.0
    %3078 = vmatpush1.msra.mxu0 0.0
    %3079 = vmatprep.subr.mxu0 0.0
    %3080 = vmatpush1.msra.mxu0 0.0
    %3081 = vmatprep.subr.mxu0 0.0
    %3082 = vmatpush1.msra.mxu0 0.0
    %3083 = vmatprep.subr.mxu0 0.0
    %3084 = vmatpush1.msra.mxu0 0.0
    %3085 = vmatprep.subr.mxu0 0.0
    %3086 = vmatpush1.msra.mxu0 0.0
    %3087 = vmatprep.subr.mxu0 0.0
    %3088 = vmatpush1.msra.mxu0 0.0
    %3089 = vmatprep.subr.mxu0 0.0
    %3090 = vmatpush1.msra.mxu0 0.0
    %3091 = vmatprep.subr.mxu0 0.0
    %3092 = vmatpush1.msra.mxu0 0.0
    %3093 = vmatprep.subr.mxu0 0.0
    %3094 = vmatpush1.msra.mxu0 0.0
    %3095 = vmatprep.subr.mxu0 0.0
    %3096 = vmatpush1.msra.mxu0 0.0
    %3097 = vmatprep.subr.mxu0 0.0
    %3098 = vmatpush1.msra.mxu0 0.0
    %3099 = vmatprep.subr.mxu0 0.0
    %3100 = vmatpush1.msra.mxu0 0.0
    %3101 = vmatprep.subr.mxu0 0.0
    %3102 = vmatpush1.msra.mxu0 0.0
    %3103 = vmatprep.subr.mxu0 0.0
    %3104 = vmatpush1.msra.mxu0 0.0
    %3105 = vmatprep.subr.mxu0 0.0
    %3106 = vmatpush1.msra.mxu0 0.0
    %3107 = vmatprep.subr.mxu0 0.0
    %3108 = vmatpush1.msra.mxu0 0.0
    %3109 = vmatprep.subr.mxu0 0.0
    %3110 = vmatpush1.msra.mxu0 0.0
    %3111 = vmatprep.subr.mxu0 0.0
    %3112 = vmatpush1.msra.mxu0 0.0
    %3113 = vmatprep.subr.mxu0 0.0
    %3114 = vmatpush1.msra.mxu0 0.0
    %3115 = vmatprep.subr.mxu0 0.0
    %3116 = vmatpush1.msra.mxu0 0.0
    %3117 = vmatprep.subr.mxu0 0.0
    %3118 = vmatpush1.msra.mxu0 0.0
    %3119 = vmatprep.subr.mxu0 0.0
    %3120 = vmatpush1.msra.mxu0 0.0
    %3121 = vmatprep.subr.mxu0 0.0
    %3122 = vmatpush1.msra.mxu0 0.0
    %3123 = vmatprep.subr.mxu0 0.0
    %3124 = vmatpush1.msra.mxu0 0.0
    %3125 = vmatprep.subr.mxu0 0.0
    %3126 = vmatpush1.msra.mxu0 0.0
    %3127 = vmatprep.mubr.f32.mxu0 0.0
    %3128 = vmatmul.mubr.f32.gmra.mrb[0].mxu0 %v2822
    %v3129 = vpop.f32.mrb[0].mxu0
    %v3130 = vadd.f32 0.0, %v3129
    %v3131 = vpop.f32.mrb[0].mxu0
    %3132 = vdwg.mxu0
    %v3134 = vrot.slane %v3130, 2
    %3135 = vrot.lane.b32.xlu0 %v3134, 96
    %v3136 = vpop.permute.xlu0 %3135
    %v3138 = vadd.f32 %v1747, %v3136
    %v3139 = vxor.u32 %v3138, 2147483648
    %v3140 = vmul.f32 %v3139, 1.442695
    %v3141 = vpow.pop %v3140
    %v3142 = vadd.f32 %v3141, 1.0
    %v3143 = vrcp.pop %v3142
    %v3144 = vmul.f32 1.0, %v3143
    %v3146 = vrot.slane %v2804, 6
    %v3148 = vmul.f32 %v2985, %v3146
    %3150 = vrot.lane.b32.xlu0 %v3062, 64
    %v3151 = vpop.permute.xlu0 %3150
    %v3153 = vmul.f32 %v2903, %v3151
    %3155 = vrot.lane.b32.xlu0 %v3153, 32
    %v3156 = vpop.permute.xlu0 %3155
    %v3158 = vadd.f32 %v3148, %v3156
    %v3159 = vtanh.pop %v3158
    %3161 = vrot.lane.b32.xlu0 %v3159, 64
    %v3162 = vpop.permute.xlu0 %3161
    %v3164 = vmul.f32 %v3144, %v3162
    %3166 = vrot.lane.b32.xlu0 %v3164, 32
    %v3167 = vpop.permute.xlu0 %3166
    %vm3169 = vcmask 260102
    %3170 = vst.msk [vmem:[#allocation46 - $0x3] sm:$0x40] %vm3169, %v3167
    %vm3171 = vcmask 261127
    %3172 = vst.msk [vmem:[#allocation46 + $0x4] sm:$0x80] %vm3171, %v3167
    %v3173 = vrot.slane %v3164, 6
    %3174 = vrot.lane.b32.xlu0 %v3173, 32
    %v3175 = vpop.permute.xlu0 %3174
    %v3176 = vsel %vm629, %v3175, 0
    %3178 = vmatprep.subr.mxu0 0.0
    %3179 = vmatpush1.msra.mxu0 %v1755
    %3180 = vmatprep.subr.mxu0 0.0
    %3181 = vmatpush1.msra.mxu0 %v1756
    %3182 = vmatprep.subr.mxu0 0.0
    %3183 = vmatpush1.msra.mxu0 %v1757
    %3184 = vmatprep.subr.mxu0 0.0
    %3185 = vmatpush1.msra.mxu0 %v1758
    %3186 = vmatprep.subr.mxu0 0.0
    %3187 = vmatpush1.msra.mxu0 0.0
    %3188 = vmatprep.subr.mxu0 0.0
    %3189 = vmatpush1.msra.mxu0 0.0
    %3190 = vmatprep.subr.mxu0 0.0
    %3191 = vmatpush1.msra.mxu0 0.0
    %3192 = vmatprep.subr.mxu0 0.0
    %3193 = vmatpush1.msra.mxu0 0.0
    %3194 = vmatprep.subr.mxu0 0.0
    %3195 = vmatpush1.msra.mxu0 0.0
    %3196 = vmatprep.subr.mxu0 0.0
    %3197 = vmatpush1.msra.mxu0 0.0
    %3198 = vmatprep.subr.mxu0 0.0
    %3199 = vmatpush1.msra.mxu0 0.0
    %3200 = vmatprep.subr.mxu0 0.0
    %3201 = vmatpush1.msra.mxu0 0.0
    %3202 = vmatprep.subr.mxu0 0.0
    %3203 = vmatpush1.msra.mxu0 0.0
    %3204 = vmatprep.subr.mxu0 0.0
    %3205 = vmatpush1.msra.mxu0 0.0
    %3206 = vmatprep.subr.mxu0 0.0
    %3207 = vmatpush1.msra.mxu0 0.0
    %3208 = vmatprep.subr.mxu0 0.0
    %3209 = vmatpush1.msra.mxu0 0.0
    %3210 = vmatprep.subr.mxu0 0.0
    %3211 = vmatpush1.msra.mxu0 0.0
    %3212 = vmatprep.subr.mxu0 0.0
    %3213 = vmatpush1.msra.mxu0 0.0
    %3214 = vmatprep.subr.mxu0 0.0
    %3215 = vmatpush1.msra.mxu0 0.0
    %3216 = vmatprep.subr.mxu0 0.0
    %3217 = vmatpush1.msra.mxu0 0.0
    %3218 = vmatprep.subr.mxu0 0.0
    %3219 = vmatpush1.msra.mxu0 0.0
    %3220 = vmatprep.subr.mxu0 0.0
    %3221 = vmatpush1.msra.mxu0 0.0
    %3222 = vmatprep.subr.mxu0 0.0
    %3223 = vmatpush1.msra.mxu0 0.0
    %3224 = vmatprep.subr.mxu0 0.0
    %3225 = vmatpush1.msra.mxu0 0.0
    %3226 = vmatprep.subr.mxu0 0.0
    %3227 = vmatpush1.msra.mxu0 0.0
    %3228 = vmatprep.subr.mxu0 0.0
    %3229 = vmatpush1.msra.mxu0 0.0
    %3230 = vmatprep.subr.mxu0 0.0
    %3231 = vmatpush1.msra.mxu0 0.0
    %3232 = vmatprep.subr.mxu0 0.0
    %3233 = vmatpush1.msra.mxu0 0.0
    %3234 = vmatprep.subr.mxu0 0.0
    %3235 = vmatpush1.msra.mxu0 0.0
    %3236 = vmatprep.subr.mxu0 0.0
    %3237 = vmatpush1.msra.mxu0 0.0
    %3238 = vmatprep.subr.mxu0 0.0
    %3239 = vmatpush1.msra.mxu0 0.0
    %3240 = vmatprep.subr.mxu0 0.0
    %3241 = vmatpush1.msra.mxu0 0.0
    %3242 = vmatprep.mubr.f32.mxu0 0.0
    %3243 = vmatmul.mubr.f32.gmra.mrb[0].mxu0 %v3176
    %v3244 = vpop.f32.mrb[0].mxu0
    %v3245 = vadd.f32 0.0, %v3244
    %v3246 = vpop.f32.mrb[0].mxu0
    %3247 = vdwg.mxu0
    %v3248 = vadd.f32 %v1752, %v3245
    %v3249 = vxor.u32 %v3248, 2147483648
    %v3250 = vmul.f32 %v3249, 1.442695
    %v3251 = vpow.pop %v3250
    %v3252 = vadd.f32 %v3251, 1.0
    %v3253 = vrcp.pop %v3252
    %v3254 = vmul.f32 1.0, %v3253
    %3255 = vmatprep.subr.mxu0 0.0
    %3256 = vmatpush1.msra.mxu0 %v1759
    %3257 = vmatprep.subr.mxu0 0.0
    %3258 = vmatpush1.msra.mxu0 %v1760
    %3259 = vmatprep.subr.mxu0 0.0
    %3260 = vmatpush1.msra.mxu0 %v1761
    %3261 = vmatprep.subr.mxu0 0.0
    %3262 = vmatpush1.msra.mxu0 %v1762
    %3263 = vmatprep.subr.mxu0 0.0
    %3264 = vmatpush1.msra.mxu0 0.0
    %3265 = vmatprep.subr.mxu0 0.0
    %3266 = vmatpush1.msra.mxu0 0.0
    %3267 = vmatprep.subr.mxu0 0.0
    %3268 = vmatpush1.msra.mxu0 0.0
    %3269 = vmatprep.subr.mxu0 0.0
    %3270 = vmatpush1.msra.mxu0 0.0
    %3271 = vmatprep.subr.mxu0 0.0
    %3272 = vmatpush1.msra.mxu0 0.0
    %3273 = vmatprep.subr.mxu0 0.0
    %3274 = vmatpush1.msra.mxu0 0.0
    %3275 = vmatprep.subr.mxu0 0.0
    %3276 = vmatpush1.msra.mxu0 0.0
    %3277 = vmatprep.subr.mxu0 0.0
    %3278 = vmatpush1.msra.mxu0 0.0
    %3279 = vmatprep.subr.mxu0 0.0
    %3280 = vmatpush1.msra.mxu0 0.0
    %3281 = vmatprep.subr.mxu0 0.0
    %3282 = vmatpush1.msra.mxu0 0.0
    %3283 = vmatprep.subr.mxu0 0.0
    %3284 = vmatpush1.msra.mxu0 0.0
    %3285 = vmatprep.subr.mxu0 0.0
    %3286 = vmatpush1.msra.mxu0 0.0
    %3287 = vmatprep.subr.mxu0 0.0
    %3288 = vmatpush1.msra.mxu0 0.0
    %3289 = vmatprep.subr.mxu0 0.0
    %3290 = vmatpush1.msra.mxu0 0.0
    %3291 = vmatprep.subr.mxu0 0.0
    %3292 = vmatpush1.msra.mxu0 0.0
    %3293 = vmatprep.subr.mxu0 0.0
    %3294 = vmatpush1.msra.mxu0 0.0
    %3295 = vmatprep.subr.mxu0 0.0
    %3296 = vmatpush1.msra.mxu0 0.0
    %3297 = vmatprep.subr.mxu0 0.0
    %3298 = vmatpush1.msra.mxu0 0.0
    %3299 = vmatprep.subr.mxu0 0.0
    %3300 = vmatpush1.msra.mxu0 0.0
    %3301 = vmatprep.subr.mxu0 0.0
    %3302 = vmatpush1.msra.mxu0 0.0
    %3303 = vmatprep.subr.mxu0 0.0
    %3304 = vmatpush1.msra.mxu0 0.0
    %3305 = vmatprep.subr.mxu0 0.0
    %3306 = vmatpush1.msra.mxu0 0.0
    %3307 = vmatprep.subr.mxu0 0.0
    %3308 = vmatpush1.msra.mxu0 0.0
    %3309 = vmatprep.subr.mxu0 0.0
    %3310 = vmatpush1.msra.mxu0 0.0
    %3311 = vmatprep.subr.mxu0 0.0
    %3312 = vmatpush1.msra.mxu0 0.0
    %3313 = vmatprep.subr.mxu0 0.0
    %3314 = vmatpush1.msra.mxu0 0.0
    %3315 = vmatprep.subr.mxu0 0.0
    %3316 = vmatpush1.msra.mxu0 0.0
    %3317 = vmatprep.subr.mxu0 0.0
    %3318 = vmatpush1.msra.mxu0 0.0
    %3319 = vmatprep.mubr.f32.mxu0 0.0
    %3320 = vmatmul.mubr.f32.gmra.mrb[0].mxu0 %v3176
    %v3321 = vpop.f32.mrb[0].mxu0
    %v3322 = vadd.f32 0.0, %v3321
    %v3323 = vpop.f32.mrb[0].mxu0
    %3324 = vdwg.mxu0
    %3326 = vrot.lane.b32.xlu0 %v3322, 32
    %v3327 = vpop.permute.xlu0 %3326
    %v3329 = vadd.f32 %v1752, %v3327
    %v3330 = vxor.u32 %v3329, 2147483648
    %v3331 = vmul.f32 %v3330, 1.442695
    %v3332 = vpow.pop %v3331
    %v3333 = vadd.f32 %v3332, 1.0
    %v3334 = vrcp.pop %v3333
    %v3335 = vmul.f32 1.0, %v3334
    %3336 = vmatprep.subr.mxu0 0.0
    %3337 = vmatpush1.msra.mxu0 %v1763
    %3338 = vmatprep.subr.mxu0 0.0
    %3339 = vmatpush1.msra.mxu0 %v1764
    %3340 = vmatprep.subr.mxu0 0.0
    %3341 = vmatpush1.msra.mxu0 %v1765
    %3342 = vmatprep.subr.mxu0 0.0
    %3343 = vmatpush1.msra.mxu0 %v1766
    %3344 = vmatprep.subr.mxu0 0.0
    %3345 = vmatpush1.msra.mxu0 0.0
    %3346 = vmatprep.subr.mxu0 0.0
    %3347 = vmatpush1.msra.mxu0 0.0
    %3348 = vmatprep.subr.mxu0 0.0
    %3349 = vmatpush1.msra.mxu0 0.0
    %3350 = vmatprep.subr.mxu0 0.0
    %3351 = vmatpush1.msra.mxu0 0.0
    %3352 = vmatprep.subr.mxu0 0.0
    %3353 = vmatpush1.msra.mxu0 0.0
    %3354 = vmatprep.subr.mxu0 0.0
    %3355 = vmatpush1.msra.mxu0 0.0
    %3356 = vmatprep.subr.mxu0 0.0
    %3357 = vmatpush1.msra.mxu0 0.0
    %3358 = vmatprep.subr.mxu0 0.0
    %3359 = vmatpush1.msra.mxu0 0.0
    %3360 = vmatprep.subr.mxu0 0.0
    %3361 = vmatpush1.msra.mxu0 0.0
    %3362 = vmatprep.subr.mxu0 0.0
    %3363 = vmatpush1.msra.mxu0 0.0
    %3364 = vmatprep.subr.mxu0 0.0
    %3365 = vmatpush1.msra.mxu0 0.0
    %3366 = vmatprep.subr.mxu0 0.0
    %3367 = vmatpush1.msra.mxu0 0.0
    %3368 = vmatprep.subr.mxu0 0.0
    %3369 = vmatpush1.msra.mxu0 0.0
    %3370 = vmatprep.subr.mxu0 0.0
    %3371 = vmatpush1.msra.mxu0 0.0
    %3372 = vmatprep.subr.mxu0 0.0
    %3373 = vmatpush1.msra.mxu0 0.0
    %3374 = vmatprep.subr.mxu0 0.0
    %3375 = vmatpush1.msra.mxu0 0.0
    %3376 = vmatprep.subr.mxu0 0.0
    %3377 = vmatpush1.msra.mxu0 0.0
    %3378 = vmatprep.subr.mxu0 0.0
    %3379 = vmatpush1.msra.mxu0 0.0
    %3380 = vmatprep.subr.mxu0 0.0
    %3381 = vmatpush1.msra.mxu0 0.0
    %3382 = vmatprep.subr.mxu0 0.0
    %3383 = vmatpush1.msra.mxu0 0.0
    %3384 = vmatprep.subr.mxu0 0.0
    %3385 = vmatpush1.msra.mxu0 0.0
    %3386 = vmatprep.subr.mxu0 0.0
    %3387 = vmatpush1.msra.mxu0 0.0
    %3388 = vmatprep.subr.mxu0 0.0
    %3389 = vmatpush1.msra.mxu0 0.0
    %3390 = vmatprep.subr.mxu0 0.0
    %3391 = vmatpush1.msra.mxu0 0.0
    %3392 = vmatprep.subr.mxu0 0.0
    %3393 = vmatpush1.msra.mxu0 0.0
    %3394 = vmatprep.subr.mxu0 0.0
    %3395 = vmatpush1.msra.mxu0 0.0
    %3396 = vmatprep.subr.mxu0 0.0
    %3397 = vmatpush1.msra.mxu0 0.0
    %3398 = vmatprep.subr.mxu0 0.0
    %3399 = vmatpush1.msra.mxu0 0.0
    %3400 = vmatprep.mubr.f32.mxu0 0.0
    %3401 = vmatmul.mubr.f32.gmra.mrb[0].mxu0 %v3176
    %v3402 = vpop.f32.mrb[0].mxu0
    %v3403 = vadd.f32 0.0, %v3402
    %v3404 = vpop.f32.mrb[0].mxu0
    %3405 = vdwg.mxu0
    %3407 = vrot.lane.b32.xlu0 %v3403, 64
    %v3408 = vpop.permute.xlu0 %3407
    %v3410 = vadd.f32 %v1752, %v3408
    %v3411 = vtanh.pop %v3410
    %3412 = vmatprep.subr.mxu0 0.0
    %3413 = vmatpush1.msra.mxu0 %v1767
    %3414 = vmatprep.subr.mxu0 0.0
    %3415 = vmatpush1.msra.mxu0 %v1768
    %3416 = vmatprep.subr.mxu0 0.0
    %3417 = vmatpush1.msra.mxu0 %v1769
    %3418 = vmatprep.subr.mxu0 0.0
    %3419 = vmatpush1.msra.mxu0 %v1770
    %3420 = vmatprep.subr.mxu0 0.0
    %3421 = vmatpush1.msra.mxu0 0.0
    %3422 = vmatprep.subr.mxu0 0.0
    %3423 = vmatpush1.msra.mxu0 0.0
    %3424 = vmatprep.subr.mxu0 0.0
    %3425 = vmatpush1.msra.mxu0 0.0
    %3426 = vmatprep.subr.mxu0 0.0
    %3427 = vmatpush1.msra.mxu0 0.0
    %3428 = vmatprep.subr.mxu0 0.0
    %3429 = vmatpush1.msra.mxu0 0.0
    %3430 = vmatprep.subr.mxu0 0.0
    %3431 = vmatpush1.msra.mxu0 0.0
    %3432 = vmatprep.subr.mxu0 0.0
    %3433 = vmatpush1.msra.mxu0 0.0
    %3434 = vmatprep.subr.mxu0 0.0
    %3435 = vmatpush1.msra.mxu0 0.0
    %3436 = vmatprep.subr.mxu0 0.0
    %3437 = vmatpush1.msra.mxu0 0.0
    %3438 = vmatprep.subr.mxu0 0.0
    %3439 = vmatpush1.msra.mxu0 0.0
    %3440 = vmatprep.subr.mxu0 0.0
    %3441 = vmatpush1.msra.mxu0 0.0
    %3442 = vmatprep.subr.mxu0 0.0
    %3443 = vmatpush1.msra.mxu0 0.0
    %3444 = vmatprep.subr.mxu0 0.0
    %3445 = vmatpush1.msra.mxu0 0.0
    %3446 = vmatprep.subr.mxu0 0.0
    %3447 = vmatpush1.msra.mxu0 0.0
    %3448 = vmatprep.subr.mxu0 0.0
    %3449 = vmatpush1.msra.mxu0 0.0
    %3450 = vmatprep.subr.mxu0 0.0
    %3451 = vmatpush1.msra.mxu0 0.0
    %3452 = vmatprep.subr.mxu0 0.0
    %3453 = vmatpush1.msra.mxu0 0.0
    %3454 = vmatprep.subr.mxu0 0.0
    %3455 = vmatpush1.msra.mxu0 0.0
    %3456 = vmatprep.subr.mxu0 0.0
    %3457 = vmatpush1.msra.mxu0 0.0
    %3458 = vmatprep.subr.mxu0 0.0
    %3459 = vmatpush1.msra.mxu0 0.0
    %3460 = vmatprep.subr.mxu0 0.0
    %3461 = vmatpush1.msra.mxu0 0.0
    %3462 = vmatprep.subr.mxu0 0.0
    %3463 = vmatpush1.msra.mxu0 0.0
    %3464 = vmatprep.subr.mxu0 0.0
    %3465 = vmatpush1.msra.mxu0 0.0
    %3466 = vmatprep.subr.mxu0 0.0
    %3467 = vmatpush1.msra.mxu0 0.0
    %3468 = vmatprep.subr.mxu0 0.0
    %3469 = vmatpush1.msra.mxu0 0.0
    %3470 = vmatprep.subr.mxu0 0.0
    %3471 = vmatpush1.msra.mxu0 0.0
    %3472 = vmatprep.subr.mxu0 0.0
    %3473 = vmatpush1.msra.mxu0 0.0
    %3474 = vmatprep.subr.mxu0 0.0
    %3475 = vmatpush1.msra.mxu0 0.0
    %3476 = vmatprep.mubr.f32.mxu0 0.0
    %3477 = vmatmul.mubr.f32.gmra.mrb[0].mxu0 %v3176
    %v3478 = vpop.f32.mrb[0].mxu0
    %v3479 = vadd.f32 0.0, %v3478
    %v3480 = vpop.f32.mrb[0].mxu0
    %3481 = vdwg.mxu0
    %3483 = vrot.lane.b32.xlu0 %v3479, 96
    %v3484 = vpop.permute.xlu0 %3483
    %v3486 = vadd.f32 %v1752, %v3484
    %v3487 = vxor.u32 %v3486, 2147483648
    %v3488 = vmul.f32 %v3487, 1.442695
    %v3489 = vpow.pop %v3488
    %v3490 = vadd.f32 %v3489, 1.0
    %v3491 = vrcp.pop %v3490
    %v3492 = vmul.f32 1.0, %v3491
    %v3494 = vrot.slane %v3158, 6
    %v3496 = vmul.f32 %v3335, %v3494
    %3498 = vrot.lane.b32.xlu0 %v3411, 64
    %v3499 = vpop.permute.xlu0 %3498
    %v3501 = vmul.f32 %v3254, %v3499
    %3503 = vrot.lane.b32.xlu0 %v3501, 32
    %v3504 = vpop.permute.xlu0 %3503
    %v3506 = vadd.f32 %v3496, %v3504
    %v3507 = vtanh.pop %v3506
    %3509 = vrot.lane.b32.xlu0 %v3507, 64
    %v3510 = vpop.permute.xlu0 %3509
    %v3512 = vmul.f32 %v3492, %v3510
    %3514 = vrot.lane.b32.xlu0 %v3512, 32
    %v3515 = vpop.permute.xlu0 %3514
    %3517 = vst.msk [vmem:[#allocation46 + $0x4] sm:$0x1] %vm2110, %v3515
    %3518 = vst.msk [vmem:[#allocation46 + $0xb] sm:$0x2] %vm2112, %v3515
    %v3519 = vsel %vm629, %v3515, 0
    %3521 = vmatprep.subr.mxu0 0.0
    %3522 = vmatpush1.msra.mxu0 %v1755
    %3523 = vmatprep.subr.mxu0 0.0
    %3524 = vmatpush1.msra.mxu0 %v1756
    %3525 = vmatprep.subr.mxu0 0.0
    %3526 = vmatpush1.msra.mxu0 %v1757
    %3527 = vmatprep.subr.mxu0 0.0
    %3528 = vmatpush1.msra.mxu0 %v1758
    %3529 = vmatprep.subr.mxu0 0.0
    %3530 = vmatpush1.msra.mxu0 0.0
    %3531 = vmatprep.subr.mxu0 0.0
    %3532 = vmatpush1.msra.mxu0 0.0
    %3533 = vmatprep.subr.mxu0 0.0
    %3534 = vmatpush1.msra.mxu0 0.0
    %3535 = vmatprep.subr.mxu0 0.0
    %3536 = vmatpush1.msra.mxu0 0.0
    %3537 = vmatprep.subr.mxu0 0.0
    %3538 = vmatpush1.msra.mxu0 0.0
    %3539 = vmatprep.subr.mxu0 0.0
    %3540 = vmatpush1.msra.mxu0 0.0
    %3541 = vmatprep.subr.mxu0 0.0
    %3542 = vmatpush1.msra.mxu0 0.0
    %3543 = vmatprep.subr.mxu0 0.0
    %3544 = vmatpush1.msra.mxu0 0.0
    %3545 = vmatprep.subr.mxu0 0.0
    %3546 = vmatpush1.msra.mxu0 0.0
    %3547 = vmatprep.subr.mxu0 0.0
    %3548 = vmatpush1.msra.mxu0 0.0
    %3549 = vmatprep.subr.mxu0 0.0
    %3550 = vmatpush1.msra.mxu0 0.0
    %3551 = vmatprep.subr.mxu0 0.0
    %3552 = vmatpush1.msra.mxu0 0.0
    %3553 = vmatprep.subr.mxu0 0.0
    %3554 = vmatpush1.msra.mxu0 0.0
    %3555 = vmatprep.subr.mxu0 0.0
    %3556 = vmatpush1.msra.mxu0 0.0
    %3557 = vmatprep.subr.mxu0 0.0
    %3558 = vmatpush1.msra.mxu0 0.0
    %3559 = vmatprep.subr.mxu0 0.0
    %3560 = vmatpush1.msra.mxu0 0.0
    %3561 = vmatprep.subr.mxu0 0.0
    %3562 = vmatpush1.msra.mxu0 0.0
    %3563 = vmatprep.subr.mxu0 0.0
    %3564 = vmatpush1.msra.mxu0 0.0
    %3565 = vmatprep.subr.mxu0 0.0
    %3566 = vmatpush1.msra.mxu0 0.0
    %3567 = vmatprep.subr.mxu0 0.0
    %3568 = vmatpush1.msra.mxu0 0.0
    %3569 = vmatprep.subr.mxu0 0.0
    %3570 = vmatpush1.msra.mxu0 0.0
    %3571 = vmatprep.subr.mxu0 0.0
    %3572 = vmatpush1.msra.mxu0 0.0
    %3573 = vmatprep.subr.mxu0 0.0
    %3574 = vmatpush1.msra.mxu0 0.0
    %3575 = vmatprep.subr.mxu0 0.0
    %3576 = vmatpush1.msra.mxu0 0.0
    %3577 = vmatprep.subr.mxu0 0.0
    %3578 = vmatpush1.msra.mxu0 0.0
    %3579 = vmatprep.subr.mxu0 0.0
    %3580 = vmatpush1.msra.mxu0 0.0
    %3581 = vmatprep.subr.mxu0 0.0
    %3582 = vmatpush1.msra.mxu0 0.0
    %3583 = vmatprep.subr.mxu0 0.0
    %3584 = vmatpush1.msra.mxu0 0.0
    %3585 = vmatprep.mubr.f32.mxu0 0.0
    %3586 = vmatmul.mubr.f32.gmra.mrb[0].mxu0 %v3519
    %v3587 = vpop.f32.mrb[0].mxu0
    %v3588 = vadd.f32 0.0, %v3587
    %v3589 = vpop.f32.mrb[0].mxu0
    %3590 = vdwg.mxu0
    %v3592 = vrot.slane %v3588, 6
    %v3594 = vadd.f32 %v1752, %v3592
    %v3595 = vxor.u32 %v3594, 2147483648
    %v3596 = vmul.f32 %v3595, 1.442695
    %v3597 = vpow.pop %v3596
    %v3598 = vadd.f32 %v3597, 1.0
    %v3599 = vrcp.pop %v3598
    %v3600 = vmul.f32 1.0, %v3599
    %3601 = vmatprep.subr.mxu0 0.0
    %3602 = vmatpush1.msra.mxu0 %v1759
    %3603 = vmatprep.subr.mxu0 0.0
    %3604 = vmatpush1.msra.mxu0 %v1760
    %3605 = vmatprep.subr.mxu0 0.0
    %3606 = vmatpush1.msra.mxu0 %v1761
    %3607 = vmatprep.subr.mxu0 0.0
    %3608 = vmatpush1.msra.mxu0 %v1762
    %3609 = vmatprep.subr.mxu0 0.0
    %3610 = vmatpush1.msra.mxu0 0.0
    %3611 = vmatprep.subr.mxu0 0.0
    %3612 = vmatpush1.msra.mxu0 0.0
    %3613 = vmatprep.subr.mxu0 0.0
    %3614 = vmatpush1.msra.mxu0 0.0
    %3615 = vmatprep.subr.mxu0 0.0
    %3616 = vmatpush1.msra.mxu0 0.0
    %3617 = vmatprep.subr.mxu0 0.0
    %3618 = vmatpush1.msra.mxu0 0.0
    %3619 = vmatprep.subr.mxu0 0.0
    %3620 = vmatpush1.msra.mxu0 0.0
    %3621 = vmatprep.subr.mxu0 0.0
    %3622 = vmatpush1.msra.mxu0 0.0
    %3623 = vmatprep.subr.mxu0 0.0
    %3624 = vmatpush1.msra.mxu0 0.0
    %3625 = vmatprep.subr.mxu0 0.0
    %3626 = vmatpush1.msra.mxu0 0.0
    %3627 = vmatprep.subr.mxu0 0.0
    %3628 = vmatpush1.msra.mxu0 0.0
    %3629 = vmatprep.subr.mxu0 0.0
    %3630 = vmatpush1.msra.mxu0 0.0
    %3631 = vmatprep.subr.mxu0 0.0
    %3632 = vmatpush1.msra.mxu0 0.0
    %3633 = vmatprep.subr.mxu0 0.0
    %3634 = vmatpush1.msra.mxu0 0.0
    %3635 = vmatprep.subr.mxu0 0.0
    %3636 = vmatpush1.msra.mxu0 0.0
    %3637 = vmatprep.subr.mxu0 0.0
    %3638 = vmatpush1.msra.mxu0 0.0
    %3639 = vmatprep.subr.mxu0 0.0
    %3640 = vmatpush1.msra.mxu0 0.0
    %3641 = vmatprep.subr.mxu0 0.0
    %3642 = vmatpush1.msra.mxu0 0.0
    %3643 = vmatprep.subr.mxu0 0.0
    %3644 = vmatpush1.msra.mxu0 0.0
    %3645 = vmatprep.subr.mxu0 0.0
    %3646 = vmatpush1.msra.mxu0 0.0
    %3647 = vmatprep.subr.mxu0 0.0
    %3648 = vmatpush1.msra.mxu0 0.0
    %3649 = vmatprep.subr.mxu0 0.0
    %3650 = vmatpush1.msra.mxu0 0.0
    %3651 = vmatprep.subr.mxu0 0.0
    %3652 = vmatpush1.msra.mxu0 0.0
    %3653 = vmatprep.subr.mxu0 0.0
    %3654 = vmatpush1.msra.mxu0 0.0
    %3655 = vmatprep.subr.mxu0 0.0
    %3656 = vmatpush1.msra.mxu0 0.0
    %3657 = vmatprep.subr.mxu0 0.0
    %3658 = vmatpush1.msra.mxu0 0.0
    %3659 = vmatprep.subr.mxu0 0.0
    %3660 = vmatpush1.msra.mxu0 0.0
    %3661 = vmatprep.subr.mxu0 0.0
    %3662 = vmatpush1.msra.mxu0 0.0
    %3663 = vmatprep.subr.mxu0 0.0
    %3664 = vmatpush1.msra.mxu0 0.0
    %3665 = vmatprep.mubr.f32.mxu0 0.0
    %3666 = vmatmul.mubr.f32.gmra.mrb[0].mxu0 %v3519
    %v3667 = vpop.f32.mrb[0].mxu0
    %v3668 = vadd.f32 0.0, %v3667
    %v3669 = vpop.f32.mrb[0].mxu0
    %3670 = vdwg.mxu0
    %v3672 = vrot.slane %v3668, 6
    %3673 = vrot.lane.b32.xlu0 %v3672, 32
    %v3674 = vpop.permute.xlu0 %3673
    %v3676 = vadd.f32 %v1752, %v3674
    %v3677 = vxor.u32 %v3676, 2147483648
    %v3678 = vmul.f32 %v3677, 1.442695
    %v3679 = vpow.pop %v3678
    %v3680 = vadd.f32 %v3679, 1.0
    %v3681 = vrcp.pop %v3680
    %v3682 = vmul.f32 1.0, %v3681
    %3683 = vmatprep.subr.mxu0 0.0
    %3684 = vmatpush1.msra.mxu0 %v1763
    %3685 = vmatprep.subr.mxu0 0.0
    %3686 = vmatpush1.msra.mxu0 %v1764
    %3687 = vmatprep.subr.mxu0 0.0
    %3688 = vmatpush1.msra.mxu0 %v1765
    %3689 = vmatprep.subr.mxu0 0.0
    %3690 = vmatpush1.msra.mxu0 %v1766
    %3691 = vmatprep.subr.mxu0 0.0
    %3692 = vmatpush1.msra.mxu0 0.0
    %3693 = vmatprep.subr.mxu0 0.0
    %3694 = vmatpush1.msra.mxu0 0.0
    %3695 = vmatprep.subr.mxu0 0.0
    %3696 = vmatpush1.msra.mxu0 0.0
    %3697 = vmatprep.subr.mxu0 0.0
    %3698 = vmatpush1.msra.mxu0 0.0
    %3699 = vmatprep.subr.mxu0 0.0
    %3700 = vmatpush1.msra.mxu0 0.0
    %3701 = vmatprep.subr.mxu0 0.0
    %3702 = vmatpush1.msra.mxu0 0.0
    %3703 = vmatprep.subr.mxu0 0.0
    %3704 = vmatpush1.msra.mxu0 0.0
    %3705 = vmatprep.subr.mxu0 0.0
    %3706 = vmatpush1.msra.mxu0 0.0
    %3707 = vmatprep.subr.mxu0 0.0
    %3708 = vmatpush1.msra.mxu0 0.0
    %3709 = vmatprep.subr.mxu0 0.0
    %3710 = vmatpush1.msra.mxu0 0.0
    %3711 = vmatprep.subr.mxu0 0.0
    %3712 = vmatpush1.msra.mxu0 0.0
    %3713 = vmatprep.subr.mxu0 0.0
    %3714 = vmatpush1.msra.mxu0 0.0
    %3715 = vmatprep.subr.mxu0 0.0
    %3716 = vmatpush1.msra.mxu0 0.0
    %3717 = vmatprep.subr.mxu0 0.0
    %3718 = vmatpush1.msra.mxu0 0.0
    %3719 = vmatprep.subr.mxu0 0.0
    %3720 = vmatpush1.msra.mxu0 0.0
    %3721 = vmatprep.subr.mxu0 0.0
    %3722 = vmatpush1.msra.mxu0 0.0
    %3723 = vmatprep.subr.mxu0 0.0
    %3724 = vmatpush1.msra.mxu0 0.0
    %3725 = vmatprep.subr.mxu0 0.0
    %3726 = vmatpush1.msra.mxu0 0.0
    %3727 = vmatprep.subr.mxu0 0.0
    %3728 = vmatpush1.msra.mxu0 0.0
    %3729 = vmatprep.subr.mxu0 0.0
    %3730 = vmatpush1.msra.mxu0 0.0
    %3731 = vmatprep.subr.mxu0 0.0
    %3732 = vmatpush1.msra.mxu0 0.0
    %3733 = vmatprep.subr.mxu0 0.0
    %3734 = vmatpush1.msra.mxu0 0.0
    %3735 = vmatprep.subr.mxu0 0.0
    %3736 = vmatpush1.msra.mxu0 0.0
    %3737 = vmatprep.subr.mxu0 0.0
    %3738 = vmatpush1.msra.mxu0 0.0
    %3739 = vmatprep.subr.mxu0 0.0
    %3740 = vmatpush1.msra.mxu0 0.0
    %3741 = vmatprep.subr.mxu0 0.0
    %3742 = vmatpush1.msra.mxu0 0.0
    %3743 = vmatprep.subr.mxu0 0.0
    %3744 = vmatpush1.msra.mxu0 0.0
    %3745 = vmatprep.subr.mxu0 0.0
    %3746 = vmatpush1.msra.mxu0 0.0
    %3747 = vmatprep.mubr.f32.mxu0 0.0
    %3748 = vmatmul.mubr.f32.gmra.mrb[0].mxu0 %v3519
    %v3749 = vpop.f32.mrb[0].mxu0
    %v3750 = vadd.f32 0.0, %v3749
    %v3751 = vpop.f32.mrb[0].mxu0
    %3752 = vdwg.mxu0
    %v3754 = vrot.slane %v3750, 6
    %3755 = vrot.lane.b32.xlu0 %v3754, 64
    %v3756 = vpop.permute.xlu0 %3755
    %v3758 = vadd.f32 %v1752, %v3756
    %v3759 = vtanh.pop %v3758
    %3760 = vmatprep.subr.mxu0 0.0
    %3761 = vmatpush1.msra.mxu0 %v1767
    %3762 = vmatprep.subr.mxu0 0.0
    %3763 = vmatpush1.msra.mxu0 %v1768
    %3764 = vmatprep.subr.mxu0 0.0
    %3765 = vmatpush1.msra.mxu0 %v1769
    %3766 = vmatprep.subr.mxu0 0.0
    %3767 = vmatpush1.msra.mxu0 %v1770
    %3768 = vmatprep.subr.mxu0 0.0
    %3769 = vmatpush1.msra.mxu0 0.0
    %3770 = vmatprep.subr.mxu0 0.0
    %3771 = vmatpush1.msra.mxu0 0.0
    %3772 = vmatprep.subr.mxu0 0.0
    %3773 = vmatpush1.msra.mxu0 0.0
    %3774 = vmatprep.subr.mxu0 0.0
    %3775 = vmatpush1.msra.mxu0 0.0
    %3776 = vmatprep.subr.mxu0 0.0
    %3777 = vmatpush1.msra.mxu0 0.0
    %3778 = vmatprep.subr.mxu0 0.0
    %3779 = vmatpush1.msra.mxu0 0.0
    %3780 = vmatprep.subr.mxu0 0.0
    %3781 = vmatpush1.msra.mxu0 0.0
    %3782 = vmatprep.subr.mxu0 0.0
    %3783 = vmatpush1.msra.mxu0 0.0
    %3784 = vmatprep.subr.mxu0 0.0
    %3785 = vmatpush1.msra.mxu0 0.0
    %3786 = vmatprep.subr.mxu0 0.0
    %3787 = vmatpush1.msra.mxu0 0.0
    %3788 = vmatprep.subr.mxu0 0.0
    %3789 = vmatpush1.msra.mxu0 0.0
    %3790 = vmatprep.subr.mxu0 0.0
    %3791 = vmatpush1.msra.mxu0 0.0
    %3792 = vmatprep.subr.mxu0 0.0
    %3793 = vmatpush1.msra.mxu0 0.0
    %3794 = vmatprep.subr.mxu0 0.0
    %3795 = vmatpush1.msra.mxu0 0.0
    %3796 = vmatprep.subr.mxu0 0.0
    %3797 = vmatpush1.msra.mxu0 0.0
    %3798 = vmatprep.subr.mxu0 0.0
    %3799 = vmatpush1.msra.mxu0 0.0
    %3800 = vmatprep.subr.mxu0 0.0
    %3801 = vmatpush1.msra.mxu0 0.0
    %3802 = vmatprep.subr.mxu0 0.0
    %3803 = vmatpush1.msra.mxu0 0.0
    %3804 = vmatprep.subr.mxu0 0.0
    %3805 = vmatpush1.msra.mxu0 0.0
    %3806 = vmatprep.subr.mxu0 0.0
    %3807 = vmatpush1.msra.mxu0 0.0
    %3808 = vmatprep.subr.mxu0 0.0
    %3809 = vmatpush1.msra.mxu0 0.0
    %3810 = vmatprep.subr.mxu0 0.0
    %3811 = vmatpush1.msra.mxu0 0.0
    %3812 = vmatprep.subr.mxu0 0.0
    %3813 = vmatpush1.msra.mxu0 0.0
    %3814 = vmatprep.subr.mxu0 0.0
    %3815 = vmatpush1.msra.mxu0 0.0
    %3816 = vmatprep.subr.mxu0 0.0
    %3817 = vmatpush1.msra.mxu0 0.0
    %3818 = vmatprep.subr.mxu0 0.0
    %3819 = vmatpush1.msra.mxu0 0.0
    %3820 = vmatprep.subr.mxu0 0.0
    %3821 = vmatpush1.msra.mxu0 0.0
    %3822 = vmatprep.subr.mxu0 0.0
    %3823 = vmatpush1.msra.mxu0 0.0
    %3824 = vmatprep.mubr.f32.mxu0 0.0
    %3825 = vmatmul.mubr.f32.gmra.mrb[0].mxu0 %v3519
    %v3826 = vpop.f32.mrb[0].mxu0
    %v3827 = vadd.f32 0.0, %v3826
    %v3828 = vpop.f32.mrb[0].mxu0
    %3829 = vdwg.mxu0
    %v3831 = vrot.slane %v3827, 6
    %3832 = vrot.lane.b32.xlu0 %v3831, 96
    %v3833 = vpop.permute.xlu0 %3832
    %v3835 = vadd.f32 %v1752, %v3833
    %v3836 = vxor.u32 %v3835, 2147483648
    %v3837 = vmul.f32 %v3836, 1.442695
    %v3838 = vpow.pop %v3837
    %v3839 = vadd.f32 %v3838, 1.0
    %v3840 = vrcp.pop %v3839
    %v3841 = vmul.f32 1.0, %v3840
    %v3843 = vrot.slane %v3506, 6
    %v3845 = vmul.f32 %v3682, %v3843
    %3847 = vrot.lane.b32.xlu0 %v3759, 64
    %v3848 = vpop.permute.xlu0 %3847
    %v3850 = vmul.f32 %v3600, %v3848
    %3852 = vrot.lane.b32.xlu0 %v3850, 32
    %v3853 = vpop.permute.xlu0 %3852
    %v3855 = vadd.f32 %v3845, %v3853
    %v3856 = vtanh.pop %v3855
    %3858 = vrot.lane.b32.xlu0 %v3856, 64
    %v3859 = vpop.permute.xlu0 %3858
    %v3861 = vmul.f32 %v3841, %v3859
    %3863 = vrot.lane.b32.xlu0 %v3861, 32
    %v3864 = vpop.permute.xlu0 %3863
    %3866 = vst.msk [vmem:[#allocation46 + $0x3] sm:$0x4] %vm2461, %v3864
    %3867 = vst.msk [vmem:[#allocation46 + $0xa] sm:$0x8] %vm2463, %v3864
    %v3868 = vrot.slane %v3861, 2
    %3869 = vrot.lane.b32.xlu0 %v3868, 32
    %v3870 = vpop.permute.xlu0 %3869
    %v3871 = vsel %vm629, %v3870, 0
    %3873 = vmatprep.subr.mxu0 0.0
    %3874 = vmatpush1.msra.mxu0 %v1755
    %3875 = vmatprep.subr.mxu0 0.0
    %3876 = vmatpush1.msra.mxu0 %v1756
    %3877 = vmatprep.subr.mxu0 0.0
    %3878 = vmatpush1.msra.mxu0 %v1757
    %3879 = vmatprep.subr.mxu0 0.0
    %3880 = vmatpush1.msra.mxu0 %v1758
    %3881 = vmatprep.subr.mxu0 0.0
    %3882 = vmatpush1.msra.mxu0 0.0
    %3883 = vmatprep.subr.mxu0 0.0
    %3884 = vmatpush1.msra.mxu0 0.0
    %3885 = vmatprep.subr.mxu0 0.0
    %3886 = vmatpush1.msra.mxu0 0.0
    %3887 = vmatprep.subr.mxu0 0.0
    %3888 = vmatpush1.msra.mxu0 0.0
    %3889 = vmatprep.subr.mxu0 0.0
    %3890 = vmatpush1.msra.mxu0 0.0
    %3891 = vmatprep.subr.mxu0 0.0
    %3892 = vmatpush1.msra.mxu0 0.0
    %3893 = vmatprep.subr.mxu0 0.0
    %3894 = vmatpush1.msra.mxu0 0.0
    %3895 = vmatprep.subr.mxu0 0.0
    %3896 = vmatpush1.msra.mxu0 0.0
    %3897 = vmatprep.subr.mxu0 0.0
    %3898 = vmatpush1.msra.mxu0 0.0
    %3899 = vmatprep.subr.mxu0 0.0
    %3900 = vmatpush1.msra.mxu0 0.0
    %3901 = vmatprep.subr.mxu0 0.0
    %3902 = vmatpush1.msra.mxu0 0.0
    %3903 = vmatprep.subr.mxu0 0.0
    %3904 = vmatpush1.msra.mxu0 0.0
    %3905 = vmatprep.subr.mxu0 0.0
    %3906 = vmatpush1.msra.mxu0 0.0
    %3907 = vmatprep.subr.mxu0 0.0
    %3908 = vmatpush1.msra.mxu0 0.0
    %3909 = vmatprep.subr.mxu0 0.0
    %3910 = vmatpush1.msra.mxu0 0.0
    %3911 = vmatprep.subr.mxu0 0.0
    %3912 = vmatpush1.msra.mxu0 0.0
    %3913 = vmatprep.subr.mxu0 0.0
    %3914 = vmatpush1.msra.mxu0 0.0
    %3915 = vmatprep.subr.mxu0 0.0
    %3916 = vmatpush1.msra.mxu0 0.0
    %3917 = vmatprep.subr.mxu0 0.0
    %3918 = vmatpush1.msra.mxu0 0.0
    %3919 = vmatprep.subr.mxu0 0.0
    %3920 = vmatpush1.msra.mxu0 0.0
    %3921 = vmatprep.subr.mxu0 0.0
    %3922 = vmatpush1.msra.mxu0 0.0
    %3923 = vmatprep.subr.mxu0 0.0
    %3924 = vmatpush1.msra.mxu0 0.0
    %3925 = vmatprep.subr.mxu0 0.0
    %3926 = vmatpush1.msra.mxu0 0.0
    %3927 = vmatprep.subr.mxu0 0.0
    %3928 = vmatpush1.msra.mxu0 0.0
    %3929 = vmatprep.subr.mxu0 0.0
    %3930 = vmatpush1.msra.mxu0 0.0
    %3931 = vmatprep.subr.mxu0 0.0
    %3932 = vmatpush1.msra.mxu0 0.0
    %3933 = vmatprep.subr.mxu0 0.0
    %3934 = vmatpush1.msra.mxu0 0.0
    %3935 = vmatprep.subr.mxu0 0.0
    %3936 = vmatpush1.msra.mxu0 0.0
    %3937 = vmatprep.mubr.f32.mxu0 0.0
    %3938 = vmatmul.mubr.f32.gmra.mrb[0].mxu0 %v3871
    %v3939 = vpop.f32.mrb[0].mxu0
    %v3940 = vadd.f32 0.0, %v3939
    %v3941 = vpop.f32.mrb[0].mxu0
    %3942 = vdwg.mxu0
    %v3944 = vrot.slane %v3940, 4
    %v3946 = vadd.f32 %v1752, %v3944
    %v3947 = vxor.u32 %v3946, 2147483648
    %v3948 = vmul.f32 %v3947, 1.442695
    %v3949 = vpow.pop %v3948
    %v3950 = vadd.f32 %v3949, 1.0
    %v3951 = vrcp.pop %v3950
    %v3952 = vmul.f32 1.0, %v3951
    %3953 = vmatprep.subr.mxu0 0.0
    %3954 = vmatpush1.msra.mxu0 %v1759
    %3955 = vmatprep.subr.mxu0 0.0
    %3956 = vmatpush1.msra.mxu0 %v1760
    %3957 = vmatprep.subr.mxu0 0.0
    %3958 = vmatpush1.msra.mxu0 %v1761
    %3959 = vmatprep.subr.mxu0 0.0
    %3960 = vmatpush1.msra.mxu0 %v1762
    %3961 = vmatprep.subr.mxu0 0.0
    %3962 = vmatpush1.msra.mxu0 0.0
    %3963 = vmatprep.subr.mxu0 0.0
    %3964 = vmatpush1.msra.mxu0 0.0
    %3965 = vmatprep.subr.mxu0 0.0
    %3966 = vmatpush1.msra.mxu0 0.0
    %3967 = vmatprep.subr.mxu0 0.0
    %3968 = vmatpush1.msra.mxu0 0.0
    %3969 = vmatprep.subr.mxu0 0.0
    %3970 = vmatpush1.msra.mxu0 0.0
    %3971 = vmatprep.subr.mxu0 0.0
    %3972 = vmatpush1.msra.mxu0 0.0
    %3973 = vmatprep.subr.mxu0 0.0
    %3974 = vmatpush1.msra.mxu0 0.0
    %3975 = vmatprep.subr.mxu0 0.0
    %3976 = vmatpush1.msra.mxu0 0.0
    %3977 = vmatprep.subr.mxu0 0.0
    %3978 = vmatpush1.msra.mxu0 0.0
    %3979 = vmatprep.subr.mxu0 0.0
    %3980 = vmatpush1.msra.mxu0 0.0
    %3981 = vmatprep.subr.mxu0 0.0
    %3982 = vmatpush1.msra.mxu0 0.0
    %3983 = vmatprep.subr.mxu0 0.0
    %3984 = vmatpush1.msra.mxu0 0.0
    %3985 = vmatprep.subr.mxu0 0.0
    %3986 = vmatpush1.msra.mxu0 0.0
    %3987 = vmatprep.subr.mxu0 0.0
    %3988 = vmatpush1.msra.mxu0 0.0
    %3989 = vmatprep.subr.mxu0 0.0
    %3990 = vmatpush1.msra.mxu0 0.0
    %3991 = vmatprep.subr.mxu0 0.0
    %3992 = vmatpush1.msra.mxu0 0.0
    %3993 = vmatprep.subr.mxu0 0.0
    %3994 = vmatpush1.msra.mxu0 0.0
    %3995 = vmatprep.subr.mxu0 0.0
    %3996 = vmatpush1.msra.mxu0 0.0
    %3997 = vmatprep.subr.mxu0 0.0
    %3998 = vmatpush1.msra.mxu0 0.0
    %3999 = vmatprep.subr.mxu0 0.0
    %4000 = vmatpush1.msra.mxu0 0.0
    %4001 = vmatprep.subr.mxu0 0.0
    %4002 = vmatpush1.msra.mxu0 0.0
    %4003 = vmatprep.subr.mxu0 0.0
    %4004 = vmatpush1.msra.mxu0 0.0
    %4005 = vmatprep.subr.mxu0 0.0
    %4006 = vmatpush1.msra.mxu0 0.0
    %4007 = vmatprep.subr.mxu0 0.0
    %4008 = vmatpush1.msra.mxu0 0.0
    %4009 = vmatprep.subr.mxu0 0.0
    %4010 = vmatpush1.msra.mxu0 0.0
    %4011 = vmatprep.subr.mxu0 0.0
    %4012 = vmatpush1.msra.mxu0 0.0
    %4013 = vmatprep.subr.mxu0 0.0
    %4014 = vmatpush1.msra.mxu0 0.0
    %4015 = vmatprep.subr.mxu0 0.0
    %4016 = vmatpush1.msra.mxu0 0.0
    %4017 = vmatprep.mubr.f32.mxu0 0.0
    %4018 = vmatmul.mubr.f32.gmra.mrb[0].mxu0 %v3871
    %v4019 = vpop.f32.mrb[0].mxu0
    %v4020 = vadd.f32 0.0, %v4019
    %v4021 = vpop.f32.mrb[0].mxu0
    %4022 = vdwg.mxu0
    %v4024 = vrot.slane %v4020, 4
    %4025 = vrot.lane.b32.xlu0 %v4024, 32
    %v4026 = vpop.permute.xlu0 %4025
    %v4028 = vadd.f32 %v1752, %v4026
    %v4029 = vxor.u32 %v4028, 2147483648
    %v4030 = vmul.f32 %v4029, 1.442695
    %v4031 = vpow.pop %v4030
    %v4032 = vadd.f32 %v4031, 1.0
    %v4033 = vrcp.pop %v4032
    %v4034 = vmul.f32 1.0, %v4033
    %4035 = vmatprep.subr.mxu0 0.0
    %4036 = vmatpush1.msra.mxu0 %v1763
    %4037 = vmatprep.subr.mxu0 0.0
    %4038 = vmatpush1.msra.mxu0 %v1764
    %4039 = vmatprep.subr.mxu0 0.0
    %4040 = vmatpush1.msra.mxu0 %v1765
    %4041 = vmatprep.subr.mxu0 0.0
    %4042 = vmatpush1.msra.mxu0 %v1766
    %4043 = vmatprep.subr.mxu0 0.0
    %4044 = vmatpush1.msra.mxu0 0.0
    %4045 = vmatprep.subr.mxu0 0.0
    %4046 = vmatpush1.msra.mxu0 0.0
    %4047 = vmatprep.subr.mxu0 0.0
    %4048 = vmatpush1.msra.mxu0 0.0
    %4049 = vmatprep.subr.mxu0 0.0
    %4050 = vmatpush1.msra.mxu0 0.0
    %4051 = vmatprep.subr.mxu0 0.0
    %4052 = vmatpush1.msra.mxu0 0.0
    %4053 = vmatprep.subr.mxu0 0.0
    %4054 = vmatpush1.msra.mxu0 0.0
    %4055 = vmatprep.subr.mxu0 0.0
    %4056 = vmatpush1.msra.mxu0 0.0
    %4057 = vmatprep.subr.mxu0 0.0
    %4058 = vmatpush1.msra.mxu0 0.0
    %4059 = vmatprep.subr.mxu0 0.0
    %4060 = vmatpush1.msra.mxu0 0.0
    %4061 = vmatprep.subr.mxu0 0.0
    %4062 = vmatpush1.msra.mxu0 0.0
    %4063 = vmatprep.subr.mxu0 0.0
    %4064 = vmatpush1.msra.mxu0 0.0
    %4065 = vmatprep.subr.mxu0 0.0
    %4066 = vmatpush1.msra.mxu0 0.0
    %4067 = vmatprep.subr.mxu0 0.0
    %4068 = vmatpush1.msra.mxu0 0.0
    %4069 = vmatprep.subr.mxu0 0.0
    %4070 = vmatpush1.msra.mxu0 0.0
    %4071 = vmatprep.subr.mxu0 0.0
    %4072 = vmatpush1.msra.mxu0 0.0
    %4073 = vmatprep.subr.mxu0 0.0
    %4074 = vmatpush1.msra.mxu0 0.0
    %4075 = vmatprep.subr.mxu0 0.0
    %4076 = vmatpush1.msra.mxu0 0.0
    %4077 = vmatprep.subr.mxu0 0.0
    %4078 = vmatpush1.msra.mxu0 0.0
    %4079 = vmatprep.subr.mxu0 0.0
    %4080 = vmatpush1.msra.mxu0 0.0
    %4081 = vmatprep.subr.mxu0 0.0
    %4082 = vmatpush1.msra.mxu0 0.0
    %4083 = vmatprep.subr.mxu0 0.0
    %4084 = vmatpush1.msra.mxu0 0.0
    %4085 = vmatprep.subr.mxu0 0.0
    %4086 = vmatpush1.msra.mxu0 0.0
    %4087 = vmatprep.subr.mxu0 0.0
    %4088 = vmatpush1.msra.mxu0 0.0
    %4089 = vmatprep.subr.mxu0 0.0
    %4090 = vmatpush1.msra.mxu0 0.0
    %4091 = vmatprep.subr.mxu0 0.0
    %4092 = vmatpush1.msra.mxu0 0.0
    %4093 = vmatprep.subr.mxu0 0.0
    %4094 = vmatpush1.msra.mxu0 0.0
    %4095 = vmatprep.subr.mxu0 0.0
    %4096 = vmatpush1.msra.mxu0 0.0
    %4097 = vmatprep.subr.mxu0 0.0
    %4098 = vmatpush1.msra.mxu0 0.0
    %4099 = vmatprep.mubr.f32.mxu0 0.0
    %4100 = vmatmul.mubr.f32.gmra.mrb[0].mxu0 %v3871
    %v4101 = vpop.f32.mrb[0].mxu0
    %v4102 = vadd.f32 0.0, %v4101
    %v4103 = vpop.f32.mrb[0].mxu0
    %4104 = vdwg.mxu0
    %v4106 = vrot.slane %v4102, 4
    %4107 = vrot.lane.b32.xlu0 %v4106, 64
    %v4108 = vpop.permute.xlu0 %4107
    %v4110 = vadd.f32 %v1752, %v4108
    %v4111 = vtanh.pop %v4110
    %4112 = vmatprep.subr.mxu0 0.0
    %4113 = vmatpush1.msra.mxu0 %v1767
    %4114 = vmatprep.subr.mxu0 0.0
    %4115 = vmatpush1.msra.mxu0 %v1768
    %4116 = vmatprep.subr.mxu0 0.0
    %4117 = vmatpush1.msra.mxu0 %v1769
    %4118 = vmatprep.subr.mxu0 0.0
    %4119 = vmatpush1.msra.mxu0 %v1770
    %4120 = vmatprep.subr.mxu0 0.0
    %4121 = vmatpush1.msra.mxu0 0.0
    %4122 = vmatprep.subr.mxu0 0.0
    %4123 = vmatpush1.msra.mxu0 0.0
    %4124 = vmatprep.subr.mxu0 0.0
    %4125 = vmatpush1.msra.mxu0 0.0
    %4126 = vmatprep.subr.mxu0 0.0
    %4127 = vmatpush1.msra.mxu0 0.0
    %4128 = vmatprep.subr.mxu0 0.0
    %4129 = vmatpush1.msra.mxu0 0.0
    %4130 = vmatprep.subr.mxu0 0.0
    %4131 = vmatpush1.msra.mxu0 0.0
    %4132 = vmatprep.subr.mxu0 0.0
    %4133 = vmatpush1.msra.mxu0 0.0
    %4134 = vmatprep.subr.mxu0 0.0
    %4135 = vmatpush1.msra.mxu0 0.0
    %4136 = vmatprep.subr.mxu0 0.0
    %4137 = vmatpush1.msra.mxu0 0.0
    %4138 = vmatprep.subr.mxu0 0.0
    %4139 = vmatpush1.msra.mxu0 0.0
    %4140 = vmatprep.subr.mxu0 0.0
    %4141 = vmatpush1.msra.mxu0 0.0
    %4142 = vmatprep.subr.mxu0 0.0
    %4143 = vmatpush1.msra.mxu0 0.0
    %4144 = vmatprep.subr.mxu0 0.0
    %4145 = vmatpush1.msra.mxu0 0.0
    %4146 = vmatprep.subr.mxu0 0.0
    %4147 = vmatpush1.msra.mxu0 0.0
    %4148 = vmatprep.subr.mxu0 0.0
    %4149 = vmatpush1.msra.mxu0 0.0
    %4150 = vmatprep.subr.mxu0 0.0
    %4151 = vmatpush1.msra.mxu0 0.0
    %4152 = vmatprep.subr.mxu0 0.0
    %4153 = vmatpush1.msra.mxu0 0.0
    %4154 = vmatprep.subr.mxu0 0.0
    %4155 = vmatpush1.msra.mxu0 0.0
    %4156 = vmatprep.subr.mxu0 0.0
    %4157 = vmatpush1.msra.mxu0 0.0
    %4158 = vmatprep.subr.mxu0 0.0
    %4159 = vmatpush1.msra.mxu0 0.0
    %4160 = vmatprep.subr.mxu0 0.0
    %4161 = vmatpush1.msra.mxu0 0.0
    %4162 = vmatprep.subr.mxu0 0.0
    %4163 = vmatpush1.msra.mxu0 0.0
    %4164 = vmatprep.subr.mxu0 0.0
    %4165 = vmatpush1.msra.mxu0 0.0
    %4166 = vmatprep.subr.mxu0 0.0
    %4167 = vmatpush1.msra.mxu0 0.0
    %4168 = vmatprep.subr.mxu0 0.0
    %4169 = vmatpush1.msra.mxu0 0.0
    %4170 = vmatprep.subr.mxu0 0.0
    %4171 = vmatpush1.msra.mxu0 0.0
    %4172 = vmatprep.subr.mxu0 0.0
    %4173 = vmatpush1.msra.mxu0 0.0
    %4174 = vmatprep.subr.mxu0 0.0
    %4175 = vmatpush1.msra.mxu0 0.0
    %4176 = vmatprep.mubr.f32.mxu0 0.0
    %4177 = vmatmul.mubr.f32.gmra.mrb[0].mxu0 %v3871
    %v4178 = vpop.f32.mrb[0].mxu0
    %v4179 = vadd.f32 0.0, %v4178
    %v4180 = vpop.f32.mrb[0].mxu0
    %4181 = vdwg.mxu0
    %v4183 = vrot.slane %v4179, 4
    %4184 = vrot.lane.b32.xlu0 %v4183, 96
    %v4185 = vpop.permute.xlu0 %4184
    %v4187 = vadd.f32 %v1752, %v4185
    %v4188 = vxor.u32 %v4187, 2147483648
    %v4189 = vmul.f32 %v4188, 1.442695
    %v4190 = vpow.pop %v4189
    %v4191 = vadd.f32 %v4190, 1.0
    %v4192 = vrcp.pop %v4191
    %v4193 = vmul.f32 1.0, %v4192
    %v4195 = vrot.slane %v3855, 6
    %v4197 = vmul.f32 %v4034, %v4195
    %4199 = vrot.lane.b32.xlu0 %v4111, 64
    %v4200 = vpop.permute.xlu0 %4199
    %v4202 = vmul.f32 %v3952, %v4200
    %4204 = vrot.lane.b32.xlu0 %v4202, 32
    %v4205 = vpop.permute.xlu0 %4204
    %v4207 = vadd.f32 %v4197, %v4205
    %v4208 = vtanh.pop %v4207
    %4210 = vrot.lane.b32.xlu0 %v4208, 64
    %v4211 = vpop.permute.xlu0 %4210
    %v4213 = vmul.f32 %v4193, %v4211
    %4215 = vrot.lane.b32.xlu0 %v4213, 32
    %v4216 = vpop.permute.xlu0 %4215
    %4218 = vst.msk [vmem:[#allocation46 + $0x2] sm:$0x10] %vm2815, %v4216
    %4219 = vst.msk [vmem:[#allocation46 + $0x9] sm:$0x20] %vm2817, %v4216
    %v4220 = vrot.slane %v4213, 4
    %4221 = vrot.lane.b32.xlu0 %v4220, 32
    %v4222 = vpop.permute.xlu0 %4221
    %v4223 = vsel %vm629, %v4222, 0
    %4225 = vmatprep.subr.mxu0 0.0
    %4226 = vmatpush1.msra.mxu0 %v1755
    %4227 = vmatprep.subr.mxu0 0.0
    %4228 = vmatpush1.msra.mxu0 %v1756
    %4229 = vmatprep.subr.mxu0 0.0
    %4230 = vmatpush1.msra.mxu0 %v1757
    %4231 = vmatprep.subr.mxu0 0.0
    %4232 = vmatpush1.msra.mxu0 %v1758
    %4233 = vmatprep.subr.mxu0 0.0
    %4234 = vmatpush1.msra.mxu0 0.0
    %4235 = vmatprep.subr.mxu0 0.0
    %4236 = vmatpush1.msra.mxu0 0.0
    %4237 = vmatprep.subr.mxu0 0.0
    %4238 = vmatpush1.msra.mxu0 0.0
    %4239 = vmatprep.subr.mxu0 0.0
    %4240 = vmatpush1.msra.mxu0 0.0
    %4241 = vmatprep.subr.mxu0 0.0
    %4242 = vmatpush1.msra.mxu0 0.0
    %4243 = vmatprep.subr.mxu0 0.0
    %4244 = vmatpush1.msra.mxu0 0.0
    %4245 = vmatprep.subr.mxu0 0.0
    %4246 = vmatpush1.msra.mxu0 0.0
    %4247 = vmatprep.subr.mxu0 0.0
    %4248 = vmatpush1.msra.mxu0 0.0
    %4249 = vmatprep.subr.mxu0 0.0
    %4250 = vmatpush1.msra.mxu0 0.0
    %4251 = vmatprep.subr.mxu0 0.0
    %4252 = vmatpush1.msra.mxu0 0.0
    %4253 = vmatprep.subr.mxu0 0.0
    %4254 = vmatpush1.msra.mxu0 0.0
    %4255 = vmatprep.subr.mxu0 0.0
    %4256 = vmatpush1.msra.mxu0 0.0
    %4257 = vmatprep.subr.mxu0 0.0
    %4258 = vmatpush1.msra.mxu0 0.0
    %4259 = vmatprep.subr.mxu0 0.0
    %4260 = vmatpush1.msra.mxu0 0.0
    %4261 = vmatprep.subr.mxu0 0.0
    %4262 = vmatpush1.msra.mxu0 0.0
    %4263 = vmatprep.subr.mxu0 0.0
    %4264 = vmatpush1.msra.mxu0 0.0
    %4265 = vmatprep.subr.mxu0 0.0
    %4266 = vmatpush1.msra.mxu0 0.0
    %4267 = vmatprep.subr.mxu0 0.0
    %4268 = vmatpush1.msra.mxu0 0.0
    %4269 = vmatprep.subr.mxu0 0.0
    %4270 = vmatpush1.msra.mxu0 0.0
    %4271 = vmatprep.subr.mxu0 0.0
    %4272 = vmatpush1.msra.mxu0 0.0
    %4273 = vmatprep.subr.mxu0 0.0
    %4274 = vmatpush1.msra.mxu0 0.0
    %4275 = vmatprep.subr.mxu0 0.0
    %4276 = vmatpush1.msra.mxu0 0.0
    %4277 = vmatprep.subr.mxu0 0.0
    %4278 = vmatpush1.msra.mxu0 0.0
    %4279 = vmatprep.subr.mxu0 0.0
    %4280 = vmatpush1.msra.mxu0 0.0
    %4281 = vmatprep.subr.mxu0 0.0
    %4282 = vmatpush1.msra.mxu0 0.0
    %4283 = vmatprep.subr.mxu0 0.0
    %4284 = vmatpush1.msra.mxu0 0.0
    %4285 = vmatprep.subr.mxu0 0.0
    %4286 = vmatpush1.msra.mxu0 0.0
    %4287 = vmatprep.subr.mxu0 0.0
    %4288 = vmatpush1.msra.mxu0 0.0
    %4289 = vmatprep.mubr.f32.mxu0 0.0
    %4290 = vmatmul.mubr.f32.gmra.mrb[0].mxu0 %v4223
    %v4291 = vpop.f32.mrb[0].mxu0
    %v4292 = vadd.f32 0.0, %v4291
    %v4293 = vpop.f32.mrb[0].mxu0
    %4294 = vdwg.mxu0
    %v4296 = vrot.slane %v4292, 2
    %v4298 = vadd.f32 %v1752, %v4296
    %v4299 = vxor.u32 %v4298, 2147483648
    %v4300 = vmul.f32 %v4299, 1.442695
    %v4301 = vpow.pop %v4300
    %v4302 = vadd.f32 %v4301, 1.0
    %v4303 = vrcp.pop %v4302
    %v4304 = vmul.f32 1.0, %v4303
    %4305 = vmatprep.subr.mxu0 0.0
    %4306 = vmatpush1.msra.mxu0 %v1759
    %4307 = vmatprep.subr.mxu0 0.0
    %4308 = vmatpush1.msra.mxu0 %v1760
    %4309 = vmatprep.subr.mxu0 0.0
    %4310 = vmatpush1.msra.mxu0 %v1761
    %4311 = vmatprep.subr.mxu0 0.0
    %4312 = vmatpush1.msra.mxu0 %v1762
    %4313 = vmatprep.subr.mxu0 0.0
    %4314 = vmatpush1.msra.mxu0 0.0
    %4315 = vmatprep.subr.mxu0 0.0
    %4316 = vmatpush1.msra.mxu0 0.0
    %4317 = vmatprep.subr.mxu0 0.0
    %4318 = vmatpush1.msra.mxu0 0.0
    %4319 = vmatprep.subr.mxu0 0.0
    %4320 = vmatpush1.msra.mxu0 0.0
    %4321 = vmatprep.subr.mxu0 0.0
    %4322 = vmatpush1.msra.mxu0 0.0
    %4323 = vmatprep.subr.mxu0 0.0
    %4324 = vmatpush1.msra.mxu0 0.0
    %4325 = vmatprep.subr.mxu0 0.0
    %4326 = vmatpush1.msra.mxu0 0.0
    %4327 = vmatprep.subr.mxu0 0.0
    %4328 = vmatpush1.msra.mxu0 0.0
    %4329 = vmatprep.subr.mxu0 0.0
    %4330 = vmatpush1.msra.mxu0 0.0
    %4331 = vmatprep.subr.mxu0 0.0
    %4332 = vmatpush1.msra.mxu0 0.0
    %4333 = vmatprep.subr.mxu0 0.0
    %4334 = vmatpush1.msra.mxu0 0.0
    %4335 = vmatprep.subr.mxu0 0.0
    %4336 = vmatpush1.msra.mxu0 0.0
    %4337 = vmatprep.subr.mxu0 0.0
    %4338 = vmatpush1.msra.mxu0 0.0
    %4339 = vmatprep.subr.mxu0 0.0
    %4340 = vmatpush1.msra.mxu0 0.0
    %4341 = vmatprep.subr.mxu0 0.0
    %4342 = vmatpush1.msra.mxu0 0.0
    %4343 = vmatprep.subr.mxu0 0.0
    %4344 = vmatpush1.msra.mxu0 0.0
    %4345 = vmatprep.subr.mxu0 0.0
    %4346 = vmatpush1.msra.mxu0 0.0
    %4347 = vmatprep.subr.mxu0 0.0
    %4348 = vmatpush1.msra.mxu0 0.0
    %4349 = vmatprep.subr.mxu0 0.0
    %4350 = vmatpush1.msra.mxu0 0.0
    %4351 = vmatprep.subr.mxu0 0.0
    %4352 = vmatpush1.msra.mxu0 0.0
    %4353 = vmatprep.subr.mxu0 0.0
    %4354 = vmatpush1.msra.mxu0 0.0
    %4355 = vmatprep.subr.mxu0 0.0
    %4356 = vmatpush1.msra.mxu0 0.0
    %4357 = vmatprep.subr.mxu0 0.0
    %4358 = vmatpush1.msra.mxu0 0.0
    %4359 = vmatprep.subr.mxu0 0.0
    %4360 = vmatpush1.msra.mxu0 0.0
    %4361 = vmatprep.subr.mxu0 0.0
    %4362 = vmatpush1.msra.mxu0 0.0
    %4363 = vmatprep.subr.mxu0 0.0
    %4364 = vmatpush1.msra.mxu0 0.0
    %4365 = vmatprep.subr.mxu0 0.0
    %4366 = vmatpush1.msra.mxu0 0.0
    %4367 = vmatprep.subr.mxu0 0.0
    %4368 = vmatpush1.msra.mxu0 0.0
    %4369 = vmatprep.mubr.f32.mxu0 0.0
    %4370 = vmatmul.mubr.f32.gmra.mrb[0].mxu0 %v4223
    %v4371 = vpop.f32.mrb[0].mxu0
    %v4372 = vadd.f32 0.0, %v4371
    %v4373 = vpop.f32.mrb[0].mxu0
    %4374 = vdwg.mxu0
    %v4376 = vrot.slane %v4372, 2
    %4377 = vrot.lane.b32.xlu0 %v4376, 32
    %v4378 = vpop.permute.xlu0 %4377
    %v4380 = vadd.f32 %v1752, %v4378
    %v4381 = vxor.u32 %v4380, 2147483648
    %v4382 = vmul.f32 %v4381, 1.442695
    %v4383 = vpow.pop %v4382
    %v4384 = vadd.f32 %v4383, 1.0
    %v4385 = vrcp.pop %v4384
    %v4386 = vmul.f32 1.0, %v4385
    %4387 = vmatprep.subr.mxu0 0.0
    %4388 = vmatpush1.msra.mxu0 %v1763
    %4389 = vmatprep.subr.mxu0 0.0
    %4390 = vmatpush1.msra.mxu0 %v1764
    %4391 = vmatprep.subr.mxu0 0.0
    %4392 = vmatpush1.msra.mxu0 %v1765
    %4393 = vmatprep.subr.mxu0 0.0
    %4394 = vmatpush1.msra.mxu0 %v1766
    %4395 = vmatprep.subr.mxu0 0.0
    %4396 = vmatpush1.msra.mxu0 0.0
    %4397 = vmatprep.subr.mxu0 0.0
    %4398 = vmatpush1.msra.mxu0 0.0
    %4399 = vmatprep.subr.mxu0 0.0
    %4400 = vmatpush1.msra.mxu0 0.0
    %4401 = vmatprep.subr.mxu0 0.0
    %4402 = vmatpush1.msra.mxu0 0.0
    %4403 = vmatprep.subr.mxu0 0.0
    %4404 = vmatpush1.msra.mxu0 0.0
    %4405 = vmatprep.subr.mxu0 0.0
    %4406 = vmatpush1.msra.mxu0 0.0
    %4407 = vmatprep.subr.mxu0 0.0
    %4408 = vmatpush1.msra.mxu0 0.0
    %4409 = vmatprep.subr.mxu0 0.0
    %4410 = vmatpush1.msra.mxu0 0.0
    %4411 = vmatprep.subr.mxu0 0.0
    %4412 = vmatpush1.msra.mxu0 0.0
    %4413 = vmatprep.subr.mxu0 0.0
    %4414 = vmatpush1.msra.mxu0 0.0
    %4415 = vmatprep.subr.mxu0 0.0
    %4416 = vmatpush1.msra.mxu0 0.0
    %4417 = vmatprep.subr.mxu0 0.0
    %4418 = vmatpush1.msra.mxu0 0.0
    %4419 = vmatprep.subr.mxu0 0.0
    %4420 = vmatpush1.msra.mxu0 0.0
    %4421 = vmatprep.subr.mxu0 0.0
    %4422 = vmatpush1.msra.mxu0 0.0
    %4423 = vmatprep.subr.mxu0 0.0
    %4424 = vmatpush1.msra.mxu0 0.0
    %4425 = vmatprep.subr.mxu0 0.0
    %4426 = vmatpush1.msra.mxu0 0.0
    %4427 = vmatprep.subr.mxu0 0.0
    %4428 = vmatpush1.msra.mxu0 0.0
    %4429 = vmatprep.subr.mxu0 0.0
    %4430 = vmatpush1.msra.mxu0 0.0
    %4431 = vmatprep.subr.mxu0 0.0
    %4432 = vmatpush1.msra.mxu0 0.0
    %4433 = vmatprep.subr.mxu0 0.0
    %4434 = vmatpush1.msra.mxu0 0.0
    %4435 = vmatprep.subr.mxu0 0.0
    %4436 = vmatpush1.msra.mxu0 0.0
    %4437 = vmatprep.subr.mxu0 0.0
    %4438 = vmatpush1.msra.mxu0 0.0
    %4439 = vmatprep.subr.mxu0 0.0
    %4440 = vmatpush1.msra.mxu0 0.0
    %4441 = vmatprep.subr.mxu0 0.0
    %4442 = vmatpush1.msra.mxu0 0.0
    %4443 = vmatprep.subr.mxu0 0.0
    %4444 = vmatpush1.msra.mxu0 0.0
    %4445 = vmatprep.subr.mxu0 0.0
    %4446 = vmatpush1.msra.mxu0 0.0
    %4447 = vmatprep.subr.mxu0 0.0
    %4448 = vmatpush1.msra.mxu0 0.0
    %4449 = vmatprep.subr.mxu0 0.0
    %4450 = vmatpush1.msra.mxu0 0.0
    %4451 = vmatprep.mubr.f32.mxu0 0.0
    %4452 = vmatmul.mubr.f32.gmra.mrb[0].mxu0 %v4223
    %v4453 = vpop.f32.mrb[0].mxu0
    %v4454 = vadd.f32 0.0, %v4453
    %v4455 = vpop.f32.mrb[0].mxu0
    %4456 = vdwg.mxu0
    %v4458 = vrot.slane %v4454, 2
    %4459 = vrot.lane.b32.xlu0 %v4458, 64
    %v4460 = vpop.permute.xlu0 %4459
    %v4462 = vadd.f32 %v1752, %v4460
    %v4463 = vtanh.pop %v4462
    %4464 = vmatprep.subr.mxu0 0.0
    %4465 = vmatpush1.msra.mxu0 %v1767
    %4466 = vmatprep.subr.mxu0 0.0
    %4467 = vmatpush1.msra.mxu0 %v1768
    %4468 = vmatprep.subr.mxu0 0.0
    %4469 = vmatpush1.msra.mxu0 %v1769
    %4470 = vmatprep.subr.mxu0 0.0
    %4471 = vmatpush1.msra.mxu0 %v1770
    %4472 = vmatprep.subr.mxu0 0.0
    %4473 = vmatpush1.msra.mxu0 0.0
    %4474 = vmatprep.subr.mxu0 0.0
    %4475 = vmatpush1.msra.mxu0 0.0
    %4476 = vmatprep.subr.mxu0 0.0
    %4477 = vmatpush1.msra.mxu0 0.0
    %4478 = vmatprep.subr.mxu0 0.0
    %4479 = vmatpush1.msra.mxu0 0.0
    %4480 = vmatprep.subr.mxu0 0.0
    %4481 = vmatpush1.msra.mxu0 0.0
    %4482 = vmatprep.subr.mxu0 0.0
    %4483 = vmatpush1.msra.mxu0 0.0
    %4484 = vmatprep.subr.mxu0 0.0
    %4485 = vmatpush1.msra.mxu0 0.0
    %4486 = vmatprep.subr.mxu0 0.0
    %4487 = vmatpush1.msra.mxu0 0.0
    %4488 = vmatprep.subr.mxu0 0.0
    %4489 = vmatpush1.msra.mxu0 0.0
    %4490 = vmatprep.subr.mxu0 0.0
    %4491 = vmatpush1.msra.mxu0 0.0
    %4492 = vmatprep.subr.mxu0 0.0
    %4493 = vmatpush1.msra.mxu0 0.0
    %4494 = vmatprep.subr.mxu0 0.0
    %4495 = vmatpush1.msra.mxu0 0.0
    %4496 = vmatprep.subr.mxu0 0.0
    %4497 = vmatpush1.msra.mxu0 0.0
    %4498 = vmatprep.subr.mxu0 0.0
    %4499 = vmatpush1.msra.mxu0 0.0
    %4500 = vmatprep.subr.mxu0 0.0
    %4501 = vmatpush1.msra.mxu0 0.0
    %4502 = vmatprep.subr.mxu0 0.0
    %4503 = vmatpush1.msra.mxu0 0.0
    %4504 = vmatprep.subr.mxu0 0.0
    %4505 = vmatpush1.msra.mxu0 0.0
    %4506 = vmatprep.subr.mxu0 0.0
    %4507 = vmatpush1.msra.mxu0 0.0
    %4508 = vmatprep.subr.mxu0 0.0
    %4509 = vmatpush1.msra.mxu0 0.0
    %4510 = vmatprep.subr.mxu0 0.0
    %4511 = vmatpush1.msra.mxu0 0.0
    %4512 = vmatprep.subr.mxu0 0.0
    %4513 = vmatpush1.msra.mxu0 0.0
    %4514 = vmatprep.subr.mxu0 0.0
    %4515 = vmatpush1.msra.mxu0 0.0
    %4516 = vmatprep.subr.mxu0 0.0
    %4517 = vmatpush1.msra.mxu0 0.0
    %4518 = vmatprep.subr.mxu0 0.0
    %4519 = vmatpush1.msra.mxu0 0.0
    %4520 = vmatprep.subr.mxu0 0.0
    %4521 = vmatpush1.msra.mxu0 0.0
    %4522 = vmatprep.subr.mxu0 0.0
    %4523 = vmatpush1.msra.mxu0 0.0
    %4524 = vmatprep.subr.mxu0 0.0
    %4525 = vmatpush1.msra.mxu0 0.0
    %4526 = vmatprep.subr.mxu0 0.0
    %4527 = vmatpush1.msra.mxu0 0.0
    %4528 = vmatprep.mubr.f32.mxu0 0.0
    %4529 = vmatmul.mubr.f32.gmra.mrb[0].mxu0 %v4223
    %v4530 = vpop.f32.mrb[0].mxu0
    %v4531 = vadd.f32 0.0, %v4530
    %v4532 = vpop.f32.mrb[0].mxu0
    %4533 = vdwg.mxu0
    %v4535 = vrot.slane %v4531, 2
    %4536 = vrot.lane.b32.xlu0 %v4535, 96
    %v4537 = vpop.permute.xlu0 %4536
    %v4539 = vadd.f32 %v1752, %v4537
    %v4540 = vxor.u32 %v4539, 2147483648
    %v4541 = vmul.f32 %v4540, 1.442695
    %v4542 = vpow.pop %v4541
    %v4543 = vadd.f32 %v4542, 1.0
    %v4544 = vrcp.pop %v4543
    %v4545 = vmul.f32 1.0, %v4544
    %v4547 = vrot.slane %v4207, 6
    %v4549 = vmul.f32 %v4386, %v4547
    %4551 = vrot.lane.b32.xlu0 %v4463, 64
    %v4552 = vpop.permute.xlu0 %4551
    %v4554 = vmul.f32 %v4304, %v4552
    %4556 = vrot.lane.b32.xlu0 %v4554, 32
    %v4557 = vpop.permute.xlu0 %4556
    %v4559 = vadd.f32 %v4549, %v4557
    %v4560 = vtanh.pop %v4559
    %4562 = vrot.lane.b32.xlu0 %v4560, 64
    %v4563 = vpop.permute.xlu0 %4562
    %v4565 = vmul.f32 %v4545, %v4563
    %4567 = vrot.lane.b32.xlu0 %v4565, 32
    %v4568 = vpop.permute.xlu0 %4567
    %4570 = vst.msk [vmem:[#allocation46 + $0x1] sm:$0x40] %vm3169, %v4568
    %4571 = vst.msk [vmem:[#allocation46 + $0x8] sm:$0x80] %vm3171, %v4568
    %vm4572 = vcmask 261126
    %4573 = vst.msk [vmem:[#allocation49 - $0x6] sm:$0xc0] %vm4572, %v4568
    %v4574 = vld [vmem:[#allocation46] sm:$0xff]
    %v4575 = vld [vmem:[#allocation46 + $0x8] sm:$0xff]
    %v4576 = vld [vmem:[%s71] sm:$0xff]
    %v4577 = vld [vmem:[%s71 + $0x8] sm:$0xff]
    %v4578 = vld [vmem:[%s71 + $0x10] sm:$0xff]
    %v4579 = vld [vmem:[%s71 + $0x18] sm:$0xff]
    %v4581 = vsel %vm629, %v4574, 0
    %v4584 = vsel %vm629, %v4575, 0
    %4586 = vmatprep.subr.mxu0 0.0
    %4587 = vmatpush1.msra.mxu0 %v4576
    %4588 = vmatprep.subr.mxu0 0.0
    %4589 = vmatpush1.msra.mxu0 %v4577
    %4590 = vmatprep.subr.mxu0 0.0
    %4591 = vmatpush1.msra.mxu0 %v4578
    %4592 = vmatprep.subr.mxu0 0.0
    %4593 = vmatpush1.msra.mxu0 %v4579
    %4594 = vmatprep.subr.mxu0 0.0
    %4595 = vmatpush1.msra.mxu0 0.0
    %4596 = vmatprep.subr.mxu0 0.0
    %4597 = vmatpush1.msra.mxu0 0.0
    %4598 = vmatprep.subr.mxu0 0.0
    %4599 = vmatpush1.msra.mxu0 0.0
    %4600 = vmatprep.subr.mxu0 0.0
    %4601 = vmatpush1.msra.mxu0 0.0
    %4602 = vmatprep.subr.mxu0 0.0
    %4603 = vmatpush1.msra.mxu0 0.0
    %4604 = vmatprep.subr.mxu0 0.0
    %4605 = vmatpush1.msra.mxu0 0.0
    %4606 = vmatprep.subr.mxu0 0.0
    %4607 = vmatpush1.msra.mxu0 0.0
    %4608 = vmatprep.subr.mxu0 0.0
    %4609 = vmatpush1.msra.mxu0 0.0
    %4610 = vmatprep.subr.mxu0 0.0
    %4611 = vmatpush1.msra.mxu0 0.0
    %4612 = vmatprep.subr.mxu0 0.0
    %4613 = vmatpush1.msra.mxu0 0.0
    %4614 = vmatprep.subr.mxu0 0.0
    %4615 = vmatpush1.msra.mxu0 0.0
    %4616 = vmatprep.subr.mxu0 0.0
    %4617 = vmatpush1.msra.mxu0 0.0
    %4618 = vmatprep.subr.mxu0 0.0
    %4619 = vmatpush1.msra.mxu0 0.0
    %4620 = vmatprep.subr.mxu0 0.0
    %4621 = vmatpush1.msra.mxu0 0.0
    %4622 = vmatprep.subr.mxu0 0.0
    %4623 = vmatpush1.msra.mxu0 0.0
    %4624 = vmatprep.subr.mxu0 0.0
    %4625 = vmatpush1.msra.mxu0 0.0
    %4626 = vmatprep.subr.mxu0 0.0
    %4627 = vmatpush1.msra.mxu0 0.0
    %4628 = vmatprep.subr.mxu0 0.0
    %4629 = vmatpush1.msra.mxu0 0.0
    %4630 = vmatprep.subr.mxu0 0.0
    %4631 = vmatpush1.msra.mxu0 0.0
    %4632 = vmatprep.subr.mxu0 0.0
    %4633 = vmatpush1.msra.mxu0 0.0
    %4634 = vmatprep.subr.mxu0 0.0
    %4635 = vmatpush1.msra.mxu0 0.0
    %4636 = vmatprep.subr.mxu0 0.0
    %4637 = vmatpush1.msra.mxu0 0.0
    %4638 = vmatprep.subr.mxu0 0.0
    %4639 = vmatpush1.msra.mxu0 0.0
    %4640 = vmatprep.subr.mxu0 0.0
    %4641 = vmatpush1.msra.mxu0 0.0
    %4642 = vmatprep.subr.mxu0 0.0
    %4643 = vmatpush1.msra.mxu0 0.0
    %4644 = vmatprep.subr.mxu0 0.0
    %4645 = vmatpush1.msra.mxu0 0.0
    %4646 = vmatprep.subr.mxu0 0.0
    %4647 = vmatpush1.msra.mxu0 0.0
    %4648 = vmatprep.subr.mxu0 0.0
    %4649 = vmatpush1.msra.mxu0 0.0
    %4650 = vmatprep.mubr.f32.mxu0 0.0
    %4651 = vmatmul.mubr.f32.gmra.mrb[0].mxu0 %v4581
    %v4652 = vpop.f32.mrb[0].mxu0
    %v4653 = vadd.f32 0.0, %v4652
    %v4654 = vpop.f32.mrb[0].mxu0
    %4655 = vmatprep.mubr.f32.mxu0 0.0
    %4656 = vmatmul.mubr.f32.gmra.mrb[0].mxu0 %v4584
    %v4657 = vpop.f32.mrb[0].mxu0
    %v4658 = vadd.f32 0.0, %v4657
    %v4659 = vpop.f32.mrb[0].mxu0
    %4660 = vdwg.mxu0
    %4663 = vrot.lane.b32.xlu0 %v4653, 120
    %v4664 = vpop.permute.xlu0 %4663
    %4665 = vrot.lane.b32.xlu0 %v4658, 120
    %v4666 = vpop.permute.xlu0 %4665
    %4667 = vrot.lane.b32.xlu0 %v4653, 112
    %v4668 = vpop.permute.xlu0 %4667
    %4669 = vrot.lane.b32.xlu0 %v4658, 112
    %v4670 = vpop.permute.xlu0 %4669
    %4671 = vrot.lane.b32.xlu0 %v4653, 104
    %v4672 = vpop.permute.xlu0 %4671
    %4673 = vrot.lane.b32.xlu0 %v4658, 104
    %v4674 = vpop.permute.xlu0 %4673
    %4675 = vrot.lane.b32.xlu0 %v4653, 96
    %v4676 = vpop.permute.xlu0 %4675
    %vm4677 = vcmask 64512
    %v4678 = vsel %vm4677, %v4653, 0
    %v4680 = vsel %vm4677, %v4676, 0
    %4682 = vmatprep.subr.mxu0 0.0
    %4683 = vmatpush1.xpose.msra.mxu0 %v4680
    %4684 = vmatprep.subr.mxu0 0.0
    %4685 = vmatpush1.xpose.msra.mxu0 0.0
    %4686 = vmatprep.subr.mxu0 0.0
    %4687 = vmatpush1.xpose.msra.mxu0 0.0
    %4688 = vmatprep.subr.mxu0 0.0
    %4689 = vmatpush1.xpose.msra.mxu0 0.0
    %4690 = vmatprep.subr.mxu0 0.0
    %4691 = vmatpush1.xpose.msra.mxu0 0.0
    %4692 = vmatprep.subr.mxu0 0.0
    %4693 = vmatpush1.xpose.msra.mxu0 0.0
    %4694 = vmatprep.subr.mxu0 0.0
    %4695 = vmatpush1.xpose.msra.mxu0 0.0
    %4696 = vmatprep.subr.mxu0 0.0
    %4697 = vmatpush1.xpose.msra.mxu0 0.0
    %4698 = vmatprep.subr.mxu0 0.0
    %4699 = vmatpush1.xpose.msra.mxu0 0.0
    %4700 = vmatprep.subr.mxu0 0.0
    %4701 = vmatpush1.xpose.msra.mxu0 0.0
    %4702 = vmatprep.subr.mxu0 0.0
    %4703 = vmatpush1.xpose.msra.mxu0 0.0
    %4704 = vmatprep.subr.mxu0 0.0
    %4705 = vmatpush1.xpose.msra.mxu0 0.0
    %4706 = vmatprep.subr.mxu0 0.0
    %4707 = vmatpush1.xpose.msra.mxu0 0.0
    %4708 = vmatprep.subr.mxu0 0.0
    %4709 = vmatpush1.xpose.msra.mxu0 0.0
    %4710 = vmatprep.subr.mxu0 0.0
    %4711 = vmatpush1.xpose.msra.mxu0 0.0
    %4712 = vmatprep.subr.mxu0 0.0
    %4713 = vmatpush1.xpose.msra.mxu0 0.0
    %4714 = vmatprep.subr.mxu0 0.0
    %4715 = vmatpush1.xpose.msra.mxu0 0.0
    %4716 = vmatprep.subr.mxu0 0.0
    %4717 = vmatpush1.xpose.msra.mxu0 0.0
    %4718 = vmatprep.subr.mxu0 0.0
    %4719 = vmatpush1.xpose.msra.mxu0 0.0
    %4720 = vmatprep.subr.mxu0 0.0
    %4721 = vmatpush1.xpose.msra.mxu0 0.0
    %4722 = vmatprep.subr.mxu0 0.0
    %4723 = vmatpush1.xpose.msra.mxu0 0.0
    %4724 = vmatprep.subr.mxu0 0.0
    %4725 = vmatpush1.xpose.msra.mxu0 0.0
    %4726 = vmatprep.subr.mxu0 0.0
    %4727 = vmatpush1.xpose.msra.mxu0 0.0
    %4728 = vmatprep.subr.mxu0 0.0
    %4729 = vmatpush1.xpose.msra.mxu0 0.0
    %4730 = vmatprep.subr.mxu0 0.0
    %4731 = vmatpush1.xpose.msra.mxu0 0.0
    %4732 = vmatprep.subr.mxu0 0.0
    %4733 = vmatpush1.xpose.msra.mxu0 0.0
    %4734 = vmatprep.subr.mxu0 0.0
    %4735 = vmatpush1.xpose.msra.mxu0 0.0
    %4736 = vmatprep.subr.mxu0 0.0
    %4737 = vmatpush1.xpose.msra.mxu0 0.0
    %4738 = vmatprep.subr.mxu0 0.0
    %4739 = vmatpush1.xpose.msra.mxu0 0.0
    %4740 = vmatprep.subr.mxu0 0.0
    %4741 = vmatpush1.xpose.msra.mxu0 0.0
    %4742 = vmatprep.subr.mxu0 0.0
    %4743 = vmatpush1.xpose.msra.mxu0 0.0
    %4744 = vmatprep.subr.mxu0 0.0
    %4745 = vmatpush1.xpose.msra.mxu0 0.0
    %4746 = vmatprep.mubr.f32.mxu0 0.0
    %4747 = vmatmul.mubr.f32.gmra.mrb[0].mxu0 %v4678
    %v4748 = vpop.f32.mrb[0].mxu0
    %v4749 = vadd.f32 0.0, %v4748
    %v4750 = vpop.f32.mrb[0].mxu0
    %4751 = vdwg.mxu0
    %4752 = vrot.lane.b32.xlu0 %v4658, 96
    %v4753 = vpop.permute.xlu0 %4752
    %v4754 = vsel %vm4677, %v4658, 0
    %v4756 = vsel %vm4677, %v4753, 0
    %4758 = vmatprep.subr.mxu0 0.0
    %4759 = vmatpush1.xpose.msra.mxu0 %v4756
    %4760 = vmatprep.subr.mxu0 0.0
    %4761 = vmatpush1.xpose.msra.mxu0 0.0
    %4762 = vmatprep.subr.mxu0 0.0
    %4763 = vmatpush1.xpose.msra.mxu0 0.0
    %4764 = vmatprep.subr.mxu0 0.0
    %4765 = vmatpush1.xpose.msra.mxu0 0.0
    %4766 = vmatprep.subr.mxu0 0.0
    %4767 = vmatpush1.xpose.msra.mxu0 0.0
    %4768 = vmatprep.subr.mxu0 0.0
    %4769 = vmatpush1.xpose.msra.mxu0 0.0
    %4770 = vmatprep.subr.mxu0 0.0
    %4771 = vmatpush1.xpose.msra.mxu0 0.0
    %4772 = vmatprep.subr.mxu0 0.0
    %4773 = vmatpush1.xpose.msra.mxu0 0.0
    %4774 = vmatprep.subr.mxu0 0.0
    %4775 = vmatpush1.xpose.msra.mxu0 0.0
    %4776 = vmatprep.subr.mxu0 0.0
    %4777 = vmatpush1.xpose.msra.mxu0 0.0
    %4778 = vmatprep.subr.mxu0 0.0
    %4779 = vmatpush1.xpose.msra.mxu0 0.0
    %4780 = vmatprep.subr.mxu0 0.0
    %4781 = vmatpush1.xpose.msra.mxu0 0.0
    %4782 = vmatprep.subr.mxu0 0.0
    %4783 = vmatpush1.xpose.msra.mxu0 0.0
    %4784 = vmatprep.subr.mxu0 0.0
    %4785 = vmatpush1.xpose.msra.mxu0 0.0
    %4786 = vmatprep.subr.mxu0 0.0
    %4787 = vmatpush1.xpose.msra.mxu0 0.0
    %4788 = vmatprep.subr.mxu0 0.0
    %4789 = vmatpush1.xpose.msra.mxu0 0.0
    %4790 = vmatprep.subr.mxu0 0.0
    %4791 = vmatpush1.xpose.msra.mxu0 0.0
    %4792 = vmatprep.subr.mxu0 0.0
    %4793 = vmatpush1.xpose.msra.mxu0 0.0
    %4794 = vmatprep.subr.mxu0 0.0
    %4795 = vmatpush1.xpose.msra.mxu0 0.0
    %4796 = vmatprep.subr.mxu0 0.0
    %4797 = vmatpush1.xpose.msra.mxu0 0.0
    %4798 = vmatprep.subr.mxu0 0.0
    %4799 = vmatpush1.xpose.msra.mxu0 0.0
    %4800 = vmatprep.subr.mxu0 0.0
    %4801 = vmatpush1.xpose.msra.mxu0 0.0
    %4802 = vmatprep.subr.mxu0 0.0
    %4803 = vmatpush1.xpose.msra.mxu0 0.0
    %4804 = vmatprep.subr.mxu0 0.0
    %4805 = vmatpush1.xpose.msra.mxu0 0.0
    %4806 = vmatprep.subr.mxu0 0.0
    %4807 = vmatpush1.xpose.msra.mxu0 0.0
    %4808 = vmatprep.subr.mxu0 0.0
    %4809 = vmatpush1.xpose.msra.mxu0 0.0
    %4810 = vmatprep.subr.mxu0 0.0
    %4811 = vmatpush1.xpose.msra.mxu0 0.0
    %4812 = vmatprep.subr.mxu0 0.0
    %4813 = vmatpush1.xpose.msra.mxu0 0.0
    %4814 = vmatprep.subr.mxu0 0.0
    %4815 = vmatpush1.xpose.msra.mxu0 0.0
    %4816 = vmatprep.subr.mxu0 0.0
    %4817 = vmatpush1.xpose.msra.mxu0 0.0
    %4818 = vmatprep.subr.mxu0 0.0
    %4819 = vmatpush1.xpose.msra.mxu0 0.0
    %4820 = vmatprep.subr.mxu0 0.0
    %4821 = vmatpush1.xpose.msra.mxu0 0.0
    %4822 = vmatprep.mubr.f32.mxu0 0.0
    %4823 = vmatmul.mubr.f32.gmra.mrb[0].mxu0 %v4754
    %v4824 = vpop.f32.mrb[0].mxu0
    %v4825 = vadd.f32 0.0, %v4824
    %v4826 = vpop.f32.mrb[0].mxu0
    %4827 = vdwg.mxu0
    %4828 = vrot.lane.b32.xlu0 %v4664, 96
    %v4829 = vpop.permute.xlu0 %4828
    %v4830 = vsel %vm4677, %v4664, 0
    %v4832 = vsel %vm4677, %v4829, 0
    %4834 = vmatprep.subr.mxu0 0.0
    %4835 = vmatpush1.xpose.msra.mxu0 %v4832
    %4836 = vmatprep.subr.mxu0 0.0
    %4837 = vmatpush1.xpose.msra.mxu0 0.0
    %4838 = vmatprep.subr.mxu0 0.0
    %4839 = vmatpush1.xpose.msra.mxu0 0.0
    %4840 = vmatprep.subr.mxu0 0.0
    %4841 = vmatpush1.xpose.msra.mxu0 0.0
    %4842 = vmatprep.subr.mxu0 0.0
    %4843 = vmatpush1.xpose.msra.mxu0 0.0
    %4844 = vmatprep.subr.mxu0 0.0
    %4845 = vmatpush1.xpose.msra.mxu0 0.0
    %4846 = vmatprep.subr.mxu0 0.0
    %4847 = vmatpush1.xpose.msra.mxu0 0.0
    %4848 = vmatprep.subr.mxu0 0.0
    %4849 = vmatpush1.xpose.msra.mxu0 0.0
    %4850 = vmatprep.subr.mxu0 0.0
    %4851 = vmatpush1.xpose.msra.mxu0 0.0
    %4852 = vmatprep.subr.mxu0 0.0
    %4853 = vmatpush1.xpose.msra.mxu0 0.0
    %4854 = vmatprep.subr.mxu0 0.0
    %4855 = vmatpush1.xpose.msra.mxu0 0.0
    %4856 = vmatprep.subr.mxu0 0.0
    %4857 = vmatpush1.xpose.msra.mxu0 0.0
    %4858 = vmatprep.subr.mxu0 0.0
    %4859 = vmatpush1.xpose.msra.mxu0 0.0
    %4860 = vmatprep.subr.mxu0 0.0
    %4861 = vmatpush1.xpose.msra.mxu0 0.0
    %4862 = vmatprep.subr.mxu0 0.0
    %4863 = vmatpush1.xpose.msra.mxu0 0.0
    %4864 = vmatprep.subr.mxu0 0.0
    %4865 = vmatpush1.xpose.msra.mxu0 0.0
    %4866 = vmatprep.subr.mxu0 0.0
    %4867 = vmatpush1.xpose.msra.mxu0 0.0
    %4868 = vmatprep.subr.mxu0 0.0
    %4869 = vmatpush1.xpose.msra.mxu0 0.0
    %4870 = vmatprep.subr.mxu0 0.0
    %4871 = vmatpush1.xpose.msra.mxu0 0.0
    %4872 = vmatprep.subr.mxu0 0.0
    %4873 = vmatpush1.xpose.msra.mxu0 0.0
    %4874 = vmatprep.subr.mxu0 0.0
    %4875 = vmatpush1.xpose.msra.mxu0 0.0
    %4876 = vmatprep.subr.mxu0 0.0
    %4877 = vmatpush1.xpose.msra.mxu0 0.0
    %4878 = vmatprep.subr.mxu0 0.0
    %4879 = vmatpush1.xpose.msra.mxu0 0.0
    %4880 = vmatprep.subr.mxu0 0.0
    %4881 = vmatpush1.xpose.msra.mxu0 0.0
    %4882 = vmatprep.subr.mxu0 0.0
    %4883 = vmatpush1.xpose.msra.mxu0 0.0
    %4884 = vmatprep.subr.mxu0 0.0
    %4885 = vmatpush1.xpose.msra.mxu0 0.0
    %4886 = vmatprep.subr.mxu0 0.0
    %4887 = vmatpush1.xpose.msra.mxu0 0.0
    %4888 = vmatprep.subr.mxu0 0.0
    %4889 = vmatpush1.xpose.msra.mxu0 0.0
    %4890 = vmatprep.subr.mxu0 0.0
    %4891 = vmatpush1.xpose.msra.mxu0 0.0
    %4892 = vmatprep.subr.mxu0 0.0
    %4893 = vmatpush1.xpose.msra.mxu0 0.0
    %4894 = vmatprep.subr.mxu0 0.0
    %4895 = vmatpush1.xpose.msra.mxu0 0.0
    %4896 = vmatprep.subr.mxu0 0.0
    %4897 = vmatpush1.xpose.msra.mxu0 0.0
    %4898 = vmatprep.mubr.f32.mxu0 0.0
    %4899 = vmatmul.mubr.f32.gmra.mrb[0].mxu0 %v4830
    %v4900 = vpop.f32.mrb[0].mxu0
    %v4901 = vadd.f32 0.0, %v4900
    %v4902 = vpop.f32.mrb[0].mxu0
    %4903 = vdwg.mxu0
    %4904 = vrot.lane.b32.xlu0 %v4666, 96
    %v4905 = vpop.permute.xlu0 %4904
    %v4906 = vsel %vm4677, %v4666, 0
    %v4908 = vsel %vm4677, %v4905, 0
    %4910 = vmatprep.subr.mxu0 0.0
    %4911 = vmatpush1.xpose.msra.mxu0 %v4908
    %4912 = vmatprep.subr.mxu0 0.0
    %4913 = vmatpush1.xpose.msra.mxu0 0.0
    %4914 = vmatprep.subr.mxu0 0.0
    %4915 = vmatpush1.xpose.msra.mxu0 0.0
    %4916 = vmatprep.subr.mxu0 0.0
    %4917 = vmatpush1.xpose.msra.mxu0 0.0
    %4918 = vmatprep.subr.mxu0 0.0
    %4919 = vmatpush1.xpose.msra.mxu0 0.0
    %4920 = vmatprep.subr.mxu0 0.0
    %4921 = vmatpush1.xpose.msra.mxu0 0.0
    %4922 = vmatprep.subr.mxu0 0.0
    %4923 = vmatpush1.xpose.msra.mxu0 0.0
    %4924 = vmatprep.subr.mxu0 0.0
    %4925 = vmatpush1.xpose.msra.mxu0 0.0
    %4926 = vmatprep.subr.mxu0 0.0
    %4927 = vmatpush1.xpose.msra.mxu0 0.0
    %4928 = vmatprep.subr.mxu0 0.0
    %4929 = vmatpush1.xpose.msra.mxu0 0.0
    %4930 = vmatprep.subr.mxu0 0.0
    %4931 = vmatpush1.xpose.msra.mxu0 0.0
    %4932 = vmatprep.subr.mxu0 0.0
    %4933 = vmatpush1.xpose.msra.mxu0 0.0
    %4934 = vmatprep.subr.mxu0 0.0
    %4935 = vmatpush1.xpose.msra.mxu0 0.0
    %4936 = vmatprep.subr.mxu0 0.0
    %4937 = vmatpush1.xpose.msra.mxu0 0.0
    %4938 = vmatprep.subr.mxu0 0.0
    %4939 = vmatpush1.xpose.msra.mxu0 0.0
    %4940 = vmatprep.subr.mxu0 0.0
    %4941 = vmatpush1.xpose.msra.mxu0 0.0
    %4942 = vmatprep.subr.mxu0 0.0
    %4943 = vmatpush1.xpose.msra.mxu0 0.0
    %4944 = vmatprep.subr.mxu0 0.0
    %4945 = vmatpush1.xpose.msra.mxu0 0.0
    %4946 = vmatprep.subr.mxu0 0.0
    %4947 = vmatpush1.xpose.msra.mxu0 0.0
    %4948 = vmatprep.subr.mxu0 0.0
    %4949 = vmatpush1.xpose.msra.mxu0 0.0
    %4950 = vmatprep.subr.mxu0 0.0
    %4951 = vmatpush1.xpose.msra.mxu0 0.0
    %4952 = vmatprep.subr.mxu0 0.0
    %4953 = vmatpush1.xpose.msra.mxu0 0.0
    %4954 = vmatprep.subr.mxu0 0.0
    %4955 = vmatpush1.xpose.msra.mxu0 0.0
    %4956 = vmatprep.subr.mxu0 0.0
    %4957 = vmatpush1.xpose.msra.mxu0 0.0
    %4958 = vmatprep.subr.mxu0 0.0
    %4959 = vmatpush1.xpose.msra.mxu0 0.0
    %4960 = vmatprep.subr.mxu0 0.0
    %4961 = vmatpush1.xpose.msra.mxu0 0.0
    %4962 = vmatprep.subr.mxu0 0.0
    %4963 = vmatpush1.xpose.msra.mxu0 0.0
    %4964 = vmatprep.subr.mxu0 0.0
    %4965 = vmatpush1.xpose.msra.mxu0 0.0
    %4966 = vmatprep.subr.mxu0 0.0
    %4967 = vmatpush1.xpose.msra.mxu0 0.0
    %4968 = vmatprep.subr.mxu0 0.0
    %4969 = vmatpush1.xpose.msra.mxu0 0.0
    %4970 = vmatprep.subr.mxu0 0.0
    %4971 = vmatpush1.xpose.msra.mxu0 0.0
    %4972 = vmatprep.subr.mxu0 0.0
    %4973 = vmatpush1.xpose.msra.mxu0 0.0
    %4974 = vmatprep.mubr.f32.mxu0 0.0
    %4975 = vmatmul.mubr.f32.gmra.mrb[0].mxu0 %v4906
    %v4976 = vpop.f32.mrb[0].mxu0
    %v4977 = vadd.f32 0.0, %v4976
    %v4978 = vpop.f32.mrb[0].mxu0
    %4979 = vdwg.mxu0
    %4980 = vrot.lane.b32.xlu0 %v4668, 96
    %v4981 = vpop.permute.xlu0 %4980
    %v4982 = vsel %vm4677, %v4668, 0
    %v4984 = vsel %vm4677, %v4981, 0
    %4986 = vmatprep.subr.mxu0 0.0
    %4987 = vmatpush1.xpose.msra.mxu0 %v4984
    %4988 = vmatprep.subr.mxu0 0.0
    %4989 = vmatpush1.xpose.msra.mxu0 0.0
    %4990 = vmatprep.subr.mxu0 0.0
    %4991 = vmatpush1.xpose.msra.mxu0 0.0
    %4992 = vmatprep.subr.mxu0 0.0
    %4993 = vmatpush1.xpose.msra.mxu0 0.0
    %4994 = vmatprep.subr.mxu0 0.0
    %4995 = vmatpush1.xpose.msra.mxu0 0.0
    %4996 = vmatprep.subr.mxu0 0.0
    %4997 = vmatpush1.xpose.msra.mxu0 0.0
    %4998 = vmatprep.subr.mxu0 0.0
    %4999 = vmatpush1.xpose.msra.mxu0 0.0
    %5000 = vmatprep.subr.mxu0 0.0
    %5001 = vmatpush1.xpose.msra.mxu0 0.0
    %5002 = vmatprep.subr.mxu0 0.0
    %5003 = vmatpush1.xpose.msra.mxu0 0.0
    %5004 = vmatprep.subr.mxu0 0.0
    %5005 = vmatpush1.xpose.msra.mxu0 0.0
    %5006 = vmatprep.subr.mxu0 0.0
    %5007 = vmatpush1.xpose.msra.mxu0 0.0
    %5008 = vmatprep.subr.mxu0 0.0
    %5009 = vmatpush1.xpose.msra.mxu0 0.0
    %5010 = vmatprep.subr.mxu0 0.0
    %5011 = vmatpush1.xpose.msra.mxu0 0.0
    %5012 = vmatprep.subr.mxu0 0.0
    %5013 = vmatpush1.xpose.msra.mxu0 0.0
    %5014 = vmatprep.subr.mxu0 0.0
    %5015 = vmatpush1.xpose.msra.mxu0 0.0
    %5016 = vmatprep.subr.mxu0 0.0
    %5017 = vmatpush1.xpose.msra.mxu0 0.0
    %5018 = vmatprep.subr.mxu0 0.0
    %5019 = vmatpush1.xpose.msra.mxu0 0.0
    %5020 = vmatprep.subr.mxu0 0.0
    %5021 = vmatpush1.xpose.msra.mxu0 0.0
    %5022 = vmatprep.subr.mxu0 0.0
    %5023 = vmatpush1.xpose.msra.mxu0 0.0
    %5024 = vmatprep.subr.mxu0 0.0
    %5025 = vmatpush1.xpose.msra.mxu0 0.0
    %5026 = vmatprep.subr.mxu0 0.0
    %5027 = vmatpush1.xpose.msra.mxu0 0.0
    %5028 = vmatprep.subr.mxu0 0.0
    %5029 = vmatpush1.xpose.msra.mxu0 0.0
    %5030 = vmatprep.subr.mxu0 0.0
    %5031 = vmatpush1.xpose.msra.mxu0 0.0
    %5032 = vmatprep.subr.mxu0 0.0
    %5033 = vmatpush1.xpose.msra.mxu0 0.0
    %5034 = vmatprep.subr.mxu0 0.0
    %5035 = vmatpush1.xpose.msra.mxu0 0.0
    %5036 = vmatprep.subr.mxu0 0.0
    %5037 = vmatpush1.xpose.msra.mxu0 0.0
    %5038 = vmatprep.subr.mxu0 0.0
    %5039 = vmatpush1.xpose.msra.mxu0 0.0
    %5040 = vmatprep.subr.mxu0 0.0
    %5041 = vmatpush1.xpose.msra.mxu0 0.0
    %5042 = vmatprep.subr.mxu0 0.0
    %5043 = vmatpush1.xpose.msra.mxu0 0.0
    %5044 = vmatprep.subr.mxu0 0.0
    %5045 = vmatpush1.xpose.msra.mxu0 0.0
    %5046 = vmatprep.subr.mxu0 0.0
    %5047 = vmatpush1.xpose.msra.mxu0 0.0
    %5048 = vmatprep.subr.mxu0 0.0
    %5049 = vmatpush1.xpose.msra.mxu0 0.0
    %5050 = vmatprep.mubr.f32.mxu0 0.0
    %5051 = vmatmul.mubr.f32.gmra.mrb[0].mxu0 %v4982
    %v5052 = vpop.f32.mrb[0].mxu0
    %v5053 = vadd.f32 0.0, %v5052
    %v5054 = vpop.f32.mrb[0].mxu0
    %5055 = vdwg.mxu0
    %5056 = vrot.lane.b32.xlu0 %v4670, 96
    %v5057 = vpop.permute.xlu0 %5056
    %v5058 = vsel %vm4677, %v4670, 0
    %v5060 = vsel %vm4677, %v5057, 0
    %5062 = vmatprep.subr.mxu0 0.0
    %5063 = vmatpush1.xpose.msra.mxu0 %v5060
    %5064 = vmatprep.subr.mxu0 0.0
    %5065 = vmatpush1.xpose.msra.mxu0 0.0
    %5066 = vmatprep.subr.mxu0 0.0
    %5067 = vmatpush1.xpose.msra.mxu0 0.0
    %5068 = vmatprep.subr.mxu0 0.0
    %5069 = vmatpush1.xpose.msra.mxu0 0.0
    %5070 = vmatprep.subr.mxu0 0.0
    %5071 = vmatpush1.xpose.msra.mxu0 0.0
    %5072 = vmatprep.subr.mxu0 0.0
    %5073 = vmatpush1.xpose.msra.mxu0 0.0
    %5074 = vmatprep.subr.mxu0 0.0
    %5075 = vmatpush1.xpose.msra.mxu0 0.0
    %5076 = vmatprep.subr.mxu0 0.0
    %5077 = vmatpush1.xpose.msra.mxu0 0.0
    %5078 = vmatprep.subr.mxu0 0.0
    %5079 = vmatpush1.xpose.msra.mxu0 0.0
    %5080 = vmatprep.subr.mxu0 0.0
    %5081 = vmatpush1.xpose.msra.mxu0 0.0
    %5082 = vmatprep.subr.mxu0 0.0
    %5083 = vmatpush1.xpose.msra.mxu0 0.0
    %5084 = vmatprep.subr.mxu0 0.0
    %5085 = vmatpush1.xpose.msra.mxu0 0.0
    %5086 = vmatprep.subr.mxu0 0.0
    %5087 = vmatpush1.xpose.msra.mxu0 0.0
    %5088 = vmatprep.subr.mxu0 0.0
    %5089 = vmatpush1.xpose.msra.mxu0 0.0
    %5090 = vmatprep.subr.mxu0 0.0
    %5091 = vmatpush1.xpose.msra.mxu0 0.0
    %5092 = vmatprep.subr.mxu0 0.0
    %5093 = vmatpush1.xpose.msra.mxu0 0.0
    %5094 = vmatprep.subr.mxu0 0.0
    %5095 = vmatpush1.xpose.msra.mxu0 0.0
    %5096 = vmatprep.subr.mxu0 0.0
    %5097 = vmatpush1.xpose.msra.mxu0 0.0
    %5098 = vmatprep.subr.mxu0 0.0
    %5099 = vmatpush1.xpose.msra.mxu0 0.0
    %5100 = vmatprep.subr.mxu0 0.0
    %5101 = vmatpush1.xpose.msra.mxu0 0.0
    %5102 = vmatprep.subr.mxu0 0.0
    %5103 = vmatpush1.xpose.msra.mxu0 0.0
    %5104 = vmatprep.subr.mxu0 0.0
    %5105 = vmatpush1.xpose.msra.mxu0 0.0
    %5106 = vmatprep.subr.mxu0 0.0
    %5107 = vmatpush1.xpose.msra.mxu0 0.0
    %5108 = vmatprep.subr.mxu0 0.0
    %5109 = vmatpush1.xpose.msra.mxu0 0.0
    %5110 = vmatprep.subr.mxu0 0.0
    %5111 = vmatpush1.xpose.msra.mxu0 0.0
    %5112 = vmatprep.subr.mxu0 0.0
    %5113 = vmatpush1.xpose.msra.mxu0 0.0
    %5114 = vmatprep.subr.mxu0 0.0
    %5115 = vmatpush1.xpose.msra.mxu0 0.0
    %5116 = vmatprep.subr.mxu0 0.0
    %5117 = vmatpush1.xpose.msra.mxu0 0.0
    %5118 = vmatprep.subr.mxu0 0.0
    %5119 = vmatpush1.xpose.msra.mxu0 0.0
    %5120 = vmatprep.subr.mxu0 0.0
    %5121 = vmatpush1.xpose.msra.mxu0 0.0
    %5122 = vmatprep.subr.mxu0 0.0
    %5123 = vmatpush1.xpose.msra.mxu0 0.0
    %5124 = vmatprep.subr.mxu0 0.0
    %5125 = vmatpush1.xpose.msra.mxu0 0.0
    %5126 = vmatprep.mubr.f32.mxu0 0.0
    %5127 = vmatmul.mubr.f32.gmra.mrb[0].mxu0 %v5058
    %v5128 = vpop.f32.mrb[0].mxu0
    %v5129 = vadd.f32 0.0, %v5128
    %v5130 = vpop.f32.mrb[0].mxu0
    %5131 = vdwg.mxu0
    %5132 = vrot.lane.b32.xlu0 %v4672, 96
    %v5133 = vpop.permute.xlu0 %5132
    %v5134 = vsel %vm4677, %v4672, 0
    %v5136 = vsel %vm4677, %v5133, 0
    %5138 = vmatprep.subr.mxu0 0.0
    %5139 = vmatpush1.xpose.msra.mxu0 %v5136
    %5140 = vmatprep.subr.mxu0 0.0
    %5141 = vmatpush1.xpose.msra.mxu0 0.0
    %5142 = vmatprep.subr.mxu0 0.0
    %5143 = vmatpush1.xpose.msra.mxu0 0.0
    %5144 = vmatprep.subr.mxu0 0.0
    %5145 = vmatpush1.xpose.msra.mxu0 0.0
    %5146 = vmatprep.subr.mxu0 0.0
    %5147 = vmatpush1.xpose.msra.mxu0 0.0
    %5148 = vmatprep.subr.mxu0 0.0
    %5149 = vmatpush1.xpose.msra.mxu0 0.0
    %5150 = vmatprep.subr.mxu0 0.0
    %5151 = vmatpush1.xpose.msra.mxu0 0.0
    %5152 = vmatprep.subr.mxu0 0.0
    %5153 = vmatpush1.xpose.msra.mxu0 0.0
    %5154 = vmatprep.subr.mxu0 0.0
    %5155 = vmatpush1.xpose.msra.mxu0 0.0
    %5156 = vmatprep.subr.mxu0 0.0
    %5157 = vmatpush1.xpose.msra.mxu0 0.0
    %5158 = vmatprep.subr.mxu0 0.0
    %5159 = vmatpush1.xpose.msra.mxu0 0.0
    %5160 = vmatprep.subr.mxu0 0.0
    %5161 = vmatpush1.xpose.msra.mxu0 0.0
    %5162 = vmatprep.subr.mxu0 0.0
    %5163 = vmatpush1.xpose.msra.mxu0 0.0
    %5164 = vmatprep.subr.mxu0 0.0
    %5165 = vmatpush1.xpose.msra.mxu0 0.0
    %5166 = vmatprep.subr.mxu0 0.0
    %5167 = vmatpush1.xpose.msra.mxu0 0.0
    %5168 = vmatprep.subr.mxu0 0.0
    %5169 = vmatpush1.xpose.msra.mxu0 0.0
    %5170 = vmatprep.subr.mxu0 0.0
    %5171 = vmatpush1.xpose.msra.mxu0 0.0
    %5172 = vmatprep.subr.mxu0 0.0
    %5173 = vmatpush1.xpose.msra.mxu0 0.0
    %5174 = vmatprep.subr.mxu0 0.0
    %5175 = vmatpush1.xpose.msra.mxu0 0.0
    %5176 = vmatprep.subr.mxu0 0.0
    %5177 = vmatpush1.xpose.msra.mxu0 0.0
    %5178 = vmatprep.subr.mxu0 0.0
    %5179 = vmatpush1.xpose.msra.mxu0 0.0
    %5180 = vmatprep.subr.mxu0 0.0
    %5181 = vmatpush1.xpose.msra.mxu0 0.0
    %5182 = vmatprep.subr.mxu0 0.0
    %5183 = vmatpush1.xpose.msra.mxu0 0.0
    %5184 = vmatprep.subr.mxu0 0.0
    %5185 = vmatpush1.xpose.msra.mxu0 0.0
    %5186 = vmatprep.subr.mxu0 0.0
    %5187 = vmatpush1.xpose.msra.mxu0 0.0
    %5188 = vmatprep.subr.mxu0 0.0
    %5189 = vmatpush1.xpose.msra.mxu0 0.0
    %5190 = vmatprep.subr.mxu0 0.0
    %5191 = vmatpush1.xpose.msra.mxu0 0.0
    %5192 = vmatprep.subr.mxu0 0.0
    %5193 = vmatpush1.xpose.msra.mxu0 0.0
    %5194 = vmatprep.subr.mxu0 0.0
    %5195 = vmatpush1.xpose.msra.mxu0 0.0
    %5196 = vmatprep.subr.mxu0 0.0
    %5197 = vmatpush1.xpose.msra.mxu0 0.0
    %5198 = vmatprep.subr.mxu0 0.0
    %5199 = vmatpush1.xpose.msra.mxu0 0.0
    %5200 = vmatprep.subr.mxu0 0.0
    %5201 = vmatpush1.xpose.msra.mxu0 0.0
    %5202 = vmatprep.mubr.f32.mxu0 0.0
    %5203 = vmatmul.mubr.f32.gmra.mrb[0].mxu0 %v5134
    %v5204 = vpop.f32.mrb[0].mxu0
    %v5205 = vadd.f32 0.0, %v5204
    %v5206 = vpop.f32.mrb[0].mxu0
    %5207 = vdwg.mxu0
    %5208 = vrot.lane.b32.xlu0 %v4674, 96
    %v5209 = vpop.permute.xlu0 %5208
    %v5210 = vsel %vm4677, %v4674, 0
    %v5212 = vsel %vm4677, %v5209, 0
    %5214 = vmatprep.subr.mxu0 0.0
    %5215 = vmatpush1.xpose.msra.mxu0 %v5212
    %5216 = vmatprep.subr.mxu0 0.0
    %5217 = vmatpush1.xpose.msra.mxu0 0.0
    %5218 = vmatprep.subr.mxu0 0.0
    %5219 = vmatpush1.xpose.msra.mxu0 0.0
    %5220 = vmatprep.subr.mxu0 0.0
    %5221 = vmatpush1.xpose.msra.mxu0 0.0
    %5222 = vmatprep.subr.mxu0 0.0
    %5223 = vmatpush1.xpose.msra.mxu0 0.0
    %5224 = vmatprep.subr.mxu0 0.0
    %5225 = vmatpush1.xpose.msra.mxu0 0.0
    %5226 = vmatprep.subr.mxu0 0.0
    %5227 = vmatpush1.xpose.msra.mxu0 0.0
    %5228 = vmatprep.subr.mxu0 0.0
    %5229 = vmatpush1.xpose.msra.mxu0 0.0
    %5230 = vmatprep.subr.mxu0 0.0
    %5231 = vmatpush1.xpose.msra.mxu0 0.0
    %5232 = vmatprep.subr.mxu0 0.0
    %5233 = vmatpush1.xpose.msra.mxu0 0.0
    %5234 = vmatprep.subr.mxu0 0.0
    %5235 = vmatpush1.xpose.msra.mxu0 0.0
    %5236 = vmatprep.subr.mxu0 0.0
    %5237 = vmatpush1.xpose.msra.mxu0 0.0
    %5238 = vmatprep.subr.mxu0 0.0
    %5239 = vmatpush1.xpose.msra.mxu0 0.0
    %5240 = vmatprep.subr.mxu0 0.0
    %5241 = vmatpush1.xpose.msra.mxu0 0.0
    %5242 = vmatprep.subr.mxu0 0.0
    %5243 = vmatpush1.xpose.msra.mxu0 0.0
    %5244 = vmatprep.subr.mxu0 0.0
    %5245 = vmatpush1.xpose.msra.mxu0 0.0
    %5246 = vmatprep.subr.mxu0 0.0
    %5247 = vmatpush1.xpose.msra.mxu0 0.0
    %5248 = vmatprep.subr.mxu0 0.0
    %5249 = vmatpush1.xpose.msra.mxu0 0.0
    %5250 = vmatprep.subr.mxu0 0.0
    %5251 = vmatpush1.xpose.msra.mxu0 0.0
    %5252 = vmatprep.subr.mxu0 0.0
    %5253 = vmatpush1.xpose.msra.mxu0 0.0
    %5254 = vmatprep.subr.mxu0 0.0
    %5255 = vmatpush1.xpose.msra.mxu0 0.0
    %5256 = vmatprep.subr.mxu0 0.0
    %5257 = vmatpush1.xpose.msra.mxu0 0.0
    %5258 = vmatprep.subr.mxu0 0.0
    %5259 = vmatpush1.xpose.msra.mxu0 0.0
    %5260 = vmatprep.subr.mxu0 0.0
    %5261 = vmatpush1.xpose.msra.mxu0 0.0
    %5262 = vmatprep.subr.mxu0 0.0
    %5263 = vmatpush1.xpose.msra.mxu0 0.0
    %5264 = vmatprep.subr.mxu0 0.0
    %5265 = vmatpush1.xpose.msra.mxu0 0.0
    %5266 = vmatprep.subr.mxu0 0.0
    %5267 = vmatpush1.xpose.msra.mxu0 0.0
    %5268 = vmatprep.subr.mxu0 0.0
    %5269 = vmatpush1.xpose.msra.mxu0 0.0
    %5270 = vmatprep.subr.mxu0 0.0
    %5271 = vmatpush1.xpose.msra.mxu0 0.0
    %5272 = vmatprep.subr.mxu0 0.0
    %5273 = vmatpush1.xpose.msra.mxu0 0.0
    %5274 = vmatprep.subr.mxu0 0.0
    %5275 = vmatpush1.xpose.msra.mxu0 0.0
    %5276 = vmatprep.subr.mxu0 0.0
    %5277 = vmatpush1.xpose.msra.mxu0 0.0
    %5278 = vmatprep.mubr.f32.mxu0 0.0
    %5279 = vmatmul.mubr.f32.gmra.mrb[0].mxu0 %v5210
    %v5280 = vpop.f32.mrb[0].mxu0
    %v5281 = vadd.f32 0.0, %v5280
    %v5282 = vpop.f32.mrb[0].mxu0
    %5283 = vdwg.mxu0
    %v5284 = vmul.f32 %v4749, 0.35355338
    %v5285 = vmul.f32 %v4825, 0.35355338
    %v5286 = vmul.f32 %v4901, 0.35355338
    %v5287 = vmul.f32 %v4977, 0.35355338
    %v5288 = vmul.f32 %v5053, 0.35355338
    %v5289 = vmul.f32 %v5129, 0.35355338
    %v5290 = vmul.f32 %v5205, 0.35355338
    %v5291 = vmul.f32 %v5281, 0.35355338
    %v5292 = vsel %vm4677, %v5284, -inf
    %5293 = vmax.xlane.f32.xlu0 %v5292
    %v5294 = vpop.xlane.xlu0 %5293
    %v5295 = vsel %vm4677, %v5285, -inf
    %5296 = vmax.xlane.f32.xlu0 %v5295
    %v5297 = vpop.xlane.xlu0 %5296
    %v5298 = vsel %vm4677, %v5286, -inf
    %5299 = vmax.xlane.f32.xlu0 %v5298
    %v5300 = vpop.xlane.xlu0 %5299
    %v5301 = vsel %vm4677, %v5287, -inf
    %5302 = vmax.xlane.f32.xlu0 %v5301
    %v5303 = vpop.xlane.xlu0 %5302
    %v5304 = vsel %vm4677, %v5288, -inf
    %5305 = vmax.xlane.f32.xlu0 %v5304
    %v5306 = vpop.xlane.xlu0 %5305
    %v5307 = vsel %vm4677, %v5289, -inf
    %5308 = vmax.xlane.f32.xlu0 %v5307
    %v5309 = vpop.xlane.xlu0 %5308
    %v5310 = vsel %vm4677, %v5290, -inf
    %5311 = vmax.xlane.f32.xlu0 %v5310
    %v5312 = vpop.xlane.xlu0 %5311
    %v5313 = vsel %vm4677, %v5291, -inf
    %5314 = vmax.xlane.f32.xlu0 %v5313
    %v5315 = vpop.xlane.xlu0 %5314
    %v5316 = vsub.f32 %v5284, %v5294
    %v5317 = vsub.f32 %v5285, %v5297
    %v5318 = vsub.f32 %v5286, %v5300
    %v5319 = vsub.f32 %v5287, %v5303
    %v5320 = vsub.f32 %v5288, %v5306
    %v5321 = vsub.f32 %v5289, %v5309
    %v5322 = vsub.f32 %v5290, %v5312
    %v5323 = vsub.f32 %v5291, %v5315
    %v5324 = vmul.f32 %v5316, 1.442695
    %v5325 = vpow.pop %v5324
    %v5326 = vmul.f32 %v5317, 1.442695
    %v5327 = vpow.pop %v5326
    %v5328 = vmul.f32 %v5318, 1.442695
    %v5329 = vpow.pop %v5328
    %v5330 = vmul.f32 %v5319, 1.442695
    %v5331 = vpow.pop %v5330
    %v5332 = vmul.f32 %v5320, 1.442695
    %v5333 = vpow.pop %v5332
    %v5334 = vmul.f32 %v5321, 1.442695
    %v5335 = vpow.pop %v5334
    %v5336 = vmul.f32 %v5322, 1.442695
    %v5337 = vpow.pop %v5336
    %v5338 = vmul.f32 %v5323, 1.442695
    %v5339 = vpow.pop %v5338
    %v5340 = vsel %vm4677, %v5325, 0.0
    %5341 = vadd.xlane.f32.xlu0 %v5340
    %v5342 = vpop.xlane.xlu0 %5341
    %v5343 = vsel %vm4677, %v5327, 0.0
    %5344 = vadd.xlane.f32.xlu0 %v5343
    %v5345 = vpop.xlane.xlu0 %5344
    %v5346 = vsel %vm4677, %v5329, 0.0
    %5347 = vadd.xlane.f32.xlu0 %v5346
    %v5348 = vpop.xlane.xlu0 %5347
    %v5349 = vsel %vm4677, %v5331, 0.0
    %5350 = vadd.xlane.f32.xlu0 %v5349
    %v5351 = vpop.xlane.xlu0 %5350
    %v5352 = vsel %vm4677, %v5333, 0.0
    %5353 = vadd.xlane.f32.xlu0 %v5352
    %v5354 = vpop.xlane.xlu0 %5353
    %v5355 = vsel %vm4677, %v5335, 0.0
    %5356 = vadd.xlane.f32.xlu0 %v5355
    %v5357 = vpop.xlane.xlu0 %5356
    %v5358 = vsel %vm4677, %v5337, 0.0
    %5359 = vadd.xlane.f32.xlu0 %v5358
    %v5360 = vpop.xlane.xlu0 %5359
    %v5361 = vsel %vm4677, %v5339, 0.0
    %5362 = vadd.xlane.f32.xlu0 %v5361
    %v5363 = vpop.xlane.xlu0 %5362
    %v5364 = vrcp.pop %v5342
    %v5365 = vrcp.pop %v5345
    %v5366 = vrcp.pop %v5348
    %v5367 = vrcp.pop %v5351
    %v5368 = vrcp.pop %v5354
    %v5369 = vrcp.pop %v5357
    %v5370 = vrcp.pop %v5360
    %v5371 = vrcp.pop %v5363
    %v5372 = vmul.f32 %v5325, %v5364
    %v5373 = vmul.f32 %v5327, %v5365
    %v5374 = vmul.f32 %v5329, %v5366
    %v5375 = vmul.f32 %v5331, %v5367
    %v5376 = vmul.f32 %v5333, %v5368
    %v5377 = vmul.f32 %v5335, %v5369
    %v5378 = vmul.f32 %v5337, %v5370
    %v5379 = vmul.f32 %v5339, %v5371
    %v5380 = vadd.f32 %v5372, %v5374
    %v5381 = vadd.f32 %v5373, %v5375
    %v5382 = vadd.f32 %v5380, %v5376
    %v5383 = vadd.f32 %v5381, %v5377
    %v5384 = vadd.f32 %v5382, %v5378
    %v5385 = vadd.f32 %v5383, %v5379
    %v5386 = vmul.f32 %v5384, 0.25
    %v5387 = vmul.f32 %v5385, 0.25
    %5388 = vst.msk [vmem:[#allocation47] sm:$0xff] %vm4677, %v5386
    %5389 = vst.msk [vmem:[#allocation47 + $0x8] sm:$0xff] %vm4677, %v5387
    %5390 = vrot.lane.b32.xlu0 %v4653, 64
    %v5391 = vpop.permute.xlu0 %5390
    %v5394 = vsel %vm4677, %v5372, 0
    %5396 = vmatprep.subr.mxu0 0.0
    %5397 = vmatpush1.msra.mxu0 %v5391
    %5398 = vmatprep.subr.mxu0 0.0
    %5399 = vmatpush1.msra.mxu0 0.0
    %5400 = vmatprep.subr.mxu0 0.0
    %5401 = vmatpush1.msra.mxu0 0.0
    %5402 = vmatprep.subr.mxu0 0.0
    %5403 = vmatpush1.msra.mxu0 0.0
    %5404 = vmatprep.subr.mxu0 0.0
    %5405 = vmatpush1.msra.mxu0 0.0
    %5406 = vmatprep.subr.mxu0 0.0
    %5407 = vmatpush1.msra.mxu0 0.0
    %5408 = vmatprep.subr.mxu0 0.0
    %5409 = vmatpush1.msra.mxu0 0.0
    %5410 = vmatprep.subr.mxu0 0.0
    %5411 = vmatpush1.msra.mxu0 0.0
    %5412 = vmatprep.subr.mxu0 0.0
    %5413 = vmatpush1.msra.mxu0 0.0
    %5414 = vmatprep.subr.mxu0 0.0
    %5415 = vmatpush1.msra.mxu0 0.0
    %5416 = vmatprep.subr.mxu0 0.0
    %5417 = vmatpush1.msra.mxu0 0.0
    %5418 = vmatprep.subr.mxu0 0.0
    %5419 = vmatpush1.msra.mxu0 0.0
    %5420 = vmatprep.subr.mxu0 0.0
    %5421 = vmatpush1.msra.mxu0 0.0
    %5422 = vmatprep.subr.mxu0 0.0
    %5423 = vmatpush1.msra.mxu0 0.0
    %5424 = vmatprep.subr.mxu0 0.0
    %5425 = vmatpush1.msra.mxu0 0.0
    %5426 = vmatprep.subr.mxu0 0.0
    %5427 = vmatpush1.msra.mxu0 0.0
    %5428 = vmatprep.subr.mxu0 0.0
    %5429 = vmatpush1.msra.mxu0 0.0
    %5430 = vmatprep.subr.mxu0 0.0
    %5431 = vmatpush1.msra.mxu0 0.0
    %5432 = vmatprep.subr.mxu0 0.0
    %5433 = vmatpush1.msra.mxu0 0.0
    %5434 = vmatprep.subr.mxu0 0.0
    %5435 = vmatpush1.msra.mxu0 0.0
    %5436 = vmatprep.subr.mxu0 0.0
    %5437 = vmatpush1.msra.mxu0 0.0
    %5438 = vmatprep.subr.mxu0 0.0
    %5439 = vmatpush1.msra.mxu0 0.0
    %5440 = vmatprep.subr.mxu0 0.0
    %5441 = vmatpush1.msra.mxu0 0.0
    %5442 = vmatprep.subr.mxu0 0.0
    %5443 = vmatpush1.msra.mxu0 0.0
    %5444 = vmatprep.subr.mxu0 0.0
    %5445 = vmatpush1.msra.mxu0 0.0
    %5446 = vmatprep.subr.mxu0 0.0
    %5447 = vmatpush1.msra.mxu0 0.0
    %5448 = vmatprep.subr.mxu0 0.0
    %5449 = vmatpush1.msra.mxu0 0.0
    %5450 = vmatprep.subr.mxu0 0.0
    %5451 = vmatpush1.msra.mxu0 0.0
    %5452 = vmatprep.subr.mxu0 0.0
    %5453 = vmatpush1.msra.mxu0 0.0
    %5454 = vmatprep.subr.mxu0 0.0
    %5455 = vmatpush1.msra.mxu0 0.0
    %5456 = vmatprep.subr.mxu0 0.0
    %5457 = vmatpush1.msra.mxu0 0.0
    %5458 = vmatprep.subr.mxu0 0.0
    %5459 = vmatpush1.msra.mxu0 0.0
    %5460 = vmatprep.mubr.f32.mxu0 0.0
    %5461 = vmatmul.mubr.f32.gmra.mrb[0].mxu0 %v5394
    %v5462 = vpop.f32.mrb[0].mxu0
    %v5463 = vadd.f32 0.0, %v5462
    %v5464 = vpop.f32.mrb[0].mxu0
    %5465 = vdwg.mxu0
    %5466 = vrot.lane.b32.xlu0 %v4658, 64
    %v5467 = vpop.permute.xlu0 %5466
    %v5470 = vsel %vm4677, %v5373, 0
    %5472 = vmatprep.subr.mxu0 0.0
    %5473 = vmatpush1.msra.mxu0 %v5467
    %5474 = vmatprep.subr.mxu0 0.0
    %5475 = vmatpush1.msra.mxu0 0.0
    %5476 = vmatprep.subr.mxu0 0.0
    %5477 = vmatpush1.msra.mxu0 0.0
    %5478 = vmatprep.subr.mxu0 0.0
    %5479 = vmatpush1.msra.mxu0 0.0
    %5480 = vmatprep.subr.mxu0 0.0
    %5481 = vmatpush1.msra.mxu0 0.0
    %5482 = vmatprep.subr.mxu0 0.0
    %5483 = vmatpush1.msra.mxu0 0.0
    %5484 = vmatprep.subr.mxu0 0.0
    %5485 = vmatpush1.msra.mxu0 0.0
    %5486 = vmatprep.subr.mxu0 0.0
    %5487 = vmatpush1.msra.mxu0 0.0
    %5488 = vmatprep.subr.mxu0 0.0
    %5489 = vmatpush1.msra.mxu0 0.0
    %5490 = vmatprep.subr.mxu0 0.0
    %5491 = vmatpush1.msra.mxu0 0.0
    %5492 = vmatprep.subr.mxu0 0.0
    %5493 = vmatpush1.msra.mxu0 0.0
    %5494 = vmatprep.subr.mxu0 0.0
    %5495 = vmatpush1.msra.mxu0 0.0
    %5496 = vmatprep.subr.mxu0 0.0
    %5497 = vmatpush1.msra.mxu0 0.0
    %5498 = vmatprep.subr.mxu0 0.0
    %5499 = vmatpush1.msra.mxu0 0.0
    %5500 = vmatprep.subr.mxu0 0.0
    %5501 = vmatpush1.msra.mxu0 0.0
    %5502 = vmatprep.subr.mxu0 0.0
    %5503 = vmatpush1.msra.mxu0 0.0
    %5504 = vmatprep.subr.mxu0 0.0
    %5505 = vmatpush1.msra.mxu0 0.0
    %5506 = vmatprep.subr.mxu0 0.0
    %5507 = vmatpush1.msra.mxu0 0.0
    %5508 = vmatprep.subr.mxu0 0.0
    %5509 = vmatpush1.msra.mxu0 0.0
    %5510 = vmatprep.subr.mxu0 0.0
    %5511 = vmatpush1.msra.mxu0 0.0
    %5512 = vmatprep.subr.mxu0 0.0
    %5513 = vmatpush1.msra.mxu0 0.0
    %5514 = vmatprep.subr.mxu0 0.0
    %5515 = vmatpush1.msra.mxu0 0.0
    %5516 = vmatprep.subr.mxu0 0.0
    %5517 = vmatpush1.msra.mxu0 0.0
    %5518 = vmatprep.subr.mxu0 0.0
    %5519 = vmatpush1.msra.mxu0 0.0
    %5520 = vmatprep.subr.mxu0 0.0
    %5521 = vmatpush1.msra.mxu0 0.0
    %5522 = vmatprep.subr.mxu0 0.0
    %5523 = vmatpush1.msra.mxu0 0.0
    %5524 = vmatprep.subr.mxu0 0.0
    %5525 = vmatpush1.msra.mxu0 0.0
    %5526 = vmatprep.subr.mxu0 0.0
    %5527 = vmatpush1.msra.mxu0 0.0
    %5528 = vmatprep.subr.mxu0 0.0
    %5529 = vmatpush1.msra.mxu0 0.0
    %5530 = vmatprep.subr.mxu0 0.0
    %5531 = vmatpush1.msra.mxu0 0.0
    %5532 = vmatprep.subr.mxu0 0.0
    %5533 = vmatpush1.msra.mxu0 0.0
    %5534 = vmatprep.subr.mxu0 0.0
    %5535 = vmatpush1.msra.mxu0 0.0
    %5536 = vmatprep.mubr.f32.mxu0 0.0
    %5537 = vmatmul.mubr.f32.gmra.mrb[0].mxu0 %v5470
    %v5538 = vpop.f32.mrb[0].mxu0
    %v5539 = vadd.f32 0.0, %v5538
    %v5540 = vpop.f32.mrb[0].mxu0
    %5541 = vdwg.mxu0
    %5542 = vrot.lane.b32.xlu0 %v4664, 64
    %v5543 = vpop.permute.xlu0 %5542
    %v5546 = vsel %vm4677, %v5374, 0
    %5548 = vmatprep.subr.mxu0 0.0
    %5549 = vmatpush1.msra.mxu0 %v5543
    %5550 = vmatprep.subr.mxu0 0.0
    %5551 = vmatpush1.msra.mxu0 0.0
    %5552 = vmatprep.subr.mxu0 0.0
    %5553 = vmatpush1.msra.mxu0 0.0
    %5554 = vmatprep.subr.mxu0 0.0
    %5555 = vmatpush1.msra.mxu0 0.0
    %5556 = vmatprep.subr.mxu0 0.0
    %5557 = vmatpush1.msra.mxu0 0.0
    %5558 = vmatprep.subr.mxu0 0.0
    %5559 = vmatpush1.msra.mxu0 0.0
    %5560 = vmatprep.subr.mxu0 0.0
    %5561 = vmatpush1.msra.mxu0 0.0
    %5562 = vmatprep.subr.mxu0 0.0
    %5563 = vmatpush1.msra.mxu0 0.0
    %5564 = vmatprep.subr.mxu0 0.0
    %5565 = vmatpush1.msra.mxu0 0.0
    %5566 = vmatprep.subr.mxu0 0.0
    %5567 = vmatpush1.msra.mxu0 0.0
    %5568 = vmatprep.subr.mxu0 0.0
    %5569 = vmatpush1.msra.mxu0 0.0
    %5570 = vmatprep.subr.mxu0 0.0
    %5571 = vmatpush1.msra.mxu0 0.0
    %5572 = vmatprep.subr.mxu0 0.0
    %5573 = vmatpush1.msra.mxu0 0.0
    %5574 = vmatprep.subr.mxu0 0.0
    %5575 = vmatpush1.msra.mxu0 0.0
    %5576 = vmatprep.subr.mxu0 0.0
    %5577 = vmatpush1.msra.mxu0 0.0
    %5578 = vmatprep.subr.mxu0 0.0
    %5579 = vmatpush1.msra.mxu0 0.0
    %5580 = vmatprep.subr.mxu0 0.0
    %5581 = vmatpush1.msra.mxu0 0.0
    %5582 = vmatprep.subr.mxu0 0.0
    %5583 = vmatpush1.msra.mxu0 0.0
    %5584 = vmatprep.subr.mxu0 0.0
    %5585 = vmatpush1.msra.mxu0 0.0
    %5586 = vmatprep.subr.mxu0 0.0
    %5587 = vmatpush1.msra.mxu0 0.0
    %5588 = vmatprep.subr.mxu0 0.0
    %5589 = vmatpush1.msra.mxu0 0.0
    %5590 = vmatprep.subr.mxu0 0.0
    %5591 = vmatpush1.msra.mxu0 0.0
    %5592 = vmatprep.subr.mxu0 0.0
    %5593 = vmatpush1.msra.mxu0 0.0
    %5594 = vmatprep.subr.mxu0 0.0
    %5595 = vmatpush1.msra.mxu0 0.0
    %5596 = vmatprep.subr.mxu0 0.0
    %5597 = vmatpush1.msra.mxu0 0.0
    %5598 = vmatprep.subr.mxu0 0.0
    %5599 = vmatpush1.msra.mxu0 0.0
    %5600 = vmatprep.subr.mxu0 0.0
    %5601 = vmatpush1.msra.mxu0 0.0
    %5602 = vmatprep.subr.mxu0 0.0
    %5603 = vmatpush1.msra.mxu0 0.0
    %5604 = vmatprep.subr.mxu0 0.0
    %5605 = vmatpush1.msra.mxu0 0.0
    %5606 = vmatprep.subr.mxu0 0.0
    %5607 = vmatpush1.msra.mxu0 0.0
    %5608 = vmatprep.subr.mxu0 0.0
    %5609 = vmatpush1.msra.mxu0 0.0
    %5610 = vmatprep.subr.mxu0 0.0
    %5611 = vmatpush1.msra.mxu0 0.0
    %5612 = vmatprep.mubr.f32.mxu0 0.0
    %5613 = vmatmul.mubr.f32.gmra.mrb[0].mxu0 %v5546
    %v5614 = vpop.f32.mrb[0].mxu0
    %v5615 = vadd.f32 0.0, %v5614
    %v5616 = vpop.f32.mrb[0].mxu0
    %5617 = vdwg.mxu0
    %5618 = vrot.lane.b32.xlu0 %v4666, 64
    %v5619 = vpop.permute.xlu0 %5618
    %v5622 = vsel %vm4677, %v5375, 0
    %5624 = vmatprep.subr.mxu0 0.0
    %5625 = vmatpush1.msra.mxu0 %v5619
    %5626 = vmatprep.subr.mxu0 0.0
    %5627 = vmatpush1.msra.mxu0 0.0
    %5628 = vmatprep.subr.mxu0 0.0
    %5629 = vmatpush1.msra.mxu0 0.0
    %5630 = vmatprep.subr.mxu0 0.0
    %5631 = vmatpush1.msra.mxu0 0.0
    %5632 = vmatprep.subr.mxu0 0.0
    %5633 = vmatpush1.msra.mxu0 0.0
    %5634 = vmatprep.subr.mxu0 0.0
    %5635 = vmatpush1.msra.mxu0 0.0
    %5636 = vmatprep.subr.mxu0 0.0
    %5637 = vmatpush1.msra.mxu0 0.0
    %5638 = vmatprep.subr.mxu0 0.0
    %5639 = vmatpush1.msra.mxu0 0.0
    %5640 = vmatprep.subr.mxu0 0.0
    %5641 = vmatpush1.msra.mxu0 0.0
    %5642 = vmatprep.subr.mxu0 0.0
    %5643 = vmatpush1.msra.mxu0 0.0
    %5644 = vmatprep.subr.mxu0 0.0
    %5645 = vmatpush1.msra.mxu0 0.0
    %5646 = vmatprep.subr.mxu0 0.0
    %5647 = vmatpush1.msra.mxu0 0.0
    %5648 = vmatprep.subr.mxu0 0.0
    %5649 = vmatpush1.msra.mxu0 0.0
    %5650 = vmatprep.subr.mxu0 0.0
    %5651 = vmatpush1.msra.mxu0 0.0
    %5652 = vmatprep.subr.mxu0 0.0
    %5653 = vmatpush1.msra.mxu0 0.0
    %5654 = vmatprep.subr.mxu0 0.0
    %5655 = vmatpush1.msra.mxu0 0.0
    %5656 = vmatprep.subr.mxu0 0.0
    %5657 = vmatpush1.msra.mxu0 0.0
    %5658 = vmatprep.subr.mxu0 0.0
    %5659 = vmatpush1.msra.mxu0 0.0
    %5660 = vmatprep.subr.mxu0 0.0
    %5661 = vmatpush1.msra.mxu0 0.0
    %5662 = vmatprep.subr.mxu0 0.0
    %5663 = vmatpush1.msra.mxu0 0.0
    %5664 = vmatprep.subr.mxu0 0.0
    %5665 = vmatpush1.msra.mxu0 0.0
    %5666 = vmatprep.subr.mxu0 0.0
    %5667 = vmatpush1.msra.mxu0 0.0
    %5668 = vmatprep.subr.mxu0 0.0
    %5669 = vmatpush1.msra.mxu0 0.0
    %5670 = vmatprep.subr.mxu0 0.0
    %5671 = vmatpush1.msra.mxu0 0.0
    %5672 = vmatprep.subr.mxu0 0.0
    %5673 = vmatpush1.msra.mxu0 0.0
    %5674 = vmatprep.subr.mxu0 0.0
    %5675 = vmatpush1.msra.mxu0 0.0
    %5676 = vmatprep.subr.mxu0 0.0
    %5677 = vmatpush1.msra.mxu0 0.0
    %5678 = vmatprep.subr.mxu0 0.0
    %5679 = vmatpush1.msra.mxu0 0.0
    %5680 = vmatprep.subr.mxu0 0.0
    %5681 = vmatpush1.msra.mxu0 0.0
    %5682 = vmatprep.subr.mxu0 0.0
    %5683 = vmatpush1.msra.mxu0 0.0
    %5684 = vmatprep.subr.mxu0 0.0
    %5685 = vmatpush1.msra.mxu0 0.0
    %5686 = vmatprep.subr.mxu0 0.0
    %5687 = vmatpush1.msra.mxu0 0.0
    %5688 = vmatprep.mubr.f32.mxu0 0.0
    %5689 = vmatmul.mubr.f32.gmra.mrb[0].mxu0 %v5622
    %v5690 = vpop.f32.mrb[0].mxu0
    %v5691 = vadd.f32 0.0, %v5690
    %v5692 = vpop.f32.mrb[0].mxu0
    %5693 = vdwg.mxu0
    %5694 = vrot.lane.b32.xlu0 %v4668, 64
    %v5695 = vpop.permute.xlu0 %5694
    %v5698 = vsel %vm4677, %v5376, 0
    %5700 = vmatprep.subr.mxu0 0.0
    %5701 = vmatpush1.msra.mxu0 %v5695
    %5702 = vmatprep.subr.mxu0 0.0
    %5703 = vmatpush1.msra.mxu0 0.0
    %5704 = vmatprep.subr.mxu0 0.0
    %5705 = vmatpush1.msra.mxu0 0.0
    %5706 = vmatprep.subr.mxu0 0.0
    %5707 = vmatpush1.msra.mxu0 0.0
    %5708 = vmatprep.subr.mxu0 0.0
    %5709 = vmatpush1.msra.mxu0 0.0
    %5710 = vmatprep.subr.mxu0 0.0
    %5711 = vmatpush1.msra.mxu0 0.0
    %5712 = vmatprep.subr.mxu0 0.0
    %5713 = vmatpush1.msra.mxu0 0.0
    %5714 = vmatprep.subr.mxu0 0.0
    %5715 = vmatpush1.msra.mxu0 0.0
    %5716 = vmatprep.subr.mxu0 0.0
    %5717 = vmatpush1.msra.mxu0 0.0
    %5718 = vmatprep.subr.mxu0 0.0
    %5719 = vmatpush1.msra.mxu0 0.0
    %5720 = vmatprep.subr.mxu0 0.0
    %5721 = vmatpush1.msra.mxu0 0.0
    %5722 = vmatprep.subr.mxu0 0.0
    %5723 = vmatpush1.msra.mxu0 0.0
    %5724 = vmatprep.subr.mxu0 0.0
    %5725 = vmatpush1.msra.mxu0 0.0
    %5726 = vmatprep.subr.mxu0 0.0
    %5727 = vmatpush1.msra.mxu0 0.0
    %5728 = vmatprep.subr.mxu0 0.0
    %5729 = vmatpush1.msra.mxu0 0.0
    %5730 = vmatprep.subr.mxu0 0.0
    %5731 = vmatpush1.msra.mxu0 0.0
    %5732 = vmatprep.subr.mxu0 0.0
    %5733 = vmatpush1.msra.mxu0 0.0
    %5734 = vmatprep.subr.mxu0 0.0
    %5735 = vmatpush1.msra.mxu0 0.0
    %5736 = vmatprep.subr.mxu0 0.0
    %5737 = vmatpush1.msra.mxu0 0.0
    %5738 = vmatprep.subr.mxu0 0.0
    %5739 = vmatpush1.msra.mxu0 0.0
    %5740 = vmatprep.subr.mxu0 0.0
    %5741 = vmatpush1.msra.mxu0 0.0
    %5742 = vmatprep.subr.mxu0 0.0
    %5743 = vmatpush1.msra.mxu0 0.0
    %5744 = vmatprep.subr.mxu0 0.0
    %5745 = vmatpush1.msra.mxu0 0.0
    %5746 = vmatprep.subr.mxu0 0.0
    %5747 = vmatpush1.msra.mxu0 0.0
    %5748 = vmatprep.subr.mxu0 0.0
    %5749 = vmatpush1.msra.mxu0 0.0
    %5750 = vmatprep.subr.mxu0 0.0
    %5751 = vmatpush1.msra.mxu0 0.0
    %5752 = vmatprep.subr.mxu0 0.0
    %5753 = vmatpush1.msra.mxu0 0.0
    %5754 = vmatprep.subr.mxu0 0.0
    %5755 = vmatpush1.msra.mxu0 0.0
    %5756 = vmatprep.subr.mxu0 0.0
    %5757 = vmatpush1.msra.mxu0 0.0
    %5758 = vmatprep.subr.mxu0 0.0
    %5759 = vmatpush1.msra.mxu0 0.0
    %5760 = vmatprep.subr.mxu0 0.0
    %5761 = vmatpush1.msra.mxu0 0.0
    %5762 = vmatprep.subr.mxu0 0.0
    %5763 = vmatpush1.msra.mxu0 0.0
    %5764 = vmatprep.mubr.f32.mxu0 0.0
    %5765 = vmatmul.mubr.f32.gmra.mrb[0].mxu0 %v5698
    %v5766 = vpop.f32.mrb[0].mxu0
    %v5767 = vadd.f32 0.0, %v5766
    %v5768 = vpop.f32.mrb[0].mxu0
    %5769 = vdwg.mxu0
    %5770 = vrot.lane.b32.xlu0 %v4670, 64
    %v5771 = vpop.permute.xlu0 %5770
    %v5774 = vsel %vm4677, %v5377, 0
    %5776 = vmatprep.subr.mxu0 0.0
    %5777 = vmatpush1.msra.mxu0 %v5771
    %5778 = vmatprep.subr.mxu0 0.0
    %5779 = vmatpush1.msra.mxu0 0.0
    %5780 = vmatprep.subr.mxu0 0.0
    %5781 = vmatpush1.msra.mxu0 0.0
    %5782 = vmatprep.subr.mxu0 0.0
    %5783 = vmatpush1.msra.mxu0 0.0
    %5784 = vmatprep.subr.mxu0 0.0
    %5785 = vmatpush1.msra.mxu0 0.0
    %5786 = vmatprep.subr.mxu0 0.0
    %5787 = vmatpush1.msra.mxu0 0.0
    %5788 = vmatprep.subr.mxu0 0.0
    %5789 = vmatpush1.msra.mxu0 0.0
    %5790 = vmatprep.subr.mxu0 0.0
    %5791 = vmatpush1.msra.mxu0 0.0
    %5792 = vmatprep.subr.mxu0 0.0
    %5793 = vmatpush1.msra.mxu0 0.0
    %5794 = vmatprep.subr.mxu0 0.0
    %5795 = vmatpush1.msra.mxu0 0.0
    %5796 = vmatprep.subr.mxu0 0.0
    %5797 = vmatpush1.msra.mxu0 0.0
    %5798 = vmatprep.subr.mxu0 0.0
    %5799 = vmatpush1.msra.mxu0 0.0
    %5800 = vmatprep.subr.mxu0 0.0
    %5801 = vmatpush1.msra.mxu0 0.0
    %5802 = vmatprep.subr.mxu0 0.0
    %5803 = vmatpush1.msra.mxu0 0.0
    %5804 = vmatprep.subr.mxu0 0.0
    %5805 = vmatpush1.msra.mxu0 0.0
    %5806 = vmatprep.subr.mxu0 0.0
    %5807 = vmatpush1.msra.mxu0 0.0
    %5808 = vmatprep.subr.mxu0 0.0
    %5809 = vmatpush1.msra.mxu0 0.0
    %5810 = vmatprep.subr.mxu0 0.0
    %5811 = vmatpush1.msra.mxu0 0.0
    %5812 = vmatprep.subr.mxu0 0.0
    %5813 = vmatpush1.msra.mxu0 0.0
    %5814 = vmatprep.subr.mxu0 0.0
    %5815 = vmatpush1.msra.mxu0 0.0
    %5816 = vmatprep.subr.mxu0 0.0
    %5817 = vmatpush1.msra.mxu0 0.0
    %5818 = vmatprep.subr.mxu0 0.0
    %5819 = vmatpush1.msra.mxu0 0.0
    %5820 = vmatprep.subr.mxu0 0.0
    %5821 = vmatpush1.msra.mxu0 0.0
    %5822 = vmatprep.subr.mxu0 0.0
    %5823 = vmatpush1.msra.mxu0 0.0
    %5824 = vmatprep.subr.mxu0 0.0
    %5825 = vmatpush1.msra.mxu0 0.0
    %5826 = vmatprep.subr.mxu0 0.0
    %5827 = vmatpush1.msra.mxu0 0.0
    %5828 = vmatprep.subr.mxu0 0.0
    %5829 = vmatpush1.msra.mxu0 0.0
    %5830 = vmatprep.subr.mxu0 0.0
    %5831 = vmatpush1.msra.mxu0 0.0
    %5832 = vmatprep.subr.mxu0 0.0
    %5833 = vmatpush1.msra.mxu0 0.0
    %5834 = vmatprep.subr.mxu0 0.0
    %5835 = vmatpush1.msra.mxu0 0.0
    %5836 = vmatprep.subr.mxu0 0.0
    %5837 = vmatpush1.msra.mxu0 0.0
    %5838 = vmatprep.subr.mxu0 0.0
    %5839 = vmatpush1.msra.mxu0 0.0
    %5840 = vmatprep.mubr.f32.mxu0 0.0
    %5841 = vmatmul.mubr.f32.gmra.mrb[0].mxu0 %v5774
    %v5842 = vpop.f32.mrb[0].mxu0
    %v5843 = vadd.f32 0.0, %v5842
    %v5844 = vpop.f32.mrb[0].mxu0
    %5845 = vdwg.mxu0
    %5846 = vrot.lane.b32.xlu0 %v4672, 64
    %v5847 = vpop.permute.xlu0 %5846
    %v5850 = vsel %vm4677, %v5378, 0
    %5852 = vmatprep.subr.mxu0 0.0
    %5853 = vmatpush1.msra.mxu0 %v5847
    %5854 = vmatprep.subr.mxu0 0.0
    %5855 = vmatpush1.msra.mxu0 0.0
    %5856 = vmatprep.subr.mxu0 0.0
    %5857 = vmatpush1.msra.mxu0 0.0
    %5858 = vmatprep.subr.mxu0 0.0
    %5859 = vmatpush1.msra.mxu0 0.0
    %5860 = vmatprep.subr.mxu0 0.0
    %5861 = vmatpush1.msra.mxu0 0.0
    %5862 = vmatprep.subr.mxu0 0.0
    %5863 = vmatpush1.msra.mxu0 0.0
    %5864 = vmatprep.subr.mxu0 0.0
    %5865 = vmatpush1.msra.mxu0 0.0
    %5866 = vmatprep.subr.mxu0 0.0
    %5867 = vmatpush1.msra.mxu0 0.0
    %5868 = vmatprep.subr.mxu0 0.0
    %5869 = vmatpush1.msra.mxu0 0.0
    %5870 = vmatprep.subr.mxu0 0.0
    %5871 = vmatpush1.msra.mxu0 0.0
    %5872 = vmatprep.subr.mxu0 0.0
    %5873 = vmatpush1.msra.mxu0 0.0
    %5874 = vmatprep.subr.mxu0 0.0
    %5875 = vmatpush1.msra.mxu0 0.0
    %5876 = vmatprep.subr.mxu0 0.0
    %5877 = vmatpush1.msra.mxu0 0.0
    %5878 = vmatprep.subr.mxu0 0.0
    %5879 = vmatpush1.msra.mxu0 0.0
    %5880 = vmatprep.subr.mxu0 0.0
    %5881 = vmatpush1.msra.mxu0 0.0
    %5882 = vmatprep.subr.mxu0 0.0
    %5883 = vmatpush1.msra.mxu0 0.0
    %5884 = vmatprep.subr.mxu0 0.0
    %5885 = vmatpush1.msra.mxu0 0.0
    %5886 = vmatprep.subr.mxu0 0.0
    %5887 = vmatpush1.msra.mxu0 0.0
    %5888 = vmatprep.subr.mxu0 0.0
    %5889 = vmatpush1.msra.mxu0 0.0
    %5890 = vmatprep.subr.mxu0 0.0
    %5891 = vmatpush1.msra.mxu0 0.0
    %5892 = vmatprep.subr.mxu0 0.0
    %5893 = vmatpush1.msra.mxu0 0.0
    %5894 = vmatprep.subr.mxu0 0.0
    %5895 = vmatpush1.msra.mxu0 0.0
    %5896 = vmatprep.subr.mxu0 0.0
    %5897 = vmatpush1.msra.mxu0 0.0
    %5898 = vmatprep.subr.mxu0 0.0
    %5899 = vmatpush1.msra.mxu0 0.0
    %5900 = vmatprep.subr.mxu0 0.0
    %5901 = vmatpush1.msra.mxu0 0.0
    %5902 = vmatprep.subr.mxu0 0.0
    %5903 = vmatpush1.msra.mxu0 0.0
    %5904 = vmatprep.subr.mxu0 0.0
    %5905 = vmatpush1.msra.mxu0 0.0
    %5906 = vmatprep.subr.mxu0 0.0
    %5907 = vmatpush1.msra.mxu0 0.0
    %5908 = vmatprep.subr.mxu0 0.0
    %5909 = vmatpush1.msra.mxu0 0.0
    %5910 = vmatprep.subr.mxu0 0.0
    %5911 = vmatpush1.msra.mxu0 0.0
    %5912 = vmatprep.subr.mxu0 0.0
    %5913 = vmatpush1.msra.mxu0 0.0
    %5914 = vmatprep.subr.mxu0 0.0
    %5915 = vmatpush1.msra.mxu0 0.0
    %5916 = vmatprep.mubr.f32.mxu0 0.0
    %5917 = vmatmul.mubr.f32.gmra.mrb[0].mxu0 %v5850
    %v5918 = vpop.f32.mrb[0].mxu0
    %v5919 = vadd.f32 0.0, %v5918
    %v5920 = vpop.f32.mrb[0].mxu0
    %5921 = vdwg.mxu0
    %5922 = vrot.lane.b32.xlu0 %v4674, 64
    %v5923 = vpop.permute.xlu0 %5922
    %v5926 = vsel %vm4677, %v5379, 0
    %5928 = vmatprep.subr.mxu0 0.0
    %5929 = vmatpush1.msra.mxu0 %v5923
    %5930 = vmatprep.subr.mxu0 0.0
    %5931 = vmatpush1.msra.mxu0 0.0
    %5932 = vmatprep.subr.mxu0 0.0
    %5933 = vmatpush1.msra.mxu0 0.0
    %5934 = vmatprep.subr.mxu0 0.0
    %5935 = vmatpush1.msra.mxu0 0.0
    %5936 = vmatprep.subr.mxu0 0.0
    %5937 = vmatpush1.msra.mxu0 0.0
    %5938 = vmatprep.subr.mxu0 0.0
    %5939 = vmatpush1.msra.mxu0 0.0
    %5940 = vmatprep.subr.mxu0 0.0
    %5941 = vmatpush1.msra.mxu0 0.0
    %5942 = vmatprep.subr.mxu0 0.0
    %5943 = vmatpush1.msra.mxu0 0.0
    %5944 = vmatprep.subr.mxu0 0.0
    %5945 = vmatpush1.msra.mxu0 0.0
    %5946 = vmatprep.subr.mxu0 0.0
    %5947 = vmatpush1.msra.mxu0 0.0
    %5948 = vmatprep.subr.mxu0 0.0
    %5949 = vmatpush1.msra.mxu0 0.0
    %5950 = vmatprep.subr.mxu0 0.0
    %5951 = vmatpush1.msra.mxu0 0.0
    %5952 = vmatprep.subr.mxu0 0.0
    %5953 = vmatpush1.msra.mxu0 0.0
    %5954 = vmatprep.subr.mxu0 0.0
    %5955 = vmatpush1.msra.mxu0 0.0
    %5956 = vmatprep.subr.mxu0 0.0
    %5957 = vmatpush1.msra.mxu0 0.0
    %5958 = vmatprep.subr.mxu0 0.0
    %5959 = vmatpush1.msra.mxu0 0.0
    %5960 = vmatprep.subr.mxu0 0.0
    %5961 = vmatpush1.msra.mxu0 0.0
    %5962 = vmatprep.subr.mxu0 0.0
    %5963 = vmatpush1.msra.mxu0 0.0
    %5964 = vmatprep.subr.mxu0 0.0
    %5965 = vmatpush1.msra.mxu0 0.0
    %5966 = vmatprep.subr.mxu0 0.0
    %5967 = vmatpush1.msra.mxu0 0.0
    %5968 = vmatprep.subr.mxu0 0.0
    %5969 = vmatpush1.msra.mxu0 0.0
    %5970 = vmatprep.subr.mxu0 0.0
    %5971 = vmatpush1.msra.mxu0 0.0
    %5972 = vmatprep.subr.mxu0 0.0
    %5973 = vmatpush1.msra.mxu0 0.0
    %5974 = vmatprep.subr.mxu0 0.0
    %5975 = vmatpush1.msra.mxu0 0.0
    %5976 = vmatprep.subr.mxu0 0.0
    %5977 = vmatpush1.msra.mxu0 0.0
    %5978 = vmatprep.subr.mxu0 0.0
    %5979 = vmatpush1.msra.mxu0 0.0
    %5980 = vmatprep.subr.mxu0 0.0
    %5981 = vmatpush1.msra.mxu0 0.0
    %5982 = vmatprep.subr.mxu0 0.0
    %5983 = vmatpush1.msra.mxu0 0.0
    %5984 = vmatprep.subr.mxu0 0.0
    %5985 = vmatpush1.msra.mxu0 0.0
    %5986 = vmatprep.subr.mxu0 0.0
    %5987 = vmatpush1.msra.mxu0 0.0
    %5988 = vmatprep.subr.mxu0 0.0
    %5989 = vmatpush1.msra.mxu0 0.0
    %5990 = vmatprep.subr.mxu0 0.0
    %5991 = vmatpush1.msra.mxu0 0.0
    %5992 = vmatprep.mubr.f32.mxu0 0.0
    %5993 = vmatmul.mubr.f32.gmra.mrb[0].mxu0 %v5926
    %v5994 = vpop.f32.mrb[0].mxu0
    %v5995 = vadd.f32 0.0, %v5994
    %v5996 = vpop.f32.mrb[0].mxu0
    %5997 = vdwg.mxu0
    %v5998 = vld [vmem:[#allocation43] sm:$0xff]
    %v5999 = vld [vmem:[#allocation43 + $0x8] sm:$0xff]
    %v6000 = vld [vmem:[#allocation43 + $0x10] sm:$0xff]
    %v6001 = vld [vmem:[#allocation43 + $0x18] sm:$0xff]
    %v6003 = vsel %vm4677, %v5615, 0
    %v6006 = vsel %vm4677, %v5691, 0
    %6008 = vmatprep.subr.mxu0 0.0
    %6009 = vmatpush1.msra.mxu0 %v5999
    %6010 = vmatprep.subr.mxu0 0.0
    %6011 = vmatpush1.msra.mxu0 0.0
    %6012 = vmatprep.subr.mxu0 0.0
    %6013 = vmatpush1.msra.mxu0 0.0
    %6014 = vmatprep.subr.mxu0 0.0
    %6015 = vmatpush1.msra.mxu0 0.0
    %6016 = vmatprep.subr.mxu0 0.0
    %6017 = vmatpush1.msra.mxu0 0.0
    %6018 = vmatprep.subr.mxu0 0.0
    %6019 = vmatpush1.msra.mxu0 0.0
    %6020 = vmatprep.subr.mxu0 0.0
    %6021 = vmatpush1.msra.mxu0 0.0
    %6022 = vmatprep.subr.mxu0 0.0
    %6023 = vmatpush1.msra.mxu0 0.0
    %6024 = vmatprep.subr.mxu0 0.0
    %6025 = vmatpush1.msra.mxu0 0.0
    %6026 = vmatprep.subr.mxu0 0.0
    %6027 = vmatpush1.msra.mxu0 0.0
    %6028 = vmatprep.subr.mxu0 0.0
    %6029 = vmatpush1.msra.mxu0 0.0
    %6030 = vmatprep.subr.mxu0 0.0
    %6031 = vmatpush1.msra.mxu0 0.0
    %6032 = vmatprep.subr.mxu0 0.0
    %6033 = vmatpush1.msra.mxu0 0.0
    %6034 = vmatprep.subr.mxu0 0.0
    %6035 = vmatpush1.msra.mxu0 0.0
    %6036 = vmatprep.subr.mxu0 0.0
    %6037 = vmatpush1.msra.mxu0 0.0
    %6038 = vmatprep.subr.mxu0 0.0
    %6039 = vmatpush1.msra.mxu0 0.0
    %6040 = vmatprep.subr.mxu0 0.0
    %6041 = vmatpush1.msra.mxu0 0.0
    %6042 = vmatprep.subr.mxu0 0.0
    %6043 = vmatpush1.msra.mxu0 0.0
    %6044 = vmatprep.subr.mxu0 0.0
    %6045 = vmatpush1.msra.mxu0 0.0
    %6046 = vmatprep.subr.mxu0 0.0
    %6047 = vmatpush1.msra.mxu0 0.0
    %6048 = vmatprep.subr.mxu0 0.0
    %6049 = vmatpush1.msra.mxu0 0.0
    %6050 = vmatprep.subr.mxu0 0.0
    %6051 = vmatpush1.msra.mxu0 0.0
    %6052 = vmatprep.subr.mxu0 0.0
    %6053 = vmatpush1.msra.mxu0 0.0
    %6054 = vmatprep.subr.mxu0 0.0
    %6055 = vmatpush1.msra.mxu0 0.0
    %6056 = vmatprep.subr.mxu0 0.0
    %6057 = vmatpush1.msra.mxu0 0.0
    %6058 = vmatprep.subr.mxu0 0.0
    %6059 = vmatpush1.msra.mxu0 0.0
    %6060 = vmatprep.subr.mxu0 0.0
    %6061 = vmatpush1.msra.mxu0 0.0
    %6062 = vmatprep.subr.mxu0 0.0
    %6063 = vmatpush1.msra.mxu0 0.0
    %6064 = vmatprep.subr.mxu0 0.0
    %6065 = vmatpush1.msra.mxu0 0.0
    %6066 = vmatprep.subr.mxu0 0.0
    %6067 = vmatpush1.msra.mxu0 0.0
    %6068 = vmatprep.subr.mxu0 0.0
    %6069 = vmatpush1.msra.mxu0 0.0
    %6070 = vmatprep.subr.mxu0 0.0
    %6071 = vmatpush1.msra.mxu0 0.0
    %6072 = vmatprep.mubr.f32.mxu0 0.0
    %6073 = vmatmul.mubr.f32.gmra.mrb[0].mxu0 %v6003
    %v6074 = vpop.f32.mrb[0].mxu0
    %v6075 = vadd.f32 0.0, %v6074
    %v6076 = vpop.f32.mrb[0].mxu0
    %6077 = vmatprep.mubr.f32.mxu0 0.0
    %6078 = vmatmul.mubr.f32.gmra.mrb[0].mxu0 %v6006
    %v6079 = vpop.f32.mrb[0].mxu0
    %v6080 = vadd.f32 0.0, %v6079
    %v6081 = vpop.f32.mrb[0].mxu0
    %6082 = vdwg.mxu0
    %v6084 = vsel %vm4677, %v5463, 0
    %v6087 = vsel %vm4677, %v5539, 0
    %6089 = vmatprep.subr.mxu0 0.0
    %6090 = vmatpush1.msra.mxu0 %v5998
    %6091 = vmatprep.subr.mxu0 0.0
    %6092 = vmatpush1.msra.mxu0 0.0
    %6093 = vmatprep.subr.mxu0 0.0
    %6094 = vmatpush1.msra.mxu0 0.0
    %6095 = vmatprep.subr.mxu0 0.0
    %6096 = vmatpush1.msra.mxu0 0.0
    %6097 = vmatprep.subr.mxu0 0.0
    %6098 = vmatpush1.msra.mxu0 0.0
    %6099 = vmatprep.subr.mxu0 0.0
    %6100 = vmatpush1.msra.mxu0 0.0
    %6101 = vmatprep.subr.mxu0 0.0
    %6102 = vmatpush1.msra.mxu0 0.0
    %6103 = vmatprep.subr.mxu0 0.0
    %6104 = vmatpush1.msra.mxu0 0.0
    %6105 = vmatprep.subr.mxu0 0.0
    %6106 = vmatpush1.msra.mxu0 0.0
    %6107 = vmatprep.subr.mxu0 0.0
    %6108 = vmatpush1.msra.mxu0 0.0
    %6109 = vmatprep.subr.mxu0 0.0
    %6110 = vmatpush1.msra.mxu0 0.0
    %6111 = vmatprep.subr.mxu0 0.0
    %6112 = vmatpush1.msra.mxu0 0.0
    %6113 = vmatprep.subr.mxu0 0.0
    %6114 = vmatpush1.msra.mxu0 0.0
    %6115 = vmatprep.subr.mxu0 0.0
    %6116 = vmatpush1.msra.mxu0 0.0
    %6117 = vmatprep.subr.mxu0 0.0
    %6118 = vmatpush1.msra.mxu0 0.0
    %6119 = vmatprep.subr.mxu0 0.0
    %6120 = vmatpush1.msra.mxu0 0.0
    %6121 = vmatprep.subr.mxu0 0.0
    %6122 = vmatpush1.msra.mxu0 0.0
    %6123 = vmatprep.subr.mxu0 0.0
    %6124 = vmatpush1.msra.mxu0 0.0
    %6125 = vmatprep.subr.mxu0 0.0
    %6126 = vmatpush1.msra.mxu0 0.0
    %6127 = vmatprep.subr.mxu0 0.0
    %6128 = vmatpush1.msra.mxu0 0.0
    %6129 = vmatprep.subr.mxu0 0.0
    %6130 = vmatpush1.msra.mxu0 0.0
    %6131 = vmatprep.subr.mxu0 0.0
    %6132 = vmatpush1.msra.mxu0 0.0
    %6133 = vmatprep.subr.mxu0 0.0
    %6134 = vmatpush1.msra.mxu0 0.0
    %6135 = vmatprep.subr.mxu0 0.0
    %6136 = vmatpush1.msra.mxu0 0.0
    %6137 = vmatprep.subr.mxu0 0.0
    %6138 = vmatpush1.msra.mxu0 0.0
    %6139 = vmatprep.subr.mxu0 0.0
    %6140 = vmatpush1.msra.mxu0 0.0
    %6141 = vmatprep.subr.mxu0 0.0
    %6142 = vmatpush1.msra.mxu0 0.0
    %6143 = vmatprep.subr.mxu0 0.0
    %6144 = vmatpush1.msra.mxu0 0.0
    %6145 = vmatprep.subr.mxu0 0.0
    %6146 = vmatpush1.msra.mxu0 0.0
    %6147 = vmatprep.subr.mxu0 0.0
    %6148 = vmatpush1.msra.mxu0 0.0
    %6149 = vmatprep.subr.mxu0 0.0
    %6150 = vmatpush1.msra.mxu0 0.0
    %6151 = vmatprep.subr.mxu0 0.0
    %6152 = vmatpush1.msra.mxu0 0.0
    %6153 = vmatprep.mubr.f32.mxu0 0.0
    %6154 = vmatmul.mubr.f32.gmra.mrb[0].mxu0 %v6084
    %v6155 = vpop.f32.mrb[0].mxu0
    %v6156 = vadd.f32 %v6075, %v6155
    %v6157 = vpop.f32.mrb[0].mxu0
    %6158 = vmatprep.mubr.f32.mxu0 0.0
    %6159 = vmatmul.mubr.f32.gmra.mrb[0].mxu0 %v6087
    %v6160 = vpop.f32.mrb[0].mxu0
    %v6161 = vadd.f32 %v6080, %v6160
    %v6162 = vpop.f32.mrb[0].mxu0
    %6163 = vdwg.mxu0
    %v6165 = vsel %vm4677, %v5767, 0
    %v6168 = vsel %vm4677, %v5843, 0
    %6170 = vmatprep.subr.mxu0 0.0
    %6171 = vmatpush1.msra.mxu0 %v6000
    %6172 = vmatprep.subr.mxu0 0.0
    %6173 = vmatpush1.msra.mxu0 0.0
    %6174 = vmatprep.subr.mxu0 0.0
    %6175 = vmatpush1.msra.mxu0 0.0
    %6176 = vmatprep.subr.mxu0 0.0
    %6177 = vmatpush1.msra.mxu0 0.0
    %6178 = vmatprep.subr.mxu0 0.0
    %6179 = vmatpush1.msra.mxu0 0.0
    %6180 = vmatprep.subr.mxu0 0.0
    %6181 = vmatpush1.msra.mxu0 0.0
    %6182 = vmatprep.subr.mxu0 0.0
    %6183 = vmatpush1.msra.mxu0 0.0
    %6184 = vmatprep.subr.mxu0 0.0
    %6185 = vmatpush1.msra.mxu0 0.0
    %6186 = vmatprep.subr.mxu0 0.0
    %6187 = vmatpush1.msra.mxu0 0.0
    %6188 = vmatprep.subr.mxu0 0.0
    %6189 = vmatpush1.msra.mxu0 0.0
    %6190 = vmatprep.subr.mxu0 0.0
    %6191 = vmatpush1.msra.mxu0 0.0
    %6192 = vmatprep.subr.mxu0 0.0
    %6193 = vmatpush1.msra.mxu0 0.0
    %6194 = vmatprep.subr.mxu0 0.0
    %6195 = vmatpush1.msra.mxu0 0.0
    %6196 = vmatprep.subr.mxu0 0.0
    %6197 = vmatpush1.msra.mxu0 0.0
    %6198 = vmatprep.subr.mxu0 0.0
    %6199 = vmatpush1.msra.mxu0 0.0
    %6200 = vmatprep.subr.mxu0 0.0
    %6201 = vmatpush1.msra.mxu0 0.0
    %6202 = vmatprep.subr.mxu0 0.0
    %6203 = vmatpush1.msra.mxu0 0.0
    %6204 = vmatprep.subr.mxu0 0.0
    %6205 = vmatpush1.msra.mxu0 0.0
    %6206 = vmatprep.subr.mxu0 0.0
    %6207 = vmatpush1.msra.mxu0 0.0
    %6208 = vmatprep.subr.mxu0 0.0
    %6209 = vmatpush1.msra.mxu0 0.0
    %6210 = vmatprep.subr.mxu0 0.0
    %6211 = vmatpush1.msra.mxu0 0.0
    %6212 = vmatprep.subr.mxu0 0.0
    %6213 = vmatpush1.msra.mxu0 0.0
    %6214 = vmatprep.subr.mxu0 0.0
    %6215 = vmatpush1.msra.mxu0 0.0
    %6216 = vmatprep.subr.mxu0 0.0
    %6217 = vmatpush1.msra.mxu0 0.0
    %6218 = vmatprep.subr.mxu0 0.0
    %6219 = vmatpush1.msra.mxu0 0.0
    %6220 = vmatprep.subr.mxu0 0.0
    %6221 = vmatpush1.msra.mxu0 0.0
    %6222 = vmatprep.subr.mxu0 0.0
    %6223 = vmatpush1.msra.mxu0 0.0
    %6224 = vmatprep.subr.mxu0 0.0
    %6225 = vmatpush1.msra.mxu0 0.0
    %6226 = vmatprep.subr.mxu0 0.0
    %6227 = vmatpush1.msra.mxu0 0.0
    %6228 = vmatprep.subr.mxu0 0.0
    %6229 = vmatpush1.msra.mxu0 0.0
    %6230 = vmatprep.subr.mxu0 0.0
    %6231 = vmatpush1.msra.mxu0 0.0
    %6232 = vmatprep.subr.mxu0 0.0
    %6233 = vmatpush1.msra.mxu0 0.0
    %6234 = vmatprep.mubr.f32.mxu0 0.0
    %6235 = vmatmul.mubr.f32.gmra.mrb[0].mxu0 %v6165
    %v6236 = vpop.f32.mrb[0].mxu0
    %v6237 = vadd.f32 0.0, %v6236
    %v6238 = vpop.f32.mrb[0].mxu0
    %6239 = vmatprep.mubr.f32.mxu0 0.0
    %6240 = vmatmul.mubr.f32.gmra.mrb[0].mxu0 %v6168
    %v6241 = vpop.f32.mrb[0].mxu0
    %v6242 = vadd.f32 0.0, %v6241
    %v6243 = vpop.f32.mrb[0].mxu0
    %6244 = vdwg.mxu0
    %v6245 = vadd.f32 %v6156, %v6237
    %v6246 = vadd.f32 %v6161, %v6242
    %v6248 = vsel %vm4677, %v5919, 0
    %v6251 = vsel %vm4677, %v5995, 0
    %6253 = vmatprep.subr.mxu0 0.0
    %6254 = vmatpush1.msra.mxu0 %v6001
    %6255 = vmatprep.subr.mxu0 0.0
    %6256 = vmatpush1.msra.mxu0 0.0
    %6257 = vmatprep.subr.mxu0 0.0
    %6258 = vmatpush1.msra.mxu0 0.0
    %6259 = vmatprep.subr.mxu0 0.0
    %6260 = vmatpush1.msra.mxu0 0.0
    %6261 = vmatprep.subr.mxu0 0.0
    %6262 = vmatpush1.msra.mxu0 0.0
    %6263 = vmatprep.subr.mxu0 0.0
    %6264 = vmatpush1.msra.mxu0 0.0
    %6265 = vmatprep.subr.mxu0 0.0
    %6266 = vmatpush1.msra.mxu0 0.0
    %6267 = vmatprep.subr.mxu0 0.0
    %6268 = vmatpush1.msra.mxu0 0.0
    %6269 = vmatprep.subr.mxu0 0.0
    %6270 = vmatpush1.msra.mxu0 0.0
    %6271 = vmatprep.subr.mxu0 0.0
    %6272 = vmatpush1.msra.mxu0 0.0
    %6273 = vmatprep.subr.mxu0 0.0
    %6274 = vmatpush1.msra.mxu0 0.0
    %6275 = vmatprep.subr.mxu0 0.0
    %6276 = vmatpush1.msra.mxu0 0.0
    %6277 = vmatprep.subr.mxu0 0.0
    %6278 = vmatpush1.msra.mxu0 0.0
    %6279 = vmatprep.subr.mxu0 0.0
    %6280 = vmatpush1.msra.mxu0 0.0
    %6281 = vmatprep.subr.mxu0 0.0
    %6282 = vmatpush1.msra.mxu0 0.0
    %6283 = vmatprep.subr.mxu0 0.0
    %6284 = vmatpush1.msra.mxu0 0.0
    %6285 = vmatprep.subr.mxu0 0.0
    %6286 = vmatpush1.msra.mxu0 0.0
    %6287 = vmatprep.subr.mxu0 0.0
    %6288 = vmatpush1.msra.mxu0 0.0
    %6289 = vmatprep.subr.mxu0 0.0
    %6290 = vmatpush1.msra.mxu0 0.0
    %6291 = vmatprep.subr.mxu0 0.0
    %6292 = vmatpush1.msra.mxu0 0.0
    %6293 = vmatprep.subr.mxu0 0.0
    %6294 = vmatpush1.msra.mxu0 0.0
    %6295 = vmatprep.subr.mxu0 0.0
    %6296 = vmatpush1.msra.mxu0 0.0
    %6297 = vmatprep.subr.mxu0 0.0
    %6298 = vmatpush1.msra.mxu0 0.0
    %6299 = vmatprep.subr.mxu0 0.0
    %6300 = vmatpush1.msra.mxu0 0.0
    %6301 = vmatprep.subr.mxu0 0.0
    %6302 = vmatpush1.msra.mxu0 0.0
    %6303 = vmatprep.subr.mxu0 0.0
    %6304 = vmatpush1.msra.mxu0 0.0
    %6305 = vmatprep.subr.mxu0 0.0
    %6306 = vmatpush1.msra.mxu0 0.0
    %6307 = vmatprep.subr.mxu0 0.0
    %6308 = vmatpush1.msra.mxu0 0.0
    %6309 = vmatprep.subr.mxu0 0.0
    %6310 = vmatpush1.msra.mxu0 0.0
    %6311 = vmatprep.subr.mxu0 0.0
    %6312 = vmatpush1.msra.mxu0 0.0
    %6313 = vmatprep.subr.mxu0 0.0
    %6314 = vmatpush1.msra.mxu0 0.0
    %6315 = vmatprep.subr.mxu0 0.0
    %6316 = vmatpush1.msra.mxu0 0.0
    %6317 = vmatprep.mubr.f32.mxu0 0.0
    %6318 = vmatmul.mubr.f32.gmra.mrb[0].mxu0 %v6248
    %v6319 = vpop.f32.mrb[0].mxu0
    %v6320 = vadd.f32 0.0, %v6319
    %v6321 = vpop.f32.mrb[0].mxu0
    %6322 = vmatprep.mubr.f32.mxu0 0.0
    %6323 = vmatmul.mubr.f32.gmra.mrb[0].mxu0 %v6251
    %v6324 = vpop.f32.mrb[0].mxu0
    %v6325 = vadd.f32 0.0, %v6324
    %v6326 = vpop.f32.mrb[0].mxu0
    %6327 = vdwg.mxu0
    %v6328 = vadd.f32 %v6245, %v6320
    %v6329 = vadd.f32 %v6246, %v6325
    %v6330 = vld [vmem:[%s75] sm:$0x1]
    %v6332 = vlaneseq
    %v6333 = vshrl.u32 %v6332, 7
    %v6334 = vsub.s32 0, %v6333
    %v6335 = vrot.slane %v6330, %v6334
    %v6337 = vadd.f32 %v6328, %v6335
    %v6338 = vadd.f32 %v6329, %v6335
    %v6339 = vld [vmem:[%s77] sm:$0xff]
    %v6340 = vld [vmem:[%s77 + $0x8] sm:$0xff]
    %v6341 = vld [vmem:[%s77 + $0x10] sm:$0xff]
    %v6342 = vld [vmem:[%s77 + $0x18] sm:$0xff]
    %v6343 = vld [vmem:[#allocation44] sm:$0x1]
    %v6345 = vlaneseq
    %v6346 = vshrl.u32 %v6345, 7
    %v6347 = vsub.s32 0, %v6346
    %v6348 = vrot.slane %v6343, %v6347
    %v6351 = vsel %vm629, %v6337, 0
    %v6354 = vsel %vm629, %v6338, 0
    %6356 = vmatprep.subr.mxu0 0.0
    %6357 = vmatpush1.msra.mxu0 %v6339
    %6358 = vmatprep.subr.mxu0 0.0
    %6359 = vmatpush1.msra.mxu0 %v6340
    %6360 = vmatprep.subr.mxu0 0.0
    %6361 = vmatpush1.msra.mxu0 %v6341
    %6362 = vmatprep.subr.mxu0 0.0
    %6363 = vmatpush1.msra.mxu0 %v6342
    %6364 = vmatprep.subr.mxu0 0.0
    %6365 = vmatpush1.msra.mxu0 0.0
    %6366 = vmatprep.subr.mxu0 0.0
    %6367 = vmatpush1.msra.mxu0 0.0
    %6368 = vmatprep.subr.mxu0 0.0
    %6369 = vmatpush1.msra.mxu0 0.0
    %6370 = vmatprep.subr.mxu0 0.0
    %6371 = vmatpush1.msra.mxu0 0.0
    %6372 = vmatprep.subr.mxu0 0.0
    %6373 = vmatpush1.msra.mxu0 0.0
    %6374 = vmatprep.subr.mxu0 0.0
    %6375 = vmatpush1.msra.mxu0 0.0
    %6376 = vmatprep.subr.mxu0 0.0
    %6377 = vmatpush1.msra.mxu0 0.0
    %6378 = vmatprep.subr.mxu0 0.0
    %6379 = vmatpush1.msra.mxu0 0.0
    %6380 = vmatprep.subr.mxu0 0.0
    %6381 = vmatpush1.msra.mxu0 0.0
    %6382 = vmatprep.subr.mxu0 0.0
    %6383 = vmatpush1.msra.mxu0 0.0
    %6384 = vmatprep.subr.mxu0 0.0
    %6385 = vmatpush1.msra.mxu0 0.0
    %6386 = vmatprep.subr.mxu0 0.0
    %6387 = vmatpush1.msra.mxu0 0.0
    %6388 = vmatprep.subr.mxu0 0.0
    %6389 = vmatpush1.msra.mxu0 0.0
    %6390 = vmatprep.subr.mxu0 0.0
    %6391 = vmatpush1.msra.mxu0 0.0
    %6392 = vmatprep.subr.mxu0 0.0
    %6393 = vmatpush1.msra.mxu0 0.0
    %6394 = vmatprep.subr.mxu0 0.0
    %6395 = vmatpush1.msra.mxu0 0.0
    %6396 = vmatprep.subr.mxu0 0.0
    %6397 = vmatpush1.msra.mxu0 0.0
    %6398 = vmatprep.subr.mxu0 0.0
    %6399 = vmatpush1.msra.mxu0 0.0
    %6400 = vmatprep.subr.mxu0 0.0
    %6401 = vmatpush1.msra.mxu0 0.0
    %6402 = vmatprep.subr.mxu0 0.0
    %6403 = vmatpush1.msra.mxu0 0.0
    %6404 = vmatprep.subr.mxu0 0.0
    %6405 = vmatpush1.msra.mxu0 0.0
    %6406 = vmatprep.subr.mxu0 0.0
    %6407 = vmatpush1.msra.mxu0 0.0
    %6408 = vmatprep.subr.mxu0 0.0
    %6409 = vmatpush1.msra.mxu0 0.0
    %6410 = vmatprep.subr.mxu0 0.0
    %6411 = vmatpush1.msra.mxu0 0.0
    %6412 = vmatprep.subr.mxu0 0.0
    %6413 = vmatpush1.msra.mxu0 0.0
    %6414 = vmatprep.subr.mxu0 0.0
    %6415 = vmatpush1.msra.mxu0 0.0
    %6416 = vmatprep.subr.mxu0 0.0
    %6417 = vmatpush1.msra.mxu0 0.0
    %6418 = vmatprep.subr.mxu0 0.0
    %6419 = vmatpush1.msra.mxu0 0.0
    %6420 = vmatprep.mubr.f32.mxu0 0.0
    %6421 = vmatmul.mubr.f32.gmra.mrb[0].mxu0 %v6351
    %v6422 = vpop.f32.mrb[0].mxu0
    %v6423 = vadd.f32 %v6348, %v6422
    %v6424 = vpop.f32.mrb[0].mxu0
    %6425 = vmatprep.mubr.f32.mxu0 0.0
    %6426 = vmatmul.mubr.f32.gmra.mrb[0].mxu0 %v6354
    %v6427 = vpop.f32.mrb[0].mxu0
    %v6428 = vadd.f32 %v6348, %v6427
    %v6429 = vpop.f32.mrb[0].mxu0
    %6430 = vdwg.mxu0
    %6431 = vst.msk [vmem:[%s87] sm:$0xff] %vm1204, %v6423
    %6432 = vst.msk [vmem:[%s87 + $0x8] sm:$0xff] %vm1204, %v6428
    // Predicated region
    $region274: #{tft_encoder_forward.1} parent=1 // pred_check
      _
    $region275: #{tft_encoder_forward.1} parent=1 // pred_check_branch
      %6434 = sbr.rel (0) target = $region277
    $region276: #{tft_encoder_forward.1} parent=1 // pred_region
      %s6436 = ssub.s32 256, 256
      %6437 = vsyncadd [#allocation4], %s6436
      %s6438 = sshll.u32 [#allocation46], 4
      %s6439 = int_to_ptr.vmem [resolvable:$true] %s6438
      %6444 = dma.vmem_to_hbm [thread:$0]  %s6439, 256, %s81, [#allocation4], 128, 128, 8
    $region277: #{tft_encoder_forward.1} parent=1 // pred_fallthru
      _
    // Predicated region
    $region278: #{tft_encoder_forward.1} parent=1 // pred_check
      _
    $region279: #{tft_encoder_forward.1} parent=1 // pred_check_branch
      %6446 = sbr.rel (0) target = $region281
    $region280: #{tft_encoder_forward.1} parent=1 // pred_region
      %s6448 = ssub.s32 256, 256
      %6449 = vsyncadd [#allocation48], %s6448
      %s6450 = sshll.u32 [#allocation47], 4
      %s6451 = int_to_ptr.vmem [resolvable:$true] %s6450
      %6456 = dma.vmem_to_hbm [thread:$0]  %s6451, 256, %s83, [#allocation48], 128, 128, 8
    $region281: #{tft_encoder_forward.1} parent=1 // pred_fallthru
      _
    // Predicated region
    $region282: #{tft_encoder_forward.1} parent=1 // pred_check
      _
    $region283: #{tft_encoder_forward.1} parent=1 // pred_check_branch
      %6458 = sbr.rel (0) target = $region285
    $region284: #{tft_encoder_forward.1} parent=1 // pred_region
      %s6460 = ssub.s32 32, 32
      %6461 = vsyncadd [#allocation48], %s6460
      %s6463 = sshll.u32 [#allocation49], 4
      %s6464 = int_to_ptr.vmem [resolvable:$true] %s6463
      %6466 = dma.vmem_to_hbm [thread:$0]  %s6464, 32, %s85, [#allocation48]
    $region285: #{tft_encoder_forward.1} parent=1 // pred_fallthru
      _
    // Predicated region
    $region286: #{tft_encoder_forward.1} parent=1 // pred_check
      _
    $region287: #{tft_encoder_forward.1} parent=1 // pred_check_branch
      %6468 = sbr.rel (0) target = $region289
    $region288: #{tft_encoder_forward.1} parent=1 // pred_region
      _
    $region289: #{tft_encoder_forward.1} parent=1 // pred_fallthru
      _
    // Predicated region
    $region290: #{tft_encoder_forward.1} parent=1 // pred_check
      _
    $region291: #{tft_encoder_forward.1} parent=1 // pred_check_branch
      %6470 = sbr.rel (0) target = $region293
    $region292: #{tft_encoder_forward.1} parent=1 // pred_region
      %6471 = dma.done [#allocation4], 256
    $region293: #{tft_encoder_forward.1} parent=1 // pred_fallthru
      _
    // Predicated region
    $region294: #{tft_encoder_forward.1} parent=1 // pred_check
      _
    $region295: #{tft_encoder_forward.1} parent=1 // pred_check_branch
      %6473 = sbr.rel (0) target = $region297
    $region296: #{tft_encoder_forward.1} parent=1 // pred_region
      %6474 = dma.done [#allocation48], 256
    $region297: #{tft_encoder_forward.1} parent=1 // pred_fallthru
      _
    // Predicated region
    $region298: #{tft_encoder_forward.1} parent=1 // pred_check
      _
    $region299: #{tft_encoder_forward.1} parent=1 // pred_check_branch
      %6476 = sbr.rel (0) target = $region301
    $region300: #{tft_encoder_forward.1} parent=1 // pred_region
      %6477 = dma.done [#allocation48], 32
    $region301: #{tft_encoder_forward.1} parent=1 // pred_fallthru
      _
    // Predicated region
    $region302: #{tft_encoder_forward.1} parent=1 // pred_check
      _
    $region303: #{tft_encoder_forward.1} parent=1 // pred_check_branch
      %6479 = sbr.rel (0) target = $region305
    $region304: #{tft_encoder_forward.1} parent=1 // pred_region
      _
    $region305: #{tft_encoder_forward.1} parent=1 // pred_fallthru
      _
    %6480 = vsyncpa [#allocation3], 1
    %6481 = vsyncpa [#allocation6], 1
    %6482 = vsyncpa [#allocation9], 1
    %6483 = vsyncpa [#allocation12], 1
    %6484 = vsyncpa [#allocation15], 1
    %6485 = vsyncpa [#allocation18], 1
    %6486 = vsyncpa [#allocation21], 1
    %6487 = vsyncpa [#allocation24], 1
    %6488 = vsyncpa [#allocation27], 1
    %6489 = vsyncpa [#allocation30], 1
    %6490 = vsyncpa [#allocation33], 1
    %6491 = vsyncpa [#allocation36], 1
    %6492 = vsyncpa [#allocation39], 1
    %6493 = vsyncpa [#allocation42], 1
    %6494 = vsyncpa [#allocation45], 1
    %6495 = vsyncpa [#allocation4], 1
    %6496 = vsyncpa [#allocation48], 1

</llo_original>
